<compile_context>
chip_gen: v6e
topology: v6e:2x2x1
jax: 0.10.0
libtpu: 0.0.40
codegen_flags: <defaults>
</compile_context>

<pallas_src>
import functools

import jax
import jax.numpy as jnp
from jax.experimental import pallas as pl
from jax.experimental.pallas import tpu as pltpu

H = W = 28           # spatial size implied by lin1 (ch*2*14*14 features)
F = H * W            # 784 flattened pixels per sample (lane axis)
BB = 8               # samples per grid step (exactly one sublane tile)
M = 32               # per-sample zero margin on the lane axis (>= W + 1)
S = F + 2 * M        # extended per-sample lane width
TAIL = 32            # zero tail used by the 2x2-pool shifted views (>= W + 1)


# ----------------------------- wrapper + kernel -----------------------------

@functools.partial(jax.jit, static_argnums=(2, 3))
def my_cnn_forward(x_nchw, params, ch, out_sz):
    """x_nchw: (N, 1, 28, 28) float32 -> (N, out_sz) float32 (MyCnn.forward)."""
    N = x_nchw.shape[0]
    ch2 = 2 * ch
    out_pad = ((out_sz + 127) // 128) * 128
    n_blk = (N + BB - 1) // BB
    n_pad = n_blk * BB

    # ---- one-time re-layout of the PyTorch-convention parameters -----------
    def conv_block_diag(w):
        # (Cout, Cin, 3, 3) -> block-diagonal-over-samples (Cout*BB, 9*Cin*BB)
        cout, cin = w.shape[0], w.shape[1]
        w_t = jnp.transpose(w, (2, 3, 1, 0)).reshape(9 * cin, cout)  # [(kh,kw,ci), co]
        eye = jnp.eye(BB, dtype=jnp.float32)
        wb = jnp.einsum('kc,bd->cbkd', w_t.astype(jnp.float32), eye)
        return wb.reshape(cout * BB, 9 * cin * BB)

    w1b = conv_block_diag(params["w_c1"])                              # (ch*BB, 9*BB)
    b1b = jnp.repeat(params["b_c1"].astype(jnp.float32), BB).reshape(ch * BB, 1)
    w2b = conv_block_diag(params["w_c2"])                              # (ch2*BB, 9*ch*BB)
    b2b = jnp.repeat(params["b_c2"].astype(jnp.float32), BB).reshape(ch2 * BB, 1)

    # lin1 (32, ch2*14*14): transpose and scatter the (c, h2, w2) features onto
    # the even-(h, w) lanes of the un-downsampled (ch2, 784) pooled slab.
    wl1_pages = params["w_l1"].T.reshape(ch2, H // 2, W // 2, 32)
    wl1_k = jnp.zeros((ch2, H, W, 32), jnp.float32)
    wl1_k = wl1_k.at[:, ::2, ::2, :].set(wl1_pages).reshape(ch2, F, 32)
    bl1_k = params["b_l1"].reshape(1, 32).astype(jnp.float32)
    # lin2 (out_sz, 32): transpose + pad the output axis to a multiple of 128.
    wl2_k = jnp.zeros((32, out_pad), jnp.float32).at[:, :out_sz].set(params["w_l2"].T)
    bl2_k = jnp.zeros((1, out_pad), jnp.float32).at[:, :out_sz].set(
        params["b_l2"].reshape(1, out_sz))

    # source-space border masks, applied once per conv:
    #   kw == 0 taps must ignore source column W-1; kw == 2 taps column 0.
    lane = jnp.arange(S, dtype=jnp.int32)
    col = (lane - M) % W
    in_data = (lane >= M) & (lane < M + F)
    m_kw0 = jnp.where(in_data & (col == W - 1), 0.0, 1.0)
    m_kw2 = jnp.where(in_data & (col == 0), 0.0, 1.0)
    masks = jnp.stack([m_kw0, m_kw2]).astype(jnp.float32)              # (2, S)

    xf = x_nchw.reshape(N, F).astype(jnp.float32)
    xf = jnp.pad(xf, ((0, n_pad - N), (0, 0)))

    def kernel(x_ref, mask_ref, w1_ref, b1_ref, w2_ref, b2_ref,
               wl1_ref, bl1_ref, wl2_ref, bl2_ref, o_ref,
               xe1, xe2, stk1, stk2, p2e):
        """BB samples per grid step; everything stays in VMEM."""

        def build_stack(src, stk_ref, rows):
            # src: (rows, S) zero-margined slab (rows = Cin*BB, ci-major b-minor)
            # stacks the 9 shifted/masked tap views along sublanes -> (9*rows, F)
            srcs = (src * mask_ref[0:1, :], src, src * mask_ref[1:2, :])
            for kh in range(3):
                for kw in range(3):
                    t = kh * 3 + kw
                    off = (kh - 1) * W + (kw - 1)
                    stk_ref[t * rows:(t + 1) * rows, :] = (
                        srcs[kw][:, M + off:M + off + F])
            return stk_ref[...]

        # ---- stage 0: zero only the per-sample margins, write the interior --
        xe1[:, 0:M] = jnp.zeros((BB, M), jnp.float32)
        xe1[:, M + F:] = jnp.zeros((BB, M), jnp.float32)
        xe1[:, M:M + F] = x_ref[...]                                   # (BB, F)

        # ---- conv1 (1 -> ch) + ReLU: one MXU matmul over the 9 folded taps --
        s1 = build_stack(xe1[...], stk1, BB)                           # (9*BB, F)
        r1 = jnp.maximum(
            jnp.dot(w1_ref[...], s1, preferred_element_type=jnp.float32)
            + b1_ref[...], 0.0)                                        # (ch*BB, F)

        xe2[:, 0:M] = jnp.zeros((ch * BB, M), jnp.float32)
        xe2[:, M + F:] = jnp.zeros((ch * BB, M), jnp.float32)
        xe2[:, M:M + F] = r1

        # ---- conv2 (ch -> 2*ch) + ReLU --------------------------------------
        s2 = build_stack(xe2[...], stk2, ch * BB)                      # (9*ch*BB, F)
        r2 = jnp.maximum(
            jnp.dot(w2_ref[...], s2, preferred_element_type=jnp.float32)
            + b2_ref[...], 0.0)                                        # (ch2*BB, F)

        # ---- 2x2 max-pool as max of 4 shifted views --------------------------
        # Valid results live at even-(h, w) lanes; all other lanes are ignored
        # by lin1's pre-scattered (zeroed) weights.
        p2e[:, F:] = jnp.zeros((ch2 * BB, TAIL), jnp.float32)
        p2e[:, 0:F] = r2
        pooled = jnp.maximum(
            jnp.maximum(p2e[:, 0:F], p2e[:, 1:1 + F]),
            jnp.maximum(p2e[:, W:W + F], p2e[:, W + 1:W + 1 + F]))     # (ch2*BB, F)

        # ---- lin1 + ReLU: per-channel (BB, F) @ (F, 32) matmuls --------------
        h = bl1_ref[...]                                               # (1, 32)
        for c in range(ch2):
            h = h + jnp.dot(pooled[c * BB:(c + 1) * BB, :], wl1_ref[c],
                            preferred_element_type=jnp.float32)
        h = jnp.maximum(h, 0.0)                                        # (BB, 32)

        # ---- lin2 (lane-dense padded output) ---------------------------------
        o_ref[...] = (jnp.dot(h, wl2_ref[...],
                              preferred_element_type=jnp.float32)
                      + bl2_ref[...])

    out = pl.pallas_call(
        kernel,
        out_shape=jax.ShapeDtypeStruct((n_pad, out_pad), jnp.float32),
        grid=(n_blk,),
        in_specs=[
            pl.BlockSpec((BB, F), lambda i: (i, 0)),                   # x (per block)
            pl.BlockSpec((2, S), lambda i: (0, 0)),                    # border masks
            pl.BlockSpec((ch * BB, 9 * BB), lambda i: (0, 0)),         # conv1 w (blkdiag)
            pl.BlockSpec((ch * BB, 1), lambda i: (0, 0)),              # conv1 b
            pl.BlockSpec((ch2 * BB, 9 * ch * BB), lambda i: (0, 0)),   # conv2 w (blkdiag)
            pl.BlockSpec((ch2 * BB, 1), lambda i: (0, 0)),             # conv2 b
            pl.BlockSpec((ch2, F, 32), lambda i: (0, 0, 0)),           # lin1 w (scattered)
            pl.BlockSpec((1, 32), lambda i: (0, 0)),                   # lin1 b
            pl.BlockSpec((32, out_pad), lambda i: (0, 0)),             # lin2 w (padded)
            pl.BlockSpec((1, out_pad), lambda i: (0, 0)),              # lin2 b (padded)
        ],
        out_specs=pl.BlockSpec((BB, out_pad), lambda i: (i, 0)),
        scratch_shapes=[
            pltpu.VMEM((BB, S), jnp.float32),                 # padded conv1 input
            pltpu.VMEM((ch * BB, S), jnp.float32),            # padded conv2 input
            pltpu.VMEM((9 * BB, F), jnp.float32),             # conv1 folded-tap stack
            pltpu.VMEM((9 * ch * BB, F), jnp.float32),        # conv2 folded-tap stack
            pltpu.VMEM((ch2 * BB, F + TAIL), jnp.float32),    # conv2 output + pool tail
        ],
        compiler_params=pltpu.CompilerParams(
            dimension_semantics=("parallel",)),
    )(xf, masks, w1b, b1b, w2b, b2b, wl1_k, bl1_k, wl2_k, bl2_k)

    return out[:N, :out_sz]


# ----------------------------- reference & init -----------------------------

def init_params(key, ch, out_sz):
    ks = jax.random.split(key, 8)
    feat = ch * 2 * (H // 2) * (W // 2)
    return {
        # stored in PyTorch conventions: conv (Cout, Cin, kh, kw), linear (out, in)
        "w_c1": 0.2 * jax.random.normal(ks[0], (ch, 1, 3, 3), jnp.float32),
        "b_c1": 0.1 * jax.random.normal(ks[1], (ch,), jnp.float32),
        "w_c2": 0.2 * jax.random.normal(ks[2], (2 * ch, ch, 3, 3), jnp.float32),
        "b_c2": 0.1 * jax.random.normal(ks[3], (2 * ch,), jnp.float32),
        "w_l1": 0.05 * jax.random.normal(ks[4], (32, feat), jnp.float32),
        "b_l1": 0.1 * jax.random.normal(ks[5], (32,), jnp.float32),
        "w_l2": 0.1 * jax.random.normal(ks[6], (out_sz, 32), jnp.float32),
        "b_l2": 0.1 * jax.random.normal(ks[7], (out_sz,), jnp.float32),
    }


def ref_forward(x_nchw, params):
    prec = jax.lax.Precision.HIGHEST
    dn = ("NCHW", "OIHW", "NCHW")
    y = jax.lax.conv_general_dilated(x_nchw, params["w_c1"], (1, 1),
                                     ((1, 1), (1, 1)), dimension_numbers=dn,
                                     precision=prec)
    y = jnp.maximum(y + params["b_c1"][None, :, None, None], 0.0)
    y = jax.lax.conv_general_dilated(y, params["w_c2"], (1, 1),
                                     ((1, 1), (1, 1)), dimension_numbers=dn,
                                     precision=prec)
    y = jnp.maximum(y + params["b_c2"][None, :, None, None], 0.0)
    n, c, h, w = y.shape
    y = y.reshape(n, c, h // 2, 2, w // 2, 2).max(axis=(3, 5))
    y = y.reshape(n, c * (h // 2) * (w // 2))
    y = jnp.maximum(jnp.dot(y, params["w_l1"].T, precision=prec) + params["b_l1"], 0.0)
    return jnp.dot(y, params["w_l2"].T, precision=prec) + params["b_l2"]


if __name__ == "__main__":
    ch, out_sz, batch = 4, 10, 10
    key = jax.random.PRNGKey(0)
    k_x, k_p = jax.random.split(key)
    # 28x28 input is implied by lin1 expecting ch*2*14*14 features after one pool.
    x = jax.random.normal(k_x, (batch, 1, 28, 28), jnp.float32)
    params = init_params(k_p, ch, out_sz)

    out = jax.block_until_ready(my_cnn_forward(x, params, ch, out_sz))
    assert out.shape == (batch, out_sz), out.shape
    assert out.dtype == jnp.float32

    ref = jax.block_until_ready(ref_forward(x, params))
    err = float(jnp.max(jnp.abs(out - ref)))
    assert err < 5e-3, f"kernel/reference mismatch: max abs err = {err}"
    print("KERNEL_OK")
</pallas_src>

<mosaic_0001>
module attributes {stable_mosaic.version = 11 : i64} {
  func.func @kernel(%arg0: i32, %arg1: memref<8x784xf32, #tpu.memory_space<vmem>>, %arg2: memref<2x848xf32, #tpu.memory_space<vmem>>, %arg3: memref<32x72xf32, #tpu.memory_space<vmem>>, %arg4: memref<32x1xf32, #tpu.memory_space<vmem>>, %arg5: memref<64x288xf32, #tpu.memory_space<vmem>>, %arg6: memref<64x1xf32, #tpu.memory_space<vmem>>, %arg7: memref<8x784x32xf32, #tpu.memory_space<vmem>>, %arg8: memref<1x32xf32, #tpu.memory_space<vmem>>, %arg9: memref<32x128xf32, #tpu.memory_space<vmem>>, %arg10: memref<1x128xf32, #tpu.memory_space<vmem>>, %arg11: memref<8x128xf32, #tpu.memory_space<vmem>>, %arg12: memref<8x848xf32, #tpu.memory_space<vmem>>, %arg13: memref<32x848xf32, #tpu.memory_space<vmem>>, %arg14: memref<72x784xf32, #tpu.memory_space<vmem>>, %arg15: memref<288x784xf32, #tpu.memory_space<vmem>>, %arg16: memref<64x816xf32, #tpu.memory_space<vmem>>) attributes {dimension_semantics = [#tpu.dimension_semantics<parallel>], iteration_bounds = array<i64: 2>, scalar_prefetch = 0 : i64, scratch_operands = 5 : i64, tpu.core_type = #tpu.core_type<tc>, window_params = [{transform_indices = @transform_0, window_bounds = array<i64: 8, 784>}, {pipeline_mode = #tpu.pipeline_mode<synchronous>, transform_indices = @transform_1, window_bounds = array<i64: 2, 848>}, {pipeline_mode = #tpu.pipeline_mode<synchronous>, transform_indices = @transform_2, window_bounds = array<i64: 32, 72>}, {pipeline_mode = #tpu.pipeline_mode<synchronous>, transform_indices = @transform_3, window_bounds = array<i64: 32, 1>}, {pipeline_mode = #tpu.pipeline_mode<synchronous>, transform_indices = @transform_4, window_bounds = array<i64: 64, 288>}, {pipeline_mode = #tpu.pipeline_mode<synchronous>, transform_indices = @transform_5, window_bounds = array<i64: 64, 1>}, {pipeline_mode = #tpu.pipeline_mode<synchronous>, transform_indices = @transform_6, window_bounds = array<i64: 8, 784, 32>}, {pipeline_mode = #tpu.pipeline_mode<synchronous>, transform_indices = @transform_7, window_bounds = array<i64: 1, 32>}, {pipeline_mode = #tpu.pipeline_mode<synchronous>, transform_indices = @transform_8, window_bounds = array<i64: 32, 128>}, {pipeline_mode = #tpu.pipeline_mode<synchronous>, transform_indices = @transform_9, window_bounds = array<i64: 1, 128>}, {transform_indices = @transform_10, window_bounds = array<i64: 8, 128>}]} {
    %cst = arith.constant 0.000000e+00 : f32
    %0 = vector.broadcast %cst : f32 to vector<8x32xf32>
    %c0 = arith.constant 0 : index
    %c0_0 = arith.constant 0 : index
    %1 = vector.load %arg12[%c0, %c0_0] : memref<8x848xf32, #tpu.memory_space<vmem>>, vector<8x32xf32>
    tpu.vector_store %arg12[%c0, %c0_0], %0 {strides = array<i32>} : memref<8x848xf32, #tpu.memory_space<vmem>>, vector<8x32xf32>,
    %cst_1 = arith.constant 0.000000e+00 : f32
    %2 = vector.broadcast %cst_1 : f32 to vector<8x32xf32>
    %c0_2 = arith.constant 0 : index
    %c816 = arith.constant 816 : index
    %3 = vector.load %arg12[%c0_2, %c816] : memref<8x848xf32, #tpu.memory_space<vmem>>, vector<8x32xf32>
    tpu.vector_store %arg12[%c0_2, %c816], %2 {strides = array<i32>} : memref<8x848xf32, #tpu.memory_space<vmem>>, vector<8x32xf32>,
    %c0_3 = arith.constant 0 : index
    %c0_4 = arith.constant 0 : index
    %4 = vector.load %arg1[%c0_3, %c0_4] : memref<8x784xf32, #tpu.memory_space<vmem>>, vector<8x784xf32>
    %c0_5 = arith.constant 0 : index
    %c32 = arith.constant 32 : index
    %5 = vector.load %arg12[%c0_5, %c32] : memref<8x848xf32, #tpu.memory_space<vmem>>, vector<8x784xf32>
    tpu.vector_store %arg12[%c0_5, %c32], %4 {strides = array<i32>} : memref<8x848xf32, #tpu.memory_space<vmem>>, vector<8x784xf32>,
    %c0_6 = arith.constant 0 : index
    %c0_7 = arith.constant 0 : index
    %6 = vector.load %arg12[%c0_6, %c0_7] : memref<8x848xf32, #tpu.memory_space<vmem>>, vector<8x848xf32>
    %c0_8 = arith.constant 0 : index
    %c0_9 = arith.constant 0 : index
    %7 = vector.load %arg2[%c0_8, %c0_9] : memref<2x848xf32, #tpu.memory_space<vmem>>, vector<1x848xf32>
    %8 = vector.broadcast %7 : vector<1x848xf32> to vector<8x848xf32>
    %9 = arith.mulf %6, %8 : vector<8x848xf32>
    %c1 = arith.constant 1 : index
    %c0_10 = arith.constant 0 : index
    %10 = vector.load %arg2[%c1, %c0_10] : memref<2x848xf32, #tpu.memory_space<vmem>>, vector<1x848xf32>
    %11 = vector.broadcast %10 : vector<1x848xf32> to vector<8x848xf32>
    %12 = arith.mulf %6, %11 : vector<8x848xf32>
    %13 = vector.extract_strided_slice %9 {offsets = [0, 3], sizes = [8, 784], strides = [1, 1]} : vector<8x848xf32> to vector<8x784xf32>
    %c0_11 = arith.constant 0 : index
    %c0_12 = arith.constant 0 : index
    %14 = vector.load %arg14[%c0_11, %c0_12] : memref<72x784xf32, #tpu.memory_space<vmem>>, vector<8x784xf32>
    tpu.vector_store %arg14[%c0_11, %c0_12], %13 {strides = array<i32>} : memref<72x784xf32, #tpu.memory_space<vmem>>, vector<8x784xf32>,
    %15 = vector.extract_strided_slice %6 {offsets = [0, 4], sizes = [8, 784], strides = [1, 1]} : vector<8x848xf32> to vector<8x784xf32>
    %c8 = arith.constant 8 : index
    %c0_13 = arith.constant 0 : index
    %16 = vector.load %arg14[%c8, %c0_13] : memref<72x784xf32, #tpu.memory_space<vmem>>, vector<8x784xf32>
    tpu.vector_store %arg14[%c8, %c0_13], %15 {strides = array<i32>} : memref<72x784xf32, #tpu.memory_space<vmem>>, vector<8x784xf32>,
    %17 = vector.extract_strided_slice %12 {offsets = [0, 5], sizes = [8, 784], strides = [1, 1]} : vector<8x848xf32> to vector<8x784xf32>
    %c16 = arith.constant 16 : index
    %c0_14 = arith.constant 0 : index
    %18 = vector.load %arg14[%c16, %c0_14] : memref<72x784xf32, #tpu.memory_space<vmem>>, vector<8x784xf32>
    tpu.vector_store %arg14[%c16, %c0_14], %17 {strides = array<i32>} : memref<72x784xf32, #tpu.memory_space<vmem>>, vector<8x784xf32>,
    %19 = vector.extract_strided_slice %9 {offsets = [0, 31], sizes = [8, 784], strides = [1, 1]} : vector<8x848xf32> to vector<8x784xf32>
    %c24 = arith.constant 24 : index
    %c0_15 = arith.constant 0 : index
    %20 = vector.load %arg14[%c24, %c0_15] : memref<72x784xf32, #tpu.memory_space<vmem>>, vector<8x784xf32>
    tpu.vector_store %arg14[%c24, %c0_15], %19 {strides = array<i32>} : memref<72x784xf32, #tpu.memory_space<vmem>>, vector<8x784xf32>,
    %21 = vector.extract_strided_slice %6 {offsets = [0, 32], sizes = [8, 784], strides = [1, 1]} : vector<8x848xf32> to vector<8x784xf32>
    %c32_16 = arith.constant 32 : index
    %c0_17 = arith.constant 0 : index
    %22 = vector.load %arg14[%c32_16, %c0_17] : memref<72x784xf32, #tpu.memory_space<vmem>>, vector<8x784xf32>
    tpu.vector_store %arg14[%c32_16, %c0_17], %21 {strides = array<i32>} : memref<72x784xf32, #tpu.memory_space<vmem>>, vector<8x784xf32>,
    %23 = vector.extract_strided_slice %12 {offsets = [0, 33], sizes = [8, 784], strides = [1, 1]} : vector<8x848xf32> to vector<8x784xf32>
    %c40 = arith.constant 40 : index
    %c0_18 = arith.constant 0 : index
    %24 = vector.load %arg14[%c40, %c0_18] : memref<72x784xf32, #tpu.memory_space<vmem>>, vector<8x784xf32>
    tpu.vector_store %arg14[%c40, %c0_18], %23 {strides = array<i32>} : memref<72x784xf32, #tpu.memory_space<vmem>>, vector<8x784xf32>,
    %25 = vector.extract_strided_slice %9 {offsets = [0, 59], sizes = [8, 784], strides = [1, 1]} : vector<8x848xf32> to vector<8x784xf32>
    %c48 = arith.constant 48 : index
    %c0_19 = arith.constant 0 : index
    %26 = vector.load %arg14[%c48, %c0_19] : memref<72x784xf32, #tpu.memory_space<vmem>>, vector<8x784xf32>
    tpu.vector_store %arg14[%c48, %c0_19], %25 {strides = array<i32>} : memref<72x784xf32, #tpu.memory_space<vmem>>, vector<8x784xf32>,
    %27 = vector.extract_strided_slice %6 {offsets = [0, 60], sizes = [8, 784], strides = [1, 1]} : vector<8x848xf32> to vector<8x784xf32>
    %c56 = arith.constant 56 : index
    %c0_20 = arith.constant 0 : index
    %28 = vector.load %arg14[%c56, %c0_20] : memref<72x784xf32, #tpu.memory_space<vmem>>, vector<8x784xf32>
    tpu.vector_store %arg14[%c56, %c0_20], %27 {strides = array<i32>} : memref<72x784xf32, #tpu.memory_space<vmem>>, vector<8x784xf32>,
    %29 = vector.extract_strided_slice %12 {offsets = [0, 61], sizes = [8, 784], strides = [1, 1]} : vector<8x848xf32> to vector<8x784xf32>
    %c64 = arith.constant 64 : index
    %c0_21 = arith.constant 0 : index
    %30 = vector.load %arg14[%c64, %c0_21] : memref<72x784xf32, #tpu.memory_space<vmem>>, vector<8x784xf32>
    tpu.vector_store %arg14[%c64, %c0_21], %29 {strides = array<i32>} : memref<72x784xf32, #tpu.memory_space<vmem>>, vector<8x784xf32>,
    %c0_22 = arith.constant 0 : index
    %c0_23 = arith.constant 0 : index
    %31 = vector.load %arg14[%c0_22, %c0_23] : memref<72x784xf32, #tpu.memory_space<vmem>>, vector<72x784xf32>
    %c0_24 = arith.constant 0 : index
    %c0_25 = arith.constant 0 : index
    %32 = vector.load %arg3[%c0_24, %c0_25] : memref<32x72xf32, #tpu.memory_space<vmem>>, vector<32x72xf32>
    %cst_26 = arith.constant dense<0.000000e+00> : vector<32x784xf32>
    %33 = tpu.matmul %32, %31, %cst_26 {dimension_numbers = #tpu.dot_dimension_numbers<[1], [0], [0], [1], [0, 0, 1, 1], [], []>} : vector<32x72xf32>, vector<72x784xf32>, vector<32x784xf32> -> vector<32x784xf32>
    %c0_27 = arith.constant 0 : index
    %c0_28 = arith.constant 0 : index
    %34 = vector.load %arg4[%c0_27, %c0_28] : memref<32x1xf32, #tpu.memory_space<vmem>>, vector<32x1xf32>
    %35 = vector.broadcast %34 : vector<32x1xf32> to vector<32x784xf32>
    %36 = arith.addf %33, %35 : vector<32x784xf32>
    %cst_29 = arith.constant 0.000000e+00 : f32
    %37 = vector.broadcast %cst_29 : f32 to vector<32x784xf32>
    %38 = arith.maximumf %36, %37 : vector<32x784xf32>
    %cst_30 = arith.constant 0.000000e+00 : f32
    %39 = vector.broadcast %cst_30 : f32 to vector<32x32xf32>
    %c0_31 = arith.constant 0 : index
    %c0_32 = arith.constant 0 : index
    %40 = vector.load %arg13[%c0_31, %c0_32] : memref<32x848xf32, #tpu.memory_space<vmem>>, vector<32x32xf32>
    tpu.vector_store %arg13[%c0_31, %c0_32], %39 {strides = array<i32>} : memref<32x848xf32, #tpu.memory_space<vmem>>, vector<32x32xf32>,
    %cst_33 = arith.constant 0.000000e+00 : f32
    %41 = vector.broadcast %cst_33 : f32 to vector<32x32xf32>
    %c0_34 = arith.constant 0 : index
    %c816_35 = arith.constant 816 : index
    %42 = vector.load %arg13[%c0_34, %c816_35] : memref<32x848xf32, #tpu.memory_space<vmem>>, vector<32x32xf32>
    tpu.vector_store %arg13[%c0_34, %c816_35], %41 {strides = array<i32>} : memref<32x848xf32, #tpu.memory_space<vmem>>, vector<32x32xf32>,
    %c0_36 = arith.constant 0 : index
    %c32_37 = arith.constant 32 : index
    %43 = vector.load %arg13[%c0_36, %c32_37] : memref<32x848xf32, #tpu.memory_space<vmem>>, vector<32x784xf32>
    tpu.vector_store %arg13[%c0_36, %c32_37], %38 {strides = array<i32>} : memref<32x848xf32, #tpu.memory_space<vmem>>, vector<32x784xf32>,
    %c0_38 = arith.constant 0 : index
    %c0_39 = arith.constant 0 : index
    %44 = vector.load %arg13[%c0_38, %c0_39] : memref<32x848xf32, #tpu.memory_space<vmem>>, vector<32x848xf32>
    %c0_40 = arith.constant 0 : index
    %c0_41 = arith.constant 0 : index
    %45 = vector.load %arg2[%c0_40, %c0_41] : memref<2x848xf32, #tpu.memory_space<vmem>>, vector<1x848xf32>
    %46 = vector.broadcast %45 : vector<1x848xf32> to vector<32x848xf32>
    %47 = arith.mulf %44, %46 : vector<32x848xf32>
    %c1_42 = arith.constant 1 : index
    %c0_43 = arith.constant 0 : index
    %48 = vector.load %arg2[%c1_42, %c0_43] : memref<2x848xf32, #tpu.memory_space<vmem>>, vector<1x848xf32>
    %49 = vector.broadcast %48 : vector<1x848xf32> to vector<32x848xf32>
    %50 = arith.mulf %44, %49 : vector<32x848xf32>
    %51 = vector.extract_strided_slice %47 {offsets = [0, 3], sizes = [32, 784], strides = [1, 1]} : vector<32x848xf32> to vector<32x784xf32>
    %c0_44 = arith.constant 0 : index
    %c0_45 = arith.constant 0 : index
    %52 = vector.load %arg15[%c0_44, %c0_45] : memref<288x784xf32, #tpu.memory_space<vmem>>, vector<32x784xf32>
    tpu.vector_store %arg15[%c0_44, %c0_45], %51 {strides = array<i32>} : memref<288x784xf32, #tpu.memory_space<vmem>>, vector<32x784xf32>,
    %53 = vector.extract_strided_slice %44 {offsets = [0, 4], sizes = [32, 784], strides = [1, 1]} : vector<32x848xf32> to vector<32x784xf32>
    %c32_46 = arith.constant 32 : index
    %c0_47 = arith.constant 0 : index
    %54 = vector.load %arg15[%c32_46, %c0_47] : memref<288x784xf32, #tpu.memory_space<vmem>>, vector<32x784xf32>
    tpu.vector_store %arg15[%c32_46, %c0_47], %53 {strides = array<i32>} : memref<288x784xf32, #tpu.memory_space<vmem>>, vector<32x784xf32>,
    %55 = vector.extract_strided_slice %50 {offsets = [0, 5], sizes = [32, 784], strides = [1, 1]} : vector<32x848xf32> to vector<32x784xf32>
    %c64_48 = arith.constant 64 : index
    %c0_49 = arith.constant 0 : index
    %56 = vector.load %arg15[%c64_48, %c0_49] : memref<288x784xf32, #tpu.memory_space<vmem>>, vector<32x784xf32>
    tpu.vector_store %arg15[%c64_48, %c0_49], %55 {strides = array<i32>} : memref<288x784xf32, #tpu.memory_space<vmem>>, vector<32x784xf32>,
    %57 = vector.extract_strided_slice %47 {offsets = [0, 31], sizes = [32, 784], strides = [1, 1]} : vector<32x848xf32> to vector<32x784xf32>
    %c96 = arith.constant 96 : index
    %c0_50 = arith.constant 0 : index
    %58 = vector.load %arg15[%c96, %c0_50] : memref<288x784xf32, #tpu.memory_space<vmem>>, vector<32x784xf32>
    tpu.vector_store %arg15[%c96, %c0_50], %57 {strides = array<i32>} : memref<288x784xf32, #tpu.memory_space<vmem>>, vector<32x784xf32>,
    %59 = vector.extract_strided_slice %44 {offsets = [0, 32], sizes = [32, 784], strides = [1, 1]} : vector<32x848xf32> to vector<32x784xf32>
    %c128 = arith.constant 128 : index
    %c0_51 = arith.constant 0 : index
    %60 = vector.load %arg15[%c128, %c0_51] : memref<288x784xf32, #tpu.memory_space<vmem>>, vector<32x784xf32>
    tpu.vector_store %arg15[%c128, %c0_51], %59 {strides = array<i32>} : memref<288x784xf32, #tpu.memory_space<vmem>>, vector<32x784xf32>,
    %61 = vector.extract_strided_slice %50 {offsets = [0, 33], sizes = [32, 784], strides = [1, 1]} : vector<32x848xf32> to vector<32x784xf32>
    %c160 = arith.constant 160 : index
    %c0_52 = arith.constant 0 : index
    %62 = vector.load %arg15[%c160, %c0_52] : memref<288x784xf32, #tpu.memory_space<vmem>>, vector<32x784xf32>
    tpu.vector_store %arg15[%c160, %c0_52], %61 {strides = array<i32>} : memref<288x784xf32, #tpu.memory_space<vmem>>, vector<32x784xf32>,
    %63 = vector.extract_strided_slice %47 {offsets = [0, 59], sizes = [32, 784], strides = [1, 1]} : vector<32x848xf32> to vector<32x784xf32>
    %c192 = arith.constant 192 : index
    %c0_53 = arith.constant 0 : index
    %64 = vector.load %arg15[%c192, %c0_53] : memref<288x784xf32, #tpu.memory_space<vmem>>, vector<32x784xf32>
    tpu.vector_store %arg15[%c192, %c0_53], %63 {strides = array<i32>} : memref<288x784xf32, #tpu.memory_space<vmem>>, vector<32x784xf32>,
    %65 = vector.extract_strided_slice %44 {offsets = [0, 60], sizes = [32, 784], strides = [1, 1]} : vector<32x848xf32> to vector<32x784xf32>
    %c224 = arith.constant 224 : index
    %c0_54 = arith.constant 0 : index
    %66 = vector.load %arg15[%c224, %c0_54] : memref<288x784xf32, #tpu.memory_space<vmem>>, vector<32x784xf32>
    tpu.vector_store %arg15[%c224, %c0_54], %65 {strides = array<i32>} : memref<288x784xf32, #tpu.memory_space<vmem>>, vector<32x784xf32>,
    %67 = vector.extract_strided_slice %50 {offsets = [0, 61], sizes = [32, 784], strides = [1, 1]} : vector<32x848xf32> to vector<32x784xf32>
    %c256 = arith.constant 256 : index
    %c0_55 = arith.constant 0 : index
    %68 = vector.load %arg15[%c256, %c0_55] : memref<288x784xf32, #tpu.memory_space<vmem>>, vector<32x784xf32>
    tpu.vector_store %arg15[%c256, %c0_55], %67 {strides = array<i32>} : memref<288x784xf32, #tpu.memory_space<vmem>>, vector<32x784xf32>,
    %c0_56 = arith.constant 0 : index
    %c0_57 = arith.constant 0 : index
    %69 = vector.load %arg15[%c0_56, %c0_57] : memref<288x784xf32, #tpu.memory_space<vmem>>, vector<288x784xf32>
    %c0_58 = arith.constant 0 : index
    %c0_59 = arith.constant 0 : index
    %70 = vector.load %arg5[%c0_58, %c0_59] : memref<64x288xf32, #tpu.memory_space<vmem>>, vector<64x288xf32>
    %cst_60 = arith.constant dense<0.000000e+00> : vector<64x784xf32>
    %71 = tpu.matmul %70, %69, %cst_60 {dimension_numbers = #tpu.dot_dimension_numbers<[1], [0], [0], [1], [0, 0, 1, 1], [], []>} : vector<64x288xf32>, vector<288x784xf32>, vector<64x784xf32> -> vector<64x784xf32>
    %c0_61 = arith.constant 0 : index
    %c0_62 = arith.constant 0 : index
    %72 = vector.load %arg6[%c0_61, %c0_62] : memref<64x1xf32, #tpu.memory_space<vmem>>, vector<64x1xf32>
    %73 = vector.broadcast %72 : vector<64x1xf32> to vector<64x784xf32>
    %74 = arith.addf %71, %73 : vector<64x784xf32>
    %cst_63 = arith.constant 0.000000e+00 : f32
    %75 = vector.broadcast %cst_63 : f32 to vector<64x784xf32>
    %76 = arith.maximumf %74, %75 : vector<64x784xf32>
    %cst_64 = arith.constant 0.000000e+00 : f32
    %77 = vector.broadcast %cst_64 : f32 to vector<64x32xf32>
    %c0_65 = arith.constant 0 : index
    %c784 = arith.constant 784 : index
    %78 = vector.load %arg16[%c0_65, %c784] : memref<64x816xf32, #tpu.memory_space<vmem>>, vector<64x32xf32>
    tpu.vector_store %arg16[%c0_65, %c784], %77 {strides = array<i32>} : memref<64x816xf32, #tpu.memory_space<vmem>>, vector<64x32xf32>,
    %c0_66 = arith.constant 0 : index
    %c0_67 = arith.constant 0 : index
    %79 = vector.load %arg16[%c0_66, %c0_67] : memref<64x816xf32, #tpu.memory_space<vmem>>, vector<64x784xf32>
    tpu.vector_store %arg16[%c0_66, %c0_67], %76 {strides = array<i32>} : memref<64x816xf32, #tpu.memory_space<vmem>>, vector<64x784xf32>,
    %c0_68 = arith.constant 0 : index
    %c0_69 = arith.constant 0 : index
    %80 = vector.load %arg16[%c0_68, %c0_69] : memref<64x816xf32, #tpu.memory_space<vmem>>, vector<64x784xf32>
    %c0_70 = arith.constant 0 : index
    %c1_71 = arith.constant 1 : index
    %81 = vector.load %arg16[%c0_70, %c1_71] : memref<64x816xf32, #tpu.memory_space<vmem>>, vector<64x784xf32>
    %82 = arith.maximumf %80, %81 : vector<64x784xf32>
    %c0_72 = arith.constant 0 : index
    %c28 = arith.constant 28 : index
    %83 = vector.load %arg16[%c0_72, %c28] : memref<64x816xf32, #tpu.memory_space<vmem>>, vector<64x784xf32>
    %c0_73 = arith.constant 0 : index
    %c29 = arith.constant 29 : index
    %84 = vector.load %arg16[%c0_73, %c29] : memref<64x816xf32, #tpu.memory_space<vmem>>, vector<64x784xf32>
    %85 = arith.maximumf %83, %84 : vector<64x784xf32>
    %86 = arith.maximumf %82, %85 : vector<64x784xf32>
    %c0_74 = arith.constant 0 : index
    %c0_75 = arith.constant 0 : index
    %87 = vector.load %arg8[%c0_74, %c0_75] : memref<1x32xf32, #tpu.memory_space<vmem>>, vector<1x32xf32>
    %88 = vector.extract_strided_slice %86 {offsets = [0, 0], sizes = [8, 784], strides = [1, 1]} : vector<64x784xf32> to vector<8x784xf32>
    %c0_76 = arith.constant 0 : index
    %c0_77 = arith.constant 0 : index
    %c0_78 = arith.constant 0 : index
    %89 = vector.load %arg7[%c0_76, %c0_77, %c0_78] : memref<8x784x32xf32, #tpu.memory_space<vmem>>, vector<1x784x32xf32>
    %90 = vector.shape_cast %89 : vector<1x784x32xf32> to vector<784x32xf32>
    %cst_79 = arith.constant dense<0.000000e+00> : vector<8x32xf32>
    %91 = tpu.matmul %88, %90, %cst_79 {dimension_numbers = #tpu.dot_dimension_numbers<[1], [0], [0], [1], [0, 0, 1, 1], [], []>} : vector<8x784xf32>, vector<784x32xf32>, vector<8x32xf32> -> vector<8x32xf32>
    %92 = vector.broadcast %87 : vector<1x32xf32> to vector<8x32xf32>
    %93 = arith.addf %92, %91 : vector<8x32xf32>
    %94 = vector.extract_strided_slice %86 {offsets = [8, 0], sizes = [8, 784], strides = [1, 1]} : vector<64x784xf32> to vector<8x784xf32>
    %c1_80 = arith.constant 1 : index
    %c0_81 = arith.constant 0 : index
    %c0_82 = arith.constant 0 : index
    %95 = vector.load %arg7[%c1_80, %c0_81, %c0_82] : memref<8x784x32xf32, #tpu.memory_space<vmem>>, vector<1x784x32xf32>
    %96 = vector.shape_cast %95 : vector<1x784x32xf32> to vector<784x32xf32>
    %cst_83 = arith.constant dense<0.000000e+00> : vector<8x32xf32>
    %97 = tpu.matmul %94, %96, %cst_83 {dimension_numbers = #tpu.dot_dimension_numbers<[1], [0], [0], [1], [0, 0, 1, 1], [], []>} : vector<8x784xf32>, vector<784x32xf32>, vector<8x32xf32> -> vector<8x32xf32>
    %98 = arith.addf %93, %97 : vector<8x32xf32>
    %99 = vector.extract_strided_slice %86 {offsets = [16, 0], sizes = [8, 784], strides = [1, 1]} : vector<64x784xf32> to vector<8x784xf32>
    %c2 = arith.constant 2 : index
    %c0_84 = arith.constant 0 : index
    %c0_85 = arith.constant 0 : index
    %100 = vector.load %arg7[%c2, %c0_84, %c0_85] : memref<8x784x32xf32, #tpu.memory_space<vmem>>, vector<1x784x32xf32>
    %101 = vector.shape_cast %100 : vector<1x784x32xf32> to vector<784x32xf32>
    %cst_86 = arith.constant dense<0.000000e+00> : vector<8x32xf32>
    %102 = tpu.matmul %99, %101, %cst_86 {dimension_numbers = #tpu.dot_dimension_numbers<[1], [0], [0], [1], [0, 0, 1, 1], [], []>} : vector<8x784xf32>, vector<784x32xf32>, vector<8x32xf32> -> vector<8x32xf32>
    %103 = arith.addf %98, %102 : vector<8x32xf32>
    %104 = vector.extract_strided_slice %86 {offsets = [24, 0], sizes = [8, 784], strides = [1, 1]} : vector<64x784xf32> to vector<8x784xf32>
    %c3 = arith.constant 3 : index
    %c0_87 = arith.constant 0 : index
    %c0_88 = arith.constant 0 : index
    %105 = vector.load %arg7[%c3, %c0_87, %c0_88] : memref<8x784x32xf32, #tpu.memory_space<vmem>>, vector<1x784x32xf32>
    %106 = vector.shape_cast %105 : vector<1x784x32xf32> to vector<784x32xf32>
    %cst_89 = arith.constant dense<0.000000e+00> : vector<8x32xf32>
    %107 = tpu.matmul %104, %106, %cst_89 {dimension_numbers = #tpu.dot_dimension_numbers<[1], [0], [0], [1], [0, 0, 1, 1], [], []>} : vector<8x784xf32>, vector<784x32xf32>, vector<8x32xf32> -> vector<8x32xf32>
    %108 = arith.addf %103, %107 : vector<8x32xf32>
    %109 = vector.extract_strided_slice %86 {offsets = [32, 0], sizes = [8, 784], strides = [1, 1]} : vector<64x784xf32> to vector<8x784xf32>
    %c4 = arith.constant 4 : index
    %c0_90 = arith.constant 0 : index
    %c0_91 = arith.constant 0 : index
    %110 = vector.load %arg7[%c4, %c0_90, %c0_91] : memref<8x784x32xf32, #tpu.memory_space<vmem>>, vector<1x784x32xf32>
    %111 = vector.shape_cast %110 : vector<1x784x32xf32> to vector<784x32xf32>
    %cst_92 = arith.constant dense<0.000000e+00> : vector<8x32xf32>
    %112 = tpu.matmul %109, %111, %cst_92 {dimension_numbers = #tpu.dot_dimension_numbers<[1], [0], [0], [1], [0, 0, 1, 1], [], []>} : vector<8x784xf32>, vector<784x32xf32>, vector<8x32xf32> -> vector<8x32xf32>
    %113 = arith.addf %108, %112 : vector<8x32xf32>
    %114 = vector.extract_strided_slice %86 {offsets = [40, 0], sizes = [8, 784], strides = [1, 1]} : vector<64x784xf32> to vector<8x784xf32>
    %c5 = arith.constant 5 : index
    %c0_93 = arith.constant 0 : index
    %c0_94 = arith.constant 0 : index
    %115 = vector.load %arg7[%c5, %c0_93, %c0_94] : memref<8x784x32xf32, #tpu.memory_space<vmem>>, vector<1x784x32xf32>
    %116 = vector.shape_cast %115 : vector<1x784x32xf32> to vector<784x32xf32>
    %cst_95 = arith.constant dense<0.000000e+00> : vector<8x32xf32>
    %117 = tpu.matmul %114, %116, %cst_95 {dimension_numbers = #tpu.dot_dimension_numbers<[1], [0], [0], [1], [0, 0, 1, 1], [], []>} : vector<8x784xf32>, vector<784x32xf32>, vector<8x32xf32> -> vector<8x32xf32>
    %118 = arith.addf %113, %117 : vector<8x32xf32>
    %119 = vector.extract_strided_slice %86 {offsets = [48, 0], sizes = [8, 784], strides = [1, 1]} : vector<64x784xf32> to vector<8x784xf32>
    %c6 = arith.constant 6 : index
    %c0_96 = arith.constant 0 : index
    %c0_97 = arith.constant 0 : index
    %120 = vector.load %arg7[%c6, %c0_96, %c0_97] : memref<8x784x32xf32, #tpu.memory_space<vmem>>, vector<1x784x32xf32>
    %121 = vector.shape_cast %120 : vector<1x784x32xf32> to vector<784x32xf32>
    %cst_98 = arith.constant dense<0.000000e+00> : vector<8x32xf32>
    %122 = tpu.matmul %119, %121, %cst_98 {dimension_numbers = #tpu.dot_dimension_numbers<[1], [0], [0], [1], [0, 0, 1, 1], [], []>} : vector<8x784xf32>, vector<784x32xf32>, vector<8x32xf32> -> vector<8x32xf32>
    %123 = arith.addf %118, %122 : vector<8x32xf32>
    %124 = vector.extract_strided_slice %86 {offsets = [56, 0], sizes = [8, 784], strides = [1, 1]} : vector<64x784xf32> to vector<8x784xf32>
    %c7 = arith.constant 7 : index
    %c0_99 = arith.constant 0 : index
    %c0_100 = arith.constant 0 : index
    %125 = vector.load %arg7[%c7, %c0_99, %c0_100] : memref<8x784x32xf32, #tpu.memory_space<vmem>>, vector<1x784x32xf32>
    %126 = vector.shape_cast %125 : vector<1x784x32xf32> to vector<784x32xf32>
    %cst_101 = arith.constant dense<0.000000e+00> : vector<8x32xf32>
    %127 = tpu.matmul %124, %126, %cst_101 {dimension_numbers = #tpu.dot_dimension_numbers<[1], [0], [0], [1], [0, 0, 1, 1], [], []>} : vector<8x784xf32>, vector<784x32xf32>, vector<8x32xf32> -> vector<8x32xf32>
    %128 = arith.addf %123, %127 : vector<8x32xf32>
    %cst_102 = arith.constant 0.000000e+00 : f32
    %129 = vector.broadcast %cst_102 : f32 to vector<8x32xf32>
    %130 = arith.maximumf %128, %129 : vector<8x32xf32>
    %c0_103 = arith.constant 0 : index
    %c0_104 = arith.constant 0 : index
    %131 = vector.load %arg9[%c0_103, %c0_104] : memref<32x128xf32, #tpu.memory_space<vmem>>, vector<32x128xf32>
    %cst_105 = arith.constant dense<0.000000e+00> : vector<8x128xf32>
    %132 = tpu.matmul %130, %131, %cst_105 {dimension_numbers = #tpu.dot_dimension_numbers<[1], [0], [0], [1], [0, 0, 1, 1], [], []>} : vector<8x32xf32>, vector<32x128xf32>, vector<8x128xf32> -> vector<8x128xf32>
    %c0_106 = arith.constant 0 : index
    %c0_107 = arith.constant 0 : index
    %133 = vector.load %arg10[%c0_106, %c0_107] : memref<1x128xf32, #tpu.memory_space<vmem>>, vector<1x128xf32>
    %134 = vector.broadcast %133 : vector<1x128xf32> to vector<8x128xf32>
    %135 = arith.addf %132, %134 : vector<8x128xf32>
    %c0_108 = arith.constant 0 : index
    %c0_109 = arith.constant 0 : index
    %136 = vector.load %arg11[%c0_108, %c0_109] : memref<8x128xf32, #tpu.memory_space<vmem>>, vector<8x128xf32>
    tpu.vector_store %arg11[%c0_108, %c0_109], %135 {strides = array<i32>} : memref<8x128xf32, #tpu.memory_space<vmem>>, vector<8x128xf32>,
    return
  }
  func.func @transform_0(%arg0: i32) -> (i32, i32) {
    %c0_i32 = arith.constant 0 : i32
    %c0_i32_0 = arith.constant 0 : i32
    return %arg0, %c0_i32 : i32, i32
  }
  func.func @transform_1(%arg0: i32) -> (i32, i32) {
    %c0_i32 = arith.constant 0 : i32
    %c0_i32_0 = arith.constant 0 : i32
    %c0_i32_1 = arith.constant 0 : i32
    return %c0_i32, %c0_i32_0 : i32, i32
  }
  func.func @transform_2(%arg0: i32) -> (i32, i32) {
    %c0_i32 = arith.constant 0 : i32
    %c0_i32_0 = arith.constant 0 : i32
    %c0_i32_1 = arith.constant 0 : i32
    return %c0_i32, %c0_i32_0 : i32, i32
  }
  func.func @transform_3(%arg0: i32) -> (i32, i32) {
    %c0_i32 = arith.constant 0 : i32
    %c0_i32_0 = arith.constant 0 : i32
    %c0_i32_1 = arith.constant 0 : i32
    return %c0_i32, %c0_i32_0 : i32, i32
  }
  func.func @transform_4(%arg0: i32) -> (i32, i32) {
    %c0_i32 = arith.constant 0 : i32
    %c0_i32_0 = arith.constant 0 : i32
    %c0_i32_1 = arith.constant 0 : i32
    return %c0_i32, %c0_i32_0 : i32, i32
  }
  func.func @transform_5(%arg0: i32) -> (i32, i32) {
    %c0_i32 = arith.constant 0 : i32
    %c0_i32_0 = arith.constant 0 : i32
    %c0_i32_1 = arith.constant 0 : i32
    return %c0_i32, %c0_i32_0 : i32, i32
  }
  func.func @transform_6(%arg0: i32) -> (i32, i32, i32) {
    %c0_i32 = arith.constant 0 : i32
    %c0_i32_0 = arith.constant 0 : i32
    %c0_i32_1 = arith.constant 0 : i32
    %c0_i32_2 = arith.constant 0 : i32
    return %c0_i32, %c0_i32_0, %c0_i32_1 : i32, i32, i32
  }
  func.func @transform_7(%arg0: i32) -> (i32, i32) {
    %c0_i32 = arith.constant 0 : i32
    %c0_i32_0 = arith.constant 0 : i32
    %c0_i32_1 = arith.constant 0 : i32
    return %c0_i32, %c0_i32_0 : i32, i32
  }
  func.func @transform_8(%arg0: i32) -> (i32, i32) {
    %c0_i32 = arith.constant 0 : i32
    %c0_i32_0 = arith.constant 0 : i32
    %c0_i32_1 = arith.constant 0 : i32
    return %c0_i32, %c0_i32_0 : i32, i32
  }
  func.func @transform_9(%arg0: i32) -> (i32, i32) {
    %c0_i32 = arith.constant 0 : i32
    %c0_i32_0 = arith.constant 0 : i32
    %c0_i32_1 = arith.constant 0 : i32
    return %c0_i32, %c0_i32_0 : i32, i32
  }
  func.func @transform_10(%arg0: i32) -> (i32, i32) {
    %c0_i32 = arith.constant 0 : i32
    %c0_i32_0 = arith.constant 0 : i32
    return %arg0, %c0_i32 : i32, i32
  }
}

</mosaic_0001>

<llo_original>
// kernel: my_cnn_forward.1
$region0: #{my_cnn_forward.1}
  #allocation0 [shape = 'u32[]', space=smem, size = 0x4, offset = 0x4, fixed_abs, tag = 'smem constant byte address 0x4 - core index']
  #allocation1 [shape = 'u32[144,128]{1,0:T(1,128)}', space=vmem, size = 0x12000, scoped, tag = 'internal scratch']
  #allocation2 [shape = 'f32[8,848]{1,0:T(8,128)}', space=vmem, size = 0x7000, scoped, tag = 'scratch operand']
  #allocation3 [shape = 'f32[32,848]{1,0:T(8,128)}', space=vmem, size = 0x1c000, scoped, tag = 'scratch operand']
  #allocation4 [shape = 'f32[72,784]{1,0:T(8,128)}', space=vmem, size = 0x3f000, scoped, tag = 'scratch operand']
  #allocation5 [shape = 'f32[288,784]{1,0:T(8,128)}', space=vmem, size = 0xfc000, scoped, tag = 'scratch operand']
  #allocation6 [shape = 'f32[64,816]{1,0:T(8,128)}', space=vmem, size = 0x38000, scoped, tag = 'scratch operand']
  %s0 = inlined_call_operand.vmem [shape: f32[16,784], index: 0, kind: input, shape index: {}]
  %s1 = inlined_call_operand.vmem [shape: f32[2,848], index: 1, kind: input, shape index: {}]
  %s2 = inlined_call_operand.vmem [shape: f32[32,72], index: 2, kind: input, shape index: {}]
  %s3 = inlined_call_operand.vmem [shape: f32[32,1], index: 3, kind: input, shape index: {}]
  %s4 = inlined_call_operand.vmem [shape: f32[64,288], index: 4, kind: input, shape index: {}]
  %s5 = inlined_call_operand.vmem [shape: f32[64,1], index: 5, kind: input, shape index: {}]
  %s6 = inlined_call_operand.vmem [shape: f32[8,784,32], index: 6, kind: input, shape index: {}]
  %s7 = inlined_call_operand.vmem [shape: f32[1,32], index: 7, kind: input, shape index: {}]
  %s8 = inlined_call_operand.vmem [shape: f32[32,128], index: 8, kind: input, shape index: {}]
  %s9 = inlined_call_operand.vmem [shape: f32[1,128], index: 9, kind: input, shape index: {}]
  %s10 = inlined_call_operand.hbm [shape: f32[16,128], index: 10, kind: output, shape index: {}]
  %s11 = sld [smem:[#allocation0]]
  $region73: #{my_cnn_forward.1} parent=0
    _
  %s13 = ssub.s32 1, %s11
  %s14 = scalar_select 0, %s13, %s11
  $region1: #{my_cnn_forward.1} parent=0
    #allocation7 [shape = 'u8[8192]{0}', space=vmem, size = 0x2000, scoped, tag = 'output window, operand 0']
    #allocation8 [shape = 's32[2]{0}', space=sflag, size = 0x8, scoped, tag = 'scoped memory for my_cnn_forward.1']
    %15 = vsyncpa [#allocation8], 0
    %s16 = scalar_lea.sflag [#allocation8], 1
    %17 = vsyncpa %s16, 0
    loop: start=0, step=1, limit=4
    $region2: #{my_cnn_forward.1} parent=1 // loop_pre_header
      _
    $region3: #{my_cnn_forward.1} parent=1 // loop_header
      %s19 = sphi 0, %s23
      %p20 = scmp.ge.s32.totalorder %s19, 4
      %s29 = sphi 0, %s31
      %s32 = sphi 0, %s29
      %s33 = sphi 0, %s32
      %s49 = sphi 0, %s33
      %s53 = sphi 0, %s53
      %s55 = sphi 0, %s53
      %s56 = sphi 0, %s55
      %s70 = sphi 0, %s56
      %s74 = sphi 0, %s74
      %s76 = sphi 0, %s74
      %s77 = sphi 0, %s76
      %s91 = sphi 0, %s77
      %s95 = sphi 0, %s95
      %s97 = sphi 0, %s95
      %s98 = sphi 0, %s97
      %s112 = sphi 0, %s98
      %s116 = sphi 0, %s116
      %s118 = sphi 0, %s116
      %s119 = sphi 0, %s118
      %s133 = sphi 0, %s119
      %s137 = sphi 0, %s137
      %s139 = sphi 0, %s137
      %s140 = sphi 0, %s139
      %s154 = sphi 0, %s140
      %s158 = sphi 0, %s158
      %s160 = sphi 0, %s158
      %s161 = sphi 0, %s160
      %s175 = sphi 0, %s161
      %s179 = sphi 0, %s179
      %s181 = sphi 0, %s179
      %s182 = sphi 0, %s181
      %s196 = sphi 0, %s182
      %s200 = sphi 0, %s200
      %s202 = sphi 0, %s200
      %s203 = sphi 0, %s202
      %s217 = sphi 0, %s203
      %s221 = sphi 0, %s221
      %s223 = sphi 0, %s221
      %s224 = sphi 0, %s223
      %s238 = sphi 0, %s224
      %s244 = sphi 0, %s246
      %s247 = sphi 0, %s244
      %s248 = sphi 0, %s247
      %s264 = sphi 0, %s248
    $region4: #{my_cnn_forward.1} parent=1 // loop_header_branch
      %22 = sbr.rel (%p20) target = $region8
    $region5: #{my_cnn_forward.1} parent=1 // loop_body
      %s24 = ssub.s32 %s19, 1
      %s25 = ssub.s32 %s19, 2
      %s26 = sadd.s32 %s19, 1
      %s27 = ssub.s32 %s19, %s26
      %p28 = scmp.eq.s32.totalorder %s27, 0
      %s30 = sadd.s32 %s29, 1
      %s31 = scalar_select %p28, %s29, %s30
      %p34 = pneg %p28
      %p35 = scmp.eq.s32.totalorder %s19, 1
      %p36 = por %p34, %p35
      %p37 = scmp.ne.s32.totalorder %s29, %s32
      %p38 = scmp.eq.s32.totalorder %s19, 0
      %p39 = por %p37, %p38
      %p40 = scmp.ne.s32.totalorder %s29, %s32
      %p41 = scmp.eq.s32.totalorder %s24, 1
      %p42 = por %p40, %p41
      %p43 = scmp.ne.s32.totalorder %s32, %s33
      %p44 = scmp.eq.s32.totalorder %s24, 0
      %p45 = por %p43, %p44
      %p46 = scmp.ne.s32.totalorder %s32, %s33
      %p47 = scmp.eq.s32.totalorder %s25, 1
      %p48 = por %p46, %p47
      %p50 = scmp.ne.s32.totalorder %s33, %s49
      %p51 = scmp.eq.s32.totalorder %s25, 0
      %p52 = por %p50, %p51
      %s54 = sadd.s32 %s53, 1
      %p57 = scmp.eq.s32.totalorder %s19, 1
      %p58 = scmp.ne.s32.totalorder %s53, %s55
      %p59 = scmp.eq.s32.totalorder %s19, 0
      %p60 = por %p58, %p59
      %p61 = scmp.ne.s32.totalorder %s53, %s55
      %p62 = scmp.eq.s32.totalorder %s24, 1
      %p63 = por %p61, %p62
      %p64 = scmp.ne.s32.totalorder %s55, %s56
      %p65 = scmp.eq.s32.totalorder %s24, 0
      %p66 = por %p64, %p65
      %p67 = scmp.ne.s32.totalorder %s55, %s56
      %p68 = scmp.eq.s32.totalorder %s25, 1
      %p69 = por %p67, %p68
      %p71 = scmp.ne.s32.totalorder %s56, %s70
      %p72 = scmp.eq.s32.totalorder %s25, 0
      %p73 = por %p71, %p72
      %s75 = sadd.s32 %s74, 1
      %p78 = scmp.eq.s32.totalorder %s19, 1
      %p79 = scmp.ne.s32.totalorder %s74, %s76
      %p80 = scmp.eq.s32.totalorder %s19, 0
      %p81 = por %p79, %p80
      %p82 = scmp.ne.s32.totalorder %s74, %s76
      %p83 = scmp.eq.s32.totalorder %s24, 1
      %p84 = por %p82, %p83
      %p85 = scmp.ne.s32.totalorder %s76, %s77
      %p86 = scmp.eq.s32.totalorder %s24, 0
      %p87 = por %p85, %p86
      %p88 = scmp.ne.s32.totalorder %s76, %s77
      %p89 = scmp.eq.s32.totalorder %s25, 1
      %p90 = por %p88, %p89
      %p92 = scmp.ne.s32.totalorder %s77, %s91
      %p93 = scmp.eq.s32.totalorder %s25, 0
      %p94 = por %p92, %p93
      %s96 = sadd.s32 %s95, 1
      %p99 = scmp.eq.s32.totalorder %s19, 1
      %p100 = scmp.ne.s32.totalorder %s95, %s97
      %p101 = scmp.eq.s32.totalorder %s19, 0
      %p102 = por %p100, %p101
      %p103 = scmp.ne.s32.totalorder %s95, %s97
      %p104 = scmp.eq.s32.totalorder %s24, 1
      %p105 = por %p103, %p104
      %p106 = scmp.ne.s32.totalorder %s97, %s98
      %p107 = scmp.eq.s32.totalorder %s24, 0
      %p108 = por %p106, %p107
      %p109 = scmp.ne.s32.totalorder %s97, %s98
      %p110 = scmp.eq.s32.totalorder %s25, 1
      %p111 = por %p109, %p110
      %p113 = scmp.ne.s32.totalorder %s98, %s112
      %p114 = scmp.eq.s32.totalorder %s25, 0
      %p115 = por %p113, %p114
      %s117 = sadd.s32 %s116, 1
      %p120 = scmp.eq.s32.totalorder %s19, 1
      %p121 = scmp.ne.s32.totalorder %s116, %s118
      %p122 = scmp.eq.s32.totalorder %s19, 0
      %p123 = por %p121, %p122
      %p124 = scmp.ne.s32.totalorder %s116, %s118
      %p125 = scmp.eq.s32.totalorder %s24, 1
      %p126 = por %p124, %p125
      %p127 = scmp.ne.s32.totalorder %s118, %s119
      %p128 = scmp.eq.s32.totalorder %s24, 0
      %p129 = por %p127, %p128
      %p130 = scmp.ne.s32.totalorder %s118, %s119
      %p131 = scmp.eq.s32.totalorder %s25, 1
      %p132 = por %p130, %p131
      %p134 = scmp.ne.s32.totalorder %s119, %s133
      %p135 = scmp.eq.s32.totalorder %s25, 0
      %p136 = por %p134, %p135
      %s138 = sadd.s32 %s137, 1
      %p141 = scmp.eq.s32.totalorder %s19, 1
      %p142 = scmp.ne.s32.totalorder %s137, %s139
      %p143 = scmp.eq.s32.totalorder %s19, 0
      %p144 = por %p142, %p143
      %p145 = scmp.ne.s32.totalorder %s137, %s139
      %p146 = scmp.eq.s32.totalorder %s24, 1
      %p147 = por %p145, %p146
      %p148 = scmp.ne.s32.totalorder %s139, %s140
      %p149 = scmp.eq.s32.totalorder %s24, 0
      %p150 = por %p148, %p149
      %p151 = scmp.ne.s32.totalorder %s139, %s140
      %p152 = scmp.eq.s32.totalorder %s25, 1
      %p153 = por %p151, %p152
      %p155 = scmp.ne.s32.totalorder %s140, %s154
      %p156 = scmp.eq.s32.totalorder %s25, 0
      %p157 = por %p155, %p156
      %s159 = sadd.s32 %s158, 1
      %p162 = scmp.eq.s32.totalorder %s19, 1
      %p163 = scmp.ne.s32.totalorder %s158, %s160
      %p164 = scmp.eq.s32.totalorder %s19, 0
      %p165 = por %p163, %p164
      %p166 = scmp.ne.s32.totalorder %s158, %s160
      %p167 = scmp.eq.s32.totalorder %s24, 1
      %p168 = por %p166, %p167
      %p169 = scmp.ne.s32.totalorder %s160, %s161
      %p170 = scmp.eq.s32.totalorder %s24, 0
      %p171 = por %p169, %p170
      %p172 = scmp.ne.s32.totalorder %s160, %s161
      %p173 = scmp.eq.s32.totalorder %s25, 1
      %p174 = por %p172, %p173
      %p176 = scmp.ne.s32.totalorder %s161, %s175
      %p177 = scmp.eq.s32.totalorder %s25, 0
      %p178 = por %p176, %p177
      %s180 = sadd.s32 %s179, 1
      %p183 = scmp.eq.s32.totalorder %s19, 1
      %p184 = scmp.ne.s32.totalorder %s179, %s181
      %p185 = scmp.eq.s32.totalorder %s19, 0
      %p186 = por %p184, %p185
      %p187 = scmp.ne.s32.totalorder %s179, %s181
      %p188 = scmp.eq.s32.totalorder %s24, 1
      %p189 = por %p187, %p188
      %p190 = scmp.ne.s32.totalorder %s181, %s182
      %p191 = scmp.eq.s32.totalorder %s24, 0
      %p192 = por %p190, %p191
      %p193 = scmp.ne.s32.totalorder %s181, %s182
      %p194 = scmp.eq.s32.totalorder %s25, 1
      %p195 = por %p193, %p194
      %p197 = scmp.ne.s32.totalorder %s182, %s196
      %p198 = scmp.eq.s32.totalorder %s25, 0
      %p199 = por %p197, %p198
      %s201 = sadd.s32 %s200, 1
      %p204 = scmp.eq.s32.totalorder %s19, 1
      %p205 = scmp.ne.s32.totalorder %s200, %s202
      %p206 = scmp.eq.s32.totalorder %s19, 0
      %p207 = por %p205, %p206
      %p208 = scmp.ne.s32.totalorder %s200, %s202
      %p209 = scmp.eq.s32.totalorder %s24, 1
      %p210 = por %p208, %p209
      %p211 = scmp.ne.s32.totalorder %s202, %s203
      %p212 = scmp.eq.s32.totalorder %s24, 0
      %p213 = por %p211, %p212
      %p214 = scmp.ne.s32.totalorder %s202, %s203
      %p215 = scmp.eq.s32.totalorder %s25, 1
      %p216 = por %p214, %p215
      %p218 = scmp.ne.s32.totalorder %s203, %s217
      %p219 = scmp.eq.s32.totalorder %s25, 0
      %p220 = por %p218, %p219
      %s222 = sadd.s32 %s221, 1
      %p225 = scmp.eq.s32.totalorder %s19, 1
      %p226 = scmp.ne.s32.totalorder %s221, %s223
      %p227 = scmp.eq.s32.totalorder %s19, 0
      %p228 = por %p226, %p227
      %p229 = scmp.ne.s32.totalorder %s221, %s223
      %p230 = scmp.eq.s32.totalorder %s24, 1
      %p231 = por %p229, %p230
      %p232 = scmp.ne.s32.totalorder %s223, %s224
      %p233 = scmp.eq.s32.totalorder %s24, 0
      %p234 = por %p232, %p233
      %p235 = scmp.ne.s32.totalorder %s223, %s224
      %p236 = scmp.eq.s32.totalorder %s25, 1
      %p237 = por %p235, %p236
      %p239 = scmp.ne.s32.totalorder %s224, %s238
      %p240 = scmp.eq.s32.totalorder %s25, 0
      %p241 = por %p239, %p240
      %s242 = ssub.s32 %s19, %s26
      %p243 = scmp.eq.s32.totalorder %s242, 0
      %s245 = sadd.s32 %s244, 1
      %s246 = scalar_select %p243, %s244, %s245
      %p249 = pneg %p243
      %p250 = scmp.eq.s32.totalorder %s19, 1
      %p251 = por %p249, %p250
      %p252 = scmp.ne.s32.totalorder %s244, %s247
      %p253 = scmp.eq.s32.totalorder %s19, 0
      %p254 = por %p252, %p253
      %p255 = scmp.ne.s32.totalorder %s244, %s247
      %p256 = scmp.eq.s32.totalorder %s24, 1
      %p257 = por %p255, %p256
      %p258 = scmp.ne.s32.totalorder %s247, %s248
      %p259 = scmp.eq.s32.totalorder %s24, 0
      %p260 = por %p258, %p259
      %p261 = scmp.ne.s32.totalorder %s247, %s248
      %p262 = scmp.eq.s32.totalorder %s25, 1
      %p263 = por %p261, %p262
      %p265 = scmp.ne.s32.totalorder %s248, %s264
      %p266 = scmp.eq.s32.totalorder %s25, 0
      %p267 = por %p265, %p266
      %p268 = scmp.le.s32.totalorder 1, %s19
      %p269 = scmp.lt.s32.totalorder %s19, 3
      %p270 = pnand %p268, %p269
      %p271 = pneg %p270
      // Predicated region
      $region9: #{my_cnn_forward.1} parent=5 // pred_check
        _
      $region10: #{my_cnn_forward.1} parent=5 // pred_check_branch
        %273 = sbr.rel (%p270) target = $region12
      $region11: #{my_cnn_forward.1} parent=5 // pred_region
        %s274 = ssub.s32 %s19, 1
        // Predicated region
        $region13: #{my_cnn_forward.1} parent=11 // pred_check
          %p275 = pneg %p66
        $region14: #{my_cnn_forward.1} parent=11 // pred_check_branch
          %277 = sbr.rel (%p275) target = $region16
        $region15: #{my_cnn_forward.1} parent=11 // pred_region
          _
        $region16: #{my_cnn_forward.1} parent=11 // pred_fallthru
          _
        // Predicated region
        $region17: #{my_cnn_forward.1} parent=11 // pred_check
          %p278 = pneg %p87
        $region18: #{my_cnn_forward.1} parent=11 // pred_check_branch
          %280 = sbr.rel (%p278) target = $region20
        $region19: #{my_cnn_forward.1} parent=11 // pred_region
          _
        $region20: #{my_cnn_forward.1} parent=11 // pred_fallthru
          _
        // Predicated region
        $region21: #{my_cnn_forward.1} parent=11 // pred_check
          %p281 = pneg %p108
        $region22: #{my_cnn_forward.1} parent=11 // pred_check_branch
          %283 = sbr.rel (%p281) target = $region24
        $region23: #{my_cnn_forward.1} parent=11 // pred_region
          _
        $region24: #{my_cnn_forward.1} parent=11 // pred_fallthru
          _
        // Predicated region
        $region25: #{my_cnn_forward.1} parent=11 // pred_check
          %p284 = pneg %p129
        $region26: #{my_cnn_forward.1} parent=11 // pred_check_branch
          %286 = sbr.rel (%p284) target = $region28
        $region27: #{my_cnn_forward.1} parent=11 // pred_region
          _
        $region28: #{my_cnn_forward.1} parent=11 // pred_fallthru
          _
        // Predicated region
        $region29: #{my_cnn_forward.1} parent=11 // pred_check
          %p287 = pneg %p150
        $region30: #{my_cnn_forward.1} parent=11 // pred_check_branch
          %289 = sbr.rel (%p287) target = $region32
        $region31: #{my_cnn_forward.1} parent=11 // pred_region
          _
        $region32: #{my_cnn_forward.1} parent=11 // pred_fallthru
          _
        // Predicated region
        $region33: #{my_cnn_forward.1} parent=11 // pred_check
          %p290 = pneg %p171
        $region34: #{my_cnn_forward.1} parent=11 // pred_check_branch
          %292 = sbr.rel (%p290) target = $region36
        $region35: #{my_cnn_forward.1} parent=11 // pred_region
          _
        $region36: #{my_cnn_forward.1} parent=11 // pred_fallthru
          _
        // Predicated region
        $region37: #{my_cnn_forward.1} parent=11 // pred_check
          %p293 = pneg %p192
        $region38: #{my_cnn_forward.1} parent=11 // pred_check_branch
          %295 = sbr.rel (%p293) target = $region40
        $region39: #{my_cnn_forward.1} parent=11 // pred_region
          _
        $region40: #{my_cnn_forward.1} parent=11 // pred_fallthru
          _
        // Predicated region
        $region41: #{my_cnn_forward.1} parent=11 // pred_check
          %p296 = pneg %p213
        $region42: #{my_cnn_forward.1} parent=11 // pred_check_branch
          %298 = sbr.rel (%p296) target = $region44
        $region43: #{my_cnn_forward.1} parent=11 // pred_region
          _
        $region44: #{my_cnn_forward.1} parent=11 // pred_fallthru
          _
        // Predicated region
        $region45: #{my_cnn_forward.1} parent=11 // pred_check
          %p299 = pneg %p234
        $region46: #{my_cnn_forward.1} parent=11 // pred_check_branch
          %301 = sbr.rel (%p299) target = $region48
        $region47: #{my_cnn_forward.1} parent=11 // pred_region
          _
        $region48: #{my_cnn_forward.1} parent=11 // pred_fallthru
          _
      $region12: #{my_cnn_forward.1} parent=5 // pred_fallthru
        _
      %p302 = scmp.lt.s32.totalorder %s19, 2
      // Predicated region
      $region49: #{my_cnn_forward.1} parent=5 // pred_check
        %p303 = pneg %p302
      $region50: #{my_cnn_forward.1} parent=5 // pred_check_branch
        %305 = sbr.rel (%p303) target = $region52
      $region51: #{my_cnn_forward.1} parent=5 // pred_region
        // Predicated region
        $region53: #{my_cnn_forward.1} parent=51 // pred_check
          %p306 = pneg %p39
        $region54: #{my_cnn_forward.1} parent=51 // pred_check_branch
          %308 = sbr.rel (%p306) target = $region56
        $region55: #{my_cnn_forward.1} parent=51 // pred_region
          %p309 = scmp.lt.s32.totalorder %s19, 1
          %s310 = scalar_select %p309, %s19, 1
          %s311 = smul.addr %s310, 7
          %s312 = smul.addr %s311, 8
          %s313 = scalar_lea.vmem %s0, %s312
        $region56: #{my_cnn_forward.1} parent=51 // pred_fallthru
          _
      $region52: #{my_cnn_forward.1} parent=5 // pred_fallthru
        _
      %p314 = scmp.le.s32.totalorder 1, %s19
      %p315 = scmp.lt.s32.totalorder %s19, 3
      %p316 = pnand %p314, %p315
      %p317 = pneg %p316
      // Predicated region
      $region57: #{my_cnn_forward.1} parent=5 // pred_check
        _
      $region58: #{my_cnn_forward.1} parent=5 // pred_check_branch
        %319 = sbr.rel (%p316) target = $region60
      $region59: #{my_cnn_forward.1} parent=5 // pred_region
        %s320 = ssub.s32 %s19, 1
        %p321 = scmp.lt.s32.totalorder %s24, 1
        %s322 = scalar_select %p321, %s24, 1
        %s323 = smul.addr %s322, 7
        %s324 = smul.addr %s323, 8
        %s325 = scalar_lea.vmem %s0, %s324
        %p326 = pneg %p45
        %p327 = pneg %p42
        %p328 = pneg %p66
        %p329 = pneg %p63
        %p330 = pneg %p87
        %p331 = pneg %p84
        %p332 = pneg %p108
        %p333 = pneg %p105
        %p334 = pneg %p129
        %p335 = pneg %p126
        %p336 = pneg %p150
        %p337 = pneg %p147
        %p338 = pneg %p171
        %p339 = pneg %p168
        %p340 = pneg %p192
        %p341 = pneg %p189
        %p342 = pneg %p213
        %p343 = pneg %p210
        %p344 = pneg %p234
        %p345 = pneg %p231
        %p346 = pneg %p260
        %p347 = pneg %p257
        %s348 = sand.u32 %s247, 1
        %s349 = scalar_lea.sflag [#allocation8], %s348
        %s350 = sand.u32 %s247, 1
        %s351 = smul.addr %s350, 8
        %s352 = scalar_lea.vmem [#allocation7], %s351
        %p353 = scmp.lt.s32.totalorder %s24, 1
        %s354 = scalar_select %p353, %s24, 1
        %s355 = smul.addr %s354, 7
        %s356 = smul.addr %s355, 8
        %s357 = scalar_lea.vmem %s0, %s356
        %vm358 = vcmask 261120
        %359 = vst.msk [vmem:[#allocation2] sm:$0xff] %vm358, 0.0
        %vm360 = vcmask 654720
        %361 = vst.msk [vmem:[#allocation2 + $0x30] sm:$0xff] %vm360, 0.0
        %v362 = vld [vmem:[%s357] sm:$0xff]
        %v363 = vld [vmem:[%s357 + $0x8] sm:$0xff]
        %v364 = vld [vmem:[%s357 + $0x10] sm:$0xff]
        %v365 = vld [vmem:[%s357 + $0x18] sm:$0xff]
        %v366 = vld [vmem:[%s357 + $0x20] sm:$0xff]
        %v367 = vld [vmem:[%s357 + $0x28] sm:$0xff]
        %v368 = vld [vmem:[%s357 + $0x30] sm:$0xff]
        %376 = vrot.lane.b32.xlu0 %v362, 32
        %v377 = vpop.permute.xlu0 %376
        %378 = vrot.lane.b32.xlu0 %v363, 32
        %v379 = vpop.permute.xlu0 %378
        %380 = vrot.lane.b32.xlu0 %v364, 32
        %v381 = vpop.permute.xlu0 %380
        %382 = vrot.lane.b32.xlu0 %v365, 32
        %v383 = vpop.permute.xlu0 %382
        %384 = vrot.lane.b32.xlu0 %v366, 32
        %v385 = vpop.permute.xlu0 %384
        %386 = vrot.lane.b32.xlu0 %v367, 32
        %v387 = vpop.permute.xlu0 %386
        %388 = vrot.lane.b32.xlu0 %v368, 32
        %v389 = vpop.permute.xlu0 %388
        %v390 = vsel %vm358, %v377, %v379
        %v391 = vsel %vm358, %v379, %v381
        %v392 = vsel %vm358, %v381, %v383
        %v393 = vsel %vm358, %v383, %v385
        %v394 = vsel %vm358, %v385, %v387
        %v395 = vsel %vm358, %v387, %v389
        %vm403 = vcmask 1047808
        %404 = vst.msk [vmem:[#allocation2] sm:$0xff] %vm403, %v377
        %405 = vst [vmem:[#allocation2 + $0x8] sm:$0xff] %v390
        %406 = vst [vmem:[#allocation2 + $0x10] sm:$0xff] %v391
        %407 = vst [vmem:[#allocation2 + $0x18] sm:$0xff] %v392
        %408 = vst [vmem:[#allocation2 + $0x20] sm:$0xff] %v393
        %409 = vst [vmem:[#allocation2 + $0x28] sm:$0xff] %v394
        %vm410 = vcmask 392192
        %411 = vst.msk [vmem:[#allocation2 + $0x30] sm:$0xff] %vm410, %v395
        %v412 = vld [vmem:[#allocation2] sm:$0xff]
        %v413 = vld [vmem:[#allocation2 + $0x8] sm:$0xff]
        %v414 = vld [vmem:[#allocation2 + $0x10] sm:$0xff]
        %v415 = vld [vmem:[#allocation2 + $0x18] sm:$0xff]
        %v416 = vld [vmem:[#allocation2 + $0x20] sm:$0xff]
        %v417 = vld [vmem:[#allocation2 + $0x28] sm:$0xff]
        %v418 = vld [vmem:[#allocation2 + $0x30] sm:$0xff]
        %v419 = vld [vmem:[%s1] ss:$2 sm:$0x7f]
        %v421 = vlaneseq
        %v422 = vshrl.u32 %v421, 7
        %v423 = vsub.s32 0, %v422
        %v424 = vrot.slane %v419, %v423
        %v425 = vlaneseq
        %v426 = vshrl.u32 %v425, 7
        %v427 = vsub.s32 1, %v426
        %v428 = vrot.slane %v419, %v427
        %v429 = vlaneseq
        %v430 = vshrl.u32 %v429, 7
        %v431 = vsub.s32 2, %v430
        %v432 = vrot.slane %v419, %v431
        %v433 = vlaneseq
        %v434 = vshrl.u32 %v433, 7
        %v435 = vsub.s32 3, %v434
        %v436 = vrot.slane %v419, %v435
        %v437 = vlaneseq
        %v438 = vshrl.u32 %v437, 7
        %v439 = vsub.s32 4, %v438
        %v440 = vrot.slane %v419, %v439
        %v441 = vlaneseq
        %v442 = vshrl.u32 %v441, 7
        %v443 = vsub.s32 5, %v442
        %v444 = vrot.slane %v419, %v443
        %v445 = vlaneseq
        %v446 = vshrl.u32 %v445, 7
        %v447 = vsub.s32 6, %v446
        %v448 = vrot.slane %v419, %v447
        %v456 = vmul.f32 %v412, %v424
        %v457 = vmul.f32 %v413, %v428
        %v458 = vmul.f32 %v414, %v432
        %v459 = vmul.f32 %v415, %v436
        %v460 = vmul.f32 %v416, %v440
        %v461 = vmul.f32 %v417, %v444
        %v462 = vmul.f32 %v418, %v448
        %s463 = scalar_lea.vmem %s1, 1
        %v464 = vld [vmem:[%s463] ss:$2 sm:$0x7f]
        %v466 = vlaneseq
        %v467 = vshrl.u32 %v466, 7
        %v468 = vsub.s32 0, %v467
        %v469 = vrot.slane %v464, %v468
        %v470 = vlaneseq
        %v471 = vshrl.u32 %v470, 7
        %v472 = vsub.s32 1, %v471
        %v473 = vrot.slane %v464, %v472
        %v474 = vlaneseq
        %v475 = vshrl.u32 %v474, 7
        %v476 = vsub.s32 2, %v475
        %v477 = vrot.slane %v464, %v476
        %v478 = vlaneseq
        %v479 = vshrl.u32 %v478, 7
        %v480 = vsub.s32 3, %v479
        %v481 = vrot.slane %v464, %v480
        %v482 = vlaneseq
        %v483 = vshrl.u32 %v482, 7
        %v484 = vsub.s32 4, %v483
        %v485 = vrot.slane %v464, %v484
        %v486 = vlaneseq
        %v487 = vshrl.u32 %v486, 7
        %v488 = vsub.s32 5, %v487
        %v489 = vrot.slane %v464, %v488
        %v490 = vlaneseq
        %v491 = vshrl.u32 %v490, 7
        %v492 = vsub.s32 6, %v491
        %v493 = vrot.slane %v464, %v492
        %v501 = vmul.f32 %v412, %v469
        %v502 = vmul.f32 %v413, %v473
        %v503 = vmul.f32 %v414, %v477
        %v504 = vmul.f32 %v415, %v481
        %v505 = vmul.f32 %v416, %v485
        %v506 = vmul.f32 %v417, %v489
        %v507 = vmul.f32 %v418, %v493
        %515 = vrot.lane.b32.xlu0 %v456, 125
        %v516 = vpop.permute.xlu0 %515
        %517 = vrot.lane.b32.xlu0 %v457, 125
        %v518 = vpop.permute.xlu0 %517
        %519 = vrot.lane.b32.xlu0 %v458, 125
        %v520 = vpop.permute.xlu0 %519
        %521 = vrot.lane.b32.xlu0 %v459, 125
        %v522 = vpop.permute.xlu0 %521
        %523 = vrot.lane.b32.xlu0 %v460, 125
        %v524 = vpop.permute.xlu0 %523
        %525 = vrot.lane.b32.xlu0 %v461, 125
        %v526 = vpop.permute.xlu0 %525
        %527 = vrot.lane.b32.xlu0 %v462, 125
        %v528 = vpop.permute.xlu0 %527
        %vm529 = vcmask 1022976
        %v530 = vsel %vm529, %v516, %v518
        %v531 = vsel %vm529, %v518, %v520
        %v532 = vsel %vm529, %v520, %v522
        %v533 = vsel %vm529, %v522, %v524
        %v534 = vsel %vm529, %v524, %v526
        %v535 = vsel %vm529, %v526, %v528
        %543 = vst [vmem:[#allocation4] sm:$0xff] %v530
        %544 = vst [vmem:[#allocation4 + $0x8] sm:$0xff] %v531
        %545 = vst [vmem:[#allocation4 + $0x10] sm:$0xff] %v532
        %546 = vst [vmem:[#allocation4 + $0x18] sm:$0xff] %v533
        %547 = vst [vmem:[#allocation4 + $0x20] sm:$0xff] %v534
        %548 = vst [vmem:[#allocation4 + $0x28] sm:$0xff] %v535
        %vm549 = vcmask 130048
        %550 = vst.msk [vmem:[#allocation4 + $0x30] sm:$0xff] %vm549, %v528
        %558 = vrot.lane.b32.xlu0 %v412, 124
        %v559 = vpop.permute.xlu0 %558
        %560 = vrot.lane.b32.xlu0 %v413, 124
        %v561 = vpop.permute.xlu0 %560
        %562 = vrot.lane.b32.xlu0 %v414, 124
        %v563 = vpop.permute.xlu0 %562
        %564 = vrot.lane.b32.xlu0 %v415, 124
        %v565 = vpop.permute.xlu0 %564
        %566 = vrot.lane.b32.xlu0 %v416, 124
        %v567 = vpop.permute.xlu0 %566
        %568 = vrot.lane.b32.xlu0 %v417, 124
        %v569 = vpop.permute.xlu0 %568
        %570 = vrot.lane.b32.xlu0 %v418, 124
        %v571 = vpop.permute.xlu0 %570
        %vm572 = vcmask 1014784
        %v573 = vsel %vm572, %v559, %v561
        %v574 = vsel %vm572, %v561, %v563
        %v575 = vsel %vm572, %v563, %v565
        %v576 = vsel %vm572, %v565, %v567
        %v577 = vsel %vm572, %v567, %v569
        %v578 = vsel %vm572, %v569, %v571
        %586 = vst [vmem:[#allocation4 + $0x38] sm:$0xff] %v573
        %587 = vst [vmem:[#allocation4 + $0x40] sm:$0xff] %v574
        %588 = vst [vmem:[#allocation4 + $0x48] sm:$0xff] %v575
        %589 = vst [vmem:[#allocation4 + $0x50] sm:$0xff] %v576
        %590 = vst [vmem:[#allocation4 + $0x58] sm:$0xff] %v577
        %591 = vst [vmem:[#allocation4 + $0x60] sm:$0xff] %v578
        %592 = vst.msk [vmem:[#allocation4 + $0x68] sm:$0xff] %vm549, %v571
        %600 = vrot.lane.b32.xlu0 %v501, 123
        %v601 = vpop.permute.xlu0 %600
        %602 = vrot.lane.b32.xlu0 %v502, 123
        %v603 = vpop.permute.xlu0 %602
        %604 = vrot.lane.b32.xlu0 %v503, 123
        %v605 = vpop.permute.xlu0 %604
        %606 = vrot.lane.b32.xlu0 %v504, 123
        %v607 = vpop.permute.xlu0 %606
        %608 = vrot.lane.b32.xlu0 %v505, 123
        %v609 = vpop.permute.xlu0 %608
        %610 = vrot.lane.b32.xlu0 %v506, 123
        %v611 = vpop.permute.xlu0 %610
        %612 = vrot.lane.b32.xlu0 %v507, 123
        %v613 = vpop.permute.xlu0 %612
        %vm614 = vcmask 1006592
        %v615 = vsel %vm614, %v601, %v603
        %v616 = vsel %vm614, %v603, %v605
        %v617 = vsel %vm614, %v605, %v607
        %v618 = vsel %vm614, %v607, %v609
        %v619 = vsel %vm614, %v609, %v611
        %v620 = vsel %vm614, %v611, %v613
        %628 = vst [vmem:[#allocation4 + $0x70] sm:$0xff] %v615
        %629 = vst [vmem:[#allocation4 + $0x78] sm:$0xff] %v616
        %630 = vst [vmem:[#allocation4 + $0x80] sm:$0xff] %v617
        %631 = vst [vmem:[#allocation4 + $0x88] sm:$0xff] %v618
        %632 = vst [vmem:[#allocation4 + $0x90] sm:$0xff] %v619
        %633 = vst [vmem:[#allocation4 + $0x98] sm:$0xff] %v620
        %634 = vst.msk [vmem:[#allocation4 + $0xa0] sm:$0xff] %vm549, %v613
        %635 = vrot.lane.b32.xlu0 %v456, 97
        %v636 = vpop.permute.xlu0 %635
        %637 = vrot.lane.b32.xlu0 %v457, 97
        %v638 = vpop.permute.xlu0 %637
        %639 = vrot.lane.b32.xlu0 %v458, 97
        %v640 = vpop.permute.xlu0 %639
        %641 = vrot.lane.b32.xlu0 %v459, 97
        %v642 = vpop.permute.xlu0 %641
        %643 = vrot.lane.b32.xlu0 %v460, 97
        %v644 = vpop.permute.xlu0 %643
        %645 = vrot.lane.b32.xlu0 %v461, 97
        %v646 = vpop.permute.xlu0 %645
        %647 = vrot.lane.b32.xlu0 %v462, 97
        %v648 = vpop.permute.xlu0 %647
        %vm649 = vcmask 793600
        %v650 = vsel %vm649, %v636, %v638
        %v651 = vsel %vm649, %v638, %v640
        %v652 = vsel %vm649, %v640, %v642
        %v653 = vsel %vm649, %v642, %v644
        %v654 = vsel %vm649, %v644, %v646
        %v655 = vsel %vm649, %v646, %v648
        %663 = vst [vmem:[#allocation4 + $0xa8] sm:$0xff] %v650
        %664 = vst [vmem:[#allocation4 + $0xb0] sm:$0xff] %v651
        %665 = vst [vmem:[#allocation4 + $0xb8] sm:$0xff] %v652
        %666 = vst [vmem:[#allocation4 + $0xc0] sm:$0xff] %v653
        %667 = vst [vmem:[#allocation4 + $0xc8] sm:$0xff] %v654
        %668 = vst [vmem:[#allocation4 + $0xd0] sm:$0xff] %v655
        %669 = vst.msk [vmem:[#allocation4 + $0xd8] sm:$0xff] %vm549, %v648
        %670 = vrot.lane.b32.xlu0 %v412, 96
        %v671 = vpop.permute.xlu0 %670
        %672 = vrot.lane.b32.xlu0 %v413, 96
        %v673 = vpop.permute.xlu0 %672
        %674 = vrot.lane.b32.xlu0 %v414, 96
        %v675 = vpop.permute.xlu0 %674
        %676 = vrot.lane.b32.xlu0 %v415, 96
        %v677 = vpop.permute.xlu0 %676
        %678 = vrot.lane.b32.xlu0 %v416, 96
        %v679 = vpop.permute.xlu0 %678
        %680 = vrot.lane.b32.xlu0 %v417, 96
        %v681 = vpop.permute.xlu0 %680
        %682 = vrot.lane.b32.xlu0 %v418, 96
        %v683 = vpop.permute.xlu0 %682
        %vm684 = vcmask 785408
        %v685 = vsel %vm684, %v671, %v673
        %v686 = vsel %vm684, %v673, %v675
        %v687 = vsel %vm684, %v675, %v677
        %v688 = vsel %vm684, %v677, %v679
        %v689 = vsel %vm684, %v679, %v681
        %v690 = vsel %vm684, %v681, %v683
        %698 = vst [vmem:[#allocation4 + $0xe0] sm:$0xff] %v685
        %699 = vst [vmem:[#allocation4 + $0xe8] sm:$0xff] %v686
        %700 = vst [vmem:[#allocation4 + $0xf0] sm:$0xff] %v687
        %701 = vst [vmem:[#allocation4 + $0xf8] sm:$0xff] %v688
        %702 = vst [vmem:[#allocation4 + $0x100] sm:$0xff] %v689
        %703 = vst [vmem:[#allocation4 + $0x108] sm:$0xff] %v690
        %704 = vst.msk [vmem:[#allocation4 + $0x110] sm:$0xff] %vm549, %v683
        %705 = vrot.lane.b32.xlu0 %v501, 95
        %v706 = vpop.permute.xlu0 %705
        %707 = vrot.lane.b32.xlu0 %v502, 95
        %v708 = vpop.permute.xlu0 %707
        %709 = vrot.lane.b32.xlu0 %v503, 95
        %v710 = vpop.permute.xlu0 %709
        %711 = vrot.lane.b32.xlu0 %v504, 95
        %v712 = vpop.permute.xlu0 %711
        %713 = vrot.lane.b32.xlu0 %v505, 95
        %v714 = vpop.permute.xlu0 %713
        %715 = vrot.lane.b32.xlu0 %v506, 95
        %v716 = vpop.permute.xlu0 %715
        %717 = vrot.lane.b32.xlu0 %v507, 95
        %v718 = vpop.permute.xlu0 %717
        %vm719 = vcmask 777216
        %v720 = vsel %vm719, %v706, %v708
        %v721 = vsel %vm719, %v708, %v710
        %v722 = vsel %vm719, %v710, %v712
        %v723 = vsel %vm719, %v712, %v714
        %v724 = vsel %vm719, %v714, %v716
        %v725 = vsel %vm719, %v716, %v718
        %733 = vst [vmem:[#allocation4 + $0x118] sm:$0xff] %v720
        %734 = vst [vmem:[#allocation4 + $0x120] sm:$0xff] %v721
        %735 = vst [vmem:[#allocation4 + $0x128] sm:$0xff] %v722
        %736 = vst [vmem:[#allocation4 + $0x130] sm:$0xff] %v723
        %737 = vst [vmem:[#allocation4 + $0x138] sm:$0xff] %v724
        %738 = vst [vmem:[#allocation4 + $0x140] sm:$0xff] %v725
        %739 = vst.msk [vmem:[#allocation4 + $0x148] sm:$0xff] %vm549, %v718
        %740 = vrot.lane.b32.xlu0 %v456, 69
        %v741 = vpop.permute.xlu0 %740
        %742 = vrot.lane.b32.xlu0 %v457, 69
        %v743 = vpop.permute.xlu0 %742
        %744 = vrot.lane.b32.xlu0 %v458, 69
        %v745 = vpop.permute.xlu0 %744
        %746 = vrot.lane.b32.xlu0 %v459, 69
        %v747 = vpop.permute.xlu0 %746
        %748 = vrot.lane.b32.xlu0 %v460, 69
        %v749 = vpop.permute.xlu0 %748
        %750 = vrot.lane.b32.xlu0 %v461, 69
        %v751 = vpop.permute.xlu0 %750
        %752 = vrot.lane.b32.xlu0 %v462, 69
        %v753 = vpop.permute.xlu0 %752
        %vm754 = vcmask 564224
        %v755 = vsel %vm754, %v741, %v743
        %v756 = vsel %vm754, %v743, %v745
        %v757 = vsel %vm754, %v745, %v747
        %v758 = vsel %vm754, %v747, %v749
        %v759 = vsel %vm754, %v749, %v751
        %v760 = vsel %vm754, %v751, %v753
        %768 = vst [vmem:[#allocation4 + $0x150] sm:$0xff] %v755
        %769 = vst [vmem:[#allocation4 + $0x158] sm:$0xff] %v756
        %770 = vst [vmem:[#allocation4 + $0x160] sm:$0xff] %v757
        %771 = vst [vmem:[#allocation4 + $0x168] sm:$0xff] %v758
        %772 = vst [vmem:[#allocation4 + $0x170] sm:$0xff] %v759
        %773 = vst [vmem:[#allocation4 + $0x178] sm:$0xff] %v760
        %774 = vst.msk [vmem:[#allocation4 + $0x180] sm:$0xff] %vm549, %v753
        %775 = vrot.lane.b32.xlu0 %v412, 68
        %v776 = vpop.permute.xlu0 %775
        %777 = vrot.lane.b32.xlu0 %v413, 68
        %v778 = vpop.permute.xlu0 %777
        %779 = vrot.lane.b32.xlu0 %v414, 68
        %v780 = vpop.permute.xlu0 %779
        %781 = vrot.lane.b32.xlu0 %v415, 68
        %v782 = vpop.permute.xlu0 %781
        %783 = vrot.lane.b32.xlu0 %v416, 68
        %v784 = vpop.permute.xlu0 %783
        %785 = vrot.lane.b32.xlu0 %v417, 68
        %v786 = vpop.permute.xlu0 %785
        %787 = vrot.lane.b32.xlu0 %v418, 68
        %v788 = vpop.permute.xlu0 %787
        %vm789 = vcmask 556032
        %v790 = vsel %vm789, %v776, %v778
        %v791 = vsel %vm789, %v778, %v780
        %v792 = vsel %vm789, %v780, %v782
        %v793 = vsel %vm789, %v782, %v784
        %v794 = vsel %vm789, %v784, %v786
        %v795 = vsel %vm789, %v786, %v788
        %803 = vst [vmem:[#allocation4 + $0x188] sm:$0xff] %v790
        %804 = vst [vmem:[#allocation4 + $0x190] sm:$0xff] %v791
        %805 = vst [vmem:[#allocation4 + $0x198] sm:$0xff] %v792
        %806 = vst [vmem:[#allocation4 + $0x1a0] sm:$0xff] %v793
        %807 = vst [vmem:[#allocation4 + $0x1a8] sm:$0xff] %v794
        %808 = vst [vmem:[#allocation4 + $0x1b0] sm:$0xff] %v795
        %809 = vst.msk [vmem:[#allocation4 + $0x1b8] sm:$0xff] %vm549, %v788
        %810 = vrot.lane.b32.xlu0 %v501, 67
        %v811 = vpop.permute.xlu0 %810
        %812 = vrot.lane.b32.xlu0 %v502, 67
        %v813 = vpop.permute.xlu0 %812
        %814 = vrot.lane.b32.xlu0 %v503, 67
        %v815 = vpop.permute.xlu0 %814
        %816 = vrot.lane.b32.xlu0 %v504, 67
        %v817 = vpop.permute.xlu0 %816
        %818 = vrot.lane.b32.xlu0 %v505, 67
        %v819 = vpop.permute.xlu0 %818
        %820 = vrot.lane.b32.xlu0 %v506, 67
        %v821 = vpop.permute.xlu0 %820
        %822 = vrot.lane.b32.xlu0 %v507, 67
        %v823 = vpop.permute.xlu0 %822
        %vm824 = vcmask 547840
        %v825 = vsel %vm824, %v811, %v813
        %v826 = vsel %vm824, %v813, %v815
        %v827 = vsel %vm824, %v815, %v817
        %v828 = vsel %vm824, %v817, %v819
        %v829 = vsel %vm824, %v819, %v821
        %v830 = vsel %vm824, %v821, %v823
        %838 = vst [vmem:[#allocation4 + $0x1c0] sm:$0xff] %v825
        %839 = vst [vmem:[#allocation4 + $0x1c8] sm:$0xff] %v826
        %840 = vst [vmem:[#allocation4 + $0x1d0] sm:$0xff] %v827
        %841 = vst [vmem:[#allocation4 + $0x1d8] sm:$0xff] %v828
        %842 = vst [vmem:[#allocation4 + $0x1e0] sm:$0xff] %v829
        %843 = vst [vmem:[#allocation4 + $0x1e8] sm:$0xff] %v830
        %844 = vst.msk [vmem:[#allocation4 + $0x1f0] sm:$0xff] %vm549, %v823
        %v845 = vld [vmem:[#allocation4] sm:$0xff]
        %v846 = vld [vmem:[#allocation4 + $0x8] sm:$0xff]
        %v847 = vld [vmem:[#allocation4 + $0x10] sm:$0xff]
        %v848 = vld [vmem:[#allocation4 + $0x18] sm:$0xff]
        %v849 = vld [vmem:[#allocation4 + $0x20] sm:$0xff]
        %v850 = vld [vmem:[#allocation4 + $0x28] sm:$0xff]
        %v851 = vld [vmem:[#allocation4 + $0x30] sm:$0xff]
        %v852 = vld [vmem:[#allocation4 + $0x38] sm:$0xff]
        %v853 = vld [vmem:[#allocation4 + $0x40] sm:$0xff]
        %v854 = vld [vmem:[#allocation4 + $0x48] sm:$0xff]
        %v855 = vld [vmem:[#allocation4 + $0x50] sm:$0xff]
        %v856 = vld [vmem:[#allocation4 + $0x58] sm:$0xff]
        %v857 = vld [vmem:[#allocation4 + $0x60] sm:$0xff]
        %v858 = vld [vmem:[#allocation4 + $0x68] sm:$0xff]
        %v859 = vld [vmem:[#allocation4 + $0x70] sm:$0xff]
        %v860 = vld [vmem:[#allocation4 + $0x78] sm:$0xff]
        %v861 = vld [vmem:[#allocation4 + $0x80] sm:$0xff]
        %v862 = vld [vmem:[#allocation4 + $0x88] sm:$0xff]
        %v863 = vld [vmem:[#allocation4 + $0x90] sm:$0xff]
        %v864 = vld [vmem:[#allocation4 + $0x98] sm:$0xff]
        %v865 = vld [vmem:[#allocation4 + $0xa0] sm:$0xff]
        %v866 = vld [vmem:[#allocation4 + $0xa8] sm:$0xff]
        %v867 = vld [vmem:[#allocation4 + $0xb0] sm:$0xff]
        %v868 = vld [vmem:[#allocation4 + $0xb8] sm:$0xff]
        %v869 = vld [vmem:[#allocation4 + $0xc0] sm:$0xff]
        %v870 = vld [vmem:[#allocation4 + $0xc8] sm:$0xff]
        %v871 = vld [vmem:[#allocation4 + $0xd0] sm:$0xff]
        %v872 = vld [vmem:[#allocation4 + $0xd8] sm:$0xff]
        %v873 = vld [vmem:[#allocation4 + $0xe0] sm:$0xff]
        %v874 = vld [vmem:[#allocation4 + $0xe8] sm:$0xff]
        %v875 = vld [vmem:[#allocation4 + $0xf0] sm:$0xff]
        %v876 = vld [vmem:[#allocation4 + $0xf8] sm:$0xff]
        %v877 = vld [vmem:[#allocation4 + $0x100] sm:$0xff]
        %v878 = vld [vmem:[#allocation4 + $0x108] sm:$0xff]
        %v879 = vld [vmem:[#allocation4 + $0x110] sm:$0xff]
        %v880 = vld [vmem:[#allocation4 + $0x118] sm:$0xff]
        %v881 = vld [vmem:[#allocation4 + $0x120] sm:$0xff]
        %v882 = vld [vmem:[#allocation4 + $0x128] sm:$0xff]
        %v883 = vld [vmem:[#allocation4 + $0x130] sm:$0xff]
        %v884 = vld [vmem:[#allocation4 + $0x138] sm:$0xff]
        %v885 = vld [vmem:[#allocation4 + $0x140] sm:$0xff]
        %v886 = vld [vmem:[#allocation4 + $0x148] sm:$0xff]
        %v887 = vld [vmem:[#allocation4 + $0x150] sm:$0xff]
        %v888 = vld [vmem:[#allocation4 + $0x158] sm:$0xff]
        %v889 = vld [vmem:[#allocation4 + $0x160] sm:$0xff]
        %v890 = vld [vmem:[#allocation4 + $0x168] sm:$0xff]
        %v891 = vld [vmem:[#allocation4 + $0x170] sm:$0xff]
        %v892 = vld [vmem:[#allocation4 + $0x178] sm:$0xff]
        %v893 = vld [vmem:[#allocation4 + $0x180] sm:$0xff]
        %v894 = vld [vmem:[#allocation4 + $0x188] sm:$0xff]
        %v895 = vld [vmem:[#allocation4 + $0x190] sm:$0xff]
        %v896 = vld [vmem:[#allocation4 + $0x198] sm:$0xff]
        %v897 = vld [vmem:[#allocation4 + $0x1a0] sm:$0xff]
        %v898 = vld [vmem:[#allocation4 + $0x1a8] sm:$0xff]
        %v899 = vld [vmem:[#allocation4 + $0x1b0] sm:$0xff]
        %v900 = vld [vmem:[#allocation4 + $0x1b8] sm:$0xff]
        %v901 = vld [vmem:[#allocation4 + $0x1c0] sm:$0xff]
        %v902 = vld [vmem:[#allocation4 + $0x1c8] sm:$0xff]
        %v903 = vld [vmem:[#allocation4 + $0x1d0] sm:$0xff]
        %v904 = vld [vmem:[#allocation4 + $0x1d8] sm:$0xff]
        %v905 = vld [vmem:[#allocation4 + $0x1e0] sm:$0xff]
        %v906 = vld [vmem:[#allocation4 + $0x1e8] sm:$0xff]
        %v907 = vld [vmem:[#allocation4 + $0x1f0] sm:$0xff]
        %v908 = vld [vmem:[%s2] sm:$0xff]
        %v909 = vld [vmem:[%s2 + $0x8] sm:$0xff]
        %v910 = vld [vmem:[%s2 + $0x10] sm:$0xff]
        %v911 = vld [vmem:[%s2 + $0x18] sm:$0xff]
        %v912 = vld [vmem:[%s3] sm:$0xff]
        %v913 = vld [vmem:[%s3 + $0x8] sm:$0xff]
        %v914 = vld [vmem:[%s3 + $0x10] sm:$0xff]
        %v915 = vld [vmem:[%s3 + $0x18] sm:$0xff]
        %917 = vset.pattern.permute.xlu0 0
        %918 = vperm.xlu0 %917, %v912
        %v919 = vpop.permute.xlu0 %918
        %922 = vset.pattern.permute.xlu0 0
        %923 = vperm.xlu0 %922, %v913
        %v924 = vpop.permute.xlu0 %923
        %927 = vset.pattern.permute.xlu0 0
        %928 = vperm.xlu0 %927, %v914
        %v929 = vpop.permute.xlu0 %928
        %932 = vset.pattern.permute.xlu0 0
        %933 = vperm.xlu0 %932, %v915
        %v934 = vpop.permute.xlu0 %933
        %vm936 = vcmask 588800
        %v938 = vsel %vm936, %v908, 0
        %v941 = vsel %vm936, %v909, 0
        %v944 = vsel %vm936, %v910, 0
        %v947 = vsel %vm936, %v911, 0
        %949 = vmatprep.subr.mxu0 0.0
        %950 = vmatpush1.msra.mxu0 0.0
        %951 = vmatprep.subr.mxu0 0.0
        %952 = vmatpush1.msra.mxu0 0.0
        %953 = vmatprep.subr.mxu0 0.0
        %954 = vmatpush1.msra.mxu0 0.0
        %955 = vmatprep.subr.mxu0 0.0
        %956 = vmatpush1.msra.mxu0 0.0
        %957 = vmatprep.subr.mxu0 0.0
        %958 = vmatpush1.msra.mxu0 0.0
        %959 = vmatprep.subr.mxu0 0.0
        %960 = vmatpush1.msra.mxu0 0.0
        %961 = vmatprep.subr.mxu0 0.0
        %962 = vmatpush1.msra.mxu0 0.0
        %963 = vmatprep.subr.mxu0 %v902
        %964 = vmatpush1.msra.mxu0 %v901
        %965 = vmatprep.subr.mxu0 %v895
        %966 = vmatpush1.msra.mxu0 %v894
        %967 = vmatprep.subr.mxu0 %v888
        %968 = vmatpush1.msra.mxu0 %v887
        %969 = vmatprep.subr.mxu0 %v881
        %970 = vmatpush1.msra.mxu0 %v880
        %971 = vmatprep.subr.mxu0 %v874
        %972 = vmatpush1.msra.mxu0 %v873
        %973 = vmatprep.subr.mxu0 %v867
        %974 = vmatpush1.msra.mxu0 %v866
        %975 = vmatprep.subr.mxu0 %v860
        %976 = vmatpush1.msra.mxu0 %v859
        %977 = vmatprep.subr.mxu0 %v853
        %978 = vmatpush1.msra.mxu0 %v852
        %979 = vmatprep.subr.mxu0 %v846
        %980 = vmatpush1.msra.mxu0 %v845
        %981 = vmatprep.subr.mxu0 0.0
        %982 = vmatpush2.msra.mxu0 0.0
        %983 = vmatprep.subr.mxu0 0.0
        %984 = vmatpush2.msra.mxu0 0.0
        %985 = vmatprep.subr.mxu0 0.0
        %986 = vmatpush2.msra.mxu0 0.0
        %987 = vmatprep.subr.mxu0 0.0
        %988 = vmatpush2.msra.mxu0 0.0
        %989 = vmatprep.subr.mxu0 0.0
        %990 = vmatpush2.msra.mxu0 0.0
        %991 = vmatprep.subr.mxu0 0.0
        %992 = vmatpush2.msra.mxu0 0.0
        %993 = vmatprep.subr.mxu0 0.0
        %994 = vmatpush2.msra.mxu0 0.0
        %995 = vmatprep.subr.mxu0 0.0
        %996 = vmatpush2.msra.mxu0 0.0
        %997 = vmatprep.subr.mxu0 0.0
        %998 = vmatpush2.msra.mxu0 0.0
        %999 = vmatprep.subr.mxu0 0.0
        %1000 = vmatpush2.msra.mxu0 0.0
        %1001 = vmatprep.subr.mxu0 0.0
        %1002 = vmatpush2.msra.mxu0 0.0
        %1003 = vmatprep.subr.mxu0 0.0
        %1004 = vmatpush2.msra.mxu0 0.0
        %1005 = vmatprep.subr.mxu0 0.0
        %1006 = vmatpush2.msra.mxu0 0.0
        %1007 = vmatprep.subr.mxu0 0.0
        %1008 = vmatpush2.msra.mxu0 0.0
        %1009 = vmatprep.subr.mxu0 0.0
        %1010 = vmatpush2.msra.mxu0 0.0
        %1011 = vmatprep.subr.mxu0 0.0
        %1012 = vmatpush2.msra.mxu0 0.0
        %1013 = vmatprep.mubr.f32.mxu0 0.0
        %1014 = vmatmul.mubr.f32.gmra.mxu0 %v938
        %v1015 = vpop.f32.mrf.mxu0
        %v1016 = vadd.f32 %v919, %v1015
        %v1017 = vpop.f32.mrf.mxu0
        %v1018 = vadd.f32 %v919, %v1017
        %1019 = vmatprep.mubr.f32.mxu0 0.0
        %1020 = vmatmul.mubr.f32.gmra.mxu0 %v941
        %v1021 = vpop.f32.mrf.mxu0
        %v1022 = vadd.f32 %v924, %v1021
        %v1023 = vpop.f32.mrf.mxu0
        %v1024 = vadd.f32 %v924, %v1023
        %1025 = vmatprep.mubr.f32.mxu0 0.0
        %1026 = vmatmul.mubr.f32.gmra.mxu0 %v944
        %v1027 = vpop.f32.mrf.mxu0
        %v1028 = vadd.f32 %v929, %v1027
        %v1029 = vpop.f32.mrf.mxu0
        %v1030 = vadd.f32 %v929, %v1029
        %1031 = vmatprep.mubr.f32.mxu0 0.0
        %1032 = vmatmul.mubr.f32.gmra.mxu0 %v947
        %v1033 = vpop.f32.mrf.mxu0
        %v1034 = vadd.f32 %v934, %v1033
        %v1035 = vpop.f32.mrf.mxu0
        %v1036 = vadd.f32 %v934, %v1035
        %1037 = vdwg.mxu0
        %1038 = vmatprep.subr.mxu0 0.0
        %1039 = vmatpush1.msra.mxu0 0.0
        %1040 = vmatprep.subr.mxu0 0.0
        %1041 = vmatpush1.msra.mxu0 0.0
        %1042 = vmatprep.subr.mxu0 0.0
        %1043 = vmatpush1.msra.mxu0 0.0
        %1044 = vmatprep.subr.mxu0 0.0
        %1045 = vmatpush1.msra.mxu0 0.0
        %1046 = vmatprep.subr.mxu0 0.0
        %1047 = vmatpush1.msra.mxu0 0.0
        %1048 = vmatprep.subr.mxu0 0.0
        %1049 = vmatpush1.msra.mxu0 0.0
        %1050 = vmatprep.subr.mxu0 0.0
        %1051 = vmatpush1.msra.mxu0 0.0
        %1052 = vmatprep.subr.mxu0 %v904
        %1053 = vmatpush1.msra.mxu0 %v903
        %1054 = vmatprep.subr.mxu0 %v897
        %1055 = vmatpush1.msra.mxu0 %v896
        %1056 = vmatprep.subr.mxu0 %v890
        %1057 = vmatpush1.msra.mxu0 %v889
        %1058 = vmatprep.subr.mxu0 %v883
        %1059 = vmatpush1.msra.mxu0 %v882
        %1060 = vmatprep.subr.mxu0 %v876
        %1061 = vmatpush1.msra.mxu0 %v875
        %1062 = vmatprep.subr.mxu0 %v869
        %1063 = vmatpush1.msra.mxu0 %v868
        %1064 = vmatprep.subr.mxu0 %v862
        %1065 = vmatpush1.msra.mxu0 %v861
        %1066 = vmatprep.subr.mxu0 %v855
        %1067 = vmatpush1.msra.mxu0 %v854
        %1068 = vmatprep.subr.mxu0 %v848
        %1069 = vmatpush1.msra.mxu0 %v847
        %1070 = vmatprep.subr.mxu0 0.0
        %1071 = vmatpush2.msra.mxu0 0.0
        %1072 = vmatprep.subr.mxu0 0.0
        %1073 = vmatpush2.msra.mxu0 0.0
        %1074 = vmatprep.subr.mxu0 0.0
        %1075 = vmatpush2.msra.mxu0 0.0
        %1076 = vmatprep.subr.mxu0 0.0
        %1077 = vmatpush2.msra.mxu0 0.0
        %1078 = vmatprep.subr.mxu0 0.0
        %1079 = vmatpush2.msra.mxu0 0.0
        %1080 = vmatprep.subr.mxu0 0.0
        %1081 = vmatpush2.msra.mxu0 0.0
        %1082 = vmatprep.subr.mxu0 0.0
        %1083 = vmatpush2.msra.mxu0 0.0
        %1084 = vmatprep.subr.mxu0 0.0
        %1085 = vmatpush2.msra.mxu0 0.0
        %1086 = vmatprep.subr.mxu0 0.0
        %1087 = vmatpush2.msra.mxu0 0.0
        %1088 = vmatprep.subr.mxu0 0.0
        %1089 = vmatpush2.msra.mxu0 0.0
        %1090 = vmatprep.subr.mxu0 0.0
        %1091 = vmatpush2.msra.mxu0 0.0
        %1092 = vmatprep.subr.mxu0 0.0
        %1093 = vmatpush2.msra.mxu0 0.0
        %1094 = vmatprep.subr.mxu0 0.0
        %1095 = vmatpush2.msra.mxu0 0.0
        %1096 = vmatprep.subr.mxu0 0.0
        %1097 = vmatpush2.msra.mxu0 0.0
        %1098 = vmatprep.subr.mxu0 0.0
        %1099 = vmatpush2.msra.mxu0 0.0
        %1100 = vmatprep.subr.mxu0 0.0
        %1101 = vmatpush2.msra.mxu0 0.0
        %1102 = vmatprep.mubr.f32.mxu0 0.0
        %1103 = vmatmul.mubr.f32.gmra.mxu0 %v938
        %v1104 = vpop.f32.mrf.mxu0
        %v1105 = vadd.f32 %v919, %v1104
        %v1106 = vpop.f32.mrf.mxu0
        %v1107 = vadd.f32 %v919, %v1106
        %1108 = vmatprep.mubr.f32.mxu0 0.0
        %1109 = vmatmul.mubr.f32.gmra.mxu0 %v941
        %v1110 = vpop.f32.mrf.mxu0
        %v1111 = vadd.f32 %v924, %v1110
        %v1112 = vpop.f32.mrf.mxu0
        %v1113 = vadd.f32 %v924, %v1112
        %1114 = vmatprep.mubr.f32.mxu0 0.0
        %1115 = vmatmul.mubr.f32.gmra.mxu0 %v944
        %v1116 = vpop.f32.mrf.mxu0
        %v1117 = vadd.f32 %v929, %v1116
        %v1118 = vpop.f32.mrf.mxu0
        %v1119 = vadd.f32 %v929, %v1118
        %1120 = vmatprep.mubr.f32.mxu0 0.0
        %1121 = vmatmul.mubr.f32.gmra.mxu0 %v947
        %v1122 = vpop.f32.mrf.mxu0
        %v1123 = vadd.f32 %v934, %v1122
        %v1124 = vpop.f32.mrf.mxu0
        %v1125 = vadd.f32 %v934, %v1124
        %1126 = vdwg.mxu0
        %1127 = vmatprep.subr.mxu0 0.0
        %1128 = vmatpush1.msra.mxu0 0.0
        %1129 = vmatprep.subr.mxu0 0.0
        %1130 = vmatpush1.msra.mxu0 0.0
        %1131 = vmatprep.subr.mxu0 0.0
        %1132 = vmatpush1.msra.mxu0 0.0
        %1133 = vmatprep.subr.mxu0 0.0
        %1134 = vmatpush1.msra.mxu0 0.0
        %1135 = vmatprep.subr.mxu0 0.0
        %1136 = vmatpush1.msra.mxu0 0.0
        %1137 = vmatprep.subr.mxu0 0.0
        %1138 = vmatpush1.msra.mxu0 0.0
        %1139 = vmatprep.subr.mxu0 0.0
        %1140 = vmatpush1.msra.mxu0 0.0
        %1141 = vmatprep.subr.mxu0 %v906
        %1142 = vmatpush1.msra.mxu0 %v905
        %1143 = vmatprep.subr.mxu0 %v899
        %1144 = vmatpush1.msra.mxu0 %v898
        %1145 = vmatprep.subr.mxu0 %v892
        %1146 = vmatpush1.msra.mxu0 %v891
        %1147 = vmatprep.subr.mxu0 %v885
        %1148 = vmatpush1.msra.mxu0 %v884
        %1149 = vmatprep.subr.mxu0 %v878
        %1150 = vmatpush1.msra.mxu0 %v877
        %1151 = vmatprep.subr.mxu0 %v871
        %1152 = vmatpush1.msra.mxu0 %v870
        %1153 = vmatprep.subr.mxu0 %v864
        %1154 = vmatpush1.msra.mxu0 %v863
        %1155 = vmatprep.subr.mxu0 %v857
        %1156 = vmatpush1.msra.mxu0 %v856
        %1157 = vmatprep.subr.mxu0 %v850
        %1158 = vmatpush1.msra.mxu0 %v849
        %1159 = vmatprep.subr.mxu0 0.0
        %1160 = vmatpush2.msra.mxu0 0.0
        %1161 = vmatprep.subr.mxu0 0.0
        %1162 = vmatpush2.msra.mxu0 0.0
        %1163 = vmatprep.subr.mxu0 0.0
        %1164 = vmatpush2.msra.mxu0 0.0
        %1165 = vmatprep.subr.mxu0 0.0
        %1166 = vmatpush2.msra.mxu0 0.0
        %1167 = vmatprep.subr.mxu0 0.0
        %1168 = vmatpush2.msra.mxu0 0.0
        %1169 = vmatprep.subr.mxu0 0.0
        %1170 = vmatpush2.msra.mxu0 0.0
        %1171 = vmatprep.subr.mxu0 0.0
        %1172 = vmatpush2.msra.mxu0 0.0
        %1173 = vmatprep.subr.mxu0 0.0
        %1174 = vmatpush2.msra.mxu0 0.0
        %1175 = vmatprep.subr.mxu0 0.0
        %1176 = vmatpush2.msra.mxu0 0.0
        %1177 = vmatprep.subr.mxu0 0.0
        %1178 = vmatpush2.msra.mxu0 0.0
        %1179 = vmatprep.subr.mxu0 0.0
        %1180 = vmatpush2.msra.mxu0 0.0
        %1181 = vmatprep.subr.mxu0 0.0
        %1182 = vmatpush2.msra.mxu0 0.0
        %1183 = vmatprep.subr.mxu0 0.0
        %1184 = vmatpush2.msra.mxu0 0.0
        %1185 = vmatprep.subr.mxu0 0.0
        %1186 = vmatpush2.msra.mxu0 0.0
        %1187 = vmatprep.subr.mxu0 0.0
        %1188 = vmatpush2.msra.mxu0 0.0
        %1189 = vmatprep.subr.mxu0 0.0
        %1190 = vmatpush2.msra.mxu0 0.0
        %1191 = vmatprep.mubr.f32.mxu0 0.0
        %1192 = vmatmul.mubr.f32.gmra.mxu0 %v938
        %v1193 = vpop.f32.mrf.mxu0
        %v1194 = vadd.f32 %v919, %v1193
        %v1195 = vpop.f32.mrf.mxu0
        %v1196 = vadd.f32 %v919, %v1195
        %1197 = vmatprep.mubr.f32.mxu0 0.0
        %1198 = vmatmul.mubr.f32.gmra.mxu0 %v941
        %v1199 = vpop.f32.mrf.mxu0
        %v1200 = vadd.f32 %v924, %v1199
        %v1201 = vpop.f32.mrf.mxu0
        %v1202 = vadd.f32 %v924, %v1201
        %1203 = vmatprep.mubr.f32.mxu0 0.0
        %1204 = vmatmul.mubr.f32.gmra.mxu0 %v944
        %v1205 = vpop.f32.mrf.mxu0
        %v1206 = vadd.f32 %v929, %v1205
        %v1207 = vpop.f32.mrf.mxu0
        %v1208 = vadd.f32 %v929, %v1207
        %1209 = vmatprep.mubr.f32.mxu0 0.0
        %1210 = vmatmul.mubr.f32.gmra.mxu0 %v947
        %v1211 = vpop.f32.mrf.mxu0
        %v1212 = vadd.f32 %v934, %v1211
        %v1213 = vpop.f32.mrf.mxu0
        %v1214 = vadd.f32 %v934, %v1213
        %1215 = vdwg.mxu0
        %1216 = vmatprep.subr.mxu0 0.0
        %1217 = vmatpush1.msra.mxu0 0.0
        %1218 = vmatprep.subr.mxu0 0.0
        %1219 = vmatpush1.msra.mxu0 0.0
        %1220 = vmatprep.subr.mxu0 0.0
        %1221 = vmatpush1.msra.mxu0 0.0
        %1222 = vmatprep.subr.mxu0 0.0
        %1223 = vmatpush1.msra.mxu0 0.0
        %1224 = vmatprep.subr.mxu0 0.0
        %1225 = vmatpush1.msra.mxu0 0.0
        %1226 = vmatprep.subr.mxu0 0.0
        %1227 = vmatpush1.msra.mxu0 0.0
        %1228 = vmatprep.subr.mxu0 0.0
        %1229 = vmatpush1.msra.mxu0 0.0
        %1230 = vmatprep.subr.mxu0 0.0
        %1231 = vmatpush1.msra.mxu0 %v907
        %1232 = vmatprep.subr.mxu0 0.0
        %1233 = vmatpush1.msra.mxu0 %v900
        %1234 = vmatprep.subr.mxu0 0.0
        %1235 = vmatpush1.msra.mxu0 %v893
        %1236 = vmatprep.subr.mxu0 0.0
        %1237 = vmatpush1.msra.mxu0 %v886
        %1238 = vmatprep.subr.mxu0 0.0
        %1239 = vmatpush1.msra.mxu0 %v879
        %1240 = vmatprep.subr.mxu0 0.0
        %1241 = vmatpush1.msra.mxu0 %v872
        %1242 = vmatprep.subr.mxu0 0.0
        %1243 = vmatpush1.msra.mxu0 %v865
        %1244 = vmatprep.subr.mxu0 0.0
        %1245 = vmatpush1.msra.mxu0 %v858
        %1246 = vmatprep.subr.mxu0 0.0
        %1247 = vmatpush1.msra.mxu0 %v851
        %1248 = vmatprep.subr.mxu0 0.0
        %1249 = vmatpush2.msra.mxu0 0.0
        %1250 = vmatprep.subr.mxu0 0.0
        %1251 = vmatpush2.msra.mxu0 0.0
        %1252 = vmatprep.subr.mxu0 0.0
        %1253 = vmatpush2.msra.mxu0 0.0
        %1254 = vmatprep.subr.mxu0 0.0
        %1255 = vmatpush2.msra.mxu0 0.0
        %1256 = vmatprep.subr.mxu0 0.0
        %1257 = vmatpush2.msra.mxu0 0.0
        %1258 = vmatprep.subr.mxu0 0.0
        %1259 = vmatpush2.msra.mxu0 0.0
        %1260 = vmatprep.subr.mxu0 0.0
        %1261 = vmatpush2.msra.mxu0 0.0
        %1262 = vmatprep.subr.mxu0 0.0
        %1263 = vmatpush2.msra.mxu0 0.0
        %1264 = vmatprep.subr.mxu0 0.0
        %1265 = vmatpush2.msra.mxu0 0.0
        %1266 = vmatprep.subr.mxu0 0.0
        %1267 = vmatpush2.msra.mxu0 0.0
        %1268 = vmatprep.subr.mxu0 0.0
        %1269 = vmatpush2.msra.mxu0 0.0
        %1270 = vmatprep.subr.mxu0 0.0
        %1271 = vmatpush2.msra.mxu0 0.0
        %1272 = vmatprep.subr.mxu0 0.0
        %1273 = vmatpush2.msra.mxu0 0.0
        %1274 = vmatprep.subr.mxu0 0.0
        %1275 = vmatpush2.msra.mxu0 0.0
        %1276 = vmatprep.subr.mxu0 0.0
        %1277 = vmatpush2.msra.mxu0 0.0
        %1278 = vmatprep.subr.mxu0 0.0
        %1279 = vmatpush2.msra.mxu0 0.0
        %1280 = vmatprep.mubr.f32.mxu0 0.0
        %1281 = vmatmul.mubr.f32.gmra.mxu0 %v938
        %v1282 = vpop.f32.mrf.mxu0
        %v1283 = vadd.f32 %v919, %v1282
        %v1284 = vpop.f32.mrf.mxu0
        %1285 = vmatprep.mubr.f32.mxu0 0.0
        %1286 = vmatmul.mubr.f32.gmra.mxu0 %v941
        %v1287 = vpop.f32.mrf.mxu0
        %v1288 = vadd.f32 %v924, %v1287
        %v1289 = vpop.f32.mrf.mxu0
        %1290 = vmatprep.mubr.f32.mxu0 0.0
        %1291 = vmatmul.mubr.f32.gmra.mxu0 %v944
        %v1292 = vpop.f32.mrf.mxu0
        %v1293 = vadd.f32 %v929, %v1292
        %v1294 = vpop.f32.mrf.mxu0
        %1295 = vmatprep.mubr.f32.mxu0 0.0
        %1296 = vmatmul.mubr.f32.gmra.mxu0 %v947
        %v1297 = vpop.f32.mrf.mxu0
        %v1298 = vadd.f32 %v934, %v1297
        %v1299 = vpop.f32.mrf.mxu0
        %1300 = vdwg.mxu0
        %v1301 = vmax.f32 %v1016, 0.0
        %v1302 = vmax.f32 %v1018, 0.0
        %v1303 = vmax.f32 %v1105, 0.0
        %v1304 = vmax.f32 %v1107, 0.0
        %v1305 = vmax.f32 %v1194, 0.0
        %v1306 = vmax.f32 %v1196, 0.0
        %v1307 = vmax.f32 %v1283, 0.0
        %v1308 = vmax.f32 %v1022, 0.0
        %v1309 = vmax.f32 %v1024, 0.0
        %v1310 = vmax.f32 %v1111, 0.0
        %v1311 = vmax.f32 %v1113, 0.0
        %v1312 = vmax.f32 %v1200, 0.0
        %v1313 = vmax.f32 %v1202, 0.0
        %v1314 = vmax.f32 %v1288, 0.0
        %v1315 = vmax.f32 %v1028, 0.0
        %v1316 = vmax.f32 %v1030, 0.0
        %v1317 = vmax.f32 %v1117, 0.0
        %v1318 = vmax.f32 %v1119, 0.0
        %v1319 = vmax.f32 %v1206, 0.0
        %v1320 = vmax.f32 %v1208, 0.0
        %v1321 = vmax.f32 %v1293, 0.0
        %v1322 = vmax.f32 %v1034, 0.0
        %v1323 = vmax.f32 %v1036, 0.0
        %v1324 = vmax.f32 %v1123, 0.0
        %v1325 = vmax.f32 %v1125, 0.0
        %v1326 = vmax.f32 %v1212, 0.0
        %v1327 = vmax.f32 %v1214, 0.0
        %v1328 = vmax.f32 %v1298, 0.0
        %1329 = vst.msk [vmem:[#allocation3] sm:$0xff] %vm358, 0.0
        %1330 = vst.msk [vmem:[#allocation3 + $0x38] sm:$0xff] %vm358, 0.0
        %1331 = vst.msk [vmem:[#allocation3 + $0x70] sm:$0xff] %vm358, 0.0
        %1332 = vst.msk [vmem:[#allocation3 + $0xa8] sm:$0xff] %vm358, 0.0
        %1333 = vst.msk [vmem:[#allocation3 + $0x30] sm:$0xff] %vm360, 0.0
        %1334 = vst.msk [vmem:[#allocation3 + $0x68] sm:$0xff] %vm360, 0.0
        %1335 = vst.msk [vmem:[#allocation3 + $0xa0] sm:$0xff] %vm360, 0.0
        %1336 = vst.msk [vmem:[#allocation3 + $0xd8] sm:$0xff] %vm360, 0.0
        %1365 = vrot.lane.b32.xlu0 %v1301, 32
        %v1366 = vpop.permute.xlu0 %1365
        %1367 = vrot.lane.b32.xlu0 %v1302, 32
        %v1368 = vpop.permute.xlu0 %1367
        %1369 = vrot.lane.b32.xlu0 %v1303, 32
        %v1370 = vpop.permute.xlu0 %1369
        %1371 = vrot.lane.b32.xlu0 %v1304, 32
        %v1372 = vpop.permute.xlu0 %1371
        %1373 = vrot.lane.b32.xlu0 %v1305, 32
        %v1374 = vpop.permute.xlu0 %1373
        %1375 = vrot.lane.b32.xlu0 %v1306, 32
        %v1376 = vpop.permute.xlu0 %1375
        %1377 = vrot.lane.b32.xlu0 %v1307, 32
        %v1378 = vpop.permute.xlu0 %1377
        %1379 = vrot.lane.b32.xlu0 %v1308, 32
        %v1380 = vpop.permute.xlu0 %1379
        %1381 = vrot.lane.b32.xlu0 %v1309, 32
        %v1382 = vpop.permute.xlu0 %1381
        %1383 = vrot.lane.b32.xlu0 %v1310, 32
        %v1384 = vpop.permute.xlu0 %1383
        %1385 = vrot.lane.b32.xlu0 %v1311, 32
        %v1386 = vpop.permute.xlu0 %1385
        %1387 = vrot.lane.b32.xlu0 %v1312, 32
        %v1388 = vpop.permute.xlu0 %1387
        %1389 = vrot.lane.b32.xlu0 %v1313, 32
        %v1390 = vpop.permute.xlu0 %1389
        %1391 = vrot.lane.b32.xlu0 %v1314, 32
        %v1392 = vpop.permute.xlu0 %1391
        %1393 = vrot.lane.b32.xlu0 %v1315, 32
        %v1394 = vpop.permute.xlu0 %1393
        %1395 = vrot.lane.b32.xlu0 %v1316, 32
        %v1396 = vpop.permute.xlu0 %1395
        %1397 = vrot.lane.b32.xlu0 %v1317, 32
        %v1398 = vpop.permute.xlu0 %1397
        %1399 = vrot.lane.b32.xlu0 %v1318, 32
        %v1400 = vpop.permute.xlu0 %1399
        %1401 = vrot.lane.b32.xlu0 %v1319, 32
        %v1402 = vpop.permute.xlu0 %1401
        %1403 = vrot.lane.b32.xlu0 %v1320, 32
        %v1404 = vpop.permute.xlu0 %1403
        %1405 = vrot.lane.b32.xlu0 %v1321, 32
        %v1406 = vpop.permute.xlu0 %1405
        %1407 = vrot.lane.b32.xlu0 %v1322, 32
        %v1408 = vpop.permute.xlu0 %1407
        %1409 = vrot.lane.b32.xlu0 %v1323, 32
        %v1410 = vpop.permute.xlu0 %1409
        %1411 = vrot.lane.b32.xlu0 %v1324, 32
        %v1412 = vpop.permute.xlu0 %1411
        %1413 = vrot.lane.b32.xlu0 %v1325, 32
        %v1414 = vpop.permute.xlu0 %1413
        %1415 = vrot.lane.b32.xlu0 %v1326, 32
        %v1416 = vpop.permute.xlu0 %1415
        %1417 = vrot.lane.b32.xlu0 %v1327, 32
        %v1418 = vpop.permute.xlu0 %1417
        %1419 = vrot.lane.b32.xlu0 %v1328, 32
        %v1420 = vpop.permute.xlu0 %1419
        %v1421 = vsel %vm358, %v1366, %v1368
        %v1422 = vsel %vm358, %v1368, %v1370
        %v1423 = vsel %vm358, %v1370, %v1372
        %v1424 = vsel %vm358, %v1372, %v1374
        %v1425 = vsel %vm358, %v1374, %v1376
        %v1426 = vsel %vm358, %v1376, %v1378
        %v1427 = vsel %vm358, %v1380, %v1382
        %v1428 = vsel %vm358, %v1382, %v1384
        %v1429 = vsel %vm358, %v1384, %v1386
        %v1430 = vsel %vm358, %v1386, %v1388
        %v1431 = vsel %vm358, %v1388, %v1390
        %v1432 = vsel %vm358, %v1390, %v1392
        %v1433 = vsel %vm358, %v1394, %v1396
        %v1434 = vsel %vm358, %v1396, %v1398
        %v1435 = vsel %vm358, %v1398, %v1400
        %v1436 = vsel %vm358, %v1400, %v1402
        %v1437 = vsel %vm358, %v1402, %v1404
        %v1438 = vsel %vm358, %v1404, %v1406
        %v1439 = vsel %vm358, %v1408, %v1410
        %v1440 = vsel %vm358, %v1410, %v1412
        %v1441 = vsel %vm358, %v1412, %v1414
        %v1442 = vsel %vm358, %v1414, %v1416
        %v1443 = vsel %vm358, %v1416, %v1418
        %v1444 = vsel %vm358, %v1418, %v1420
        %1473 = vst.msk [vmem:[#allocation3] sm:$0xff] %vm403, %v1366
        %1474 = vst [vmem:[#allocation3 + $0x8] sm:$0xff] %v1421
        %1475 = vst [vmem:[#allocation3 + $0x10] sm:$0xff] %v1422
        %1476 = vst [vmem:[#allocation3 + $0x18] sm:$0xff] %v1423
        %1477 = vst [vmem:[#allocation3 + $0x20] sm:$0xff] %v1424
        %1478 = vst [vmem:[#allocation3 + $0x28] sm:$0xff] %v1425
        %1479 = vst.msk [vmem:[#allocation3 + $0x30] sm:$0xff] %vm410, %v1426
        %1480 = vst.msk [vmem:[#allocation3 + $0x38] sm:$0xff] %vm403, %v1380
        %1481 = vst [vmem:[#allocation3 + $0x40] sm:$0xff] %v1427
        %1482 = vst [vmem:[#allocation3 + $0x48] sm:$0xff] %v1428
        %1483 = vst [vmem:[#allocation3 + $0x50] sm:$0xff] %v1429
        %1484 = vst [vmem:[#allocation3 + $0x58] sm:$0xff] %v1430
        %1485 = vst [vmem:[#allocation3 + $0x60] sm:$0xff] %v1431
        %1486 = vst.msk [vmem:[#allocation3 + $0x68] sm:$0xff] %vm410, %v1432
        %1487 = vst.msk [vmem:[#allocation3 + $0x70] sm:$0xff] %vm403, %v1394
        %1488 = vst [vmem:[#allocation3 + $0x78] sm:$0xff] %v1433
        %1489 = vst [vmem:[#allocation3 + $0x80] sm:$0xff] %v1434
        %1490 = vst [vmem:[#allocation3 + $0x88] sm:$0xff] %v1435
        %1491 = vst [vmem:[#allocation3 + $0x90] sm:$0xff] %v1436
        %1492 = vst [vmem:[#allocation3 + $0x98] sm:$0xff] %v1437
        %1493 = vst.msk [vmem:[#allocation3 + $0xa0] sm:$0xff] %vm410, %v1438
        %1494 = vst.msk [vmem:[#allocation3 + $0xa8] sm:$0xff] %vm403, %v1408
        %1495 = vst [vmem:[#allocation3 + $0xb0] sm:$0xff] %v1439
        %1496 = vst [vmem:[#allocation3 + $0xb8] sm:$0xff] %v1440
        %1497 = vst [vmem:[#allocation3 + $0xc0] sm:$0xff] %v1441
        %1498 = vst [vmem:[#allocation3 + $0xc8] sm:$0xff] %v1442
        %1499 = vst [vmem:[#allocation3 + $0xd0] sm:$0xff] %v1443
        %1500 = vst.msk [vmem:[#allocation3 + $0xd8] sm:$0xff] %vm410, %v1444
        %v1501 = vld [vmem:[#allocation3] sm:$0xff]
        %v1502 = vld [vmem:[#allocation3 + $0x8] sm:$0xff]
        %v1503 = vld [vmem:[#allocation3 + $0x10] sm:$0xff]
        %v1504 = vld [vmem:[#allocation3 + $0x18] sm:$0xff]
        %v1505 = vld [vmem:[#allocation3 + $0x20] sm:$0xff]
        %v1506 = vld [vmem:[#allocation3 + $0x28] sm:$0xff]
        %v1507 = vld [vmem:[#allocation3 + $0x30] sm:$0xff]
        %v1508 = vld [vmem:[#allocation3 + $0x38] sm:$0xff]
        %v1509 = vld [vmem:[#allocation3 + $0x40] sm:$0xff]
        %v1510 = vld [vmem:[#allocation3 + $0x48] sm:$0xff]
        %v1511 = vld [vmem:[#allocation3 + $0x50] sm:$0xff]
        %v1512 = vld [vmem:[#allocation3 + $0x58] sm:$0xff]
        %v1513 = vld [vmem:[#allocation3 + $0x60] sm:$0xff]
        %v1514 = vld [vmem:[#allocation3 + $0x68] sm:$0xff]
        %v1515 = vld [vmem:[#allocation3 + $0x70] sm:$0xff]
        %v1516 = vld [vmem:[#allocation3 + $0x78] sm:$0xff]
        %v1517 = vld [vmem:[#allocation3 + $0x80] sm:$0xff]
        %v1518 = vld [vmem:[#allocation3 + $0x88] sm:$0xff]
        %v1519 = vld [vmem:[#allocation3 + $0x90] sm:$0xff]
        %v1520 = vld [vmem:[#allocation3 + $0x98] sm:$0xff]
        %v1521 = vld [vmem:[#allocation3 + $0xa0] sm:$0xff]
        %v1522 = vld [vmem:[#allocation3 + $0xa8] sm:$0xff]
        %v1523 = vld [vmem:[#allocation3 + $0xb0] sm:$0xff]
        %v1524 = vld [vmem:[#allocation3 + $0xb8] sm:$0xff]
        %v1525 = vld [vmem:[#allocation3 + $0xc0] sm:$0xff]
        %v1526 = vld [vmem:[#allocation3 + $0xc8] sm:$0xff]
        %v1527 = vld [vmem:[#allocation3 + $0xd0] sm:$0xff]
        %v1528 = vld [vmem:[#allocation3 + $0xd8] sm:$0xff]
        %v1529 = vld [vmem:[%s1] ss:$2 sm:$0x7f]
        %v1531 = vlaneseq
        %v1532 = vshrl.u32 %v1531, 7
        %v1533 = vsub.s32 0, %v1532
        %v1534 = vrot.slane %v1529, %v1533
        %v1535 = vlaneseq
        %v1536 = vshrl.u32 %v1535, 7
        %v1537 = vsub.s32 1, %v1536
        %v1538 = vrot.slane %v1529, %v1537
        %v1539 = vlaneseq
        %v1540 = vshrl.u32 %v1539, 7
        %v1541 = vsub.s32 2, %v1540
        %v1542 = vrot.slane %v1529, %v1541
        %v1543 = vlaneseq
        %v1544 = vshrl.u32 %v1543, 7
        %v1545 = vsub.s32 3, %v1544
        %v1546 = vrot.slane %v1529, %v1545
        %v1547 = vlaneseq
        %v1548 = vshrl.u32 %v1547, 7
        %v1549 = vsub.s32 4, %v1548
        %v1550 = vrot.slane %v1529, %v1549
        %v1551 = vlaneseq
        %v1552 = vshrl.u32 %v1551, 7
        %v1553 = vsub.s32 5, %v1552
        %v1554 = vrot.slane %v1529, %v1553
        %v1555 = vlaneseq
        %v1556 = vshrl.u32 %v1555, 7
        %v1557 = vsub.s32 6, %v1556
        %v1558 = vrot.slane %v1529, %v1557
        %v1566 = vmul.f32 %v1501, %v1534
        %v1567 = vmul.f32 %v1502, %v1538
        %v1568 = vmul.f32 %v1503, %v1542
        %v1569 = vmul.f32 %v1504, %v1546
        %v1570 = vmul.f32 %v1505, %v1550
        %v1571 = vmul.f32 %v1506, %v1554
        %v1572 = vmul.f32 %v1507, %v1558
        %v1573 = vmul.f32 %v1508, %v1534
        %v1574 = vmul.f32 %v1509, %v1538
        %v1575 = vmul.f32 %v1510, %v1542
        %v1576 = vmul.f32 %v1511, %v1546
        %v1577 = vmul.f32 %v1512, %v1550
        %v1578 = vmul.f32 %v1513, %v1554
        %v1579 = vmul.f32 %v1514, %v1558
        %v1580 = vmul.f32 %v1515, %v1534
        %v1581 = vmul.f32 %v1516, %v1538
        %v1582 = vmul.f32 %v1517, %v1542
        %v1583 = vmul.f32 %v1518, %v1546
        %v1584 = vmul.f32 %v1519, %v1550
        %v1585 = vmul.f32 %v1520, %v1554
        %v1586 = vmul.f32 %v1521, %v1558
        %v1587 = vmul.f32 %v1522, %v1534
        %v1588 = vmul.f32 %v1523, %v1538
        %v1589 = vmul.f32 %v1524, %v1542
        %v1590 = vmul.f32 %v1525, %v1546
        %v1591 = vmul.f32 %v1526, %v1550
        %v1592 = vmul.f32 %v1527, %v1554
        %v1593 = vmul.f32 %v1528, %v1558
        %v1594 = vld [vmem:[%s463] ss:$2 sm:$0x7f]
        %v1596 = vlaneseq
        %v1597 = vshrl.u32 %v1596, 7
        %v1598 = vsub.s32 0, %v1597
        %v1599 = vrot.slane %v1594, %v1598
        %v1600 = vlaneseq
        %v1601 = vshrl.u32 %v1600, 7
        %v1602 = vsub.s32 1, %v1601
        %v1603 = vrot.slane %v1594, %v1602
        %v1604 = vlaneseq
        %v1605 = vshrl.u32 %v1604, 7
        %v1606 = vsub.s32 2, %v1605
        %v1607 = vrot.slane %v1594, %v1606
        %v1608 = vlaneseq
        %v1609 = vshrl.u32 %v1608, 7
        %v1610 = vsub.s32 3, %v1609
        %v1611 = vrot.slane %v1594, %v1610
        %v1612 = vlaneseq
        %v1613 = vshrl.u32 %v1612, 7
        %v1614 = vsub.s32 4, %v1613
        %v1615 = vrot.slane %v1594, %v1614
        %v1616 = vlaneseq
        %v1617 = vshrl.u32 %v1616, 7
        %v1618 = vsub.s32 5, %v1617
        %v1619 = vrot.slane %v1594, %v1618
        %v1620 = vlaneseq
        %v1621 = vshrl.u32 %v1620, 7
        %v1622 = vsub.s32 6, %v1621
        %v1623 = vrot.slane %v1594, %v1622
        %v1631 = vmul.f32 %v1501, %v1599
        %v1632 = vmul.f32 %v1502, %v1603
        %v1633 = vmul.f32 %v1503, %v1607
        %v1634 = vmul.f32 %v1504, %v1611
        %v1635 = vmul.f32 %v1505, %v1615
        %v1636 = vmul.f32 %v1506, %v1619
        %v1637 = vmul.f32 %v1507, %v1623
        %v1638 = vmul.f32 %v1508, %v1599
        %v1639 = vmul.f32 %v1509, %v1603
        %v1640 = vmul.f32 %v1510, %v1607
        %v1641 = vmul.f32 %v1511, %v1611
        %v1642 = vmul.f32 %v1512, %v1615
        %v1643 = vmul.f32 %v1513, %v1619
        %v1644 = vmul.f32 %v1514, %v1623
        %v1645 = vmul.f32 %v1515, %v1599
        %v1646 = vmul.f32 %v1516, %v1603
        %v1647 = vmul.f32 %v1517, %v1607
        %v1648 = vmul.f32 %v1518, %v1611
        %v1649 = vmul.f32 %v1519, %v1615
        %v1650 = vmul.f32 %v1520, %v1619
        %v1651 = vmul.f32 %v1521, %v1623
        %v1652 = vmul.f32 %v1522, %v1599
        %v1653 = vmul.f32 %v1523, %v1603
        %v1654 = vmul.f32 %v1524, %v1607
        %v1655 = vmul.f32 %v1525, %v1611
        %v1656 = vmul.f32 %v1526, %v1615
        %v1657 = vmul.f32 %v1527, %v1619
        %v1658 = vmul.f32 %v1528, %v1623
        %1687 = vrot.lane.b32.xlu0 %v1566, 125
        %v1688 = vpop.permute.xlu0 %1687
        %1689 = vrot.lane.b32.xlu0 %v1567, 125
        %v1690 = vpop.permute.xlu0 %1689
        %1691 = vrot.lane.b32.xlu0 %v1568, 125
        %v1692 = vpop.permute.xlu0 %1691
        %1693 = vrot.lane.b32.xlu0 %v1569, 125
        %v1694 = vpop.permute.xlu0 %1693
        %1695 = vrot.lane.b32.xlu0 %v1570, 125
        %v1696 = vpop.permute.xlu0 %1695
        %1697 = vrot.lane.b32.xlu0 %v1571, 125
        %v1698 = vpop.permute.xlu0 %1697
        %1699 = vrot.lane.b32.xlu0 %v1572, 125
        %v1700 = vpop.permute.xlu0 %1699
        %1701 = vrot.lane.b32.xlu0 %v1573, 125
        %v1702 = vpop.permute.xlu0 %1701
        %1703 = vrot.lane.b32.xlu0 %v1574, 125
        %v1704 = vpop.permute.xlu0 %1703
        %1705 = vrot.lane.b32.xlu0 %v1575, 125
        %v1706 = vpop.permute.xlu0 %1705
        %1707 = vrot.lane.b32.xlu0 %v1576, 125
        %v1708 = vpop.permute.xlu0 %1707
        %1709 = vrot.lane.b32.xlu0 %v1577, 125
        %v1710 = vpop.permute.xlu0 %1709
        %1711 = vrot.lane.b32.xlu0 %v1578, 125
        %v1712 = vpop.permute.xlu0 %1711
        %1713 = vrot.lane.b32.xlu0 %v1579, 125
        %v1714 = vpop.permute.xlu0 %1713
        %1715 = vrot.lane.b32.xlu0 %v1580, 125
        %v1716 = vpop.permute.xlu0 %1715
        %1717 = vrot.lane.b32.xlu0 %v1581, 125
        %v1718 = vpop.permute.xlu0 %1717
        %1719 = vrot.lane.b32.xlu0 %v1582, 125
        %v1720 = vpop.permute.xlu0 %1719
        %1721 = vrot.lane.b32.xlu0 %v1583, 125
        %v1722 = vpop.permute.xlu0 %1721
        %1723 = vrot.lane.b32.xlu0 %v1584, 125
        %v1724 = vpop.permute.xlu0 %1723
        %1725 = vrot.lane.b32.xlu0 %v1585, 125
        %v1726 = vpop.permute.xlu0 %1725
        %1727 = vrot.lane.b32.xlu0 %v1586, 125
        %v1728 = vpop.permute.xlu0 %1727
        %1729 = vrot.lane.b32.xlu0 %v1587, 125
        %v1730 = vpop.permute.xlu0 %1729
        %1731 = vrot.lane.b32.xlu0 %v1588, 125
        %v1732 = vpop.permute.xlu0 %1731
        %1733 = vrot.lane.b32.xlu0 %v1589, 125
        %v1734 = vpop.permute.xlu0 %1733
        %1735 = vrot.lane.b32.xlu0 %v1590, 125
        %v1736 = vpop.permute.xlu0 %1735
        %1737 = vrot.lane.b32.xlu0 %v1591, 125
        %v1738 = vpop.permute.xlu0 %1737
        %1739 = vrot.lane.b32.xlu0 %v1592, 125
        %v1740 = vpop.permute.xlu0 %1739
        %1741 = vrot.lane.b32.xlu0 %v1593, 125
        %v1742 = vpop.permute.xlu0 %1741
        %v1743 = vsel %vm529, %v1688, %v1690
        %v1744 = vsel %vm529, %v1690, %v1692
        %v1745 = vsel %vm529, %v1692, %v1694
        %v1746 = vsel %vm529, %v1694, %v1696
        %v1747 = vsel %vm529, %v1696, %v1698
        %v1748 = vsel %vm529, %v1698, %v1700
        %v1749 = vsel %vm529, %v1702, %v1704
        %v1750 = vsel %vm529, %v1704, %v1706
        %v1751 = vsel %vm529, %v1706, %v1708
        %v1752 = vsel %vm529, %v1708, %v1710
        %v1753 = vsel %vm529, %v1710, %v1712
        %v1754 = vsel %vm529, %v1712, %v1714
        %v1755 = vsel %vm529, %v1716, %v1718
        %v1756 = vsel %vm529, %v1718, %v1720
        %v1757 = vsel %vm529, %v1720, %v1722
        %v1758 = vsel %vm529, %v1722, %v1724
        %v1759 = vsel %vm529, %v1724, %v1726
        %v1760 = vsel %vm529, %v1726, %v1728
        %v1761 = vsel %vm529, %v1730, %v1732
        %v1762 = vsel %vm529, %v1732, %v1734
        %v1763 = vsel %vm529, %v1734, %v1736
        %v1764 = vsel %vm529, %v1736, %v1738
        %v1765 = vsel %vm529, %v1738, %v1740
        %v1766 = vsel %vm529, %v1740, %v1742
        %1795 = vst [vmem:[#allocation5] sm:$0xff] %v1743
        %1796 = vst [vmem:[#allocation5 + $0x8] sm:$0xff] %v1744
        %1797 = vst [vmem:[#allocation5 + $0x10] sm:$0xff] %v1745
        %1798 = vst [vmem:[#allocation5 + $0x18] sm:$0xff] %v1746
        %1799 = vst [vmem:[#allocation5 + $0x20] sm:$0xff] %v1747
        %1800 = vst [vmem:[#allocation5 + $0x28] sm:$0xff] %v1748
        %1801 = vst.msk [vmem:[#allocation5 + $0x30] sm:$0xff] %vm549, %v1700
        %1802 = vst [vmem:[#allocation5 + $0x38] sm:$0xff] %v1749
        %1803 = vst [vmem:[#allocation5 + $0x40] sm:$0xff] %v1750
        %1804 = vst [vmem:[#allocation5 + $0x48] sm:$0xff] %v1751
        %1805 = vst [vmem:[#allocation5 + $0x50] sm:$0xff] %v1752
        %1806 = vst [vmem:[#allocation5 + $0x58] sm:$0xff] %v1753
        %1807 = vst [vmem:[#allocation5 + $0x60] sm:$0xff] %v1754
        %1808 = vst.msk [vmem:[#allocation5 + $0x68] sm:$0xff] %vm549, %v1714
        %1809 = vst [vmem:[#allocation5 + $0x70] sm:$0xff] %v1755
        %1810 = vst [vmem:[#allocation5 + $0x78] sm:$0xff] %v1756
        %1811 = vst [vmem:[#allocation5 + $0x80] sm:$0xff] %v1757
        %1812 = vst [vmem:[#allocation5 + $0x88] sm:$0xff] %v1758
        %1813 = vst [vmem:[#allocation5 + $0x90] sm:$0xff] %v1759
        %1814 = vst [vmem:[#allocation5 + $0x98] sm:$0xff] %v1760
        %1815 = vst.msk [vmem:[#allocation5 + $0xa0] sm:$0xff] %vm549, %v1728
        %1816 = vst [vmem:[#allocation5 + $0xa8] sm:$0xff] %v1761
        %1817 = vst [vmem:[#allocation5 + $0xb0] sm:$0xff] %v1762
        %1818 = vst [vmem:[#allocation5 + $0xb8] sm:$0xff] %v1763
        %1819 = vst [vmem:[#allocation5 + $0xc0] sm:$0xff] %v1764
        %1820 = vst [vmem:[#allocation5 + $0xc8] sm:$0xff] %v1765
        %1821 = vst [vmem:[#allocation5 + $0xd0] sm:$0xff] %v1766
        %1822 = vst.msk [vmem:[#allocation5 + $0xd8] sm:$0xff] %vm549, %v1742
        %1851 = vrot.lane.b32.xlu0 %v1501, 124
        %v1852 = vpop.permute.xlu0 %1851
        %1853 = vrot.lane.b32.xlu0 %v1502, 124
        %v1854 = vpop.permute.xlu0 %1853
        %1855 = vrot.lane.b32.xlu0 %v1503, 124
        %v1856 = vpop.permute.xlu0 %1855
        %1857 = vrot.lane.b32.xlu0 %v1504, 124
        %v1858 = vpop.permute.xlu0 %1857
        %1859 = vrot.lane.b32.xlu0 %v1505, 124
        %v1860 = vpop.permute.xlu0 %1859
        %1861 = vrot.lane.b32.xlu0 %v1506, 124
        %v1862 = vpop.permute.xlu0 %1861
        %1863 = vrot.lane.b32.xlu0 %v1507, 124
        %v1864 = vpop.permute.xlu0 %1863
        %1865 = vrot.lane.b32.xlu0 %v1508, 124
        %v1866 = vpop.permute.xlu0 %1865
        %1867 = vrot.lane.b32.xlu0 %v1509, 124
        %v1868 = vpop.permute.xlu0 %1867
        %1869 = vrot.lane.b32.xlu0 %v1510, 124
        %v1870 = vpop.permute.xlu0 %1869
        %1871 = vrot.lane.b32.xlu0 %v1511, 124
        %v1872 = vpop.permute.xlu0 %1871
        %1873 = vrot.lane.b32.xlu0 %v1512, 124
        %v1874 = vpop.permute.xlu0 %1873
        %1875 = vrot.lane.b32.xlu0 %v1513, 124
        %v1876 = vpop.permute.xlu0 %1875
        %1877 = vrot.lane.b32.xlu0 %v1514, 124
        %v1878 = vpop.permute.xlu0 %1877
        %1879 = vrot.lane.b32.xlu0 %v1515, 124
        %v1880 = vpop.permute.xlu0 %1879
        %1881 = vrot.lane.b32.xlu0 %v1516, 124
        %v1882 = vpop.permute.xlu0 %1881
        %1883 = vrot.lane.b32.xlu0 %v1517, 124
        %v1884 = vpop.permute.xlu0 %1883
        %1885 = vrot.lane.b32.xlu0 %v1518, 124
        %v1886 = vpop.permute.xlu0 %1885
        %1887 = vrot.lane.b32.xlu0 %v1519, 124
        %v1888 = vpop.permute.xlu0 %1887
        %1889 = vrot.lane.b32.xlu0 %v1520, 124
        %v1890 = vpop.permute.xlu0 %1889
        %1891 = vrot.lane.b32.xlu0 %v1521, 124
        %v1892 = vpop.permute.xlu0 %1891
        %1893 = vrot.lane.b32.xlu0 %v1522, 124
        %v1894 = vpop.permute.xlu0 %1893
        %1895 = vrot.lane.b32.xlu0 %v1523, 124
        %v1896 = vpop.permute.xlu0 %1895
        %1897 = vrot.lane.b32.xlu0 %v1524, 124
        %v1898 = vpop.permute.xlu0 %1897
        %1899 = vrot.lane.b32.xlu0 %v1525, 124
        %v1900 = vpop.permute.xlu0 %1899
        %1901 = vrot.lane.b32.xlu0 %v1526, 124
        %v1902 = vpop.permute.xlu0 %1901
        %1903 = vrot.lane.b32.xlu0 %v1527, 124
        %v1904 = vpop.permute.xlu0 %1903
        %1905 = vrot.lane.b32.xlu0 %v1528, 124
        %v1906 = vpop.permute.xlu0 %1905
        %v1907 = vsel %vm572, %v1852, %v1854
        %v1908 = vsel %vm572, %v1854, %v1856
        %v1909 = vsel %vm572, %v1856, %v1858
        %v1910 = vsel %vm572, %v1858, %v1860
        %v1911 = vsel %vm572, %v1860, %v1862
        %v1912 = vsel %vm572, %v1862, %v1864
        %v1913 = vsel %vm572, %v1866, %v1868
        %v1914 = vsel %vm572, %v1868, %v1870
        %v1915 = vsel %vm572, %v1870, %v1872
        %v1916 = vsel %vm572, %v1872, %v1874
        %v1917 = vsel %vm572, %v1874, %v1876
        %v1918 = vsel %vm572, %v1876, %v1878
        %v1919 = vsel %vm572, %v1880, %v1882
        %v1920 = vsel %vm572, %v1882, %v1884
        %v1921 = vsel %vm572, %v1884, %v1886
        %v1922 = vsel %vm572, %v1886, %v1888
        %v1923 = vsel %vm572, %v1888, %v1890
        %v1924 = vsel %vm572, %v1890, %v1892
        %v1925 = vsel %vm572, %v1894, %v1896
        %v1926 = vsel %vm572, %v1896, %v1898
        %v1927 = vsel %vm572, %v1898, %v1900
        %v1928 = vsel %vm572, %v1900, %v1902
        %v1929 = vsel %vm572, %v1902, %v1904
        %v1930 = vsel %vm572, %v1904, %v1906
        %1959 = vst [vmem:[#allocation5 + $0xe0] sm:$0xff] %v1907
        %1960 = vst [vmem:[#allocation5 + $0xe8] sm:$0xff] %v1908
        %1961 = vst [vmem:[#allocation5 + $0xf0] sm:$0xff] %v1909
        %1962 = vst [vmem:[#allocation5 + $0xf8] sm:$0xff] %v1910
        %1963 = vst [vmem:[#allocation5 + $0x100] sm:$0xff] %v1911
        %1964 = vst [vmem:[#allocation5 + $0x108] sm:$0xff] %v1912
        %1965 = vst.msk [vmem:[#allocation5 + $0x110] sm:$0xff] %vm549, %v1864
        %1966 = vst [vmem:[#allocation5 + $0x118] sm:$0xff] %v1913
        %1967 = vst [vmem:[#allocation5 + $0x120] sm:$0xff] %v1914
        %1968 = vst [vmem:[#allocation5 + $0x128] sm:$0xff] %v1915
        %1969 = vst [vmem:[#allocation5 + $0x130] sm:$0xff] %v1916
        %1970 = vst [vmem:[#allocation5 + $0x138] sm:$0xff] %v1917
        %1971 = vst [vmem:[#allocation5 + $0x140] sm:$0xff] %v1918
        %1972 = vst.msk [vmem:[#allocation5 + $0x148] sm:$0xff] %vm549, %v1878
        %1973 = vst [vmem:[#allocation5 + $0x150] sm:$0xff] %v1919
        %1974 = vst [vmem:[#allocation5 + $0x158] sm:$0xff] %v1920
        %1975 = vst [vmem:[#allocation5 + $0x160] sm:$0xff] %v1921
        %1976 = vst [vmem:[#allocation5 + $0x168] sm:$0xff] %v1922
        %1977 = vst [vmem:[#allocation5 + $0x170] sm:$0xff] %v1923
        %1978 = vst [vmem:[#allocation5 + $0x178] sm:$0xff] %v1924
        %1979 = vst.msk [vmem:[#allocation5 + $0x180] sm:$0xff] %vm549, %v1892
        %1980 = vst [vmem:[#allocation5 + $0x188] sm:$0xff] %v1925
        %1981 = vst [vmem:[#allocation5 + $0x190] sm:$0xff] %v1926
        %1982 = vst [vmem:[#allocation5 + $0x198] sm:$0xff] %v1927
        %1983 = vst [vmem:[#allocation5 + $0x1a0] sm:$0xff] %v1928
        %1984 = vst [vmem:[#allocation5 + $0x1a8] sm:$0xff] %v1929
        %1985 = vst [vmem:[#allocation5 + $0x1b0] sm:$0xff] %v1930
        %1986 = vst.msk [vmem:[#allocation5 + $0x1b8] sm:$0xff] %vm549, %v1906
        %2015 = vrot.lane.b32.xlu0 %v1631, 123
        %v2016 = vpop.permute.xlu0 %2015
        %2017 = vrot.lane.b32.xlu0 %v1632, 123
        %v2018 = vpop.permute.xlu0 %2017
        %2019 = vrot.lane.b32.xlu0 %v1633, 123
        %v2020 = vpop.permute.xlu0 %2019
        %2021 = vrot.lane.b32.xlu0 %v1634, 123
        %v2022 = vpop.permute.xlu0 %2021
        %2023 = vrot.lane.b32.xlu0 %v1635, 123
        %v2024 = vpop.permute.xlu0 %2023
        %2025 = vrot.lane.b32.xlu0 %v1636, 123
        %v2026 = vpop.permute.xlu0 %2025
        %2027 = vrot.lane.b32.xlu0 %v1637, 123
        %v2028 = vpop.permute.xlu0 %2027
        %2029 = vrot.lane.b32.xlu0 %v1638, 123
        %v2030 = vpop.permute.xlu0 %2029
        %2031 = vrot.lane.b32.xlu0 %v1639, 123
        %v2032 = vpop.permute.xlu0 %2031
        %2033 = vrot.lane.b32.xlu0 %v1640, 123
        %v2034 = vpop.permute.xlu0 %2033
        %2035 = vrot.lane.b32.xlu0 %v1641, 123
        %v2036 = vpop.permute.xlu0 %2035
        %2037 = vrot.lane.b32.xlu0 %v1642, 123
        %v2038 = vpop.permute.xlu0 %2037
        %2039 = vrot.lane.b32.xlu0 %v1643, 123
        %v2040 = vpop.permute.xlu0 %2039
        %2041 = vrot.lane.b32.xlu0 %v1644, 123
        %v2042 = vpop.permute.xlu0 %2041
        %2043 = vrot.lane.b32.xlu0 %v1645, 123
        %v2044 = vpop.permute.xlu0 %2043
        %2045 = vrot.lane.b32.xlu0 %v1646, 123
        %v2046 = vpop.permute.xlu0 %2045
        %2047 = vrot.lane.b32.xlu0 %v1647, 123
        %v2048 = vpop.permute.xlu0 %2047
        %2049 = vrot.lane.b32.xlu0 %v1648, 123
        %v2050 = vpop.permute.xlu0 %2049
        %2051 = vrot.lane.b32.xlu0 %v1649, 123
        %v2052 = vpop.permute.xlu0 %2051
        %2053 = vrot.lane.b32.xlu0 %v1650, 123
        %v2054 = vpop.permute.xlu0 %2053
        %2055 = vrot.lane.b32.xlu0 %v1651, 123
        %v2056 = vpop.permute.xlu0 %2055
        %2057 = vrot.lane.b32.xlu0 %v1652, 123
        %v2058 = vpop.permute.xlu0 %2057
        %2059 = vrot.lane.b32.xlu0 %v1653, 123
        %v2060 = vpop.permute.xlu0 %2059
        %2061 = vrot.lane.b32.xlu0 %v1654, 123
        %v2062 = vpop.permute.xlu0 %2061
        %2063 = vrot.lane.b32.xlu0 %v1655, 123
        %v2064 = vpop.permute.xlu0 %2063
        %2065 = vrot.lane.b32.xlu0 %v1656, 123
        %v2066 = vpop.permute.xlu0 %2065
        %2067 = vrot.lane.b32.xlu0 %v1657, 123
        %v2068 = vpop.permute.xlu0 %2067
        %2069 = vrot.lane.b32.xlu0 %v1658, 123
        %v2070 = vpop.permute.xlu0 %2069
        %v2071 = vsel %vm614, %v2016, %v2018
        %v2072 = vsel %vm614, %v2018, %v2020
        %v2073 = vsel %vm614, %v2020, %v2022
        %v2074 = vsel %vm614, %v2022, %v2024
        %v2075 = vsel %vm614, %v2024, %v2026
        %v2076 = vsel %vm614, %v2026, %v2028
        %v2077 = vsel %vm614, %v2030, %v2032
        %v2078 = vsel %vm614, %v2032, %v2034
        %v2079 = vsel %vm614, %v2034, %v2036
        %v2080 = vsel %vm614, %v2036, %v2038
        %v2081 = vsel %vm614, %v2038, %v2040
        %v2082 = vsel %vm614, %v2040, %v2042
        %v2083 = vsel %vm614, %v2044, %v2046
        %v2084 = vsel %vm614, %v2046, %v2048
        %v2085 = vsel %vm614, %v2048, %v2050
        %v2086 = vsel %vm614, %v2050, %v2052
        %v2087 = vsel %vm614, %v2052, %v2054
        %v2088 = vsel %vm614, %v2054, %v2056
        %v2089 = vsel %vm614, %v2058, %v2060
        %v2090 = vsel %vm614, %v2060, %v2062
        %v2091 = vsel %vm614, %v2062, %v2064
        %v2092 = vsel %vm614, %v2064, %v2066
        %v2093 = vsel %vm614, %v2066, %v2068
        %v2094 = vsel %vm614, %v2068, %v2070
        %2123 = vst [vmem:[#allocation5 + $0x1c0] sm:$0xff] %v2071
        %2124 = vst [vmem:[#allocation5 + $0x1c8] sm:$0xff] %v2072
        %2125 = vst [vmem:[#allocation5 + $0x1d0] sm:$0xff] %v2073
        %2126 = vst [vmem:[#allocation5 + $0x1d8] sm:$0xff] %v2074
        %2127 = vst [vmem:[#allocation5 + $0x1e0] sm:$0xff] %v2075
        %2128 = vst [vmem:[#allocation5 + $0x1e8] sm:$0xff] %v2076
        %2129 = vst.msk [vmem:[#allocation5 + $0x1f0] sm:$0xff] %vm549, %v2028
        %2130 = vst [vmem:[#allocation5 + $0x1f8] sm:$0xff] %v2077
        %2131 = vst [vmem:[#allocation5 + $0x200] sm:$0xff] %v2078
        %2132 = vst [vmem:[#allocation5 + $0x208] sm:$0xff] %v2079
        %2133 = vst [vmem:[#allocation5 + $0x210] sm:$0xff] %v2080
        %2134 = vst [vmem:[#allocation5 + $0x218] sm:$0xff] %v2081
        %2135 = vst [vmem:[#allocation5 + $0x220] sm:$0xff] %v2082
        %2136 = vst.msk [vmem:[#allocation5 + $0x228] sm:$0xff] %vm549, %v2042
        %2137 = vst [vmem:[#allocation5 + $0x230] sm:$0xff] %v2083
        %2138 = vst [vmem:[#allocation5 + $0x238] sm:$0xff] %v2084
        %2139 = vst [vmem:[#allocation5 + $0x240] sm:$0xff] %v2085
        %2140 = vst [vmem:[#allocation5 + $0x248] sm:$0xff] %v2086
        %2141 = vst [vmem:[#allocation5 + $0x250] sm:$0xff] %v2087
        %2142 = vst [vmem:[#allocation5 + $0x258] sm:$0xff] %v2088
        %2143 = vst.msk [vmem:[#allocation5 + $0x260] sm:$0xff] %vm549, %v2056
        %2144 = vst [vmem:[#allocation5 + $0x268] sm:$0xff] %v2089
        %2145 = vst [vmem:[#allocation5 + $0x270] sm:$0xff] %v2090
        %2146 = vst [vmem:[#allocation5 + $0x278] sm:$0xff] %v2091
        %2147 = vst [vmem:[#allocation5 + $0x280] sm:$0xff] %v2092
        %2148 = vst [vmem:[#allocation5 + $0x288] sm:$0xff] %v2093
        %2149 = vst [vmem:[#allocation5 + $0x290] sm:$0xff] %v2094
        %2150 = vst.msk [vmem:[#allocation5 + $0x298] sm:$0xff] %vm549, %v2070
        %2151 = vrot.lane.b32.xlu0 %v1566, 97
        %v2152 = vpop.permute.xlu0 %2151
        %2153 = vrot.lane.b32.xlu0 %v1567, 97
        %v2154 = vpop.permute.xlu0 %2153
        %2155 = vrot.lane.b32.xlu0 %v1568, 97
        %v2156 = vpop.permute.xlu0 %2155
        %2157 = vrot.lane.b32.xlu0 %v1569, 97
        %v2158 = vpop.permute.xlu0 %2157
        %2159 = vrot.lane.b32.xlu0 %v1570, 97
        %v2160 = vpop.permute.xlu0 %2159
        %2161 = vrot.lane.b32.xlu0 %v1571, 97
        %v2162 = vpop.permute.xlu0 %2161
        %2163 = vrot.lane.b32.xlu0 %v1572, 97
        %v2164 = vpop.permute.xlu0 %2163
        %2165 = vrot.lane.b32.xlu0 %v1573, 97
        %v2166 = vpop.permute.xlu0 %2165
        %2167 = vrot.lane.b32.xlu0 %v1574, 97
        %v2168 = vpop.permute.xlu0 %2167
        %2169 = vrot.lane.b32.xlu0 %v1575, 97
        %v2170 = vpop.permute.xlu0 %2169
        %2171 = vrot.lane.b32.xlu0 %v1576, 97
        %v2172 = vpop.permute.xlu0 %2171
        %2173 = vrot.lane.b32.xlu0 %v1577, 97
        %v2174 = vpop.permute.xlu0 %2173
        %2175 = vrot.lane.b32.xlu0 %v1578, 97
        %v2176 = vpop.permute.xlu0 %2175
        %2177 = vrot.lane.b32.xlu0 %v1579, 97
        %v2178 = vpop.permute.xlu0 %2177
        %2179 = vrot.lane.b32.xlu0 %v1580, 97
        %v2180 = vpop.permute.xlu0 %2179
        %2181 = vrot.lane.b32.xlu0 %v1581, 97
        %v2182 = vpop.permute.xlu0 %2181
        %2183 = vrot.lane.b32.xlu0 %v1582, 97
        %v2184 = vpop.permute.xlu0 %2183
        %2185 = vrot.lane.b32.xlu0 %v1583, 97
        %v2186 = vpop.permute.xlu0 %2185
        %2187 = vrot.lane.b32.xlu0 %v1584, 97
        %v2188 = vpop.permute.xlu0 %2187
        %2189 = vrot.lane.b32.xlu0 %v1585, 97
        %v2190 = vpop.permute.xlu0 %2189
        %2191 = vrot.lane.b32.xlu0 %v1586, 97
        %v2192 = vpop.permute.xlu0 %2191
        %2193 = vrot.lane.b32.xlu0 %v1587, 97
        %v2194 = vpop.permute.xlu0 %2193
        %2195 = vrot.lane.b32.xlu0 %v1588, 97
        %v2196 = vpop.permute.xlu0 %2195
        %2197 = vrot.lane.b32.xlu0 %v1589, 97
        %v2198 = vpop.permute.xlu0 %2197
        %2199 = vrot.lane.b32.xlu0 %v1590, 97
        %v2200 = vpop.permute.xlu0 %2199
        %2201 = vrot.lane.b32.xlu0 %v1591, 97
        %v2202 = vpop.permute.xlu0 %2201
        %2203 = vrot.lane.b32.xlu0 %v1592, 97
        %v2204 = vpop.permute.xlu0 %2203
        %2205 = vrot.lane.b32.xlu0 %v1593, 97
        %v2206 = vpop.permute.xlu0 %2205
        %v2207 = vsel %vm649, %v2152, %v2154
        %v2208 = vsel %vm649, %v2154, %v2156
        %v2209 = vsel %vm649, %v2156, %v2158
        %v2210 = vsel %vm649, %v2158, %v2160
        %v2211 = vsel %vm649, %v2160, %v2162
        %v2212 = vsel %vm649, %v2162, %v2164
        %v2213 = vsel %vm649, %v2166, %v2168
        %v2214 = vsel %vm649, %v2168, %v2170
        %v2215 = vsel %vm649, %v2170, %v2172
        %v2216 = vsel %vm649, %v2172, %v2174
        %v2217 = vsel %vm649, %v2174, %v2176
        %v2218 = vsel %vm649, %v2176, %v2178
        %v2219 = vsel %vm649, %v2180, %v2182
        %v2220 = vsel %vm649, %v2182, %v2184
        %v2221 = vsel %vm649, %v2184, %v2186
        %v2222 = vsel %vm649, %v2186, %v2188
        %v2223 = vsel %vm649, %v2188, %v2190
        %v2224 = vsel %vm649, %v2190, %v2192
        %v2225 = vsel %vm649, %v2194, %v2196
        %v2226 = vsel %vm649, %v2196, %v2198
        %v2227 = vsel %vm649, %v2198, %v2200
        %v2228 = vsel %vm649, %v2200, %v2202
        %v2229 = vsel %vm649, %v2202, %v2204
        %v2230 = vsel %vm649, %v2204, %v2206
        %2259 = vst [vmem:[#allocation5 + $0x2a0] sm:$0xff] %v2207
        %2260 = vst [vmem:[#allocation5 + $0x2a8] sm:$0xff] %v2208
        %2261 = vst [vmem:[#allocation5 + $0x2b0] sm:$0xff] %v2209
        %2262 = vst [vmem:[#allocation5 + $0x2b8] sm:$0xff] %v2210
        %2263 = vst [vmem:[#allocation5 + $0x2c0] sm:$0xff] %v2211
        %2264 = vst [vmem:[#allocation5 + $0x2c8] sm:$0xff] %v2212
        %2265 = vst.msk [vmem:[#allocation5 + $0x2d0] sm:$0xff] %vm549, %v2164
        %2266 = vst [vmem:[#allocation5 + $0x2d8] sm:$0xff] %v2213
        %2267 = vst [vmem:[#allocation5 + $0x2e0] sm:$0xff] %v2214
        %2268 = vst [vmem:[#allocation5 + $0x2e8] sm:$0xff] %v2215
        %2269 = vst [vmem:[#allocation5 + $0x2f0] sm:$0xff] %v2216
        %2270 = vst [vmem:[#allocation5 + $0x2f8] sm:$0xff] %v2217
        %2271 = vst [vmem:[#allocation5 + $0x300] sm:$0xff] %v2218
        %2272 = vst.msk [vmem:[#allocation5 + $0x308] sm:$0xff] %vm549, %v2178
        %2273 = vst [vmem:[#allocation5 + $0x310] sm:$0xff] %v2219
        %2274 = vst [vmem:[#allocation5 + $0x318] sm:$0xff] %v2220
        %2275 = vst [vmem:[#allocation5 + $0x320] sm:$0xff] %v2221
        %2276 = vst [vmem:[#allocation5 + $0x328] sm:$0xff] %v2222
        %2277 = vst [vmem:[#allocation5 + $0x330] sm:$0xff] %v2223
        %2278 = vst [vmem:[#allocation5 + $0x338] sm:$0xff] %v2224
        %2279 = vst.msk [vmem:[#allocation5 + $0x340] sm:$0xff] %vm549, %v2192
        %2280 = vst [vmem:[#allocation5 + $0x348] sm:$0xff] %v2225
        %2281 = vst [vmem:[#allocation5 + $0x350] sm:$0xff] %v2226
        %2282 = vst [vmem:[#allocation5 + $0x358] sm:$0xff] %v2227
        %2283 = vst [vmem:[#allocation5 + $0x360] sm:$0xff] %v2228
        %2284 = vst [vmem:[#allocation5 + $0x368] sm:$0xff] %v2229
        %2285 = vst [vmem:[#allocation5 + $0x370] sm:$0xff] %v2230
        %2286 = vst.msk [vmem:[#allocation5 + $0x378] sm:$0xff] %vm549, %v2206
        %2287 = vrot.lane.b32.xlu0 %v1501, 96
        %v2288 = vpop.permute.xlu0 %2287
        %2289 = vrot.lane.b32.xlu0 %v1502, 96
        %v2290 = vpop.permute.xlu0 %2289
        %2291 = vrot.lane.b32.xlu0 %v1503, 96
        %v2292 = vpop.permute.xlu0 %2291
        %2293 = vrot.lane.b32.xlu0 %v1504, 96
        %v2294 = vpop.permute.xlu0 %2293
        %2295 = vrot.lane.b32.xlu0 %v1505, 96
        %v2296 = vpop.permute.xlu0 %2295
        %2297 = vrot.lane.b32.xlu0 %v1506, 96
        %v2298 = vpop.permute.xlu0 %2297
        %2299 = vrot.lane.b32.xlu0 %v1507, 96
        %v2300 = vpop.permute.xlu0 %2299
        %2301 = vrot.lane.b32.xlu0 %v1508, 96
        %v2302 = vpop.permute.xlu0 %2301
        %2303 = vrot.lane.b32.xlu0 %v1509, 96
        %v2304 = vpop.permute.xlu0 %2303
        %2305 = vrot.lane.b32.xlu0 %v1510, 96
        %v2306 = vpop.permute.xlu0 %2305
        %2307 = vrot.lane.b32.xlu0 %v1511, 96
        %v2308 = vpop.permute.xlu0 %2307
        %2309 = vrot.lane.b32.xlu0 %v1512, 96
        %v2310 = vpop.permute.xlu0 %2309
        %2311 = vrot.lane.b32.xlu0 %v1513, 96
        %v2312 = vpop.permute.xlu0 %2311
        %2313 = vrot.lane.b32.xlu0 %v1514, 96
        %v2314 = vpop.permute.xlu0 %2313
        %2315 = vrot.lane.b32.xlu0 %v1515, 96
        %v2316 = vpop.permute.xlu0 %2315
        %2317 = vrot.lane.b32.xlu0 %v1516, 96
        %v2318 = vpop.permute.xlu0 %2317
        %2319 = vrot.lane.b32.xlu0 %v1517, 96
        %v2320 = vpop.permute.xlu0 %2319
        %2321 = vrot.lane.b32.xlu0 %v1518, 96
        %v2322 = vpop.permute.xlu0 %2321
        %2323 = vrot.lane.b32.xlu0 %v1519, 96
        %v2324 = vpop.permute.xlu0 %2323
        %2325 = vrot.lane.b32.xlu0 %v1520, 96
        %v2326 = vpop.permute.xlu0 %2325
        %2327 = vrot.lane.b32.xlu0 %v1521, 96
        %v2328 = vpop.permute.xlu0 %2327
        %2329 = vrot.lane.b32.xlu0 %v1522, 96
        %v2330 = vpop.permute.xlu0 %2329
        %2331 = vrot.lane.b32.xlu0 %v1523, 96
        %v2332 = vpop.permute.xlu0 %2331
        %2333 = vrot.lane.b32.xlu0 %v1524, 96
        %v2334 = vpop.permute.xlu0 %2333
        %2335 = vrot.lane.b32.xlu0 %v1525, 96
        %v2336 = vpop.permute.xlu0 %2335
        %2337 = vrot.lane.b32.xlu0 %v1526, 96
        %v2338 = vpop.permute.xlu0 %2337
        %2339 = vrot.lane.b32.xlu0 %v1527, 96
        %v2340 = vpop.permute.xlu0 %2339
        %2341 = vrot.lane.b32.xlu0 %v1528, 96
        %v2342 = vpop.permute.xlu0 %2341
        %v2343 = vsel %vm684, %v2288, %v2290
        %v2344 = vsel %vm684, %v2290, %v2292
        %v2345 = vsel %vm684, %v2292, %v2294
        %v2346 = vsel %vm684, %v2294, %v2296
        %v2347 = vsel %vm684, %v2296, %v2298
        %v2348 = vsel %vm684, %v2298, %v2300
        %v2349 = vsel %vm684, %v2302, %v2304
        %v2350 = vsel %vm684, %v2304, %v2306
        %v2351 = vsel %vm684, %v2306, %v2308
        %v2352 = vsel %vm684, %v2308, %v2310
        %v2353 = vsel %vm684, %v2310, %v2312
        %v2354 = vsel %vm684, %v2312, %v2314
        %v2355 = vsel %vm684, %v2316, %v2318
        %v2356 = vsel %vm684, %v2318, %v2320
        %v2357 = vsel %vm684, %v2320, %v2322
        %v2358 = vsel %vm684, %v2322, %v2324
        %v2359 = vsel %vm684, %v2324, %v2326
        %v2360 = vsel %vm684, %v2326, %v2328
        %v2361 = vsel %vm684, %v2330, %v2332
        %v2362 = vsel %vm684, %v2332, %v2334
        %v2363 = vsel %vm684, %v2334, %v2336
        %v2364 = vsel %vm684, %v2336, %v2338
        %v2365 = vsel %vm684, %v2338, %v2340
        %v2366 = vsel %vm684, %v2340, %v2342
        %2395 = vst [vmem:[#allocation5 + $0x380] sm:$0xff] %v2343
        %2396 = vst [vmem:[#allocation5 + $0x388] sm:$0xff] %v2344
        %2397 = vst [vmem:[#allocation5 + $0x390] sm:$0xff] %v2345
        %2398 = vst [vmem:[#allocation5 + $0x398] sm:$0xff] %v2346
        %2399 = vst [vmem:[#allocation5 + $0x3a0] sm:$0xff] %v2347
        %2400 = vst [vmem:[#allocation5 + $0x3a8] sm:$0xff] %v2348
        %2401 = vst.msk [vmem:[#allocation5 + $0x3b0] sm:$0xff] %vm549, %v2300
        %2402 = vst [vmem:[#allocation5 + $0x3b8] sm:$0xff] %v2349
        %2403 = vst [vmem:[#allocation5 + $0x3c0] sm:$0xff] %v2350
        %2404 = vst [vmem:[#allocation5 + $0x3c8] sm:$0xff] %v2351
        %2405 = vst [vmem:[#allocation5 + $0x3d0] sm:$0xff] %v2352
        %2406 = vst [vmem:[#allocation5 + $0x3d8] sm:$0xff] %v2353
        %2407 = vst [vmem:[#allocation5 + $0x3e0] sm:$0xff] %v2354
        %2408 = vst.msk [vmem:[#allocation5 + $0x3e8] sm:$0xff] %vm549, %v2314
        %2409 = vst [vmem:[#allocation5 + $0x3f0] sm:$0xff] %v2355
        %2410 = vst [vmem:[#allocation5 + $0x3f8] sm:$0xff] %v2356
        %2411 = vst [vmem:[#allocation5 + $0x400] sm:$0xff] %v2357
        %2412 = vst [vmem:[#allocation5 + $0x408] sm:$0xff] %v2358
        %2413 = vst [vmem:[#allocation5 + $0x410] sm:$0xff] %v2359
        %2414 = vst [vmem:[#allocation5 + $0x418] sm:$0xff] %v2360
        %2415 = vst.msk [vmem:[#allocation5 + $0x420] sm:$0xff] %vm549, %v2328
        %2416 = vst [vmem:[#allocation5 + $0x428] sm:$0xff] %v2361
        %2417 = vst [vmem:[#allocation5 + $0x430] sm:$0xff] %v2362
        %2418 = vst [vmem:[#allocation5 + $0x438] sm:$0xff] %v2363
        %2419 = vst [vmem:[#allocation5 + $0x440] sm:$0xff] %v2364
        %2420 = vst [vmem:[#allocation5 + $0x448] sm:$0xff] %v2365
        %2421 = vst [vmem:[#allocation5 + $0x450] sm:$0xff] %v2366
        %2422 = vst.msk [vmem:[#allocation5 + $0x458] sm:$0xff] %vm549, %v2342
        %2423 = vrot.lane.b32.xlu0 %v1631, 95
        %v2424 = vpop.permute.xlu0 %2423
        %2425 = vrot.lane.b32.xlu0 %v1632, 95
        %v2426 = vpop.permute.xlu0 %2425
        %2427 = vrot.lane.b32.xlu0 %v1633, 95
        %v2428 = vpop.permute.xlu0 %2427
        %2429 = vrot.lane.b32.xlu0 %v1634, 95
        %v2430 = vpop.permute.xlu0 %2429
        %2431 = vrot.lane.b32.xlu0 %v1635, 95
        %v2432 = vpop.permute.xlu0 %2431
        %2433 = vrot.lane.b32.xlu0 %v1636, 95
        %v2434 = vpop.permute.xlu0 %2433
        %2435 = vrot.lane.b32.xlu0 %v1637, 95
        %v2436 = vpop.permute.xlu0 %2435
        %2437 = vrot.lane.b32.xlu0 %v1638, 95
        %v2438 = vpop.permute.xlu0 %2437
        %2439 = vrot.lane.b32.xlu0 %v1639, 95
        %v2440 = vpop.permute.xlu0 %2439
        %2441 = vrot.lane.b32.xlu0 %v1640, 95
        %v2442 = vpop.permute.xlu0 %2441
        %2443 = vrot.lane.b32.xlu0 %v1641, 95
        %v2444 = vpop.permute.xlu0 %2443
        %2445 = vrot.lane.b32.xlu0 %v1642, 95
        %v2446 = vpop.permute.xlu0 %2445
        %2447 = vrot.lane.b32.xlu0 %v1643, 95
        %v2448 = vpop.permute.xlu0 %2447
        %2449 = vrot.lane.b32.xlu0 %v1644, 95
        %v2450 = vpop.permute.xlu0 %2449
        %2451 = vrot.lane.b32.xlu0 %v1645, 95
        %v2452 = vpop.permute.xlu0 %2451
        %2453 = vrot.lane.b32.xlu0 %v1646, 95
        %v2454 = vpop.permute.xlu0 %2453
        %2455 = vrot.lane.b32.xlu0 %v1647, 95
        %v2456 = vpop.permute.xlu0 %2455
        %2457 = vrot.lane.b32.xlu0 %v1648, 95
        %v2458 = vpop.permute.xlu0 %2457
        %2459 = vrot.lane.b32.xlu0 %v1649, 95
        %v2460 = vpop.permute.xlu0 %2459
        %2461 = vrot.lane.b32.xlu0 %v1650, 95
        %v2462 = vpop.permute.xlu0 %2461
        %2463 = vrot.lane.b32.xlu0 %v1651, 95
        %v2464 = vpop.permute.xlu0 %2463
        %2465 = vrot.lane.b32.xlu0 %v1652, 95
        %v2466 = vpop.permute.xlu0 %2465
        %2467 = vrot.lane.b32.xlu0 %v1653, 95
        %v2468 = vpop.permute.xlu0 %2467
        %2469 = vrot.lane.b32.xlu0 %v1654, 95
        %v2470 = vpop.permute.xlu0 %2469
        %2471 = vrot.lane.b32.xlu0 %v1655, 95
        %v2472 = vpop.permute.xlu0 %2471
        %2473 = vrot.lane.b32.xlu0 %v1656, 95
        %v2474 = vpop.permute.xlu0 %2473
        %2475 = vrot.lane.b32.xlu0 %v1657, 95
        %v2476 = vpop.permute.xlu0 %2475
        %2477 = vrot.lane.b32.xlu0 %v1658, 95
        %v2478 = vpop.permute.xlu0 %2477
        %v2479 = vsel %vm719, %v2424, %v2426
        %v2480 = vsel %vm719, %v2426, %v2428
        %v2481 = vsel %vm719, %v2428, %v2430
        %v2482 = vsel %vm719, %v2430, %v2432
        %v2483 = vsel %vm719, %v2432, %v2434
        %v2484 = vsel %vm719, %v2434, %v2436
        %v2485 = vsel %vm719, %v2438, %v2440
        %v2486 = vsel %vm719, %v2440, %v2442
        %v2487 = vsel %vm719, %v2442, %v2444
        %v2488 = vsel %vm719, %v2444, %v2446
        %v2489 = vsel %vm719, %v2446, %v2448
        %v2490 = vsel %vm719, %v2448, %v2450
        %v2491 = vsel %vm719, %v2452, %v2454
        %v2492 = vsel %vm719, %v2454, %v2456
        %v2493 = vsel %vm719, %v2456, %v2458
        %v2494 = vsel %vm719, %v2458, %v2460
        %v2495 = vsel %vm719, %v2460, %v2462
        %v2496 = vsel %vm719, %v2462, %v2464
        %v2497 = vsel %vm719, %v2466, %v2468
        %v2498 = vsel %vm719, %v2468, %v2470
        %v2499 = vsel %vm719, %v2470, %v2472
        %v2500 = vsel %vm719, %v2472, %v2474
        %v2501 = vsel %vm719, %v2474, %v2476
        %v2502 = vsel %vm719, %v2476, %v2478
        %2531 = vst [vmem:[#allocation5 + $0x460] sm:$0xff] %v2479
        %2532 = vst [vmem:[#allocation5 + $0x468] sm:$0xff] %v2480
        %2533 = vst [vmem:[#allocation5 + $0x470] sm:$0xff] %v2481
        %2534 = vst [vmem:[#allocation5 + $0x478] sm:$0xff] %v2482
        %2535 = vst [vmem:[#allocation5 + $0x480] sm:$0xff] %v2483
        %2536 = vst [vmem:[#allocation5 + $0x488] sm:$0xff] %v2484
        %2537 = vst.msk [vmem:[#allocation5 + $0x490] sm:$0xff] %vm549, %v2436
        %2538 = vst [vmem:[#allocation5 + $0x498] sm:$0xff] %v2485
        %2539 = vst [vmem:[#allocation5 + $0x4a0] sm:$0xff] %v2486
        %2540 = vst [vmem:[#allocation5 + $0x4a8] sm:$0xff] %v2487
        %2541 = vst [vmem:[#allocation5 + $0x4b0] sm:$0xff] %v2488
        %2542 = vst [vmem:[#allocation5 + $0x4b8] sm:$0xff] %v2489
        %2543 = vst [vmem:[#allocation5 + $0x4c0] sm:$0xff] %v2490
        %2544 = vst.msk [vmem:[#allocation5 + $0x4c8] sm:$0xff] %vm549, %v2450
        %2545 = vst [vmem:[#allocation5 + $0x4d0] sm:$0xff] %v2491
        %2546 = vst [vmem:[#allocation5 + $0x4d8] sm:$0xff] %v2492
        %2547 = vst [vmem:[#allocation5 + $0x4e0] sm:$0xff] %v2493
        %2548 = vst [vmem:[#allocation5 + $0x4e8] sm:$0xff] %v2494
        %2549 = vst [vmem:[#allocation5 + $0x4f0] sm:$0xff] %v2495
        %2550 = vst [vmem:[#allocation5 + $0x4f8] sm:$0xff] %v2496
        %2551 = vst.msk [vmem:[#allocation5 + $0x500] sm:$0xff] %vm549, %v2464
        %2552 = vst [vmem:[#allocation5 + $0x508] sm:$0xff] %v2497
        %2553 = vst [vmem:[#allocation5 + $0x510] sm:$0xff] %v2498
        %2554 = vst [vmem:[#allocation5 + $0x518] sm:$0xff] %v2499
        %2555 = vst [vmem:[#allocation5 + $0x520] sm:$0xff] %v2500
        %2556 = vst [vmem:[#allocation5 + $0x528] sm:$0xff] %v2501
        %2557 = vst [vmem:[#allocation5 + $0x530] sm:$0xff] %v2502
        %2558 = vst.msk [vmem:[#allocation5 + $0x538] sm:$0xff] %vm549, %v2478
        %2559 = vrot.lane.b32.xlu0 %v1566, 69
        %v2560 = vpop.permute.xlu0 %2559
        %2561 = vrot.lane.b32.xlu0 %v1567, 69
        %v2562 = vpop.permute.xlu0 %2561
        %2563 = vrot.lane.b32.xlu0 %v1568, 69
        %v2564 = vpop.permute.xlu0 %2563
        %2565 = vrot.lane.b32.xlu0 %v1569, 69
        %v2566 = vpop.permute.xlu0 %2565
        %2567 = vrot.lane.b32.xlu0 %v1570, 69
        %v2568 = vpop.permute.xlu0 %2567
        %2569 = vrot.lane.b32.xlu0 %v1571, 69
        %v2570 = vpop.permute.xlu0 %2569
        %2571 = vrot.lane.b32.xlu0 %v1572, 69
        %v2572 = vpop.permute.xlu0 %2571
        %2573 = vrot.lane.b32.xlu0 %v1573, 69
        %v2574 = vpop.permute.xlu0 %2573
        %2575 = vrot.lane.b32.xlu0 %v1574, 69
        %v2576 = vpop.permute.xlu0 %2575
        %2577 = vrot.lane.b32.xlu0 %v1575, 69
        %v2578 = vpop.permute.xlu0 %2577
        %2579 = vrot.lane.b32.xlu0 %v1576, 69
        %v2580 = vpop.permute.xlu0 %2579
        %2581 = vrot.lane.b32.xlu0 %v1577, 69
        %v2582 = vpop.permute.xlu0 %2581
        %2583 = vrot.lane.b32.xlu0 %v1578, 69
        %v2584 = vpop.permute.xlu0 %2583
        %2585 = vrot.lane.b32.xlu0 %v1579, 69
        %v2586 = vpop.permute.xlu0 %2585
        %2587 = vrot.lane.b32.xlu0 %v1580, 69
        %v2588 = vpop.permute.xlu0 %2587
        %2589 = vrot.lane.b32.xlu0 %v1581, 69
        %v2590 = vpop.permute.xlu0 %2589
        %2591 = vrot.lane.b32.xlu0 %v1582, 69
        %v2592 = vpop.permute.xlu0 %2591
        %2593 = vrot.lane.b32.xlu0 %v1583, 69
        %v2594 = vpop.permute.xlu0 %2593
        %2595 = vrot.lane.b32.xlu0 %v1584, 69
        %v2596 = vpop.permute.xlu0 %2595
        %2597 = vrot.lane.b32.xlu0 %v1585, 69
        %v2598 = vpop.permute.xlu0 %2597
        %2599 = vrot.lane.b32.xlu0 %v1586, 69
        %v2600 = vpop.permute.xlu0 %2599
        %2601 = vrot.lane.b32.xlu0 %v1587, 69
        %v2602 = vpop.permute.xlu0 %2601
        %2603 = vrot.lane.b32.xlu0 %v1588, 69
        %v2604 = vpop.permute.xlu0 %2603
        %2605 = vrot.lane.b32.xlu0 %v1589, 69
        %v2606 = vpop.permute.xlu0 %2605
        %2607 = vrot.lane.b32.xlu0 %v1590, 69
        %v2608 = vpop.permute.xlu0 %2607
        %2609 = vrot.lane.b32.xlu0 %v1591, 69
        %v2610 = vpop.permute.xlu0 %2609
        %2611 = vrot.lane.b32.xlu0 %v1592, 69
        %v2612 = vpop.permute.xlu0 %2611
        %2613 = vrot.lane.b32.xlu0 %v1593, 69
        %v2614 = vpop.permute.xlu0 %2613
        %v2615 = vsel %vm754, %v2560, %v2562
        %v2616 = vsel %vm754, %v2562, %v2564
        %v2617 = vsel %vm754, %v2564, %v2566
        %v2618 = vsel %vm754, %v2566, %v2568
        %v2619 = vsel %vm754, %v2568, %v2570
        %v2620 = vsel %vm754, %v2570, %v2572
        %v2621 = vsel %vm754, %v2574, %v2576
        %v2622 = vsel %vm754, %v2576, %v2578
        %v2623 = vsel %vm754, %v2578, %v2580
        %v2624 = vsel %vm754, %v2580, %v2582
        %v2625 = vsel %vm754, %v2582, %v2584
        %v2626 = vsel %vm754, %v2584, %v2586
        %v2627 = vsel %vm754, %v2588, %v2590
        %v2628 = vsel %vm754, %v2590, %v2592
        %v2629 = vsel %vm754, %v2592, %v2594
        %v2630 = vsel %vm754, %v2594, %v2596
        %v2631 = vsel %vm754, %v2596, %v2598
        %v2632 = vsel %vm754, %v2598, %v2600
        %v2633 = vsel %vm754, %v2602, %v2604
        %v2634 = vsel %vm754, %v2604, %v2606
        %v2635 = vsel %vm754, %v2606, %v2608
        %v2636 = vsel %vm754, %v2608, %v2610
        %v2637 = vsel %vm754, %v2610, %v2612
        %v2638 = vsel %vm754, %v2612, %v2614
        %2667 = vst [vmem:[#allocation5 + $0x540] sm:$0xff] %v2615
        %2668 = vst [vmem:[#allocation5 + $0x548] sm:$0xff] %v2616
        %2669 = vst [vmem:[#allocation5 + $0x550] sm:$0xff] %v2617
        %2670 = vst [vmem:[#allocation5 + $0x558] sm:$0xff] %v2618
        %2671 = vst [vmem:[#allocation5 + $0x560] sm:$0xff] %v2619
        %2672 = vst [vmem:[#allocation5 + $0x568] sm:$0xff] %v2620
        %2673 = vst.msk [vmem:[#allocation5 + $0x570] sm:$0xff] %vm549, %v2572
        %2674 = vst [vmem:[#allocation5 + $0x578] sm:$0xff] %v2621
        %2675 = vst [vmem:[#allocation5 + $0x580] sm:$0xff] %v2622
        %2676 = vst [vmem:[#allocation5 + $0x588] sm:$0xff] %v2623
        %2677 = vst [vmem:[#allocation5 + $0x590] sm:$0xff] %v2624
        %2678 = vst [vmem:[#allocation5 + $0x598] sm:$0xff] %v2625
        %2679 = vst [vmem:[#allocation5 + $0x5a0] sm:$0xff] %v2626
        %2680 = vst.msk [vmem:[#allocation5 + $0x5a8] sm:$0xff] %vm549, %v2586
        %2681 = vst [vmem:[#allocation5 + $0x5b0] sm:$0xff] %v2627
        %2682 = vst [vmem:[#allocation5 + $0x5b8] sm:$0xff] %v2628
        %2683 = vst [vmem:[#allocation5 + $0x5c0] sm:$0xff] %v2629
        %2684 = vst [vmem:[#allocation5 + $0x5c8] sm:$0xff] %v2630
        %2685 = vst [vmem:[#allocation5 + $0x5d0] sm:$0xff] %v2631
        %2686 = vst [vmem:[#allocation5 + $0x5d8] sm:$0xff] %v2632
        %2687 = vst.msk [vmem:[#allocation5 + $0x5e0] sm:$0xff] %vm549, %v2600
        %2688 = vst [vmem:[#allocation5 + $0x5e8] sm:$0xff] %v2633
        %2689 = vst [vmem:[#allocation5 + $0x5f0] sm:$0xff] %v2634
        %2690 = vst [vmem:[#allocation5 + $0x5f8] sm:$0xff] %v2635
        %2691 = vst [vmem:[#allocation5 + $0x600] sm:$0xff] %v2636
        %2692 = vst [vmem:[#allocation5 + $0x608] sm:$0xff] %v2637
        %2693 = vst [vmem:[#allocation5 + $0x610] sm:$0xff] %v2638
        %2694 = vst.msk [vmem:[#allocation5 + $0x618] sm:$0xff] %vm549, %v2614
        %2695 = vrot.lane.b32.xlu0 %v1501, 68
        %v2696 = vpop.permute.xlu0 %2695
        %2697 = vrot.lane.b32.xlu0 %v1502, 68
        %v2698 = vpop.permute.xlu0 %2697
        %2699 = vrot.lane.b32.xlu0 %v1503, 68
        %v2700 = vpop.permute.xlu0 %2699
        %2701 = vrot.lane.b32.xlu0 %v1504, 68
        %v2702 = vpop.permute.xlu0 %2701
        %2703 = vrot.lane.b32.xlu0 %v1505, 68
        %v2704 = vpop.permute.xlu0 %2703
        %2705 = vrot.lane.b32.xlu0 %v1506, 68
        %v2706 = vpop.permute.xlu0 %2705
        %2707 = vrot.lane.b32.xlu0 %v1507, 68
        %v2708 = vpop.permute.xlu0 %2707
        %2709 = vrot.lane.b32.xlu0 %v1508, 68
        %v2710 = vpop.permute.xlu0 %2709
        %2711 = vrot.lane.b32.xlu0 %v1509, 68
        %v2712 = vpop.permute.xlu0 %2711
        %2713 = vrot.lane.b32.xlu0 %v1510, 68
        %v2714 = vpop.permute.xlu0 %2713
        %2715 = vrot.lane.b32.xlu0 %v1511, 68
        %v2716 = vpop.permute.xlu0 %2715
        %2717 = vrot.lane.b32.xlu0 %v1512, 68
        %v2718 = vpop.permute.xlu0 %2717
        %2719 = vrot.lane.b32.xlu0 %v1513, 68
        %v2720 = vpop.permute.xlu0 %2719
        %2721 = vrot.lane.b32.xlu0 %v1514, 68
        %v2722 = vpop.permute.xlu0 %2721
        %2723 = vrot.lane.b32.xlu0 %v1515, 68
        %v2724 = vpop.permute.xlu0 %2723
        %2725 = vrot.lane.b32.xlu0 %v1516, 68
        %v2726 = vpop.permute.xlu0 %2725
        %2727 = vrot.lane.b32.xlu0 %v1517, 68
        %v2728 = vpop.permute.xlu0 %2727
        %2729 = vrot.lane.b32.xlu0 %v1518, 68
        %v2730 = vpop.permute.xlu0 %2729
        %2731 = vrot.lane.b32.xlu0 %v1519, 68
        %v2732 = vpop.permute.xlu0 %2731
        %2733 = vrot.lane.b32.xlu0 %v1520, 68
        %v2734 = vpop.permute.xlu0 %2733
        %2735 = vrot.lane.b32.xlu0 %v1521, 68
        %v2736 = vpop.permute.xlu0 %2735
        %2737 = vrot.lane.b32.xlu0 %v1522, 68
        %v2738 = vpop.permute.xlu0 %2737
        %2739 = vrot.lane.b32.xlu0 %v1523, 68
        %v2740 = vpop.permute.xlu0 %2739
        %2741 = vrot.lane.b32.xlu0 %v1524, 68
        %v2742 = vpop.permute.xlu0 %2741
        %2743 = vrot.lane.b32.xlu0 %v1525, 68
        %v2744 = vpop.permute.xlu0 %2743
        %2745 = vrot.lane.b32.xlu0 %v1526, 68
        %v2746 = vpop.permute.xlu0 %2745
        %2747 = vrot.lane.b32.xlu0 %v1527, 68
        %v2748 = vpop.permute.xlu0 %2747
        %2749 = vrot.lane.b32.xlu0 %v1528, 68
        %v2750 = vpop.permute.xlu0 %2749
        %v2751 = vsel %vm789, %v2696, %v2698
        %v2752 = vsel %vm789, %v2698, %v2700
        %v2753 = vsel %vm789, %v2700, %v2702
        %v2754 = vsel %vm789, %v2702, %v2704
        %v2755 = vsel %vm789, %v2704, %v2706
        %v2756 = vsel %vm789, %v2706, %v2708
        %v2757 = vsel %vm789, %v2710, %v2712
        %v2758 = vsel %vm789, %v2712, %v2714
        %v2759 = vsel %vm789, %v2714, %v2716
        %v2760 = vsel %vm789, %v2716, %v2718
        %v2761 = vsel %vm789, %v2718, %v2720
        %v2762 = vsel %vm789, %v2720, %v2722
        %v2763 = vsel %vm789, %v2724, %v2726
        %v2764 = vsel %vm789, %v2726, %v2728
        %v2765 = vsel %vm789, %v2728, %v2730
        %v2766 = vsel %vm789, %v2730, %v2732
        %v2767 = vsel %vm789, %v2732, %v2734
        %v2768 = vsel %vm789, %v2734, %v2736
        %v2769 = vsel %vm789, %v2738, %v2740
        %v2770 = vsel %vm789, %v2740, %v2742
        %v2771 = vsel %vm789, %v2742, %v2744
        %v2772 = vsel %vm789, %v2744, %v2746
        %v2773 = vsel %vm789, %v2746, %v2748
        %v2774 = vsel %vm789, %v2748, %v2750
        %2803 = vst [vmem:[#allocation5 + $0x620] sm:$0xff] %v2751
        %2804 = vst [vmem:[#allocation5 + $0x628] sm:$0xff] %v2752
        %2805 = vst [vmem:[#allocation5 + $0x630] sm:$0xff] %v2753
        %2806 = vst [vmem:[#allocation5 + $0x638] sm:$0xff] %v2754
        %2807 = vst [vmem:[#allocation5 + $0x640] sm:$0xff] %v2755
        %2808 = vst [vmem:[#allocation5 + $0x648] sm:$0xff] %v2756
        %2809 = vst.msk [vmem:[#allocation5 + $0x650] sm:$0xff] %vm549, %v2708
        %2810 = vst [vmem:[#allocation5 + $0x658] sm:$0xff] %v2757
        %2811 = vst [vmem:[#allocation5 + $0x660] sm:$0xff] %v2758
        %2812 = vst [vmem:[#allocation5 + $0x668] sm:$0xff] %v2759
        %2813 = vst [vmem:[#allocation5 + $0x670] sm:$0xff] %v2760
        %2814 = vst [vmem:[#allocation5 + $0x678] sm:$0xff] %v2761
        %2815 = vst [vmem:[#allocation5 + $0x680] sm:$0xff] %v2762
        %2816 = vst.msk [vmem:[#allocation5 + $0x688] sm:$0xff] %vm549, %v2722
        %2817 = vst [vmem:[#allocation5 + $0x690] sm:$0xff] %v2763
        %2818 = vst [vmem:[#allocation5 + $0x698] sm:$0xff] %v2764
        %2819 = vst [vmem:[#allocation5 + $0x6a0] sm:$0xff] %v2765
        %2820 = vst [vmem:[#allocation5 + $0x6a8] sm:$0xff] %v2766
        %2821 = vst [vmem:[#allocation5 + $0x6b0] sm:$0xff] %v2767
        %2822 = vst [vmem:[#allocation5 + $0x6b8] sm:$0xff] %v2768
        %2823 = vst.msk [vmem:[#allocation5 + $0x6c0] sm:$0xff] %vm549, %v2736
        %2824 = vst [vmem:[#allocation5 + $0x6c8] sm:$0xff] %v2769
        %2825 = vst [vmem:[#allocation5 + $0x6d0] sm:$0xff] %v2770
        %2826 = vst [vmem:[#allocation5 + $0x6d8] sm:$0xff] %v2771
        %2827 = vst [vmem:[#allocation5 + $0x6e0] sm:$0xff] %v2772
        %2828 = vst [vmem:[#allocation5 + $0x6e8] sm:$0xff] %v2773
        %2829 = vst [vmem:[#allocation5 + $0x6f0] sm:$0xff] %v2774
        %2830 = vst.msk [vmem:[#allocation5 + $0x6f8] sm:$0xff] %vm549, %v2750
        %2831 = vrot.lane.b32.xlu0 %v1631, 67
        %v2832 = vpop.permute.xlu0 %2831
        %2833 = vrot.lane.b32.xlu0 %v1632, 67
        %v2834 = vpop.permute.xlu0 %2833
        %2835 = vrot.lane.b32.xlu0 %v1633, 67
        %v2836 = vpop.permute.xlu0 %2835
        %2837 = vrot.lane.b32.xlu0 %v1634, 67
        %v2838 = vpop.permute.xlu0 %2837
        %2839 = vrot.lane.b32.xlu0 %v1635, 67
        %v2840 = vpop.permute.xlu0 %2839
        %2841 = vrot.lane.b32.xlu0 %v1636, 67
        %v2842 = vpop.permute.xlu0 %2841
        %2843 = vrot.lane.b32.xlu0 %v1637, 67
        %v2844 = vpop.permute.xlu0 %2843
        %2845 = vrot.lane.b32.xlu0 %v1638, 67
        %v2846 = vpop.permute.xlu0 %2845
        %2847 = vrot.lane.b32.xlu0 %v1639, 67
        %v2848 = vpop.permute.xlu0 %2847
        %2849 = vrot.lane.b32.xlu0 %v1640, 67
        %v2850 = vpop.permute.xlu0 %2849
        %2851 = vrot.lane.b32.xlu0 %v1641, 67
        %v2852 = vpop.permute.xlu0 %2851
        %2853 = vrot.lane.b32.xlu0 %v1642, 67
        %v2854 = vpop.permute.xlu0 %2853
        %2855 = vrot.lane.b32.xlu0 %v1643, 67
        %v2856 = vpop.permute.xlu0 %2855
        %2857 = vrot.lane.b32.xlu0 %v1644, 67
        %v2858 = vpop.permute.xlu0 %2857
        %2859 = vrot.lane.b32.xlu0 %v1645, 67
        %v2860 = vpop.permute.xlu0 %2859
        %2861 = vrot.lane.b32.xlu0 %v1646, 67
        %v2862 = vpop.permute.xlu0 %2861
        %2863 = vrot.lane.b32.xlu0 %v1647, 67
        %v2864 = vpop.permute.xlu0 %2863
        %2865 = vrot.lane.b32.xlu0 %v1648, 67
        %v2866 = vpop.permute.xlu0 %2865
        %2867 = vrot.lane.b32.xlu0 %v1649, 67
        %v2868 = vpop.permute.xlu0 %2867
        %2869 = vrot.lane.b32.xlu0 %v1650, 67
        %v2870 = vpop.permute.xlu0 %2869
        %2871 = vrot.lane.b32.xlu0 %v1651, 67
        %v2872 = vpop.permute.xlu0 %2871
        %2873 = vrot.lane.b32.xlu0 %v1652, 67
        %v2874 = vpop.permute.xlu0 %2873
        %2875 = vrot.lane.b32.xlu0 %v1653, 67
        %v2876 = vpop.permute.xlu0 %2875
        %2877 = vrot.lane.b32.xlu0 %v1654, 67
        %v2878 = vpop.permute.xlu0 %2877
        %2879 = vrot.lane.b32.xlu0 %v1655, 67
        %v2880 = vpop.permute.xlu0 %2879
        %2881 = vrot.lane.b32.xlu0 %v1656, 67
        %v2882 = vpop.permute.xlu0 %2881
        %2883 = vrot.lane.b32.xlu0 %v1657, 67
        %v2884 = vpop.permute.xlu0 %2883
        %2885 = vrot.lane.b32.xlu0 %v1658, 67
        %v2886 = vpop.permute.xlu0 %2885
        %v2887 = vsel %vm824, %v2832, %v2834
        %v2888 = vsel %vm824, %v2834, %v2836
        %v2889 = vsel %vm824, %v2836, %v2838
        %v2890 = vsel %vm824, %v2838, %v2840
        %v2891 = vsel %vm824, %v2840, %v2842
        %v2892 = vsel %vm824, %v2842, %v2844
        %v2893 = vsel %vm824, %v2846, %v2848
        %v2894 = vsel %vm824, %v2848, %v2850
        %v2895 = vsel %vm824, %v2850, %v2852
        %v2896 = vsel %vm824, %v2852, %v2854
        %v2897 = vsel %vm824, %v2854, %v2856
        %v2898 = vsel %vm824, %v2856, %v2858
        %v2899 = vsel %vm824, %v2860, %v2862
        %v2900 = vsel %vm824, %v2862, %v2864
        %v2901 = vsel %vm824, %v2864, %v2866
        %v2902 = vsel %vm824, %v2866, %v2868
        %v2903 = vsel %vm824, %v2868, %v2870
        %v2904 = vsel %vm824, %v2870, %v2872
        %v2905 = vsel %vm824, %v2874, %v2876
        %v2906 = vsel %vm824, %v2876, %v2878
        %v2907 = vsel %vm824, %v2878, %v2880
        %v2908 = vsel %vm824, %v2880, %v2882
        %v2909 = vsel %vm824, %v2882, %v2884
        %v2910 = vsel %vm824, %v2884, %v2886
        %2939 = vst [vmem:[#allocation5 + $0x700] sm:$0xff] %v2887
        %2940 = vst [vmem:[#allocation5 + $0x708] sm:$0xff] %v2888
        %2941 = vst [vmem:[#allocation5 + $0x710] sm:$0xff] %v2889
        %2942 = vst [vmem:[#allocation5 + $0x718] sm:$0xff] %v2890
        %2943 = vst [vmem:[#allocation5 + $0x720] sm:$0xff] %v2891
        %2944 = vst [vmem:[#allocation5 + $0x728] sm:$0xff] %v2892
        %2945 = vst.msk [vmem:[#allocation5 + $0x730] sm:$0xff] %vm549, %v2844
        %2946 = vst [vmem:[#allocation5 + $0x738] sm:$0xff] %v2893
        %2947 = vst [vmem:[#allocation5 + $0x740] sm:$0xff] %v2894
        %2948 = vst [vmem:[#allocation5 + $0x748] sm:$0xff] %v2895
        %2949 = vst [vmem:[#allocation5 + $0x750] sm:$0xff] %v2896
        %2950 = vst [vmem:[#allocation5 + $0x758] sm:$0xff] %v2897
        %2951 = vst [vmem:[#allocation5 + $0x760] sm:$0xff] %v2898
        %2952 = vst.msk [vmem:[#allocation5 + $0x768] sm:$0xff] %vm549, %v2858
        %2953 = vst [vmem:[#allocation5 + $0x770] sm:$0xff] %v2899
        %2954 = vst [vmem:[#allocation5 + $0x778] sm:$0xff] %v2900
        %2955 = vst [vmem:[#allocation5 + $0x780] sm:$0xff] %v2901
        %2956 = vst [vmem:[#allocation5 + $0x788] sm:$0xff] %v2902
        %2957 = vst [vmem:[#allocation5 + $0x790] sm:$0xff] %v2903
        %2958 = vst [vmem:[#allocation5 + $0x798] sm:$0xff] %v2904
        %2959 = vst.msk [vmem:[#allocation5 + $0x7a0] sm:$0xff] %vm549, %v2872
        %2960 = vst [vmem:[#allocation5 + $0x7a8] sm:$0xff] %v2905
        %2961 = vst [vmem:[#allocation5 + $0x7b0] sm:$0xff] %v2906
        %2962 = vst [vmem:[#allocation5 + $0x7b8] sm:$0xff] %v2907
        %2963 = vst [vmem:[#allocation5 + $0x7c0] sm:$0xff] %v2908
        %2964 = vst [vmem:[#allocation5 + $0x7c8] sm:$0xff] %v2909
        %2965 = vst [vmem:[#allocation5 + $0x7d0] sm:$0xff] %v2910
        %2966 = vst.msk [vmem:[#allocation5 + $0x7d8] sm:$0xff] %vm549, %v2886
        %v2967 = vld [vmem:[#allocation5] sm:$0xff]
        %v2968 = vld [vmem:[#allocation5 + $0x8] sm:$0xff]
        %v2969 = vld [vmem:[#allocation5 + $0x10] sm:$0xff]
        %v2970 = vld [vmem:[#allocation5 + $0x18] sm:$0xff]
        %v2971 = vld [vmem:[#allocation5 + $0x20] sm:$0xff]
        %v2972 = vld [vmem:[#allocation5 + $0x28] sm:$0xff]
        %v2973 = vld [vmem:[#allocation5 + $0x30] sm:$0xff]
        %v2974 = vld [vmem:[#allocation5 + $0x38] sm:$0xff]
        %v2975 = vld [vmem:[#allocation5 + $0x40] sm:$0xff]
        %v2976 = vld [vmem:[#allocation5 + $0x48] sm:$0xff]
        %v2977 = vld [vmem:[#allocation5 + $0x50] sm:$0xff]
        %v2978 = vld [vmem:[#allocation5 + $0x58] sm:$0xff]
        %v2979 = vld [vmem:[#allocation5 + $0x60] sm:$0xff]
        %v2980 = vld [vmem:[#allocation5 + $0x68] sm:$0xff]
        %v2981 = vld [vmem:[#allocation5 + $0x70] sm:$0xff]
        %v2982 = vld [vmem:[#allocation5 + $0x78] sm:$0xff]
        %v2983 = vld [vmem:[#allocation5 + $0x80] sm:$0xff]
        %v2984 = vld [vmem:[#allocation5 + $0x88] sm:$0xff]
        %v2985 = vld [vmem:[#allocation5 + $0x90] sm:$0xff]
        %v2986 = vld [vmem:[#allocation5 + $0x98] sm:$0xff]
        %v2987 = vld [vmem:[#allocation5 + $0xa0] sm:$0xff]
        %v2988 = vld [vmem:[#allocation5 + $0xa8] sm:$0xff]
        %v2989 = vld [vmem:[#allocation5 + $0xb0] sm:$0xff]
        %v2990 = vld [vmem:[#allocation5 + $0xb8] sm:$0xff]
        %v2991 = vld [vmem:[#allocation5 + $0xc0] sm:$0xff]
        %v2992 = vld [vmem:[#allocation5 + $0xc8] sm:$0xff]
        %v2993 = vld [vmem:[#allocation5 + $0xd0] sm:$0xff]
        %v2994 = vld [vmem:[#allocation5 + $0xd8] sm:$0xff]
        %v2995 = vld [vmem:[#allocation5 + $0xe0] sm:$0xff]
        %v2996 = vld [vmem:[#allocation5 + $0xe8] sm:$0xff]
        %v2997 = vld [vmem:[#allocation5 + $0xf0] sm:$0xff]
        %v2998 = vld [vmem:[#allocation5 + $0xf8] sm:$0xff]
        %v2999 = vld [vmem:[#allocation5 + $0x100] sm:$0xff]
        %v3000 = vld [vmem:[#allocation5 + $0x108] sm:$0xff]
        %v3001 = vld [vmem:[#allocation5 + $0x110] sm:$0xff]
        %v3002 = vld [vmem:[#allocation5 + $0x118] sm:$0xff]
        %v3003 = vld [vmem:[#allocation5 + $0x120] sm:$0xff]
        %v3004 = vld [vmem:[#allocation5 + $0x128] sm:$0xff]
        %v3005 = vld [vmem:[#allocation5 + $0x130] sm:$0xff]
        %v3006 = vld [vmem:[#allocation5 + $0x138] sm:$0xff]
        %v3007 = vld [vmem:[#allocation5 + $0x140] sm:$0xff]
        %v3008 = vld [vmem:[#allocation5 + $0x148] sm:$0xff]
        %v3009 = vld [vmem:[#allocation5 + $0x150] sm:$0xff]
        %v3010 = vld [vmem:[#allocation5 + $0x158] sm:$0xff]
        %v3011 = vld [vmem:[#allocation5 + $0x160] sm:$0xff]
        %v3012 = vld [vmem:[#allocation5 + $0x168] sm:$0xff]
        %v3013 = vld [vmem:[#allocation5 + $0x170] sm:$0xff]
        %v3014 = vld [vmem:[#allocation5 + $0x178] sm:$0xff]
        %v3015 = vld [vmem:[#allocation5 + $0x180] sm:$0xff]
        %v3016 = vld [vmem:[#allocation5 + $0x188] sm:$0xff]
        %v3017 = vld [vmem:[#allocation5 + $0x190] sm:$0xff]
        %v3018 = vld [vmem:[#allocation5 + $0x198] sm:$0xff]
        %v3019 = vld [vmem:[#allocation5 + $0x1a0] sm:$0xff]
        %v3020 = vld [vmem:[#allocation5 + $0x1a8] sm:$0xff]
        %v3021 = vld [vmem:[#allocation5 + $0x1b0] sm:$0xff]
        %v3022 = vld [vmem:[#allocation5 + $0x1b8] sm:$0xff]
        %v3023 = vld [vmem:[#allocation5 + $0x1c0] sm:$0xff]
        %v3024 = vld [vmem:[#allocation5 + $0x1c8] sm:$0xff]
        %v3025 = vld [vmem:[#allocation5 + $0x1d0] sm:$0xff]
        %v3026 = vld [vmem:[#allocation5 + $0x1d8] sm:$0xff]
        %v3027 = vld [vmem:[#allocation5 + $0x1e0] sm:$0xff]
        %v3028 = vld [vmem:[#allocation5 + $0x1e8] sm:$0xff]
        %v3029 = vld [vmem:[#allocation5 + $0x1f0] sm:$0xff]
        %v3030 = vld [vmem:[#allocation5 + $0x1f8] sm:$0xff]
        %v3031 = vld [vmem:[#allocation5 + $0x200] sm:$0xff]
        %v3032 = vld [vmem:[#allocation5 + $0x208] sm:$0xff]
        %v3033 = vld [vmem:[#allocation5 + $0x210] sm:$0xff]
        %v3034 = vld [vmem:[#allocation5 + $0x218] sm:$0xff]
        %v3035 = vld [vmem:[#allocation5 + $0x220] sm:$0xff]
        %v3036 = vld [vmem:[#allocation5 + $0x228] sm:$0xff]
        %v3037 = vld [vmem:[#allocation5 + $0x230] sm:$0xff]
        %v3038 = vld [vmem:[#allocation5 + $0x238] sm:$0xff]
        %v3039 = vld [vmem:[#allocation5 + $0x240] sm:$0xff]
        %v3040 = vld [vmem:[#allocation5 + $0x248] sm:$0xff]
        %v3041 = vld [vmem:[#allocation5 + $0x250] sm:$0xff]
        %v3042 = vld [vmem:[#allocation5 + $0x258] sm:$0xff]
        %v3043 = vld [vmem:[#allocation5 + $0x260] sm:$0xff]
        %v3044 = vld [vmem:[#allocation5 + $0x268] sm:$0xff]
        %v3045 = vld [vmem:[#allocation5 + $0x270] sm:$0xff]
        %v3046 = vld [vmem:[#allocation5 + $0x278] sm:$0xff]
        %v3047 = vld [vmem:[#allocation5 + $0x280] sm:$0xff]
        %v3048 = vld [vmem:[#allocation5 + $0x288] sm:$0xff]
        %v3049 = vld [vmem:[#allocation5 + $0x290] sm:$0xff]
        %v3050 = vld [vmem:[#allocation5 + $0x298] sm:$0xff]
        %v3051 = vld [vmem:[#allocation5 + $0x2a0] sm:$0xff]
        %v3052 = vld [vmem:[#allocation5 + $0x2a8] sm:$0xff]
        %v3053 = vld [vmem:[#allocation5 + $0x2b0] sm:$0xff]
        %v3054 = vld [vmem:[#allocation5 + $0x2b8] sm:$0xff]
        %v3055 = vld [vmem:[#allocation5 + $0x2c0] sm:$0xff]
        %v3056 = vld [vmem:[#allocation5 + $0x2c8] sm:$0xff]
        %v3057 = vld [vmem:[#allocation5 + $0x2d0] sm:$0xff]
        %v3058 = vld [vmem:[#allocation5 + $0x2d8] sm:$0xff]
        %v3059 = vld [vmem:[#allocation5 + $0x2e0] sm:$0xff]
        %v3060 = vld [vmem:[#allocation5 + $0x2e8] sm:$0xff]
        %v3061 = vld [vmem:[#allocation5 + $0x2f0] sm:$0xff]
        %v3062 = vld [vmem:[#allocation5 + $0x2f8] sm:$0xff]
        %v3063 = vld [vmem:[#allocation5 + $0x300] sm:$0xff]
        %v3064 = vld [vmem:[#allocation5 + $0x308] sm:$0xff]
        %v3065 = vld [vmem:[#allocation5 + $0x310] sm:$0xff]
        %v3066 = vld [vmem:[#allocation5 + $0x318] sm:$0xff]
        %v3067 = vld [vmem:[#allocation5 + $0x320] sm:$0xff]
        %v3068 = vld [vmem:[#allocation5 + $0x328] sm:$0xff]
        %v3069 = vld [vmem:[#allocation5 + $0x330] sm:$0xff]
        %v3070 = vld [vmem:[#allocation5 + $0x338] sm:$0xff]
        %v3071 = vld [vmem:[#allocation5 + $0x340] sm:$0xff]
        %v3072 = vld [vmem:[#allocation5 + $0x348] sm:$0xff]
        %v3073 = vld [vmem:[#allocation5 + $0x350] sm:$0xff]
        %v3074 = vld [vmem:[#allocation5 + $0x358] sm:$0xff]
        %v3075 = vld [vmem:[#allocation5 + $0x360] sm:$0xff]
        %v3076 = vld [vmem:[#allocation5 + $0x368] sm:$0xff]
        %v3077 = vld [vmem:[#allocation5 + $0x370] sm:$0xff]
        %v3078 = vld [vmem:[#allocation5 + $0x378] sm:$0xff]
        %v3079 = vld [vmem:[#allocation5 + $0x380] sm:$0xff]
        %v3080 = vld [vmem:[#allocation5 + $0x388] sm:$0xff]
        %v3081 = vld [vmem:[#allocation5 + $0x390] sm:$0xff]
        %v3082 = vld [vmem:[#allocation5 + $0x398] sm:$0xff]
        %v3083 = vld [vmem:[#allocation5 + $0x3a0] sm:$0xff]
        %v3084 = vld [vmem:[#allocation5 + $0x3a8] sm:$0xff]
        %v3085 = vld [vmem:[#allocation5 + $0x3b0] sm:$0xff]
        %v3086 = vld [vmem:[#allocation5 + $0x3b8] sm:$0xff]
        %v3087 = vld [vmem:[#allocation5 + $0x3c0] sm:$0xff]
        %v3088 = vld [vmem:[#allocation5 + $0x3c8] sm:$0xff]
        %v3089 = vld [vmem:[#allocation5 + $0x3d0] sm:$0xff]
        %v3090 = vld [vmem:[#allocation5 + $0x3d8] sm:$0xff]
        %v3091 = vld [vmem:[#allocation5 + $0x3e0] sm:$0xff]
        %v3092 = vld [vmem:[#allocation5 + $0x3e8] sm:$0xff]
        %v3093 = vld [vmem:[#allocation5 + $0x3f0] sm:$0xff]
        %v3094 = vld [vmem:[#allocation5 + $0x3f8] sm:$0xff]
        %v3095 = vld [vmem:[#allocation5 + $0x400] sm:$0xff]
        %v3096 = vld [vmem:[#allocation5 + $0x408] sm:$0xff]
        %v3097 = vld [vmem:[#allocation5 + $0x410] sm:$0xff]
        %v3098 = vld [vmem:[#allocation5 + $0x418] sm:$0xff]
        %v3099 = vld [vmem:[#allocation5 + $0x420] sm:$0xff]
        %v3100 = vld [vmem:[#allocation5 + $0x428] sm:$0xff]
        %v3101 = vld [vmem:[#allocation5 + $0x430] sm:$0xff]
        %v3102 = vld [vmem:[#allocation5 + $0x438] sm:$0xff]
        %v3103 = vld [vmem:[#allocation5 + $0x440] sm:$0xff]
        %v3104 = vld [vmem:[#allocation5 + $0x448] sm:$0xff]
        %v3105 = vld [vmem:[#allocation5 + $0x450] sm:$0xff]
        %v3106 = vld [vmem:[#allocation5 + $0x458] sm:$0xff]
        %v3107 = vld [vmem:[#allocation5 + $0x460] sm:$0xff]
        %v3108 = vld [vmem:[#allocation5 + $0x468] sm:$0xff]
        %v3109 = vld [vmem:[#allocation5 + $0x470] sm:$0xff]
        %v3110 = vld [vmem:[#allocation5 + $0x478] sm:$0xff]
        %v3111 = vld [vmem:[#allocation5 + $0x480] sm:$0xff]
        %v3112 = vld [vmem:[#allocation5 + $0x488] sm:$0xff]
        %v3113 = vld [vmem:[#allocation5 + $0x490] sm:$0xff]
        %v3114 = vld [vmem:[#allocation5 + $0x498] sm:$0xff]
        %v3115 = vld [vmem:[#allocation5 + $0x4a0] sm:$0xff]
        %v3116 = vld [vmem:[#allocation5 + $0x4a8] sm:$0xff]
        %v3117 = vld [vmem:[#allocation5 + $0x4b0] sm:$0xff]
        %v3118 = vld [vmem:[#allocation5 + $0x4b8] sm:$0xff]
        %v3119 = vld [vmem:[#allocation5 + $0x4c0] sm:$0xff]
        %v3120 = vld [vmem:[#allocation5 + $0x4c8] sm:$0xff]
        %v3121 = vld [vmem:[#allocation5 + $0x4d0] sm:$0xff]
        %v3122 = vld [vmem:[#allocation5 + $0x4d8] sm:$0xff]
        %v3123 = vld [vmem:[#allocation5 + $0x4e0] sm:$0xff]
        %v3124 = vld [vmem:[#allocation5 + $0x4e8] sm:$0xff]
        %v3125 = vld [vmem:[#allocation5 + $0x4f0] sm:$0xff]
        %v3126 = vld [vmem:[#allocation5 + $0x4f8] sm:$0xff]
        %v3127 = vld [vmem:[#allocation5 + $0x500] sm:$0xff]
        %v3128 = vld [vmem:[#allocation5 + $0x508] sm:$0xff]
        %v3129 = vld [vmem:[#allocation5 + $0x510] sm:$0xff]
        %v3130 = vld [vmem:[#allocation5 + $0x518] sm:$0xff]
        %v3131 = vld [vmem:[#allocation5 + $0x520] sm:$0xff]
        %v3132 = vld [vmem:[#allocation5 + $0x528] sm:$0xff]
        %v3133 = vld [vmem:[#allocation5 + $0x530] sm:$0xff]
        %v3134 = vld [vmem:[#allocation5 + $0x538] sm:$0xff]
        %v3135 = vld [vmem:[#allocation5 + $0x540] sm:$0xff]
        %v3136 = vld [vmem:[#allocation5 + $0x548] sm:$0xff]
        %v3137 = vld [vmem:[#allocation5 + $0x550] sm:$0xff]
        %v3138 = vld [vmem:[#allocation5 + $0x558] sm:$0xff]
        %v3139 = vld [vmem:[#allocation5 + $0x560] sm:$0xff]
        %v3140 = vld [vmem:[#allocation5 + $0x568] sm:$0xff]
        %v3141 = vld [vmem:[#allocation5 + $0x570] sm:$0xff]
        %v3142 = vld [vmem:[#allocation5 + $0x578] sm:$0xff]
        %v3143 = vld [vmem:[#allocation5 + $0x580] sm:$0xff]
        %v3144 = vld [vmem:[#allocation5 + $0x588] sm:$0xff]
        %v3145 = vld [vmem:[#allocation5 + $0x590] sm:$0xff]
        %v3146 = vld [vmem:[#allocation5 + $0x598] sm:$0xff]
        %v3147 = vld [vmem:[#allocation5 + $0x5a0] sm:$0xff]
        %v3148 = vld [vmem:[#allocation5 + $0x5a8] sm:$0xff]
        %v3149 = vld [vmem:[#allocation5 + $0x5b0] sm:$0xff]
        %v3150 = vld [vmem:[#allocation5 + $0x5b8] sm:$0xff]
        %v3151 = vld [vmem:[#allocation5 + $0x5c0] sm:$0xff]
        %v3152 = vld [vmem:[#allocation5 + $0x5c8] sm:$0xff]
        %v3153 = vld [vmem:[#allocation5 + $0x5d0] sm:$0xff]
        %v3154 = vld [vmem:[#allocation5 + $0x5d8] sm:$0xff]
        %v3155 = vld [vmem:[#allocation5 + $0x5e0] sm:$0xff]
        %v3156 = vld [vmem:[#allocation5 + $0x5e8] sm:$0xff]
        %v3157 = vld [vmem:[#allocation5 + $0x5f0] sm:$0xff]
        %v3158 = vld [vmem:[#allocation5 + $0x5f8] sm:$0xff]
        %v3159 = vld [vmem:[#allocation5 + $0x600] sm:$0xff]
        %v3160 = vld [vmem:[#allocation5 + $0x608] sm:$0xff]
        %v3161 = vld [vmem:[#allocation5 + $0x610] sm:$0xff]
        %v3162 = vld [vmem:[#allocation5 + $0x618] sm:$0xff]
        %v3163 = vld [vmem:[#allocation5 + $0x620] sm:$0xff]
        %v3164 = vld [vmem:[#allocation5 + $0x628] sm:$0xff]
        %v3165 = vld [vmem:[#allocation5 + $0x630] sm:$0xff]
        %v3166 = vld [vmem:[#allocation5 + $0x638] sm:$0xff]
        %v3167 = vld [vmem:[#allocation5 + $0x640] sm:$0xff]
        %v3168 = vld [vmem:[#allocation5 + $0x648] sm:$0xff]
        %v3169 = vld [vmem:[#allocation5 + $0x650] sm:$0xff]
        %v3170 = vld [vmem:[#allocation5 + $0x658] sm:$0xff]
        %v3171 = vld [vmem:[#allocation5 + $0x660] sm:$0xff]
        %v3172 = vld [vmem:[#allocation5 + $0x668] sm:$0xff]
        %v3173 = vld [vmem:[#allocation5 + $0x670] sm:$0xff]
        %v3174 = vld [vmem:[#allocation5 + $0x678] sm:$0xff]
        %v3175 = vld [vmem:[#allocation5 + $0x680] sm:$0xff]
        %v3176 = vld [vmem:[#allocation5 + $0x688] sm:$0xff]
        %v3177 = vld [vmem:[#allocation5 + $0x690] sm:$0xff]
        %v3178 = vld [vmem:[#allocation5 + $0x698] sm:$0xff]
        %v3179 = vld [vmem:[#allocation5 + $0x6a0] sm:$0xff]
        %v3180 = vld [vmem:[#allocation5 + $0x6a8] sm:$0xff]
        %v3181 = vld [vmem:[#allocation5 + $0x6b0] sm:$0xff]
        %v3182 = vld [vmem:[#allocation5 + $0x6b8] sm:$0xff]
        %v3183 = vld [vmem:[#allocation5 + $0x6c0] sm:$0xff]
        %v3184 = vld [vmem:[#allocation5 + $0x6c8] sm:$0xff]
        %v3185 = vld [vmem:[#allocation5 + $0x6d0] sm:$0xff]
        %v3186 = vld [vmem:[#allocation5 + $0x6d8] sm:$0xff]
        %v3187 = vld [vmem:[#allocation5 + $0x6e0] sm:$0xff]
        %v3188 = vld [vmem:[#allocation5 + $0x6e8] sm:$0xff]
        %v3189 = vld [vmem:[#allocation5 + $0x6f0] sm:$0xff]
        %v3190 = vld [vmem:[#allocation5 + $0x6f8] sm:$0xff]
        %v3191 = vld [vmem:[#allocation5 + $0x700] sm:$0xff]
        %v3192 = vld [vmem:[#allocation5 + $0x708] sm:$0xff]
        %v3193 = vld [vmem:[#allocation5 + $0x710] sm:$0xff]
        %v3194 = vld [vmem:[#allocation5 + $0x718] sm:$0xff]
        %v3195 = vld [vmem:[#allocation5 + $0x720] sm:$0xff]
        %v3196 = vld [vmem:[#allocation5 + $0x728] sm:$0xff]
        %v3197 = vld [vmem:[#allocation5 + $0x730] sm:$0xff]
        %v3198 = vld [vmem:[#allocation5 + $0x738] sm:$0xff]
        %v3199 = vld [vmem:[#allocation5 + $0x740] sm:$0xff]
        %v3200 = vld [vmem:[#allocation5 + $0x748] sm:$0xff]
        %v3201 = vld [vmem:[#allocation5 + $0x750] sm:$0xff]
        %v3202 = vld [vmem:[#allocation5 + $0x758] sm:$0xff]
        %v3203 = vld [vmem:[#allocation5 + $0x760] sm:$0xff]
        %v3204 = vld [vmem:[#allocation5 + $0x768] sm:$0xff]
        %v3205 = vld [vmem:[#allocation5 + $0x770] sm:$0xff]
        %v3206 = vld [vmem:[#allocation5 + $0x778] sm:$0xff]
        %v3207 = vld [vmem:[#allocation5 + $0x780] sm:$0xff]
        %v3208 = vld [vmem:[#allocation5 + $0x788] sm:$0xff]
        %v3209 = vld [vmem:[#allocation5 + $0x790] sm:$0xff]
        %v3210 = vld [vmem:[#allocation5 + $0x798] sm:$0xff]
        %v3211 = vld [vmem:[#allocation5 + $0x7a0] sm:$0xff]
        %v3212 = vld [vmem:[#allocation5 + $0x7a8] sm:$0xff]
        %v3213 = vld [vmem:[#allocation5 + $0x7b0] sm:$0xff]
        %v3214 = vld [vmem:[#allocation5 + $0x7b8] sm:$0xff]
        %v3215 = vld [vmem:[#allocation5 + $0x7c0] sm:$0xff]
        %v3216 = vld [vmem:[#allocation5 + $0x7c8] sm:$0xff]
        %v3217 = vld [vmem:[#allocation5 + $0x7d0] sm:$0xff]
        %v3218 = vld [vmem:[#allocation5 + $0x7d8] sm:$0xff]
        %v3219 = vld [vmem:[%s4] sm:$0xff]
        %v3220 = vld [vmem:[%s4 + $0x8] sm:$0xff]
        %v3221 = vld [vmem:[%s4 + $0x10] sm:$0xff]
        %v3222 = vld [vmem:[%s4 + $0x18] sm:$0xff]
        %v3223 = vld [vmem:[%s4 + $0x20] sm:$0xff]
        %v3224 = vld [vmem:[%s4 + $0x28] sm:$0xff]
        %v3225 = vld [vmem:[%s4 + $0x30] sm:$0xff]
        %v3226 = vld [vmem:[%s4 + $0x38] sm:$0xff]
        %v3227 = vld [vmem:[%s4 + $0x40] sm:$0xff]
        %v3228 = vld [vmem:[%s4 + $0x48] sm:$0xff]
        %v3229 = vld [vmem:[%s4 + $0x50] sm:$0xff]
        %v3230 = vld [vmem:[%s4 + $0x58] sm:$0xff]
        %v3231 = vld [vmem:[%s4 + $0x60] sm:$0xff]
        %v3232 = vld [vmem:[%s4 + $0x68] sm:$0xff]
        %v3233 = vld [vmem:[%s4 + $0x70] sm:$0xff]
        %v3234 = vld [vmem:[%s4 + $0x78] sm:$0xff]
        %v3235 = vld [vmem:[%s4 + $0x80] sm:$0xff]
        %v3236 = vld [vmem:[%s4 + $0x88] sm:$0xff]
        %v3237 = vld [vmem:[%s4 + $0x90] sm:$0xff]
        %v3238 = vld [vmem:[%s4 + $0x98] sm:$0xff]
        %v3239 = vld [vmem:[%s4 + $0xa0] sm:$0xff]
        %v3240 = vld [vmem:[%s4 + $0xa8] sm:$0xff]
        %v3241 = vld [vmem:[%s4 + $0xb0] sm:$0xff]
        %v3242 = vld [vmem:[%s4 + $0xb8] sm:$0xff]
        %v3243 = vld [vmem:[%s5] sm:$0xff]
        %v3244 = vld [vmem:[%s5 + $0x8] sm:$0xff]
        %v3245 = vld [vmem:[%s5 + $0x10] sm:$0xff]
        %v3246 = vld [vmem:[%s5 + $0x18] sm:$0xff]
        %v3247 = vld [vmem:[%s5 + $0x20] sm:$0xff]
        %v3248 = vld [vmem:[%s5 + $0x28] sm:$0xff]
        %v3249 = vld [vmem:[%s5 + $0x30] sm:$0xff]
        %v3250 = vld [vmem:[%s5 + $0x38] sm:$0xff]
        %3252 = vset.pattern.permute.xlu0 0
        %3253 = vperm.xlu0 %3252, %v3243
        %v3254 = vpop.permute.xlu0 %3253
        %3257 = vset.pattern.permute.xlu0 0
        %3258 = vperm.xlu0 %3257, %v3244
        %v3259 = vpop.permute.xlu0 %3258
        %3262 = vset.pattern.permute.xlu0 0
        %3263 = vperm.xlu0 %3262, %v3245
        %v3264 = vpop.permute.xlu0 %3263
        %3267 = vset.pattern.permute.xlu0 0
        %3268 = vperm.xlu0 %3267, %v3246
        %v3269 = vpop.permute.xlu0 %3268
        %3272 = vset.pattern.permute.xlu0 0
        %3273 = vperm.xlu0 %3272, %v3247
        %v3274 = vpop.permute.xlu0 %3273
        %3277 = vset.pattern.permute.xlu0 0
        %3278 = vperm.xlu0 %3277, %v3248
        %v3279 = vpop.permute.xlu0 %3278
        %3282 = vset.pattern.permute.xlu0 0
        %3283 = vperm.xlu0 %3282, %v3249
        %v3284 = vpop.permute.xlu0 %3283
        %3287 = vset.pattern.permute.xlu0 0
        %3288 = vperm.xlu0 %3287, %v3250
        %v3289 = vpop.permute.xlu0 %3288
        %v3292 = vsel %vm358, %v3221, 0
        %v3295 = vsel %vm358, %v3224, 0
        %v3298 = vsel %vm358, %v3227, 0
        %v3301 = vsel %vm358, %v3230, 0
        %v3304 = vsel %vm358, %v3233, 0
        %v3307 = vsel %vm358, %v3236, 0
        %v3310 = vsel %vm358, %v3239, 0
        %v3313 = vsel %vm358, %v3242, 0
        %3315 = vmatprep.subr.mxu0 %v3073
        %3316 = vmatpush1.msra.mxu0 %v3072
        %3317 = vmatprep.subr.mxu0 %v3066
        %3318 = vmatpush1.msra.mxu0 %v3065
        %3319 = vmatprep.subr.mxu0 %v3059
        %3320 = vmatpush1.msra.mxu0 %v3058
        %3321 = vmatprep.subr.mxu0 %v3052
        %3322 = vmatpush1.msra.mxu0 %v3051
        %3323 = vmatprep.subr.mxu0 %v3045
        %3324 = vmatpush1.msra.mxu0 %v3044
        %3325 = vmatprep.subr.mxu0 %v3038
        %3326 = vmatpush1.msra.mxu0 %v3037
        %3327 = vmatprep.subr.mxu0 %v3031
        %3328 = vmatpush1.msra.mxu0 %v3030
        %3329 = vmatprep.subr.mxu0 %v3024
        %3330 = vmatpush1.msra.mxu0 %v3023
        %3331 = vmatprep.subr.mxu0 %v3017
        %3332 = vmatpush1.msra.mxu0 %v3016
        %3333 = vmatprep.subr.mxu0 %v3010
        %3334 = vmatpush1.msra.mxu0 %v3009
        %3335 = vmatprep.subr.mxu0 %v3003
        %3336 = vmatpush1.msra.mxu0 %v3002
        %3337 = vmatprep.subr.mxu0 %v2996
        %3338 = vmatpush1.msra.mxu0 %v2995
        %3339 = vmatprep.subr.mxu0 %v2989
        %3340 = vmatpush1.msra.mxu0 %v2988
        %3341 = vmatprep.subr.mxu0 %v2982
        %3342 = vmatpush1.msra.mxu0 %v2981
        %3343 = vmatprep.subr.mxu0 %v2975
        %3344 = vmatpush1.msra.mxu0 %v2974
        %3345 = vmatprep.subr.mxu0 %v2968
        %3346 = vmatpush1.msra.mxu0 %v2967
        %3347 = vmatprep.subr.mxu0 %v3185
        %3348 = vmatpush2.msra.mxu0 %v3184
        %3349 = vmatprep.subr.mxu0 %v3178
        %3350 = vmatpush2.msra.mxu0 %v3177
        %3351 = vmatprep.subr.mxu0 %v3171
        %3352 = vmatpush2.msra.mxu0 %v3170
        %3353 = vmatprep.subr.mxu0 %v3164
        %3354 = vmatpush2.msra.mxu0 %v3163
        %3355 = vmatprep.subr.mxu0 %v3157
        %3356 = vmatpush2.msra.mxu0 %v3156
        %3357 = vmatprep.subr.mxu0 %v3150
        %3358 = vmatpush2.msra.mxu0 %v3149
        %3359 = vmatprep.subr.mxu0 %v3143
        %3360 = vmatpush2.msra.mxu0 %v3142
        %3361 = vmatprep.subr.mxu0 %v3136
        %3362 = vmatpush2.msra.mxu0 %v3135
        %3363 = vmatprep.subr.mxu0 %v3129
        %3364 = vmatpush2.msra.mxu0 %v3128
        %3365 = vmatprep.subr.mxu0 %v3122
        %3366 = vmatpush2.msra.mxu0 %v3121
        %3367 = vmatprep.subr.mxu0 %v3115
        %3368 = vmatpush2.msra.mxu0 %v3114
        %3369 = vmatprep.subr.mxu0 %v3108
        %3370 = vmatpush2.msra.mxu0 %v3107
        %3371 = vmatprep.subr.mxu0 %v3101
        %3372 = vmatpush2.msra.mxu0 %v3100
        %3373 = vmatprep.subr.mxu0 %v3094
        %3374 = vmatpush2.msra.mxu0 %v3093
        %3375 = vmatprep.subr.mxu0 %v3087
        %3376 = vmatpush2.msra.mxu0 %v3086
        %3377 = vmatprep.subr.mxu0 %v3080
        %3378 = vmatpush2.msra.mxu0 %v3079
        %3379 = vmatprep.mubr.f32.mxu0 %v3220
        %3380 = vmatmul.mubr.f32.gmra.mxu0 %v3219
        %v3381 = vpop.f32.mrf.mxu0
        %v3382 = vadd.f32 %v3254, %v3381
        %v3383 = vpop.f32.mrf.mxu0
        %v3384 = vadd.f32 %v3254, %v3383
        %3385 = vmatprep.mubr.f32.mxu0 %v3223
        %3386 = vmatmul.mubr.f32.gmra.mxu0 %v3222
        %v3387 = vpop.f32.mrf.mxu0
        %v3388 = vadd.f32 %v3259, %v3387
        %v3389 = vpop.f32.mrf.mxu0
        %v3390 = vadd.f32 %v3259, %v3389
        %3391 = vmatprep.mubr.f32.mxu0 %v3226
        %3392 = vmatmul.mubr.f32.gmra.mxu0 %v3225
        %v3393 = vpop.f32.mrf.mxu0
        %v3394 = vadd.f32 %v3264, %v3393
        %v3395 = vpop.f32.mrf.mxu0
        %v3396 = vadd.f32 %v3264, %v3395
        %3397 = vmatprep.mubr.f32.mxu0 %v3229
        %3398 = vmatmul.mubr.f32.gmra.mxu0 %v3228
        %v3399 = vpop.f32.mrf.mxu0
        %v3400 = vadd.f32 %v3269, %v3399
        %v3401 = vpop.f32.mrf.mxu0
        %v3402 = vadd.f32 %v3269, %v3401
        %3403 = vmatprep.mubr.f32.mxu0 %v3232
        %3404 = vmatmul.mubr.f32.gmra.mxu0 %v3231
        %v3405 = vpop.f32.mrf.mxu0
        %v3406 = vadd.f32 %v3274, %v3405
        %v3407 = vpop.f32.mrf.mxu0
        %v3408 = vadd.f32 %v3274, %v3407
        %3409 = vmatprep.mubr.f32.mxu0 %v3235
        %3410 = vmatmul.mubr.f32.gmra.mxu0 %v3234
        %v3411 = vpop.f32.mrf.mxu0
        %v3412 = vadd.f32 %v3279, %v3411
        %v3413 = vpop.f32.mrf.mxu0
        %v3414 = vadd.f32 %v3279, %v3413
        %3415 = vmatprep.mubr.f32.mxu0 %v3238
        %3416 = vmatmul.mubr.f32.gmra.mxu0 %v3237
        %v3417 = vpop.f32.mrf.mxu0
        %v3418 = vadd.f32 %v3284, %v3417
        %v3419 = vpop.f32.mrf.mxu0
        %v3420 = vadd.f32 %v3284, %v3419
        %3421 = vmatprep.mubr.f32.mxu0 %v3241
        %3422 = vmatmul.mubr.f32.gmra.mxu0 %v3240
        %v3423 = vpop.f32.mrf.mxu0
        %v3424 = vadd.f32 %v3289, %v3423
        %v3425 = vpop.f32.mrf.mxu0
        %v3426 = vadd.f32 %v3289, %v3425
        %3427 = vdwg.mxu0
        %3428 = vmatprep.subr.mxu0 0.0
        %3429 = vmatpush1.msra.mxu0 0.0
        %3430 = vmatprep.subr.mxu0 0.0
        %3431 = vmatpush1.msra.mxu0 0.0
        %3432 = vmatprep.subr.mxu0 0.0
        %3433 = vmatpush1.msra.mxu0 0.0
        %3434 = vmatprep.subr.mxu0 0.0
        %3435 = vmatpush1.msra.mxu0 0.0
        %3436 = vmatprep.subr.mxu0 0.0
        %3437 = vmatpush1.msra.mxu0 0.0
        %3438 = vmatprep.subr.mxu0 0.0
        %3439 = vmatpush1.msra.mxu0 0.0
        %3440 = vmatprep.subr.mxu0 0.0
        %3441 = vmatpush1.msra.mxu0 0.0
        %3442 = vmatprep.subr.mxu0 0.0
        %3443 = vmatpush1.msra.mxu0 0.0
        %3444 = vmatprep.subr.mxu0 0.0
        %3445 = vmatpush1.msra.mxu0 0.0
        %3446 = vmatprep.subr.mxu0 0.0
        %3447 = vmatpush1.msra.mxu0 0.0
        %3448 = vmatprep.subr.mxu0 0.0
        %3449 = vmatpush1.msra.mxu0 0.0
        %3450 = vmatprep.subr.mxu0 0.0
        %3451 = vmatpush1.msra.mxu0 0.0
        %3452 = vmatprep.subr.mxu0 %v3213
        %3453 = vmatpush1.msra.mxu0 %v3212
        %3454 = vmatprep.subr.mxu0 %v3206
        %3455 = vmatpush1.msra.mxu0 %v3205
        %3456 = vmatprep.subr.mxu0 %v3199
        %3457 = vmatpush1.msra.mxu0 %v3198
        %3458 = vmatprep.subr.mxu0 %v3192
        %3459 = vmatpush1.msra.mxu0 %v3191
        %3460 = vmatprep.subr.mxu0 0.0
        %3461 = vmatpush2.msra.mxu0 0.0
        %3462 = vmatprep.subr.mxu0 0.0
        %3463 = vmatpush2.msra.mxu0 0.0
        %3464 = vmatprep.subr.mxu0 0.0
        %3465 = vmatpush2.msra.mxu0 0.0
        %3466 = vmatprep.subr.mxu0 0.0
        %3467 = vmatpush2.msra.mxu0 0.0
        %3468 = vmatprep.subr.mxu0 0.0
        %3469 = vmatpush2.msra.mxu0 0.0
        %3470 = vmatprep.subr.mxu0 0.0
        %3471 = vmatpush2.msra.mxu0 0.0
        %3472 = vmatprep.subr.mxu0 0.0
        %3473 = vmatpush2.msra.mxu0 0.0
        %3474 = vmatprep.subr.mxu0 0.0
        %3475 = vmatpush2.msra.mxu0 0.0
        %3476 = vmatprep.subr.mxu0 0.0
        %3477 = vmatpush2.msra.mxu0 0.0
        %3478 = vmatprep.subr.mxu0 0.0
        %3479 = vmatpush2.msra.mxu0 0.0
        %3480 = vmatprep.subr.mxu0 0.0
        %3481 = vmatpush2.msra.mxu0 0.0
        %3482 = vmatprep.subr.mxu0 0.0
        %3483 = vmatpush2.msra.mxu0 0.0
        %3484 = vmatprep.subr.mxu0 0.0
        %3485 = vmatpush2.msra.mxu0 0.0
        %3486 = vmatprep.subr.mxu0 0.0
        %3487 = vmatpush2.msra.mxu0 0.0
        %3488 = vmatprep.subr.mxu0 0.0
        %3489 = vmatpush2.msra.mxu0 0.0
        %3490 = vmatprep.subr.mxu0 0.0
        %3491 = vmatpush2.msra.mxu0 0.0
        %3492 = vmatprep.mubr.f32.mxu0 0.0
        %3493 = vmatmul.mubr.f32.gmra.mxu0 %v3292
        %v3494 = vpop.f32.mrf.mxu0
        %v3495 = vadd.f32 %v3382, %v3494
        %v3496 = vpop.f32.mrf.mxu0
        %v3497 = vadd.f32 %v3384, %v3496
        %3498 = vmatprep.mubr.f32.mxu0 0.0
        %3499 = vmatmul.mubr.f32.gmra.mxu0 %v3295
        %v3500 = vpop.f32.mrf.mxu0
        %v3501 = vadd.f32 %v3388, %v3500
        %v3502 = vpop.f32.mrf.mxu0
        %v3503 = vadd.f32 %v3390, %v3502
        %3504 = vmatprep.mubr.f32.mxu0 0.0
        %3505 = vmatmul.mubr.f32.gmra.mxu0 %v3298
        %v3506 = vpop.f32.mrf.mxu0
        %v3507 = vadd.f32 %v3394, %v3506
        %v3508 = vpop.f32.mrf.mxu0
        %v3509 = vadd.f32 %v3396, %v3508
        %3510 = vmatprep.mubr.f32.mxu0 0.0
        %3511 = vmatmul.mubr.f32.gmra.mxu0 %v3301
        %v3512 = vpop.f32.mrf.mxu0
        %v3513 = vadd.f32 %v3400, %v3512
        %v3514 = vpop.f32.mrf.mxu0
        %v3515 = vadd.f32 %v3402, %v3514
        %3516 = vmatprep.mubr.f32.mxu0 0.0
        %3517 = vmatmul.mubr.f32.gmra.mxu0 %v3304
        %v3518 = vpop.f32.mrf.mxu0
        %v3519 = vadd.f32 %v3406, %v3518
        %v3520 = vpop.f32.mrf.mxu0
        %v3521 = vadd.f32 %v3408, %v3520
        %3522 = vmatprep.mubr.f32.mxu0 0.0
        %3523 = vmatmul.mubr.f32.gmra.mxu0 %v3307
        %v3524 = vpop.f32.mrf.mxu0
        %v3525 = vadd.f32 %v3412, %v3524
        %v3526 = vpop.f32.mrf.mxu0
        %v3527 = vadd.f32 %v3414, %v3526
        %3528 = vmatprep.mubr.f32.mxu0 0.0
        %3529 = vmatmul.mubr.f32.gmra.mxu0 %v3310
        %v3530 = vpop.f32.mrf.mxu0
        %v3531 = vadd.f32 %v3418, %v3530
        %v3532 = vpop.f32.mrf.mxu0
        %v3533 = vadd.f32 %v3420, %v3532
        %3534 = vmatprep.mubr.f32.mxu0 0.0
        %3535 = vmatmul.mubr.f32.gmra.mxu0 %v3313
        %v3536 = vpop.f32.mrf.mxu0
        %v3537 = vadd.f32 %v3424, %v3536
        %v3538 = vpop.f32.mrf.mxu0
        %v3539 = vadd.f32 %v3426, %v3538
        %3540 = vdwg.mxu0
        %3541 = vmatprep.subr.mxu0 %v3075
        %3542 = vmatpush1.msra.mxu0 %v3074
        %3543 = vmatprep.subr.mxu0 %v3068
        %3544 = vmatpush1.msra.mxu0 %v3067
        %3545 = vmatprep.subr.mxu0 %v3061
        %3546 = vmatpush1.msra.mxu0 %v3060
        %3547 = vmatprep.subr.mxu0 %v3054
        %3548 = vmatpush1.msra.mxu0 %v3053
        %3549 = vmatprep.subr.mxu0 %v3047
        %3550 = vmatpush1.msra.mxu0 %v3046
        %3551 = vmatprep.subr.mxu0 %v3040
        %3552 = vmatpush1.msra.mxu0 %v3039
        %3553 = vmatprep.subr.mxu0 %v3033
        %3554 = vmatpush1.msra.mxu0 %v3032
        %3555 = vmatprep.subr.mxu0 %v3026
        %3556 = vmatpush1.msra.mxu0 %v3025
        %3557 = vmatprep.subr.mxu0 %v3019
        %3558 = vmatpush1.msra.mxu0 %v3018
        %3559 = vmatprep.subr.mxu0 %v3012
        %3560 = vmatpush1.msra.mxu0 %v3011
        %3561 = vmatprep.subr.mxu0 %v3005
        %3562 = vmatpush1.msra.mxu0 %v3004
        %3563 = vmatprep.subr.mxu0 %v2998
        %3564 = vmatpush1.msra.mxu0 %v2997
        %3565 = vmatprep.subr.mxu0 %v2991
        %3566 = vmatpush1.msra.mxu0 %v2990
        %3567 = vmatprep.subr.mxu0 %v2984
        %3568 = vmatpush1.msra.mxu0 %v2983
        %3569 = vmatprep.subr.mxu0 %v2977
        %3570 = vmatpush1.msra.mxu0 %v2976
        %3571 = vmatprep.subr.mxu0 %v2970
        %3572 = vmatpush1.msra.mxu0 %v2969
        %3573 = vmatprep.subr.mxu0 %v3187
        %3574 = vmatpush2.msra.mxu0 %v3186
        %3575 = vmatprep.subr.mxu0 %v3180
        %3576 = vmatpush2.msra.mxu0 %v3179
        %3577 = vmatprep.subr.mxu0 %v3173
        %3578 = vmatpush2.msra.mxu0 %v3172
        %3579 = vmatprep.subr.mxu0 %v3166
        %3580 = vmatpush2.msra.mxu0 %v3165
        %3581 = vmatprep.subr.mxu0 %v3159
        %3582 = vmatpush2.msra.mxu0 %v3158
        %3583 = vmatprep.subr.mxu0 %v3152
        %3584 = vmatpush2.msra.mxu0 %v3151
        %3585 = vmatprep.subr.mxu0 %v3145
        %3586 = vmatpush2.msra.mxu0 %v3144
        %3587 = vmatprep.subr.mxu0 %v3138
        %3588 = vmatpush2.msra.mxu0 %v3137
        %3589 = vmatprep.subr.mxu0 %v3131
        %3590 = vmatpush2.msra.mxu0 %v3130
        %3591 = vmatprep.subr.mxu0 %v3124
        %3592 = vmatpush2.msra.mxu0 %v3123
        %3593 = vmatprep.subr.mxu0 %v3117
        %3594 = vmatpush2.msra.mxu0 %v3116
        %3595 = vmatprep.subr.mxu0 %v3110
        %3596 = vmatpush2.msra.mxu0 %v3109
        %3597 = vmatprep.subr.mxu0 %v3103
        %3598 = vmatpush2.msra.mxu0 %v3102
        %3599 = vmatprep.subr.mxu0 %v3096
        %3600 = vmatpush2.msra.mxu0 %v3095
        %3601 = vmatprep.subr.mxu0 %v3089
        %3602 = vmatpush2.msra.mxu0 %v3088
        %3603 = vmatprep.subr.mxu0 %v3082
        %3604 = vmatpush2.msra.mxu0 %v3081
        %3605 = vmatprep.mubr.f32.mxu0 %v3220
        %3606 = vmatmul.mubr.f32.gmra.mxu0 %v3219
        %v3607 = vpop.f32.mrf.mxu0
        %v3608 = vadd.f32 %v3254, %v3607
        %v3609 = vpop.f32.mrf.mxu0
        %v3610 = vadd.f32 %v3254, %v3609
        %3611 = vmatprep.mubr.f32.mxu0 %v3223
        %3612 = vmatmul.mubr.f32.gmra.mxu0 %v3222
        %v3613 = vpop.f32.mrf.mxu0
        %v3614 = vadd.f32 %v3259, %v3613
        %v3615 = vpop.f32.mrf.mxu0
        %v3616 = vadd.f32 %v3259, %v3615
        %3617 = vmatprep.mubr.f32.mxu0 %v3226
        %3618 = vmatmul.mubr.f32.gmra.mxu0 %v3225
        %v3619 = vpop.f32.mrf.mxu0
        %v3620 = vadd.f32 %v3264, %v3619
        %v3621 = vpop.f32.mrf.mxu0
        %v3622 = vadd.f32 %v3264, %v3621
        %3623 = vmatprep.mubr.f32.mxu0 %v3229
        %3624 = vmatmul.mubr.f32.gmra.mxu0 %v3228
        %v3625 = vpop.f32.mrf.mxu0
        %v3626 = vadd.f32 %v3269, %v3625
        %v3627 = vpop.f32.mrf.mxu0
        %v3628 = vadd.f32 %v3269, %v3627
        %3629 = vmatprep.mubr.f32.mxu0 %v3232
        %3630 = vmatmul.mubr.f32.gmra.mxu0 %v3231
        %v3631 = vpop.f32.mrf.mxu0
        %v3632 = vadd.f32 %v3274, %v3631
        %v3633 = vpop.f32.mrf.mxu0
        %v3634 = vadd.f32 %v3274, %v3633
        %3635 = vmatprep.mubr.f32.mxu0 %v3235
        %3636 = vmatmul.mubr.f32.gmra.mxu0 %v3234
        %v3637 = vpop.f32.mrf.mxu0
        %v3638 = vadd.f32 %v3279, %v3637
        %v3639 = vpop.f32.mrf.mxu0
        %v3640 = vadd.f32 %v3279, %v3639
        %3641 = vmatprep.mubr.f32.mxu0 %v3238
        %3642 = vmatmul.mubr.f32.gmra.mxu0 %v3237
        %v3643 = vpop.f32.mrf.mxu0
        %v3644 = vadd.f32 %v3284, %v3643
        %v3645 = vpop.f32.mrf.mxu0
        %v3646 = vadd.f32 %v3284, %v3645
        %3647 = vmatprep.mubr.f32.mxu0 %v3241
        %3648 = vmatmul.mubr.f32.gmra.mxu0 %v3240
        %v3649 = vpop.f32.mrf.mxu0
        %v3650 = vadd.f32 %v3289, %v3649
        %v3651 = vpop.f32.mrf.mxu0
        %v3652 = vadd.f32 %v3289, %v3651
        %3653 = vdwg.mxu0
        %3654 = vmatprep.subr.mxu0 0.0
        %3655 = vmatpush1.msra.mxu0 0.0
        %3656 = vmatprep.subr.mxu0 0.0
        %3657 = vmatpush1.msra.mxu0 0.0
        %3658 = vmatprep.subr.mxu0 0.0
        %3659 = vmatpush1.msra.mxu0 0.0
        %3660 = vmatprep.subr.mxu0 0.0
        %3661 = vmatpush1.msra.mxu0 0.0
        %3662 = vmatprep.subr.mxu0 0.0
        %3663 = vmatpush1.msra.mxu0 0.0
        %3664 = vmatprep.subr.mxu0 0.0
        %3665 = vmatpush1.msra.mxu0 0.0
        %3666 = vmatprep.subr.mxu0 0.0
        %3667 = vmatpush1.msra.mxu0 0.0
        %3668 = vmatprep.subr.mxu0 0.0
        %3669 = vmatpush1.msra.mxu0 0.0
        %3670 = vmatprep.subr.mxu0 0.0
        %3671 = vmatpush1.msra.mxu0 0.0
        %3672 = vmatprep.subr.mxu0 0.0
        %3673 = vmatpush1.msra.mxu0 0.0
        %3674 = vmatprep.subr.mxu0 0.0
        %3675 = vmatpush1.msra.mxu0 0.0
        %3676 = vmatprep.subr.mxu0 0.0
        %3677 = vmatpush1.msra.mxu0 0.0
        %3678 = vmatprep.subr.mxu0 %v3215
        %3679 = vmatpush1.msra.mxu0 %v3214
        %3680 = vmatprep.subr.mxu0 %v3208
        %3681 = vmatpush1.msra.mxu0 %v3207
        %3682 = vmatprep.subr.mxu0 %v3201
        %3683 = vmatpush1.msra.mxu0 %v3200
        %3684 = vmatprep.subr.mxu0 %v3194
        %3685 = vmatpush1.msra.mxu0 %v3193
        %3686 = vmatprep.subr.mxu0 0.0
        %3687 = vmatpush2.msra.mxu0 0.0
        %3688 = vmatprep.subr.mxu0 0.0
        %3689 = vmatpush2.msra.mxu0 0.0
        %3690 = vmatprep.subr.mxu0 0.0
        %3691 = vmatpush2.msra.mxu0 0.0
        %3692 = vmatprep.subr.mxu0 0.0
        %3693 = vmatpush2.msra.mxu0 0.0
        %3694 = vmatprep.subr.mxu0 0.0
        %3695 = vmatpush2.msra.mxu0 0.0
        %3696 = vmatprep.subr.mxu0 0.0
        %3697 = vmatpush2.msra.mxu0 0.0
        %3698 = vmatprep.subr.mxu0 0.0
        %3699 = vmatpush2.msra.mxu0 0.0
        %3700 = vmatprep.subr.mxu0 0.0
        %3701 = vmatpush2.msra.mxu0 0.0
        %3702 = vmatprep.subr.mxu0 0.0
        %3703 = vmatpush2.msra.mxu0 0.0
        %3704 = vmatprep.subr.mxu0 0.0
        %3705 = vmatpush2.msra.mxu0 0.0
        %3706 = vmatprep.subr.mxu0 0.0
        %3707 = vmatpush2.msra.mxu0 0.0
        %3708 = vmatprep.subr.mxu0 0.0
        %3709 = vmatpush2.msra.mxu0 0.0
        %3710 = vmatprep.subr.mxu0 0.0
        %3711 = vmatpush2.msra.mxu0 0.0
        %3712 = vmatprep.subr.mxu0 0.0
        %3713 = vmatpush2.msra.mxu0 0.0
        %3714 = vmatprep.subr.mxu0 0.0
        %3715 = vmatpush2.msra.mxu0 0.0
        %3716 = vmatprep.subr.mxu0 0.0
        %3717 = vmatpush2.msra.mxu0 0.0
        %3718 = vmatprep.mubr.f32.mxu0 0.0
        %3719 = vmatmul.mubr.f32.gmra.mxu0 %v3292
        %v3720 = vpop.f32.mrf.mxu0
        %v3721 = vadd.f32 %v3608, %v3720
        %v3722 = vpop.f32.mrf.mxu0
        %v3723 = vadd.f32 %v3610, %v3722
        %3724 = vmatprep.mubr.f32.mxu0 0.0
        %3725 = vmatmul.mubr.f32.gmra.mxu0 %v3295
        %v3726 = vpop.f32.mrf.mxu0
        %v3727 = vadd.f32 %v3614, %v3726
        %v3728 = vpop.f32.mrf.mxu0
        %v3729 = vadd.f32 %v3616, %v3728
        %3730 = vmatprep.mubr.f32.mxu0 0.0
        %3731 = vmatmul.mubr.f32.gmra.mxu0 %v3298
        %v3732 = vpop.f32.mrf.mxu0
        %v3733 = vadd.f32 %v3620, %v3732
        %v3734 = vpop.f32.mrf.mxu0
        %v3735 = vadd.f32 %v3622, %v3734
        %3736 = vmatprep.mubr.f32.mxu0 0.0
        %3737 = vmatmul.mubr.f32.gmra.mxu0 %v3301
        %v3738 = vpop.f32.mrf.mxu0
        %v3739 = vadd.f32 %v3626, %v3738
        %v3740 = vpop.f32.mrf.mxu0
        %v3741 = vadd.f32 %v3628, %v3740
        %3742 = vmatprep.mubr.f32.mxu0 0.0
        %3743 = vmatmul.mubr.f32.gmra.mxu0 %v3304
        %v3744 = vpop.f32.mrf.mxu0
        %v3745 = vadd.f32 %v3632, %v3744
        %v3746 = vpop.f32.mrf.mxu0
        %v3747 = vadd.f32 %v3634, %v3746
        %3748 = vmatprep.mubr.f32.mxu0 0.0
        %3749 = vmatmul.mubr.f32.gmra.mxu0 %v3307
        %v3750 = vpop.f32.mrf.mxu0
        %v3751 = vadd.f32 %v3638, %v3750
        %v3752 = vpop.f32.mrf.mxu0
        %v3753 = vadd.f32 %v3640, %v3752
        %3754 = vmatprep.mubr.f32.mxu0 0.0
        %3755 = vmatmul.mubr.f32.gmra.mxu0 %v3310
        %v3756 = vpop.f32.mrf.mxu0
        %v3757 = vadd.f32 %v3644, %v3756
        %v3758 = vpop.f32.mrf.mxu0
        %v3759 = vadd.f32 %v3646, %v3758
        %3760 = vmatprep.mubr.f32.mxu0 0.0
        %3761 = vmatmul.mubr.f32.gmra.mxu0 %v3313
        %v3762 = vpop.f32.mrf.mxu0
        %v3763 = vadd.f32 %v3650, %v3762
        %v3764 = vpop.f32.mrf.mxu0
        %v3765 = vadd.f32 %v3652, %v3764
        %3766 = vdwg.mxu0
        %3767 = vmatprep.subr.mxu0 %v3077
        %3768 = vmatpush1.msra.mxu0 %v3076
        %3769 = vmatprep.subr.mxu0 %v3070
        %3770 = vmatpush1.msra.mxu0 %v3069
        %3771 = vmatprep.subr.mxu0 %v3063
        %3772 = vmatpush1.msra.mxu0 %v3062
        %3773 = vmatprep.subr.mxu0 %v3056
        %3774 = vmatpush1.msra.mxu0 %v3055
        %3775 = vmatprep.subr.mxu0 %v3049
        %3776 = vmatpush1.msra.mxu0 %v3048
        %3777 = vmatprep.subr.mxu0 %v3042
        %3778 = vmatpush1.msra.mxu0 %v3041
        %3779 = vmatprep.subr.mxu0 %v3035
        %3780 = vmatpush1.msra.mxu0 %v3034
        %3781 = vmatprep.subr.mxu0 %v3028
        %3782 = vmatpush1.msra.mxu0 %v3027
        %3783 = vmatprep.subr.mxu0 %v3021
        %3784 = vmatpush1.msra.mxu0 %v3020
        %3785 = vmatprep.subr.mxu0 %v3014
        %3786 = vmatpush1.msra.mxu0 %v3013
        %3787 = vmatprep.subr.mxu0 %v3007
        %3788 = vmatpush1.msra.mxu0 %v3006
        %3789 = vmatprep.subr.mxu0 %v3000
        %3790 = vmatpush1.msra.mxu0 %v2999
        %3791 = vmatprep.subr.mxu0 %v2993
        %3792 = vmatpush1.msra.mxu0 %v2992
        %3793 = vmatprep.subr.mxu0 %v2986
        %3794 = vmatpush1.msra.mxu0 %v2985
        %3795 = vmatprep.subr.mxu0 %v2979
        %3796 = vmatpush1.msra.mxu0 %v2978
        %3797 = vmatprep.subr.mxu0 %v2972
        %3798 = vmatpush1.msra.mxu0 %v2971
        %3799 = vmatprep.subr.mxu0 %v3189
        %3800 = vmatpush2.msra.mxu0 %v3188
        %3801 = vmatprep.subr.mxu0 %v3182
        %3802 = vmatpush2.msra.mxu0 %v3181
        %3803 = vmatprep.subr.mxu0 %v3175
        %3804 = vmatpush2.msra.mxu0 %v3174
        %3805 = vmatprep.subr.mxu0 %v3168
        %3806 = vmatpush2.msra.mxu0 %v3167
        %3807 = vmatprep.subr.mxu0 %v3161
        %3808 = vmatpush2.msra.mxu0 %v3160
        %3809 = vmatprep.subr.mxu0 %v3154
        %3810 = vmatpush2.msra.mxu0 %v3153
        %3811 = vmatprep.subr.mxu0 %v3147
        %3812 = vmatpush2.msra.mxu0 %v3146
        %3813 = vmatprep.subr.mxu0 %v3140
        %3814 = vmatpush2.msra.mxu0 %v3139
        %3815 = vmatprep.subr.mxu0 %v3133
        %3816 = vmatpush2.msra.mxu0 %v3132
        %3817 = vmatprep.subr.mxu0 %v3126
        %3818 = vmatpush2.msra.mxu0 %v3125
        %3819 = vmatprep.subr.mxu0 %v3119
        %3820 = vmatpush2.msra.mxu0 %v3118
        %3821 = vmatprep.subr.mxu0 %v3112
        %3822 = vmatpush2.msra.mxu0 %v3111
        %3823 = vmatprep.subr.mxu0 %v3105
        %3824 = vmatpush2.msra.mxu0 %v3104
        %3825 = vmatprep.subr.mxu0 %v3098
        %3826 = vmatpush2.msra.mxu0 %v3097
        %3827 = vmatprep.subr.mxu0 %v3091
        %3828 = vmatpush2.msra.mxu0 %v3090
        %3829 = vmatprep.subr.mxu0 %v3084
        %3830 = vmatpush2.msra.mxu0 %v3083
        %3831 = vmatprep.mubr.f32.mxu0 %v3220
        %3832 = vmatmul.mubr.f32.gmra.mxu0 %v3219
        %v3833 = vpop.f32.mrf.mxu0
        %v3834 = vadd.f32 %v3254, %v3833
        %v3835 = vpop.f32.mrf.mxu0
        %v3836 = vadd.f32 %v3254, %v3835
        %3837 = vmatprep.mubr.f32.mxu0 %v3223
        %3838 = vmatmul.mubr.f32.gmra.mxu0 %v3222
        %v3839 = vpop.f32.mrf.mxu0
        %v3840 = vadd.f32 %v3259, %v3839
        %v3841 = vpop.f32.mrf.mxu0
        %v3842 = vadd.f32 %v3259, %v3841
        %3843 = vmatprep.mubr.f32.mxu0 %v3226
        %3844 = vmatmul.mubr.f32.gmra.mxu0 %v3225
        %v3845 = vpop.f32.mrf.mxu0
        %v3846 = vadd.f32 %v3264, %v3845
        %v3847 = vpop.f32.mrf.mxu0
        %v3848 = vadd.f32 %v3264, %v3847
        %3849 = vmatprep.mubr.f32.mxu0 %v3229
        %3850 = vmatmul.mubr.f32.gmra.mxu0 %v3228
        %v3851 = vpop.f32.mrf.mxu0
        %v3852 = vadd.f32 %v3269, %v3851
        %v3853 = vpop.f32.mrf.mxu0
        %v3854 = vadd.f32 %v3269, %v3853
        %3855 = vmatprep.mubr.f32.mxu0 %v3232
        %3856 = vmatmul.mubr.f32.gmra.mxu0 %v3231
        %v3857 = vpop.f32.mrf.mxu0
        %v3858 = vadd.f32 %v3274, %v3857
        %v3859 = vpop.f32.mrf.mxu0
        %v3860 = vadd.f32 %v3274, %v3859
        %3861 = vmatprep.mubr.f32.mxu0 %v3235
        %3862 = vmatmul.mubr.f32.gmra.mxu0 %v3234
        %v3863 = vpop.f32.mrf.mxu0
        %v3864 = vadd.f32 %v3279, %v3863
        %v3865 = vpop.f32.mrf.mxu0
        %v3866 = vadd.f32 %v3279, %v3865
        %3867 = vmatprep.mubr.f32.mxu0 %v3238
        %3868 = vmatmul.mubr.f32.gmra.mxu0 %v3237
        %v3869 = vpop.f32.mrf.mxu0
        %v3870 = vadd.f32 %v3284, %v3869
        %v3871 = vpop.f32.mrf.mxu0
        %v3872 = vadd.f32 %v3284, %v3871
        %3873 = vmatprep.mubr.f32.mxu0 %v3241
        %3874 = vmatmul.mubr.f32.gmra.mxu0 %v3240
        %v3875 = vpop.f32.mrf.mxu0
        %v3876 = vadd.f32 %v3289, %v3875
        %v3877 = vpop.f32.mrf.mxu0
        %v3878 = vadd.f32 %v3289, %v3877
        %3879 = vdwg.mxu0
        %3880 = vmatprep.subr.mxu0 0.0
        %3881 = vmatpush1.msra.mxu0 0.0
        %3882 = vmatprep.subr.mxu0 0.0
        %3883 = vmatpush1.msra.mxu0 0.0
        %3884 = vmatprep.subr.mxu0 0.0
        %3885 = vmatpush1.msra.mxu0 0.0
        %3886 = vmatprep.subr.mxu0 0.0
        %3887 = vmatpush1.msra.mxu0 0.0
        %3888 = vmatprep.subr.mxu0 0.0
        %3889 = vmatpush1.msra.mxu0 0.0
        %3890 = vmatprep.subr.mxu0 0.0
        %3891 = vmatpush1.msra.mxu0 0.0
        %3892 = vmatprep.subr.mxu0 0.0
        %3893 = vmatpush1.msra.mxu0 0.0
        %3894 = vmatprep.subr.mxu0 0.0
        %3895 = vmatpush1.msra.mxu0 0.0
        %3896 = vmatprep.subr.mxu0 0.0
        %3897 = vmatpush1.msra.mxu0 0.0
        %3898 = vmatprep.subr.mxu0 0.0
        %3899 = vmatpush1.msra.mxu0 0.0
        %3900 = vmatprep.subr.mxu0 0.0
        %3901 = vmatpush1.msra.mxu0 0.0
        %3902 = vmatprep.subr.mxu0 0.0
        %3903 = vmatpush1.msra.mxu0 0.0
        %3904 = vmatprep.subr.mxu0 %v3217
        %3905 = vmatpush1.msra.mxu0 %v3216
        %3906 = vmatprep.subr.mxu0 %v3210
        %3907 = vmatpush1.msra.mxu0 %v3209
        %3908 = vmatprep.subr.mxu0 %v3203
        %3909 = vmatpush1.msra.mxu0 %v3202
        %3910 = vmatprep.subr.mxu0 %v3196
        %3911 = vmatpush1.msra.mxu0 %v3195
        %3912 = vmatprep.subr.mxu0 0.0
        %3913 = vmatpush2.msra.mxu0 0.0
        %3914 = vmatprep.subr.mxu0 0.0
        %3915 = vmatpush2.msra.mxu0 0.0
        %3916 = vmatprep.subr.mxu0 0.0
        %3917 = vmatpush2.msra.mxu0 0.0
        %3918 = vmatprep.subr.mxu0 0.0
        %3919 = vmatpush2.msra.mxu0 0.0
        %3920 = vmatprep.subr.mxu0 0.0
        %3921 = vmatpush2.msra.mxu0 0.0
        %3922 = vmatprep.subr.mxu0 0.0
        %3923 = vmatpush2.msra.mxu0 0.0
        %3924 = vmatprep.subr.mxu0 0.0
        %3925 = vmatpush2.msra.mxu0 0.0
        %3926 = vmatprep.subr.mxu0 0.0
        %3927 = vmatpush2.msra.mxu0 0.0
        %3928 = vmatprep.subr.mxu0 0.0
        %3929 = vmatpush2.msra.mxu0 0.0
        %3930 = vmatprep.subr.mxu0 0.0
        %3931 = vmatpush2.msra.mxu0 0.0
        %3932 = vmatprep.subr.mxu0 0.0
        %3933 = vmatpush2.msra.mxu0 0.0
        %3934 = vmatprep.subr.mxu0 0.0
        %3935 = vmatpush2.msra.mxu0 0.0
        %3936 = vmatprep.subr.mxu0 0.0
        %3937 = vmatpush2.msra.mxu0 0.0
        %3938 = vmatprep.subr.mxu0 0.0
        %3939 = vmatpush2.msra.mxu0 0.0
        %3940 = vmatprep.subr.mxu0 0.0
        %3941 = vmatpush2.msra.mxu0 0.0
        %3942 = vmatprep.subr.mxu0 0.0
        %3943 = vmatpush2.msra.mxu0 0.0
        %3944 = vmatprep.mubr.f32.mxu0 0.0
        %3945 = vmatmul.mubr.f32.gmra.mxu0 %v3292
        %v3946 = vpop.f32.mrf.mxu0
        %v3947 = vadd.f32 %v3834, %v3946
        %v3948 = vpop.f32.mrf.mxu0
        %v3949 = vadd.f32 %v3836, %v3948
        %3950 = vmatprep.mubr.f32.mxu0 0.0
        %3951 = vmatmul.mubr.f32.gmra.mxu0 %v3295
        %v3952 = vpop.f32.mrf.mxu0
        %v3953 = vadd.f32 %v3840, %v3952
        %v3954 = vpop.f32.mrf.mxu0
        %v3955 = vadd.f32 %v3842, %v3954
        %3956 = vmatprep.mubr.f32.mxu0 0.0
        %3957 = vmatmul.mubr.f32.gmra.mxu0 %v3298
        %v3958 = vpop.f32.mrf.mxu0
        %v3959 = vadd.f32 %v3846, %v3958
        %v3960 = vpop.f32.mrf.mxu0
        %v3961 = vadd.f32 %v3848, %v3960
        %3962 = vmatprep.mubr.f32.mxu0 0.0
        %3963 = vmatmul.mubr.f32.gmra.mxu0 %v3301
        %v3964 = vpop.f32.mrf.mxu0
        %v3965 = vadd.f32 %v3852, %v3964
        %v3966 = vpop.f32.mrf.mxu0
        %v3967 = vadd.f32 %v3854, %v3966
        %3968 = vmatprep.mubr.f32.mxu0 0.0
        %3969 = vmatmul.mubr.f32.gmra.mxu0 %v3304
        %v3970 = vpop.f32.mrf.mxu0
        %v3971 = vadd.f32 %v3858, %v3970
        %v3972 = vpop.f32.mrf.mxu0
        %v3973 = vadd.f32 %v3860, %v3972
        %3974 = vmatprep.mubr.f32.mxu0 0.0
        %3975 = vmatmul.mubr.f32.gmra.mxu0 %v3307
        %v3976 = vpop.f32.mrf.mxu0
        %v3977 = vadd.f32 %v3864, %v3976
        %v3978 = vpop.f32.mrf.mxu0
        %v3979 = vadd.f32 %v3866, %v3978
        %3980 = vmatprep.mubr.f32.mxu0 0.0
        %3981 = vmatmul.mubr.f32.gmra.mxu0 %v3310
        %v3982 = vpop.f32.mrf.mxu0
        %v3983 = vadd.f32 %v3870, %v3982
        %v3984 = vpop.f32.mrf.mxu0
        %v3985 = vadd.f32 %v3872, %v3984
        %3986 = vmatprep.mubr.f32.mxu0 0.0
        %3987 = vmatmul.mubr.f32.gmra.mxu0 %v3313
        %v3988 = vpop.f32.mrf.mxu0
        %v3989 = vadd.f32 %v3876, %v3988
        %v3990 = vpop.f32.mrf.mxu0
        %v3991 = vadd.f32 %v3878, %v3990
        %3992 = vdwg.mxu0
        %3993 = vmatprep.subr.mxu0 0.0
        %3994 = vmatpush1.msra.mxu0 %v3078
        %3995 = vmatprep.subr.mxu0 0.0
        %3996 = vmatpush1.msra.mxu0 %v3071
        %3997 = vmatprep.subr.mxu0 0.0
        %3998 = vmatpush1.msra.mxu0 %v3064
        %3999 = vmatprep.subr.mxu0 0.0
        %4000 = vmatpush1.msra.mxu0 %v3057
        %4001 = vmatprep.subr.mxu0 0.0
        %4002 = vmatpush1.msra.mxu0 %v3050
        %4003 = vmatprep.subr.mxu0 0.0
        %4004 = vmatpush1.msra.mxu0 %v3043
        %4005 = vmatprep.subr.mxu0 0.0
        %4006 = vmatpush1.msra.mxu0 %v3036
        %4007 = vmatprep.subr.mxu0 0.0
        %4008 = vmatpush1.msra.mxu0 %v3029
        %4009 = vmatprep.subr.mxu0 0.0
        %4010 = vmatpush1.msra.mxu0 %v3022
        %4011 = vmatprep.subr.mxu0 0.0
        %4012 = vmatpush1.msra.mxu0 %v3015
        %4013 = vmatprep.subr.mxu0 0.0
        %4014 = vmatpush1.msra.mxu0 %v3008
        %4015 = vmatprep.subr.mxu0 0.0
        %4016 = vmatpush1.msra.mxu0 %v3001
        %4017 = vmatprep.subr.mxu0 0.0
        %4018 = vmatpush1.msra.mxu0 %v2994
        %4019 = vmatprep.subr.mxu0 0.0
        %4020 = vmatpush1.msra.mxu0 %v2987
        %4021 = vmatprep.subr.mxu0 0.0
        %4022 = vmatpush1.msra.mxu0 %v2980
        %4023 = vmatprep.subr.mxu0 0.0
        %4024 = vmatpush1.msra.mxu0 %v2973
        %4025 = vmatprep.subr.mxu0 0.0
        %4026 = vmatpush2.msra.mxu0 %v3190
        %4027 = vmatprep.subr.mxu0 0.0
        %4028 = vmatpush2.msra.mxu0 %v3183
        %4029 = vmatprep.subr.mxu0 0.0
        %4030 = vmatpush2.msra.mxu0 %v3176
        %4031 = vmatprep.subr.mxu0 0.0
        %4032 = vmatpush2.msra.mxu0 %v3169
        %4033 = vmatprep.subr.mxu0 0.0
        %4034 = vmatpush2.msra.mxu0 %v3162
        %4035 = vmatprep.subr.mxu0 0.0
        %4036 = vmatpush2.msra.mxu0 %v3155
        %4037 = vmatprep.subr.mxu0 0.0
        %4038 = vmatpush2.msra.mxu0 %v3148
        %4039 = vmatprep.subr.mxu0 0.0
        %4040 = vmatpush2.msra.mxu0 %v3141
        %4041 = vmatprep.subr.mxu0 0.0
        %4042 = vmatpush2.msra.mxu0 %v3134
        %4043 = vmatprep.subr.mxu0 0.0
        %4044 = vmatpush2.msra.mxu0 %v3127
        %4045 = vmatprep.subr.mxu0 0.0
        %4046 = vmatpush2.msra.mxu0 %v3120
        %4047 = vmatprep.subr.mxu0 0.0
        %4048 = vmatpush2.msra.mxu0 %v3113
        %4049 = vmatprep.subr.mxu0 0.0
        %4050 = vmatpush2.msra.mxu0 %v3106
        %4051 = vmatprep.subr.mxu0 0.0
        %4052 = vmatpush2.msra.mxu0 %v3099
        %4053 = vmatprep.subr.mxu0 0.0
        %4054 = vmatpush2.msra.mxu0 %v3092
        %4055 = vmatprep.subr.mxu0 0.0
        %4056 = vmatpush2.msra.mxu0 %v3085
        %4057 = vmatprep.mubr.f32.mxu0 %v3220
        %4058 = vmatmul.mubr.f32.gmra.mxu0 %v3219
        %v4059 = vpop.f32.mrf.mxu0
        %v4060 = vadd.f32 %v3254, %v4059
        %v4061 = vpop.f32.mrf.mxu0
        %4062 = vmatprep.mubr.f32.mxu0 %v3223
        %4063 = vmatmul.mubr.f32.gmra.mxu0 %v3222
        %v4064 = vpop.f32.mrf.mxu0
        %v4065 = vadd.f32 %v3259, %v4064
        %v4066 = vpop.f32.mrf.mxu0
        %4067 = vmatprep.mubr.f32.mxu0 %v3226
        %4068 = vmatmul.mubr.f32.gmra.mxu0 %v3225
        %v4069 = vpop.f32.mrf.mxu0
        %v4070 = vadd.f32 %v3264, %v4069
        %v4071 = vpop.f32.mrf.mxu0
        %4072 = vmatprep.mubr.f32.mxu0 %v3229
        %4073 = vmatmul.mubr.f32.gmra.mxu0 %v3228
        %v4074 = vpop.f32.mrf.mxu0
        %v4075 = vadd.f32 %v3269, %v4074
        %v4076 = vpop.f32.mrf.mxu0
        %4077 = vmatprep.mubr.f32.mxu0 %v3232
        %4078 = vmatmul.mubr.f32.gmra.mxu0 %v3231
        %v4079 = vpop.f32.mrf.mxu0
        %v4080 = vadd.f32 %v3274, %v4079
        %v4081 = vpop.f32.mrf.mxu0
        %4082 = vmatprep.mubr.f32.mxu0 %v3235
        %4083 = vmatmul.mubr.f32.gmra.mxu0 %v3234
        %v4084 = vpop.f32.mrf.mxu0
        %v4085 = vadd.f32 %v3279, %v4084
        %v4086 = vpop.f32.mrf.mxu0
        %4087 = vmatprep.mubr.f32.mxu0 %v3238
        %4088 = vmatmul.mubr.f32.gmra.mxu0 %v3237
        %v4089 = vpop.f32.mrf.mxu0
        %v4090 = vadd.f32 %v3284, %v4089
        %v4091 = vpop.f32.mrf.mxu0
        %4092 = vmatprep.mubr.f32.mxu0 %v3241
        %4093 = vmatmul.mubr.f32.gmra.mxu0 %v3240
        %v4094 = vpop.f32.mrf.mxu0
        %v4095 = vadd.f32 %v3289, %v4094
        %v4096 = vpop.f32.mrf.mxu0
        %4097 = vdwg.mxu0
        %4098 = vmatprep.subr.mxu0 0.0
        %4099 = vmatpush1.msra.mxu0 0.0
        %4100 = vmatprep.subr.mxu0 0.0
        %4101 = vmatpush1.msra.mxu0 0.0
        %4102 = vmatprep.subr.mxu0 0.0
        %4103 = vmatpush1.msra.mxu0 0.0
        %4104 = vmatprep.subr.mxu0 0.0
        %4105 = vmatpush1.msra.mxu0 0.0
        %4106 = vmatprep.subr.mxu0 0.0
        %4107 = vmatpush1.msra.mxu0 0.0
        %4108 = vmatprep.subr.mxu0 0.0
        %4109 = vmatpush1.msra.mxu0 0.0
        %4110 = vmatprep.subr.mxu0 0.0
        %4111 = vmatpush1.msra.mxu0 0.0
        %4112 = vmatprep.subr.mxu0 0.0
        %4113 = vmatpush1.msra.mxu0 0.0
        %4114 = vmatprep.subr.mxu0 0.0
        %4115 = vmatpush1.msra.mxu0 0.0
        %4116 = vmatprep.subr.mxu0 0.0
        %4117 = vmatpush1.msra.mxu0 0.0
        %4118 = vmatprep.subr.mxu0 0.0
        %4119 = vmatpush1.msra.mxu0 0.0
        %4120 = vmatprep.subr.mxu0 0.0
        %4121 = vmatpush1.msra.mxu0 0.0
        %4122 = vmatprep.subr.mxu0 0.0
        %4123 = vmatpush1.msra.mxu0 %v3218
        %4124 = vmatprep.subr.mxu0 0.0
        %4125 = vmatpush1.msra.mxu0 %v3211
        %4126 = vmatprep.subr.mxu0 0.0
        %4127 = vmatpush1.msra.mxu0 %v3204
        %4128 = vmatprep.subr.mxu0 0.0
        %4129 = vmatpush1.msra.mxu0 %v3197
        %4130 = vmatprep.subr.mxu0 0.0
        %4131 = vmatpush2.msra.mxu0 0.0
        %4132 = vmatprep.subr.mxu0 0.0
        %4133 = vmatpush2.msra.mxu0 0.0
        %4134 = vmatprep.subr.mxu0 0.0
        %4135 = vmatpush2.msra.mxu0 0.0
        %4136 = vmatprep.subr.mxu0 0.0
        %4137 = vmatpush2.msra.mxu0 0.0
        %4138 = vmatprep.subr.mxu0 0.0
        %4139 = vmatpush2.msra.mxu0 0.0
        %4140 = vmatprep.subr.mxu0 0.0
        %4141 = vmatpush2.msra.mxu0 0.0
        %4142 = vmatprep.subr.mxu0 0.0
        %4143 = vmatpush2.msra.mxu0 0.0
        %4144 = vmatprep.subr.mxu0 0.0
        %4145 = vmatpush2.msra.mxu0 0.0
        %4146 = vmatprep.subr.mxu0 0.0
        %4147 = vmatpush2.msra.mxu0 0.0
        %4148 = vmatprep.subr.mxu0 0.0
        %4149 = vmatpush2.msra.mxu0 0.0
        %4150 = vmatprep.subr.mxu0 0.0
        %4151 = vmatpush2.msra.mxu0 0.0
        %4152 = vmatprep.subr.mxu0 0.0
        %4153 = vmatpush2.msra.mxu0 0.0
        %4154 = vmatprep.subr.mxu0 0.0
        %4155 = vmatpush2.msra.mxu0 0.0
        %4156 = vmatprep.subr.mxu0 0.0
        %4157 = vmatpush2.msra.mxu0 0.0
        %4158 = vmatprep.subr.mxu0 0.0
        %4159 = vmatpush2.msra.mxu0 0.0
        %4160 = vmatprep.subr.mxu0 0.0
        %4161 = vmatpush2.msra.mxu0 0.0
        %4162 = vmatprep.mubr.f32.mxu0 0.0
        %4163 = vmatmul.mubr.f32.gmra.mxu0 %v3292
        %v4164 = vpop.f32.mrf.mxu0
        %v4165 = vadd.f32 %v4060, %v4164
        %v4166 = vpop.f32.mrf.mxu0
        %4167 = vmatprep.mubr.f32.mxu0 0.0
        %4168 = vmatmul.mubr.f32.gmra.mxu0 %v3295
        %v4169 = vpop.f32.mrf.mxu0
        %v4170 = vadd.f32 %v4065, %v4169
        %v4171 = vpop.f32.mrf.mxu0
        %4172 = vmatprep.mubr.f32.mxu0 0.0
        %4173 = vmatmul.mubr.f32.gmra.mxu0 %v3298
        %v4174 = vpop.f32.mrf.mxu0
        %v4175 = vadd.f32 %v4070, %v4174
        %v4176 = vpop.f32.mrf.mxu0
        %4177 = vmatprep.mubr.f32.mxu0 0.0
        %4178 = vmatmul.mubr.f32.gmra.mxu0 %v3301
        %v4179 = vpop.f32.mrf.mxu0
        %v4180 = vadd.f32 %v4075, %v4179
        %v4181 = vpop.f32.mrf.mxu0
        %4182 = vmatprep.mubr.f32.mxu0 0.0
        %4183 = vmatmul.mubr.f32.gmra.mxu0 %v3304
        %v4184 = vpop.f32.mrf.mxu0
        %v4185 = vadd.f32 %v4080, %v4184
        %v4186 = vpop.f32.mrf.mxu0
        %4187 = vmatprep.mubr.f32.mxu0 0.0
        %4188 = vmatmul.mubr.f32.gmra.mxu0 %v3307
        %v4189 = vpop.f32.mrf.mxu0
        %v4190 = vadd.f32 %v4085, %v4189
        %v4191 = vpop.f32.mrf.mxu0
        %4192 = vmatprep.mubr.f32.mxu0 0.0
        %4193 = vmatmul.mubr.f32.gmra.mxu0 %v3310
        %v4194 = vpop.f32.mrf.mxu0
        %v4195 = vadd.f32 %v4090, %v4194
        %v4196 = vpop.f32.mrf.mxu0
        %4197 = vmatprep.mubr.f32.mxu0 0.0
        %4198 = vmatmul.mubr.f32.gmra.mxu0 %v3313
        %v4199 = vpop.f32.mrf.mxu0
        %v4200 = vadd.f32 %v4095, %v4199
        %v4201 = vpop.f32.mrf.mxu0
        %4202 = vdwg.mxu0
        %v4203 = vmax.f32 %v3495, 0.0
        %v4204 = vmax.f32 %v3497, 0.0
        %v4205 = vmax.f32 %v3721, 0.0
        %v4206 = vmax.f32 %v3723, 0.0
        %v4207 = vmax.f32 %v3947, 0.0
        %v4208 = vmax.f32 %v3949, 0.0
        %v4209 = vmax.f32 %v4165, 0.0
        %v4210 = vmax.f32 %v3501, 0.0
        %v4211 = vmax.f32 %v3503, 0.0
        %v4212 = vmax.f32 %v3727, 0.0
        %v4213 = vmax.f32 %v3729, 0.0
        %v4214 = vmax.f32 %v3953, 0.0
        %v4215 = vmax.f32 %v3955, 0.0
        %v4216 = vmax.f32 %v4170, 0.0
        %v4217 = vmax.f32 %v3507, 0.0
        %v4218 = vmax.f32 %v3509, 0.0
        %v4219 = vmax.f32 %v3733, 0.0
        %v4220 = vmax.f32 %v3735, 0.0
        %v4221 = vmax.f32 %v3959, 0.0
        %v4222 = vmax.f32 %v3961, 0.0
        %v4223 = vmax.f32 %v4175, 0.0
        %v4224 = vmax.f32 %v3513, 0.0
        %v4225 = vmax.f32 %v3515, 0.0
        %v4226 = vmax.f32 %v3739, 0.0
        %v4227 = vmax.f32 %v3741, 0.0
        %v4228 = vmax.f32 %v3965, 0.0
        %v4229 = vmax.f32 %v3967, 0.0
        %v4230 = vmax.f32 %v4180, 0.0
        %v4231 = vmax.f32 %v3519, 0.0
        %v4232 = vmax.f32 %v3521, 0.0
        %v4233 = vmax.f32 %v3745, 0.0
        %v4234 = vmax.f32 %v3747, 0.0
        %v4235 = vmax.f32 %v3971, 0.0
        %v4236 = vmax.f32 %v3973, 0.0
        %v4237 = vmax.f32 %v4185, 0.0
        %v4238 = vmax.f32 %v3525, 0.0
        %v4239 = vmax.f32 %v3527, 0.0
        %v4240 = vmax.f32 %v3751, 0.0
        %v4241 = vmax.f32 %v3753, 0.0
        %v4242 = vmax.f32 %v3977, 0.0
        %v4243 = vmax.f32 %v3979, 0.0
        %v4244 = vmax.f32 %v4190, 0.0
        %v4245 = vmax.f32 %v3531, 0.0
        %v4246 = vmax.f32 %v3533, 0.0
        %v4247 = vmax.f32 %v3757, 0.0
        %v4248 = vmax.f32 %v3759, 0.0
        %v4249 = vmax.f32 %v3983, 0.0
        %v4250 = vmax.f32 %v3985, 0.0
        %v4251 = vmax.f32 %v4195, 0.0
        %v4252 = vmax.f32 %v3537, 0.0
        %v4253 = vmax.f32 %v3539, 0.0
        %v4254 = vmax.f32 %v3763, 0.0
        %v4255 = vmax.f32 %v3765, 0.0
        %v4256 = vmax.f32 %v3989, 0.0
        %v4257 = vmax.f32 %v3991, 0.0
        %v4258 = vmax.f32 %v4200, 0.0
        %vm4259 = vcmask 392320
        %4260 = vst.msk [vmem:[#allocation6 + $0x30] sm:$0xff] %vm4259, 0.0
        %4261 = vst.msk [vmem:[#allocation6 + $0x68] sm:$0xff] %vm4259, 0.0
        %4262 = vst.msk [vmem:[#allocation6 + $0xa0] sm:$0xff] %vm4259, 0.0
        %4263 = vst.msk [vmem:[#allocation6 + $0xd8] sm:$0xff] %vm4259, 0.0
        %4264 = vst.msk [vmem:[#allocation6 + $0x110] sm:$0xff] %vm4259, 0.0
        %4265 = vst.msk [vmem:[#allocation6 + $0x148] sm:$0xff] %vm4259, 0.0
        %4266 = vst.msk [vmem:[#allocation6 + $0x180] sm:$0xff] %vm4259, 0.0
        %4267 = vst.msk [vmem:[#allocation6 + $0x1b8] sm:$0xff] %vm4259, 0.0
        %4268 = vst [vmem:[#allocation6] sm:$0xff] %v4203
        %4269 = vst [vmem:[#allocation6 + $0x8] sm:$0xff] %v4204
        %4270 = vst [vmem:[#allocation6 + $0x10] sm:$0xff] %v4205
        %4271 = vst [vmem:[#allocation6 + $0x18] sm:$0xff] %v4206
        %4272 = vst [vmem:[#allocation6 + $0x20] sm:$0xff] %v4207
        %4273 = vst [vmem:[#allocation6 + $0x28] sm:$0xff] %v4208
        %4274 = vst.msk [vmem:[#allocation6 + $0x30] sm:$0xff] %vm549, %v4209
        %4275 = vst [vmem:[#allocation6 + $0x38] sm:$0xff] %v4210
        %4276 = vst [vmem:[#allocation6 + $0x40] sm:$0xff] %v4211
        %4277 = vst [vmem:[#allocation6 + $0x48] sm:$0xff] %v4212
        %4278 = vst [vmem:[#allocation6 + $0x50] sm:$0xff] %v4213
        %4279 = vst [vmem:[#allocation6 + $0x58] sm:$0xff] %v4214
        %4280 = vst [vmem:[#allocation6 + $0x60] sm:$0xff] %v4215
        %4281 = vst.msk [vmem:[#allocation6 + $0x68] sm:$0xff] %vm549, %v4216
        %4282 = vst [vmem:[#allocation6 + $0x70] sm:$0xff] %v4217
        %4283 = vst [vmem:[#allocation6 + $0x78] sm:$0xff] %v4218
        %4284 = vst [vmem:[#allocation6 + $0x80] sm:$0xff] %v4219
        %4285 = vst [vmem:[#allocation6 + $0x88] sm:$0xff] %v4220
        %4286 = vst [vmem:[#allocation6 + $0x90] sm:$0xff] %v4221
        %4287 = vst [vmem:[#allocation6 + $0x98] sm:$0xff] %v4222
        %4288 = vst.msk [vmem:[#allocation6 + $0xa0] sm:$0xff] %vm549, %v4223
        %4289 = vst [vmem:[#allocation6 + $0xa8] sm:$0xff] %v4224
        %4290 = vst [vmem:[#allocation6 + $0xb0] sm:$0xff] %v4225
        %4291 = vst [vmem:[#allocation6 + $0xb8] sm:$0xff] %v4226
        %4292 = vst [vmem:[#allocation6 + $0xc0] sm:$0xff] %v4227
        %4293 = vst [vmem:[#allocation6 + $0xc8] sm:$0xff] %v4228
        %4294 = vst [vmem:[#allocation6 + $0xd0] sm:$0xff] %v4229
        %4295 = vst.msk [vmem:[#allocation6 + $0xd8] sm:$0xff] %vm549, %v4230
        %4296 = vst [vmem:[#allocation6 + $0xe0] sm:$0xff] %v4231
        %4297 = vst [vmem:[#allocation6 + $0xe8] sm:$0xff] %v4232
        %4298 = vst [vmem:[#allocation6 + $0xf0] sm:$0xff] %v4233
        %4299 = vst [vmem:[#allocation6 + $0xf8] sm:$0xff] %v4234
        %4300 = vst [vmem:[#allocation6 + $0x100] sm:$0xff] %v4235
        %4301 = vst [vmem:[#allocation6 + $0x108] sm:$0xff] %v4236
        %4302 = vst.msk [vmem:[#allocation6 + $0x110] sm:$0xff] %vm549, %v4237
        %4303 = vst [vmem:[#allocation6 + $0x118] sm:$0xff] %v4238
        %4304 = vst [vmem:[#allocation6 + $0x120] sm:$0xff] %v4239
        %4305 = vst [vmem:[#allocation6 + $0x128] sm:$0xff] %v4240
        %4306 = vst [vmem:[#allocation6 + $0x130] sm:$0xff] %v4241
        %4307 = vst [vmem:[#allocation6 + $0x138] sm:$0xff] %v4242
        %4308 = vst [vmem:[#allocation6 + $0x140] sm:$0xff] %v4243
        %4309 = vst.msk [vmem:[#allocation6 + $0x148] sm:$0xff] %vm549, %v4244
        %4310 = vst [vmem:[#allocation6 + $0x150] sm:$0xff] %v4245
        %4311 = vst [vmem:[#allocation6 + $0x158] sm:$0xff] %v4246
        %4312 = vst [vmem:[#allocation6 + $0x160] sm:$0xff] %v4247
        %4313 = vst [vmem:[#allocation6 + $0x168] sm:$0xff] %v4248
        %4314 = vst [vmem:[#allocation6 + $0x170] sm:$0xff] %v4249
        %4315 = vst [vmem:[#allocation6 + $0x178] sm:$0xff] %v4250
        %4316 = vst.msk [vmem:[#allocation6 + $0x180] sm:$0xff] %vm549, %v4251
        %4317 = vst [vmem:[#allocation6 + $0x188] sm:$0xff] %v4252
        %4318 = vst [vmem:[#allocation6 + $0x190] sm:$0xff] %v4253
        %4319 = vst [vmem:[#allocation6 + $0x198] sm:$0xff] %v4254
        %4320 = vst [vmem:[#allocation6 + $0x1a0] sm:$0xff] %v4255
        %4321 = vst [vmem:[#allocation6 + $0x1a8] sm:$0xff] %v4256
        %4322 = vst [vmem:[#allocation6 + $0x1b0] sm:$0xff] %v4257
        %4323 = vst.msk [vmem:[#allocation6 + $0x1b8] sm:$0xff] %vm549, %v4258
        %v4324 = vld [vmem:[#allocation6] sm:$0xff]
        %v4325 = vld [vmem:[#allocation6 + $0x8] sm:$0xff]
        %v4326 = vld [vmem:[#allocation6 + $0x10] sm:$0xff]
        %v4327 = vld [vmem:[#allocation6 + $0x18] sm:$0xff]
        %v4328 = vld [vmem:[#allocation6 + $0x20] sm:$0xff]
        %v4329 = vld [vmem:[#allocation6 + $0x28] sm:$0xff]
        %v4330 = vld [vmem:[#allocation6 + $0x30] sm:$0xff]
        %v4331 = vld [vmem:[#allocation6 + $0x38] sm:$0xff]
        %v4332 = vld [vmem:[#allocation6 + $0x40] sm:$0xff]
        %v4333 = vld [vmem:[#allocation6 + $0x48] sm:$0xff]
        %v4334 = vld [vmem:[#allocation6 + $0x50] sm:$0xff]
        %v4335 = vld [vmem:[#allocation6 + $0x58] sm:$0xff]
        %v4336 = vld [vmem:[#allocation6 + $0x60] sm:$0xff]
        %v4337 = vld [vmem:[#allocation6 + $0x68] sm:$0xff]
        %v4338 = vld [vmem:[#allocation6 + $0x70] sm:$0xff]
        %v4339 = vld [vmem:[#allocation6 + $0x78] sm:$0xff]
        %v4340 = vld [vmem:[#allocation6 + $0x80] sm:$0xff]
        %v4341 = vld [vmem:[#allocation6 + $0x88] sm:$0xff]
        %v4342 = vld [vmem:[#allocation6 + $0x90] sm:$0xff]
        %v4343 = vld [vmem:[#allocation6 + $0x98] sm:$0xff]
        %v4344 = vld [vmem:[#allocation6 + $0xa0] sm:$0xff]
        %v4345 = vld [vmem:[#allocation6 + $0xa8] sm:$0xff]
        %v4346 = vld [vmem:[#allocation6 + $0xb0] sm:$0xff]
        %v4347 = vld [vmem:[#allocation6 + $0xb8] sm:$0xff]
        %v4348 = vld [vmem:[#allocation6 + $0xc0] sm:$0xff]
        %v4349 = vld [vmem:[#allocation6 + $0xc8] sm:$0xff]
        %v4350 = vld [vmem:[#allocation6 + $0xd0] sm:$0xff]
        %v4351 = vld [vmem:[#allocation6 + $0xd8] sm:$0xff]
        %v4352 = vld [vmem:[#allocation6 + $0xe0] sm:$0xff]
        %v4353 = vld [vmem:[#allocation6 + $0xe8] sm:$0xff]
        %v4354 = vld [vmem:[#allocation6 + $0xf0] sm:$0xff]
        %v4355 = vld [vmem:[#allocation6 + $0xf8] sm:$0xff]
        %v4356 = vld [vmem:[#allocation6 + $0x100] sm:$0xff]
        %v4357 = vld [vmem:[#allocation6 + $0x108] sm:$0xff]
        %v4358 = vld [vmem:[#allocation6 + $0x110] sm:$0xff]
        %v4359 = vld [vmem:[#allocation6 + $0x118] sm:$0xff]
        %v4360 = vld [vmem:[#allocation6 + $0x120] sm:$0xff]
        %v4361 = vld [vmem:[#allocation6 + $0x128] sm:$0xff]
        %v4362 = vld [vmem:[#allocation6 + $0x130] sm:$0xff]
        %v4363 = vld [vmem:[#allocation6 + $0x138] sm:$0xff]
        %v4364 = vld [vmem:[#allocation6 + $0x140] sm:$0xff]
        %v4365 = vld [vmem:[#allocation6 + $0x148] sm:$0xff]
        %v4366 = vld [vmem:[#allocation6 + $0x150] sm:$0xff]
        %v4367 = vld [vmem:[#allocation6 + $0x158] sm:$0xff]
        %v4368 = vld [vmem:[#allocation6 + $0x160] sm:$0xff]
        %v4369 = vld [vmem:[#allocation6 + $0x168] sm:$0xff]
        %v4370 = vld [vmem:[#allocation6 + $0x170] sm:$0xff]
        %v4371 = vld [vmem:[#allocation6 + $0x178] sm:$0xff]
        %v4372 = vld [vmem:[#allocation6 + $0x180] sm:$0xff]
        %v4373 = vld [vmem:[#allocation6 + $0x188] sm:$0xff]
        %v4374 = vld [vmem:[#allocation6 + $0x190] sm:$0xff]
        %v4375 = vld [vmem:[#allocation6 + $0x198] sm:$0xff]
        %v4376 = vld [vmem:[#allocation6 + $0x1a0] sm:$0xff]
        %v4377 = vld [vmem:[#allocation6 + $0x1a8] sm:$0xff]
        %v4378 = vld [vmem:[#allocation6 + $0x1b0] sm:$0xff]
        %v4379 = vld [vmem:[#allocation6 + $0x1b8] sm:$0xff]
        %4436 = vrot.lane.b32.xlu0 %v4324, 127
        %v4437 = vpop.permute.xlu0 %4436
        %4438 = vrot.lane.b32.xlu0 %v4325, 127
        %v4439 = vpop.permute.xlu0 %4438
        %4440 = vrot.lane.b32.xlu0 %v4326, 127
        %v4441 = vpop.permute.xlu0 %4440
        %4442 = vrot.lane.b32.xlu0 %v4327, 127
        %v4443 = vpop.permute.xlu0 %4442
        %4444 = vrot.lane.b32.xlu0 %v4328, 127
        %v4445 = vpop.permute.xlu0 %4444
        %4446 = vrot.lane.b32.xlu0 %v4329, 127
        %v4447 = vpop.permute.xlu0 %4446
        %4448 = vrot.lane.b32.xlu0 %v4330, 127
        %v4449 = vpop.permute.xlu0 %4448
        %4450 = vrot.lane.b32.xlu0 %v4331, 127
        %v4451 = vpop.permute.xlu0 %4450
        %4452 = vrot.lane.b32.xlu0 %v4332, 127
        %v4453 = vpop.permute.xlu0 %4452
        %4454 = vrot.lane.b32.xlu0 %v4333, 127
        %v4455 = vpop.permute.xlu0 %4454
        %4456 = vrot.lane.b32.xlu0 %v4334, 127
        %v4457 = vpop.permute.xlu0 %4456
        %4458 = vrot.lane.b32.xlu0 %v4335, 127
        %v4459 = vpop.permute.xlu0 %4458
        %4460 = vrot.lane.b32.xlu0 %v4336, 127
        %v4461 = vpop.permute.xlu0 %4460
        %4462 = vrot.lane.b32.xlu0 %v4337, 127
        %v4463 = vpop.permute.xlu0 %4462
        %4464 = vrot.lane.b32.xlu0 %v4338, 127
        %v4465 = vpop.permute.xlu0 %4464
        %4466 = vrot.lane.b32.xlu0 %v4339, 127
        %v4467 = vpop.permute.xlu0 %4466
        %4468 = vrot.lane.b32.xlu0 %v4340, 127
        %v4469 = vpop.permute.xlu0 %4468
        %4470 = vrot.lane.b32.xlu0 %v4341, 127
        %v4471 = vpop.permute.xlu0 %4470
        %4472 = vrot.lane.b32.xlu0 %v4342, 127
        %v4473 = vpop.permute.xlu0 %4472
        %4474 = vrot.lane.b32.xlu0 %v4343, 127
        %v4475 = vpop.permute.xlu0 %4474
        %4476 = vrot.lane.b32.xlu0 %v4344, 127
        %v4477 = vpop.permute.xlu0 %4476
        %4478 = vrot.lane.b32.xlu0 %v4345, 127
        %v4479 = vpop.permute.xlu0 %4478
        %4480 = vrot.lane.b32.xlu0 %v4346, 127
        %v4481 = vpop.permute.xlu0 %4480
        %4482 = vrot.lane.b32.xlu0 %v4347, 127
        %v4483 = vpop.permute.xlu0 %4482
        %4484 = vrot.lane.b32.xlu0 %v4348, 127
        %v4485 = vpop.permute.xlu0 %4484
        %4486 = vrot.lane.b32.xlu0 %v4349, 127
        %v4487 = vpop.permute.xlu0 %4486
        %4488 = vrot.lane.b32.xlu0 %v4350, 127
        %v4489 = vpop.permute.xlu0 %4488
        %4490 = vrot.lane.b32.xlu0 %v4351, 127
        %v4491 = vpop.permute.xlu0 %4490
        %4492 = vrot.lane.b32.xlu0 %v4352, 127
        %v4493 = vpop.permute.xlu0 %4492
        %4494 = vrot.lane.b32.xlu0 %v4353, 127
        %v4495 = vpop.permute.xlu0 %4494
        %4496 = vrot.lane.b32.xlu0 %v4354, 127
        %v4497 = vpop.permute.xlu0 %4496
        %4498 = vrot.lane.b32.xlu0 %v4355, 127
        %v4499 = vpop.permute.xlu0 %4498
        %4500 = vrot.lane.b32.xlu0 %v4356, 127
        %v4501 = vpop.permute.xlu0 %4500
        %4502 = vrot.lane.b32.xlu0 %v4357, 127
        %v4503 = vpop.permute.xlu0 %4502
        %4504 = vrot.lane.b32.xlu0 %v4358, 127
        %v4505 = vpop.permute.xlu0 %4504
        %4506 = vrot.lane.b32.xlu0 %v4359, 127
        %v4507 = vpop.permute.xlu0 %4506
        %4508 = vrot.lane.b32.xlu0 %v4360, 127
        %v4509 = vpop.permute.xlu0 %4508
        %4510 = vrot.lane.b32.xlu0 %v4361, 127
        %v4511 = vpop.permute.xlu0 %4510
        %4512 = vrot.lane.b32.xlu0 %v4362, 127
        %v4513 = vpop.permute.xlu0 %4512
        %4514 = vrot.lane.b32.xlu0 %v4363, 127
        %v4515 = vpop.permute.xlu0 %4514
        %4516 = vrot.lane.b32.xlu0 %v4364, 127
        %v4517 = vpop.permute.xlu0 %4516
        %4518 = vrot.lane.b32.xlu0 %v4365, 127
        %v4519 = vpop.permute.xlu0 %4518
        %4520 = vrot.lane.b32.xlu0 %v4366, 127
        %v4521 = vpop.permute.xlu0 %4520
        %4522 = vrot.lane.b32.xlu0 %v4367, 127
        %v4523 = vpop.permute.xlu0 %4522
        %4524 = vrot.lane.b32.xlu0 %v4368, 127
        %v4525 = vpop.permute.xlu0 %4524
        %4526 = vrot.lane.b32.xlu0 %v4369, 127
        %v4527 = vpop.permute.xlu0 %4526
        %4528 = vrot.lane.b32.xlu0 %v4370, 127
        %v4529 = vpop.permute.xlu0 %4528
        %4530 = vrot.lane.b32.xlu0 %v4371, 127
        %v4531 = vpop.permute.xlu0 %4530
        %4532 = vrot.lane.b32.xlu0 %v4372, 127
        %v4533 = vpop.permute.xlu0 %4532
        %4534 = vrot.lane.b32.xlu0 %v4373, 127
        %v4535 = vpop.permute.xlu0 %4534
        %4536 = vrot.lane.b32.xlu0 %v4374, 127
        %v4537 = vpop.permute.xlu0 %4536
        %4538 = vrot.lane.b32.xlu0 %v4375, 127
        %v4539 = vpop.permute.xlu0 %4538
        %4540 = vrot.lane.b32.xlu0 %v4376, 127
        %v4541 = vpop.permute.xlu0 %4540
        %4542 = vrot.lane.b32.xlu0 %v4377, 127
        %v4543 = vpop.permute.xlu0 %4542
        %4544 = vrot.lane.b32.xlu0 %v4378, 127
        %v4545 = vpop.permute.xlu0 %4544
        %4546 = vrot.lane.b32.xlu0 %v4379, 127
        %v4547 = vpop.permute.xlu0 %4546
        %vm4548 = vcmask 1039360
        %v4549 = vsel %vm4548, %v4437, %v4439
        %v4550 = vsel %vm4548, %v4439, %v4441
        %v4551 = vsel %vm4548, %v4441, %v4443
        %v4552 = vsel %vm4548, %v4443, %v4445
        %v4553 = vsel %vm4548, %v4445, %v4447
        %v4554 = vsel %vm4548, %v4447, %v4449
        %v4555 = vsel %vm4548, %v4451, %v4453
        %v4556 = vsel %vm4548, %v4453, %v4455
        %v4557 = vsel %vm4548, %v4455, %v4457
        %v4558 = vsel %vm4548, %v4457, %v4459
        %v4559 = vsel %vm4548, %v4459, %v4461
        %v4560 = vsel %vm4548, %v4461, %v4463
        %v4561 = vsel %vm4548, %v4465, %v4467
        %v4562 = vsel %vm4548, %v4467, %v4469
        %v4563 = vsel %vm4548, %v4469, %v4471
        %v4564 = vsel %vm4548, %v4471, %v4473
        %v4565 = vsel %vm4548, %v4473, %v4475
        %v4566 = vsel %vm4548, %v4475, %v4477
        %v4567 = vsel %vm4548, %v4479, %v4481
        %v4568 = vsel %vm4548, %v4481, %v4483
        %v4569 = vsel %vm4548, %v4483, %v4485
        %v4570 = vsel %vm4548, %v4485, %v4487
        %v4571 = vsel %vm4548, %v4487, %v4489
        %v4572 = vsel %vm4548, %v4489, %v4491
        %v4573 = vsel %vm4548, %v4493, %v4495
        %v4574 = vsel %vm4548, %v4495, %v4497
        %v4575 = vsel %vm4548, %v4497, %v4499
        %v4576 = vsel %vm4548, %v4499, %v4501
        %v4577 = vsel %vm4548, %v4501, %v4503
        %v4578 = vsel %vm4548, %v4503, %v4505
        %v4579 = vsel %vm4548, %v4507, %v4509
        %v4580 = vsel %vm4548, %v4509, %v4511
        %v4581 = vsel %vm4548, %v4511, %v4513
        %v4582 = vsel %vm4548, %v4513, %v4515
        %v4583 = vsel %vm4548, %v4515, %v4517
        %v4584 = vsel %vm4548, %v4517, %v4519
        %v4585 = vsel %vm4548, %v4521, %v4523
        %v4586 = vsel %vm4548, %v4523, %v4525
        %v4587 = vsel %vm4548, %v4525, %v4527
        %v4588 = vsel %vm4548, %v4527, %v4529
        %v4589 = vsel %vm4548, %v4529, %v4531
        %v4590 = vsel %vm4548, %v4531, %v4533
        %v4591 = vsel %vm4548, %v4535, %v4537
        %v4592 = vsel %vm4548, %v4537, %v4539
        %v4593 = vsel %vm4548, %v4539, %v4541
        %v4594 = vsel %vm4548, %v4541, %v4543
        %v4595 = vsel %vm4548, %v4543, %v4545
        %v4596 = vsel %vm4548, %v4545, %v4547
        %v4653 = vmax.f32 %v4324, %v4549
        %v4654 = vmax.f32 %v4325, %v4550
        %v4655 = vmax.f32 %v4326, %v4551
        %v4656 = vmax.f32 %v4327, %v4552
        %v4657 = vmax.f32 %v4328, %v4553
        %v4658 = vmax.f32 %v4329, %v4554
        %v4659 = vmax.f32 %v4330, %v4449
        %v4660 = vmax.f32 %v4331, %v4555
        %v4661 = vmax.f32 %v4332, %v4556
        %v4662 = vmax.f32 %v4333, %v4557
        %v4663 = vmax.f32 %v4334, %v4558
        %v4664 = vmax.f32 %v4335, %v4559
        %v4665 = vmax.f32 %v4336, %v4560
        %v4666 = vmax.f32 %v4337, %v4463
        %v4667 = vmax.f32 %v4338, %v4561
        %v4668 = vmax.f32 %v4339, %v4562
        %v4669 = vmax.f32 %v4340, %v4563
        %v4670 = vmax.f32 %v4341, %v4564
        %v4671 = vmax.f32 %v4342, %v4565
        %v4672 = vmax.f32 %v4343, %v4566
        %v4673 = vmax.f32 %v4344, %v4477
        %v4674 = vmax.f32 %v4345, %v4567
        %v4675 = vmax.f32 %v4346, %v4568
        %v4676 = vmax.f32 %v4347, %v4569
        %v4677 = vmax.f32 %v4348, %v4570
        %v4678 = vmax.f32 %v4349, %v4571
        %v4679 = vmax.f32 %v4350, %v4572
        %v4680 = vmax.f32 %v4351, %v4491
        %v4681 = vmax.f32 %v4352, %v4573
        %v4682 = vmax.f32 %v4353, %v4574
        %v4683 = vmax.f32 %v4354, %v4575
        %v4684 = vmax.f32 %v4355, %v4576
        %v4685 = vmax.f32 %v4356, %v4577
        %v4686 = vmax.f32 %v4357, %v4578
        %v4687 = vmax.f32 %v4358, %v4505
        %v4688 = vmax.f32 %v4359, %v4579
        %v4689 = vmax.f32 %v4360, %v4580
        %v4690 = vmax.f32 %v4361, %v4581
        %v4691 = vmax.f32 %v4362, %v4582
        %v4692 = vmax.f32 %v4363, %v4583
        %v4693 = vmax.f32 %v4364, %v4584
        %v4694 = vmax.f32 %v4365, %v4519
        %v4695 = vmax.f32 %v4366, %v4585
        %v4696 = vmax.f32 %v4367, %v4586
        %v4697 = vmax.f32 %v4368, %v4587
        %v4698 = vmax.f32 %v4369, %v4588
        %v4699 = vmax.f32 %v4370, %v4589
        %v4700 = vmax.f32 %v4371, %v4590
        %v4701 = vmax.f32 %v4372, %v4533
        %v4702 = vmax.f32 %v4373, %v4591
        %v4703 = vmax.f32 %v4374, %v4592
        %v4704 = vmax.f32 %v4375, %v4593
        %v4705 = vmax.f32 %v4376, %v4594
        %v4706 = vmax.f32 %v4377, %v4595
        %v4707 = vmax.f32 %v4378, %v4596
        %v4708 = vmax.f32 %v4379, %v4547
        %4765 = vrot.lane.b32.xlu0 %v4653, 100
        %v4766 = vpop.permute.xlu0 %4765
        %4767 = vrot.lane.b32.xlu0 %v4654, 100
        %v4768 = vpop.permute.xlu0 %4767
        %4769 = vrot.lane.b32.xlu0 %v4655, 100
        %v4770 = vpop.permute.xlu0 %4769
        %4771 = vrot.lane.b32.xlu0 %v4656, 100
        %v4772 = vpop.permute.xlu0 %4771
        %4773 = vrot.lane.b32.xlu0 %v4657, 100
        %v4774 = vpop.permute.xlu0 %4773
        %4775 = vrot.lane.b32.xlu0 %v4658, 100
        %v4776 = vpop.permute.xlu0 %4775
        %4777 = vrot.lane.b32.xlu0 %v4659, 100
        %v4778 = vpop.permute.xlu0 %4777
        %4779 = vrot.lane.b32.xlu0 %v4660, 100
        %v4780 = vpop.permute.xlu0 %4779
        %4781 = vrot.lane.b32.xlu0 %v4661, 100
        %v4782 = vpop.permute.xlu0 %4781
        %4783 = vrot.lane.b32.xlu0 %v4662, 100
        %v4784 = vpop.permute.xlu0 %4783
        %4785 = vrot.lane.b32.xlu0 %v4663, 100
        %v4786 = vpop.permute.xlu0 %4785
        %4787 = vrot.lane.b32.xlu0 %v4664, 100
        %v4788 = vpop.permute.xlu0 %4787
        %4789 = vrot.lane.b32.xlu0 %v4665, 100
        %v4790 = vpop.permute.xlu0 %4789
        %4791 = vrot.lane.b32.xlu0 %v4666, 100
        %v4792 = vpop.permute.xlu0 %4791
        %4793 = vrot.lane.b32.xlu0 %v4667, 100
        %v4794 = vpop.permute.xlu0 %4793
        %4795 = vrot.lane.b32.xlu0 %v4668, 100
        %v4796 = vpop.permute.xlu0 %4795
        %4797 = vrot.lane.b32.xlu0 %v4669, 100
        %v4798 = vpop.permute.xlu0 %4797
        %4799 = vrot.lane.b32.xlu0 %v4670, 100
        %v4800 = vpop.permute.xlu0 %4799
        %4801 = vrot.lane.b32.xlu0 %v4671, 100
        %v4802 = vpop.permute.xlu0 %4801
        %4803 = vrot.lane.b32.xlu0 %v4672, 100
        %v4804 = vpop.permute.xlu0 %4803
        %4805 = vrot.lane.b32.xlu0 %v4673, 100
        %v4806 = vpop.permute.xlu0 %4805
        %4807 = vrot.lane.b32.xlu0 %v4674, 100
        %v4808 = vpop.permute.xlu0 %4807
        %4809 = vrot.lane.b32.xlu0 %v4675, 100
        %v4810 = vpop.permute.xlu0 %4809
        %4811 = vrot.lane.b32.xlu0 %v4676, 100
        %v4812 = vpop.permute.xlu0 %4811
        %4813 = vrot.lane.b32.xlu0 %v4677, 100
        %v4814 = vpop.permute.xlu0 %4813
        %4815 = vrot.lane.b32.xlu0 %v4678, 100
        %v4816 = vpop.permute.xlu0 %4815
        %4817 = vrot.lane.b32.xlu0 %v4679, 100
        %v4818 = vpop.permute.xlu0 %4817
        %4819 = vrot.lane.b32.xlu0 %v4680, 100
        %v4820 = vpop.permute.xlu0 %4819
        %4821 = vrot.lane.b32.xlu0 %v4681, 100
        %v4822 = vpop.permute.xlu0 %4821
        %4823 = vrot.lane.b32.xlu0 %v4682, 100
        %v4824 = vpop.permute.xlu0 %4823
        %4825 = vrot.lane.b32.xlu0 %v4683, 100
        %v4826 = vpop.permute.xlu0 %4825
        %4827 = vrot.lane.b32.xlu0 %v4684, 100
        %v4828 = vpop.permute.xlu0 %4827
        %4829 = vrot.lane.b32.xlu0 %v4685, 100
        %v4830 = vpop.permute.xlu0 %4829
        %4831 = vrot.lane.b32.xlu0 %v4686, 100
        %v4832 = vpop.permute.xlu0 %4831
        %4833 = vrot.lane.b32.xlu0 %v4687, 100
        %v4834 = vpop.permute.xlu0 %4833
        %4835 = vrot.lane.b32.xlu0 %v4688, 100
        %v4836 = vpop.permute.xlu0 %4835
        %4837 = vrot.lane.b32.xlu0 %v4689, 100
        %v4838 = vpop.permute.xlu0 %4837
        %4839 = vrot.lane.b32.xlu0 %v4690, 100
        %v4840 = vpop.permute.xlu0 %4839
        %4841 = vrot.lane.b32.xlu0 %v4691, 100
        %v4842 = vpop.permute.xlu0 %4841
        %4843 = vrot.lane.b32.xlu0 %v4692, 100
        %v4844 = vpop.permute.xlu0 %4843
        %4845 = vrot.lane.b32.xlu0 %v4693, 100
        %v4846 = vpop.permute.xlu0 %4845
        %4847 = vrot.lane.b32.xlu0 %v4694, 100
        %v4848 = vpop.permute.xlu0 %4847
        %4849 = vrot.lane.b32.xlu0 %v4695, 100
        %v4850 = vpop.permute.xlu0 %4849
        %4851 = vrot.lane.b32.xlu0 %v4696, 100
        %v4852 = vpop.permute.xlu0 %4851
        %4853 = vrot.lane.b32.xlu0 %v4697, 100
        %v4854 = vpop.permute.xlu0 %4853
        %4855 = vrot.lane.b32.xlu0 %v4698, 100
        %v4856 = vpop.permute.xlu0 %4855
        %4857 = vrot.lane.b32.xlu0 %v4699, 100
        %v4858 = vpop.permute.xlu0 %4857
        %4859 = vrot.lane.b32.xlu0 %v4700, 100
        %v4860 = vpop.permute.xlu0 %4859
        %4861 = vrot.lane.b32.xlu0 %v4701, 100
        %v4862 = vpop.permute.xlu0 %4861
        %4863 = vrot.lane.b32.xlu0 %v4702, 100
        %v4864 = vpop.permute.xlu0 %4863
        %4865 = vrot.lane.b32.xlu0 %v4703, 100
        %v4866 = vpop.permute.xlu0 %4865
        %4867 = vrot.lane.b32.xlu0 %v4704, 100
        %v4868 = vpop.permute.xlu0 %4867
        %4869 = vrot.lane.b32.xlu0 %v4705, 100
        %v4870 = vpop.permute.xlu0 %4869
        %4871 = vrot.lane.b32.xlu0 %v4706, 100
        %v4872 = vpop.permute.xlu0 %4871
        %4873 = vrot.lane.b32.xlu0 %v4707, 100
        %v4874 = vpop.permute.xlu0 %4873
        %4875 = vrot.lane.b32.xlu0 %v4708, 100
        %v4876 = vpop.permute.xlu0 %4875
        %vm4877 = vcmask 818176
        %v4878 = vsel %vm4877, %v4766, %v4768
        %v4879 = vsel %vm4877, %v4768, %v4770
        %v4880 = vsel %vm4877, %v4770, %v4772
        %v4881 = vsel %vm4877, %v4772, %v4774
        %v4882 = vsel %vm4877, %v4774, %v4776
        %v4883 = vsel %vm4877, %v4776, %v4778
        %v4884 = vsel %vm4877, %v4780, %v4782
        %v4885 = vsel %vm4877, %v4782, %v4784
        %v4886 = vsel %vm4877, %v4784, %v4786
        %v4887 = vsel %vm4877, %v4786, %v4788
        %v4888 = vsel %vm4877, %v4788, %v4790
        %v4889 = vsel %vm4877, %v4790, %v4792
        %v4890 = vsel %vm4877, %v4794, %v4796
        %v4891 = vsel %vm4877, %v4796, %v4798
        %v4892 = vsel %vm4877, %v4798, %v4800
        %v4893 = vsel %vm4877, %v4800, %v4802
        %v4894 = vsel %vm4877, %v4802, %v4804
        %v4895 = vsel %vm4877, %v4804, %v4806
        %v4896 = vsel %vm4877, %v4808, %v4810
        %v4897 = vsel %vm4877, %v4810, %v4812
        %v4898 = vsel %vm4877, %v4812, %v4814
        %v4899 = vsel %vm4877, %v4814, %v4816
        %v4900 = vsel %vm4877, %v4816, %v4818
        %v4901 = vsel %vm4877, %v4818, %v4820
        %v4902 = vsel %vm4877, %v4822, %v4824
        %v4903 = vsel %vm4877, %v4824, %v4826
        %v4904 = vsel %vm4877, %v4826, %v4828
        %v4905 = vsel %vm4877, %v4828, %v4830
        %v4906 = vsel %vm4877, %v4830, %v4832
        %v4907 = vsel %vm4877, %v4832, %v4834
        %v4908 = vsel %vm4877, %v4836, %v4838
        %v4909 = vsel %vm4877, %v4838, %v4840
        %v4910 = vsel %vm4877, %v4840, %v4842
        %v4911 = vsel %vm4877, %v4842, %v4844
        %v4912 = vsel %vm4877, %v4844, %v4846
        %v4913 = vsel %vm4877, %v4846, %v4848
        %v4914 = vsel %vm4877, %v4850, %v4852
        %v4915 = vsel %vm4877, %v4852, %v4854
        %v4916 = vsel %vm4877, %v4854, %v4856
        %v4917 = vsel %vm4877, %v4856, %v4858
        %v4918 = vsel %vm4877, %v4858, %v4860
        %v4919 = vsel %vm4877, %v4860, %v4862
        %v4920 = vsel %vm4877, %v4864, %v4866
        %v4921 = vsel %vm4877, %v4866, %v4868
        %v4922 = vsel %vm4877, %v4868, %v4870
        %v4923 = vsel %vm4877, %v4870, %v4872
        %v4924 = vsel %vm4877, %v4872, %v4874
        %v4925 = vsel %vm4877, %v4874, %v4876
        %v4982 = vmax.f32 %v4653, %v4878
        %v4983 = vmax.f32 %v4654, %v4879
        %v4984 = vmax.f32 %v4655, %v4880
        %v4985 = vmax.f32 %v4656, %v4881
        %v4986 = vmax.f32 %v4657, %v4882
        %v4987 = vmax.f32 %v4658, %v4883
        %v4988 = vmax.f32 %v4659, %v4778
        %v4989 = vmax.f32 %v4660, %v4884
        %v4990 = vmax.f32 %v4661, %v4885
        %v4991 = vmax.f32 %v4662, %v4886
        %v4992 = vmax.f32 %v4663, %v4887
        %v4993 = vmax.f32 %v4664, %v4888
        %v4994 = vmax.f32 %v4665, %v4889
        %v4995 = vmax.f32 %v4666, %v4792
        %v4996 = vmax.f32 %v4667, %v4890
        %v4997 = vmax.f32 %v4668, %v4891
        %v4998 = vmax.f32 %v4669, %v4892
        %v4999 = vmax.f32 %v4670, %v4893
        %v5000 = vmax.f32 %v4671, %v4894
        %v5001 = vmax.f32 %v4672, %v4895
        %v5002 = vmax.f32 %v4673, %v4806
        %v5003 = vmax.f32 %v4674, %v4896
        %v5004 = vmax.f32 %v4675, %v4897
        %v5005 = vmax.f32 %v4676, %v4898
        %v5006 = vmax.f32 %v4677, %v4899
        %v5007 = vmax.f32 %v4678, %v4900
        %v5008 = vmax.f32 %v4679, %v4901
        %v5009 = vmax.f32 %v4680, %v4820
        %v5010 = vmax.f32 %v4681, %v4902
        %v5011 = vmax.f32 %v4682, %v4903
        %v5012 = vmax.f32 %v4683, %v4904
        %v5013 = vmax.f32 %v4684, %v4905
        %v5014 = vmax.f32 %v4685, %v4906
        %v5015 = vmax.f32 %v4686, %v4907
        %v5016 = vmax.f32 %v4687, %v4834
        %v5017 = vmax.f32 %v4688, %v4908
        %v5018 = vmax.f32 %v4689, %v4909
        %v5019 = vmax.f32 %v4690, %v4910
        %v5020 = vmax.f32 %v4691, %v4911
        %v5021 = vmax.f32 %v4692, %v4912
        %v5022 = vmax.f32 %v4693, %v4913
        %v5023 = vmax.f32 %v4694, %v4848
        %v5024 = vmax.f32 %v4695, %v4914
        %v5025 = vmax.f32 %v4696, %v4915
        %v5026 = vmax.f32 %v4697, %v4916
        %v5027 = vmax.f32 %v4698, %v4917
        %v5028 = vmax.f32 %v4699, %v4918
        %v5029 = vmax.f32 %v4700, %v4919
        %v5030 = vmax.f32 %v4701, %v4862
        %v5031 = vmax.f32 %v4702, %v4920
        %v5032 = vmax.f32 %v4703, %v4921
        %v5033 = vmax.f32 %v4704, %v4922
        %v5034 = vmax.f32 %v4705, %v4923
        %v5035 = vmax.f32 %v4706, %v4924
        %v5036 = vmax.f32 %v4707, %v4925
        %v5037 = vmax.f32 %v4708, %v4876
        %v5038 = vld [vmem:[%s7] sm:$0x1]
        %v5039 = vld [vmem:[%s6] sm:$0xff]
        %v5040 = vld [vmem:[%s6 + $0x8] sm:$0xff]
        %v5041 = vld [vmem:[%s6 + $0x10] sm:$0xff]
        %v5042 = vld [vmem:[%s6 + $0x18] sm:$0xff]
        %v5043 = vld [vmem:[%s6 + $0x20] sm:$0xff]
        %v5044 = vld [vmem:[%s6 + $0x28] sm:$0xff]
        %v5045 = vld [vmem:[%s6 + $0x30] sm:$0xff]
        %v5046 = vld [vmem:[%s6 + $0x38] sm:$0xff]
        %v5047 = vld [vmem:[%s6 + $0x40] sm:$0xff]
        %v5048 = vld [vmem:[%s6 + $0x48] sm:$0xff]
        %v5049 = vld [vmem:[%s6 + $0x50] sm:$0xff]
        %v5050 = vld [vmem:[%s6 + $0x58] sm:$0xff]
        %v5051 = vld [vmem:[%s6 + $0x60] sm:$0xff]
        %v5052 = vld [vmem:[%s6 + $0x68] sm:$0xff]
        %v5053 = vld [vmem:[%s6 + $0x70] sm:$0xff]
        %v5054 = vld [vmem:[%s6 + $0x78] sm:$0xff]
        %v5055 = vld [vmem:[%s6 + $0x80] sm:$0xff]
        %v5056 = vld [vmem:[%s6 + $0x88] sm:$0xff]
        %v5057 = vld [vmem:[%s6 + $0x90] sm:$0xff]
        %v5058 = vld [vmem:[%s6 + $0x98] sm:$0xff]
        %v5059 = vld [vmem:[%s6 + $0xa0] sm:$0xff]
        %v5060 = vld [vmem:[%s6 + $0xa8] sm:$0xff]
        %v5061 = vld [vmem:[%s6 + $0xb0] sm:$0xff]
        %v5062 = vld [vmem:[%s6 + $0xb8] sm:$0xff]
        %v5063 = vld [vmem:[%s6 + $0xc0] sm:$0xff]
        %v5064 = vld [vmem:[%s6 + $0xc8] sm:$0xff]
        %v5065 = vld [vmem:[%s6 + $0xd0] sm:$0xff]
        %v5066 = vld [vmem:[%s6 + $0xd8] sm:$0xff]
        %v5067 = vld [vmem:[%s6 + $0xe0] sm:$0xff]
        %v5068 = vld [vmem:[%s6 + $0xe8] sm:$0xff]
        %v5069 = vld [vmem:[%s6 + $0xf0] sm:$0xff]
        %v5070 = vld [vmem:[%s6 + $0xf8] sm:$0xff]
        %v5071 = vld [vmem:[%s6 + $0x100] sm:$0xff]
        %v5072 = vld [vmem:[%s6 + $0x108] sm:$0xff]
        %v5073 = vld [vmem:[%s6 + $0x110] sm:$0xff]
        %v5074 = vld [vmem:[%s6 + $0x118] sm:$0xff]
        %v5075 = vld [vmem:[%s6 + $0x120] sm:$0xff]
        %v5076 = vld [vmem:[%s6 + $0x128] sm:$0xff]
        %v5077 = vld [vmem:[%s6 + $0x130] sm:$0xff]
        %v5078 = vld [vmem:[%s6 + $0x138] sm:$0xff]
        %v5079 = vld [vmem:[%s6 + $0x140] sm:$0xff]
        %v5080 = vld [vmem:[%s6 + $0x148] sm:$0xff]
        %v5081 = vld [vmem:[%s6 + $0x150] sm:$0xff]
        %v5082 = vld [vmem:[%s6 + $0x158] sm:$0xff]
        %v5083 = vld [vmem:[%s6 + $0x160] sm:$0xff]
        %v5084 = vld [vmem:[%s6 + $0x168] sm:$0xff]
        %v5085 = vld [vmem:[%s6 + $0x170] sm:$0xff]
        %v5086 = vld [vmem:[%s6 + $0x178] sm:$0xff]
        %v5087 = vld [vmem:[%s6 + $0x180] sm:$0xff]
        %v5088 = vld [vmem:[%s6 + $0x188] sm:$0xff]
        %v5089 = vld [vmem:[%s6 + $0x190] sm:$0xff]
        %v5090 = vld [vmem:[%s6 + $0x198] sm:$0xff]
        %v5091 = vld [vmem:[%s6 + $0x1a0] sm:$0xff]
        %v5092 = vld [vmem:[%s6 + $0x1a8] sm:$0xff]
        %v5093 = vld [vmem:[%s6 + $0x1b0] sm:$0xff]
        %v5094 = vld [vmem:[%s6 + $0x1b8] sm:$0xff]
        %v5095 = vld [vmem:[%s6 + $0x1c0] sm:$0xff]
        %v5096 = vld [vmem:[%s6 + $0x1c8] sm:$0xff]
        %v5097 = vld [vmem:[%s6 + $0x1d0] sm:$0xff]
        %v5098 = vld [vmem:[%s6 + $0x1d8] sm:$0xff]
        %v5099 = vld [vmem:[%s6 + $0x1e0] sm:$0xff]
        %v5100 = vld [vmem:[%s6 + $0x1e8] sm:$0xff]
        %v5101 = vld [vmem:[%s6 + $0x1f0] sm:$0xff]
        %v5102 = vld [vmem:[%s6 + $0x1f8] sm:$0xff]
        %v5103 = vld [vmem:[%s6 + $0x200] sm:$0xff]
        %v5104 = vld [vmem:[%s6 + $0x208] sm:$0xff]
        %v5105 = vld [vmem:[%s6 + $0x210] sm:$0xff]
        %v5106 = vld [vmem:[%s6 + $0x218] sm:$0xff]
        %v5107 = vld [vmem:[%s6 + $0x220] sm:$0xff]
        %v5108 = vld [vmem:[%s6 + $0x228] sm:$0xff]
        %v5109 = vld [vmem:[%s6 + $0x230] sm:$0xff]
        %v5110 = vld [vmem:[%s6 + $0x238] sm:$0xff]
        %v5111 = vld [vmem:[%s6 + $0x240] sm:$0xff]
        %v5112 = vld [vmem:[%s6 + $0x248] sm:$0xff]
        %v5113 = vld [vmem:[%s6 + $0x250] sm:$0xff]
        %v5114 = vld [vmem:[%s6 + $0x258] sm:$0xff]
        %v5115 = vld [vmem:[%s6 + $0x260] sm:$0xff]
        %v5116 = vld [vmem:[%s6 + $0x268] sm:$0xff]
        %v5117 = vld [vmem:[%s6 + $0x270] sm:$0xff]
        %v5118 = vld [vmem:[%s6 + $0x278] sm:$0xff]
        %v5119 = vld [vmem:[%s6 + $0x280] sm:$0xff]
        %v5120 = vld [vmem:[%s6 + $0x288] sm:$0xff]
        %v5121 = vld [vmem:[%s6 + $0x290] sm:$0xff]
        %v5122 = vld [vmem:[%s6 + $0x298] sm:$0xff]
        %v5123 = vld [vmem:[%s6 + $0x2a0] sm:$0xff]
        %v5124 = vld [vmem:[%s6 + $0x2a8] sm:$0xff]
        %v5125 = vld [vmem:[%s6 + $0x2b0] sm:$0xff]
        %v5126 = vld [vmem:[%s6 + $0x2b8] sm:$0xff]
        %v5127 = vld [vmem:[%s6 + $0x2c0] sm:$0xff]
        %v5128 = vld [vmem:[%s6 + $0x2c8] sm:$0xff]
        %v5129 = vld [vmem:[%s6 + $0x2d0] sm:$0xff]
        %v5130 = vld [vmem:[%s6 + $0x2d8] sm:$0xff]
        %v5131 = vld [vmem:[%s6 + $0x2e0] sm:$0xff]
        %v5132 = vld [vmem:[%s6 + $0x2e8] sm:$0xff]
        %v5133 = vld [vmem:[%s6 + $0x2f0] sm:$0xff]
        %v5134 = vld [vmem:[%s6 + $0x2f8] sm:$0xff]
        %v5135 = vld [vmem:[%s6 + $0x300] sm:$0xff]
        %v5136 = vld [vmem:[%s6 + $0x308] sm:$0xff]
        %v5138 = vsel %vm549, %v4988, 0
        %5140 = vmatprep.subr.mxu0 0.0
        %5141 = vmatpush1.msra.mxu0 %v5054
        %5142 = vmatprep.subr.mxu0 0.0
        %5143 = vmatpush1.msra.mxu0 %v5053
        %5144 = vmatprep.subr.mxu0 0.0
        %5145 = vmatpush1.msra.mxu0 %v5052
        %5146 = vmatprep.subr.mxu0 0.0
        %5147 = vmatpush1.msra.mxu0 %v5051
        %5148 = vmatprep.subr.mxu0 0.0
        %5149 = vmatpush1.msra.mxu0 %v5050
        %5150 = vmatprep.subr.mxu0 0.0
        %5151 = vmatpush1.msra.mxu0 %v5049
        %5152 = vmatprep.subr.mxu0 0.0
        %5153 = vmatpush1.msra.mxu0 %v5048
        %5154 = vmatprep.subr.mxu0 0.0
        %5155 = vmatpush1.msra.mxu0 %v5047
        %5156 = vmatprep.subr.mxu0 0.0
        %5157 = vmatpush1.msra.mxu0 %v5046
        %5158 = vmatprep.subr.mxu0 0.0
        %5159 = vmatpush1.msra.mxu0 %v5045
        %5160 = vmatprep.subr.mxu0 0.0
        %5161 = vmatpush1.msra.mxu0 %v5044
        %5162 = vmatprep.subr.mxu0 0.0
        %5163 = vmatpush1.msra.mxu0 %v5043
        %5164 = vmatprep.subr.mxu0 0.0
        %5165 = vmatpush1.msra.mxu0 %v5042
        %5166 = vmatprep.subr.mxu0 0.0
        %5167 = vmatpush1.msra.mxu0 %v5041
        %5168 = vmatprep.subr.mxu0 0.0
        %5169 = vmatpush1.msra.mxu0 %v5040
        %5170 = vmatprep.subr.mxu0 0.0
        %5171 = vmatpush1.msra.mxu0 %v5039
        %5172 = vmatprep.subr.mxu0 0.0
        %5173 = vmatpush2.msra.mxu0 %v5070
        %5174 = vmatprep.subr.mxu0 0.0
        %5175 = vmatpush2.msra.mxu0 %v5069
        %5176 = vmatprep.subr.mxu0 0.0
        %5177 = vmatpush2.msra.mxu0 %v5068
        %5178 = vmatprep.subr.mxu0 0.0
        %5179 = vmatpush2.msra.mxu0 %v5067
        %5180 = vmatprep.subr.mxu0 0.0
        %5181 = vmatpush2.msra.mxu0 %v5066
        %5182 = vmatprep.subr.mxu0 0.0
        %5183 = vmatpush2.msra.mxu0 %v5065
        %5184 = vmatprep.subr.mxu0 0.0
        %5185 = vmatpush2.msra.mxu0 %v5064
        %5186 = vmatprep.subr.mxu0 0.0
        %5187 = vmatpush2.msra.mxu0 %v5063
        %5188 = vmatprep.subr.mxu0 0.0
        %5189 = vmatpush2.msra.mxu0 %v5062
        %5190 = vmatprep.subr.mxu0 0.0
        %5191 = vmatpush2.msra.mxu0 %v5061
        %5192 = vmatprep.subr.mxu0 0.0
        %5193 = vmatpush2.msra.mxu0 %v5060
        %5194 = vmatprep.subr.mxu0 0.0
        %5195 = vmatpush2.msra.mxu0 %v5059
        %5196 = vmatprep.subr.mxu0 0.0
        %5197 = vmatpush2.msra.mxu0 %v5058
        %5198 = vmatprep.subr.mxu0 0.0
        %5199 = vmatpush2.msra.mxu0 %v5057
        %5200 = vmatprep.subr.mxu0 0.0
        %5201 = vmatpush2.msra.mxu0 %v5056
        %5202 = vmatprep.subr.mxu0 0.0
        %5203 = vmatpush2.msra.mxu0 %v5055
        %5204 = vmatprep.mubr.f32.mxu0 %v4983
        %5205 = vmatmul.mubr.f32.gmra.mxu0 %v4982
        %v5206 = vpop.f32.mrf.mxu0
        %v5207 = vadd.f32 0.0, %v5206
        %v5208 = vpop.f32.mrf.mxu0
        %5209 = vdwg.mxu0
        %5210 = vmatprep.subr.mxu0 0.0
        %5211 = vmatpush1.msra.mxu0 %v5086
        %5212 = vmatprep.subr.mxu0 0.0
        %5213 = vmatpush1.msra.mxu0 %v5085
        %5214 = vmatprep.subr.mxu0 0.0
        %5215 = vmatpush1.msra.mxu0 %v5084
        %5216 = vmatprep.subr.mxu0 0.0
        %5217 = vmatpush1.msra.mxu0 %v5083
        %5218 = vmatprep.subr.mxu0 0.0
        %5219 = vmatpush1.msra.mxu0 %v5082
        %5220 = vmatprep.subr.mxu0 0.0
        %5221 = vmatpush1.msra.mxu0 %v5081
        %5222 = vmatprep.subr.mxu0 0.0
        %5223 = vmatpush1.msra.mxu0 %v5080
        %5224 = vmatprep.subr.mxu0 0.0
        %5225 = vmatpush1.msra.mxu0 %v5079
        %5226 = vmatprep.subr.mxu0 0.0
        %5227 = vmatpush1.msra.mxu0 %v5078
        %5228 = vmatprep.subr.mxu0 0.0
        %5229 = vmatpush1.msra.mxu0 %v5077
        %5230 = vmatprep.subr.mxu0 0.0
        %5231 = vmatpush1.msra.mxu0 %v5076
        %5232 = vmatprep.subr.mxu0 0.0
        %5233 = vmatpush1.msra.mxu0 %v5075
        %5234 = vmatprep.subr.mxu0 0.0
        %5235 = vmatpush1.msra.mxu0 %v5074
        %5236 = vmatprep.subr.mxu0 0.0
        %5237 = vmatpush1.msra.mxu0 %v5073
        %5238 = vmatprep.subr.mxu0 0.0
        %5239 = vmatpush1.msra.mxu0 %v5072
        %5240 = vmatprep.subr.mxu0 0.0
        %5241 = vmatpush1.msra.mxu0 %v5071
        %5242 = vmatprep.subr.mxu0 0.0
        %5243 = vmatpush2.msra.mxu0 %v5102
        %5244 = vmatprep.subr.mxu0 0.0
        %5245 = vmatpush2.msra.mxu0 %v5101
        %5246 = vmatprep.subr.mxu0 0.0
        %5247 = vmatpush2.msra.mxu0 %v5100
        %5248 = vmatprep.subr.mxu0 0.0
        %5249 = vmatpush2.msra.mxu0 %v5099
        %5250 = vmatprep.subr.mxu0 0.0
        %5251 = vmatpush2.msra.mxu0 %v5098
        %5252 = vmatprep.subr.mxu0 0.0
        %5253 = vmatpush2.msra.mxu0 %v5097
        %5254 = vmatprep.subr.mxu0 0.0
        %5255 = vmatpush2.msra.mxu0 %v5096
        %5256 = vmatprep.subr.mxu0 0.0
        %5257 = vmatpush2.msra.mxu0 %v5095
        %5258 = vmatprep.subr.mxu0 0.0
        %5259 = vmatpush2.msra.mxu0 %v5094
        %5260 = vmatprep.subr.mxu0 0.0
        %5261 = vmatpush2.msra.mxu0 %v5093
        %5262 = vmatprep.subr.mxu0 0.0
        %5263 = vmatpush2.msra.mxu0 %v5092
        %5264 = vmatprep.subr.mxu0 0.0
        %5265 = vmatpush2.msra.mxu0 %v5091
        %5266 = vmatprep.subr.mxu0 0.0
        %5267 = vmatpush2.msra.mxu0 %v5090
        %5268 = vmatprep.subr.mxu0 0.0
        %5269 = vmatpush2.msra.mxu0 %v5089
        %5270 = vmatprep.subr.mxu0 0.0
        %5271 = vmatpush2.msra.mxu0 %v5088
        %5272 = vmatprep.subr.mxu0 0.0
        %5273 = vmatpush2.msra.mxu0 %v5087
        %5274 = vmatprep.mubr.f32.mxu0 %v4985
        %5275 = vmatmul.mubr.f32.gmra.mxu0 %v4984
        %v5276 = vpop.f32.mrf.mxu0
        %v5277 = vadd.f32 %v5207, %v5276
        %v5278 = vpop.f32.mrf.mxu0
        %5279 = vdwg.mxu0
        %5280 = vmatprep.subr.mxu0 0.0
        %5281 = vmatpush1.msra.mxu0 %v5118
        %5282 = vmatprep.subr.mxu0 0.0
        %5283 = vmatpush1.msra.mxu0 %v5117
        %5284 = vmatprep.subr.mxu0 0.0
        %5285 = vmatpush1.msra.mxu0 %v5116
        %5286 = vmatprep.subr.mxu0 0.0
        %5287 = vmatpush1.msra.mxu0 %v5115
        %5288 = vmatprep.subr.mxu0 0.0
        %5289 = vmatpush1.msra.mxu0 %v5114
        %5290 = vmatprep.subr.mxu0 0.0
        %5291 = vmatpush1.msra.mxu0 %v5113
        %5292 = vmatprep.subr.mxu0 0.0
        %5293 = vmatpush1.msra.mxu0 %v5112
        %5294 = vmatprep.subr.mxu0 0.0
        %5295 = vmatpush1.msra.mxu0 %v5111
        %5296 = vmatprep.subr.mxu0 0.0
        %5297 = vmatpush1.msra.mxu0 %v5110
        %5298 = vmatprep.subr.mxu0 0.0
        %5299 = vmatpush1.msra.mxu0 %v5109
        %5300 = vmatprep.subr.mxu0 0.0
        %5301 = vmatpush1.msra.mxu0 %v5108
        %5302 = vmatprep.subr.mxu0 0.0
        %5303 = vmatpush1.msra.mxu0 %v5107
        %5304 = vmatprep.subr.mxu0 0.0
        %5305 = vmatpush1.msra.mxu0 %v5106
        %5306 = vmatprep.subr.mxu0 0.0
        %5307 = vmatpush1.msra.mxu0 %v5105
        %5308 = vmatprep.subr.mxu0 0.0
        %5309 = vmatpush1.msra.mxu0 %v5104
        %5310 = vmatprep.subr.mxu0 0.0
        %5311 = vmatpush1.msra.mxu0 %v5103
        %5312 = vmatprep.subr.mxu0 0.0
        %5313 = vmatpush2.msra.mxu0 %v5134
        %5314 = vmatprep.subr.mxu0 0.0
        %5315 = vmatpush2.msra.mxu0 %v5133
        %5316 = vmatprep.subr.mxu0 0.0
        %5317 = vmatpush2.msra.mxu0 %v5132
        %5318 = vmatprep.subr.mxu0 0.0
        %5319 = vmatpush2.msra.mxu0 %v5131
        %5320 = vmatprep.subr.mxu0 0.0
        %5321 = vmatpush2.msra.mxu0 %v5130
        %5322 = vmatprep.subr.mxu0 0.0
        %5323 = vmatpush2.msra.mxu0 %v5129
        %5324 = vmatprep.subr.mxu0 0.0
        %5325 = vmatpush2.msra.mxu0 %v5128
        %5326 = vmatprep.subr.mxu0 0.0
        %5327 = vmatpush2.msra.mxu0 %v5127
        %5328 = vmatprep.subr.mxu0 0.0
        %5329 = vmatpush2.msra.mxu0 %v5126
        %5330 = vmatprep.subr.mxu0 0.0
        %5331 = vmatpush2.msra.mxu0 %v5125
        %5332 = vmatprep.subr.mxu0 0.0
        %5333 = vmatpush2.msra.mxu0 %v5124
        %5334 = vmatprep.subr.mxu0 0.0
        %5335 = vmatpush2.msra.mxu0 %v5123
        %5336 = vmatprep.subr.mxu0 0.0
        %5337 = vmatpush2.msra.mxu0 %v5122
        %5338 = vmatprep.subr.mxu0 0.0
        %5339 = vmatpush2.msra.mxu0 %v5121
        %5340 = vmatprep.subr.mxu0 0.0
        %5341 = vmatpush2.msra.mxu0 %v5120
        %5342 = vmatprep.subr.mxu0 0.0
        %5343 = vmatpush2.msra.mxu0 %v5119
        %5344 = vmatprep.mubr.f32.mxu0 %v4987
        %5345 = vmatmul.mubr.f32.gmra.mxu0 %v4986
        %v5346 = vpop.f32.mrf.mxu0
        %v5347 = vadd.f32 %v5277, %v5346
        %v5348 = vpop.f32.mrf.mxu0
        %5349 = vdwg.mxu0
        %5350 = vmatprep.subr.mxu0 0.0
        %5351 = vmatpush1.msra.mxu0 0.0
        %5352 = vmatprep.subr.mxu0 0.0
        %5353 = vmatpush1.msra.mxu0 0.0
        %5354 = vmatprep.subr.mxu0 0.0
        %5355 = vmatpush1.msra.mxu0 0.0
        %5356 = vmatprep.subr.mxu0 0.0
        %5357 = vmatpush1.msra.mxu0 0.0
        %5358 = vmatprep.subr.mxu0 0.0
        %5359 = vmatpush1.msra.mxu0 0.0
        %5360 = vmatprep.subr.mxu0 0.0
        %5361 = vmatpush1.msra.mxu0 0.0
        %5362 = vmatprep.subr.mxu0 0.0
        %5363 = vmatpush1.msra.mxu0 0.0
        %5364 = vmatprep.subr.mxu0 0.0
        %5365 = vmatpush1.msra.mxu0 0.0
        %5366 = vmatprep.subr.mxu0 0.0
        %5367 = vmatpush1.msra.mxu0 0.0
        %5368 = vmatprep.subr.mxu0 0.0
        %5369 = vmatpush1.msra.mxu0 0.0
        %5370 = vmatprep.subr.mxu0 0.0
        %5371 = vmatpush1.msra.mxu0 0.0
        %5372 = vmatprep.subr.mxu0 0.0
        %5373 = vmatpush1.msra.mxu0 0.0
        %5374 = vmatprep.subr.mxu0 0.0
        %5375 = vmatpush1.msra.mxu0 0.0
        %5376 = vmatprep.subr.mxu0 0.0
        %5377 = vmatpush1.msra.mxu0 0.0
        %5378 = vmatprep.subr.mxu0 0.0
        %5379 = vmatpush1.msra.mxu0 %v5136
        %5380 = vmatprep.subr.mxu0 0.0
        %5381 = vmatpush1.msra.mxu0 %v5135
        %5382 = vmatprep.subr.mxu0 0.0
        %5383 = vmatpush2.msra.mxu0 0.0
        %5384 = vmatprep.subr.mxu0 0.0
        %5385 = vmatpush2.msra.mxu0 0.0
        %5386 = vmatprep.subr.mxu0 0.0
        %5387 = vmatpush2.msra.mxu0 0.0
        %5388 = vmatprep.subr.mxu0 0.0
        %5389 = vmatpush2.msra.mxu0 0.0
        %5390 = vmatprep.subr.mxu0 0.0
        %5391 = vmatpush2.msra.mxu0 0.0
        %5392 = vmatprep.subr.mxu0 0.0
        %5393 = vmatpush2.msra.mxu0 0.0
        %5394 = vmatprep.subr.mxu0 0.0
        %5395 = vmatpush2.msra.mxu0 0.0
        %5396 = vmatprep.subr.mxu0 0.0
        %5397 = vmatpush2.msra.mxu0 0.0
        %5398 = vmatprep.subr.mxu0 0.0
        %5399 = vmatpush2.msra.mxu0 0.0
        %5400 = vmatprep.subr.mxu0 0.0
        %5401 = vmatpush2.msra.mxu0 0.0
        %5402 = vmatprep.subr.mxu0 0.0
        %5403 = vmatpush2.msra.mxu0 0.0
        %5404 = vmatprep.subr.mxu0 0.0
        %5405 = vmatpush2.msra.mxu0 0.0
        %5406 = vmatprep.subr.mxu0 0.0
        %5407 = vmatpush2.msra.mxu0 0.0
        %5408 = vmatprep.subr.mxu0 0.0
        %5409 = vmatpush2.msra.mxu0 0.0
        %5410 = vmatprep.subr.mxu0 0.0
        %5411 = vmatpush2.msra.mxu0 0.0
        %5412 = vmatprep.subr.mxu0 0.0
        %5413 = vmatpush2.msra.mxu0 0.0
        %5414 = vmatprep.mubr.f32.mxu0 0.0
        %5415 = vmatmul.mubr.f32.gmra.mxu0 %v5138
        %v5416 = vpop.f32.mrf.mxu0
        %v5417 = vadd.f32 %v5347, %v5416
        %v5418 = vpop.f32.mrf.mxu0
        %5419 = vdwg.mxu0
        %v5421 = vlaneseq
        %v5422 = vshrl.u32 %v5421, 7
        %v5423 = vsub.s32 0, %v5422
        %v5424 = vrot.slane %v5038, %v5423
        %v5426 = vadd.f32 %v5424, %v5417
        %s5427 = scalar_lea.vmem %s6, 784
        %v5428 = vld [vmem:[%s5427] sm:$0xff]
        %v5429 = vld [vmem:[%s5427 + $0x8] sm:$0xff]
        %v5430 = vld [vmem:[%s5427 + $0x10] sm:$0xff]
        %v5431 = vld [vmem:[%s5427 + $0x18] sm:$0xff]
        %v5432 = vld [vmem:[%s5427 + $0x20] sm:$0xff]
        %v5433 = vld [vmem:[%s5427 + $0x28] sm:$0xff]
        %v5434 = vld [vmem:[%s5427 + $0x30] sm:$0xff]
        %v5435 = vld [vmem:[%s5427 + $0x38] sm:$0xff]
        %v5436 = vld [vmem:[%s5427 + $0x40] sm:$0xff]
        %v5437 = vld [vmem:[%s5427 + $0x48] sm:$0xff]
        %v5438 = vld [vmem:[%s5427 + $0x50] sm:$0xff]
        %v5439 = vld [vmem:[%s5427 + $0x58] sm:$0xff]
        %v5440 = vld [vmem:[%s5427 + $0x60] sm:$0xff]
        %v5441 = vld [vmem:[%s5427 + $0x68] sm:$0xff]
        %v5442 = vld [vmem:[%s5427 + $0x70] sm:$0xff]
        %v5443 = vld [vmem:[%s5427 + $0x78] sm:$0xff]
        %v5444 = vld [vmem:[%s5427 + $0x80] sm:$0xff]
        %v5445 = vld [vmem:[%s5427 + $0x88] sm:$0xff]
        %v5446 = vld [vmem:[%s5427 + $0x90] sm:$0xff]
        %v5447 = vld [vmem:[%s5427 + $0x98] sm:$0xff]
        %v5448 = vld [vmem:[%s5427 + $0xa0] sm:$0xff]
        %v5449 = vld [vmem:[%s5427 + $0xa8] sm:$0xff]
        %v5450 = vld [vmem:[%s5427 + $0xb0] sm:$0xff]
        %v5451 = vld [vmem:[%s5427 + $0xb8] sm:$0xff]
        %v5452 = vld [vmem:[%s5427 + $0xc0] sm:$0xff]
        %v5453 = vld [vmem:[%s5427 + $0xc8] sm:$0xff]
        %v5454 = vld [vmem:[%s5427 + $0xd0] sm:$0xff]
        %v5455 = vld [vmem:[%s5427 + $0xd8] sm:$0xff]
        %v5456 = vld [vmem:[%s5427 + $0xe0] sm:$0xff]
        %v5457 = vld [vmem:[%s5427 + $0xe8] sm:$0xff]
        %v5458 = vld [vmem:[%s5427 + $0xf0] sm:$0xff]
        %v5459 = vld [vmem:[%s5427 + $0xf8] sm:$0xff]
        %v5460 = vld [vmem:[%s5427 + $0x100] sm:$0xff]
        %v5461 = vld [vmem:[%s5427 + $0x108] sm:$0xff]
        %v5462 = vld [vmem:[%s5427 + $0x110] sm:$0xff]
        %v5463 = vld [vmem:[%s5427 + $0x118] sm:$0xff]
        %v5464 = vld [vmem:[%s5427 + $0x120] sm:$0xff]
        %v5465 = vld [vmem:[%s5427 + $0x128] sm:$0xff]
        %v5466 = vld [vmem:[%s5427 + $0x130] sm:$0xff]
        %v5467 = vld [vmem:[%s5427 + $0x138] sm:$0xff]
        %v5468 = vld [vmem:[%s5427 + $0x140] sm:$0xff]
        %v5469 = vld [vmem:[%s5427 + $0x148] sm:$0xff]
        %v5470 = vld [vmem:[%s5427 + $0x150] sm:$0xff]
        %v5471 = vld [vmem:[%s5427 + $0x158] sm:$0xff]
        %v5472 = vld [vmem:[%s5427 + $0x160] sm:$0xff]
        %v5473 = vld [vmem:[%s5427 + $0x168] sm:$0xff]
        %v5474 = vld [vmem:[%s5427 + $0x170] sm:$0xff]
        %v5475 = vld [vmem:[%s5427 + $0x178] sm:$0xff]
        %v5476 = vld [vmem:[%s5427 + $0x180] sm:$0xff]
        %v5477 = vld [vmem:[%s5427 + $0x188] sm:$0xff]
        %v5478 = vld [vmem:[%s5427 + $0x190] sm:$0xff]
        %v5479 = vld [vmem:[%s5427 + $0x198] sm:$0xff]
        %v5480 = vld [vmem:[%s5427 + $0x1a0] sm:$0xff]
        %v5481 = vld [vmem:[%s5427 + $0x1a8] sm:$0xff]
        %v5482 = vld [vmem:[%s5427 + $0x1b0] sm:$0xff]
        %v5483 = vld [vmem:[%s5427 + $0x1b8] sm:$0xff]
        %v5484 = vld [vmem:[%s5427 + $0x1c0] sm:$0xff]
        %v5485 = vld [vmem:[%s5427 + $0x1c8] sm:$0xff]
        %v5486 = vld [vmem:[%s5427 + $0x1d0] sm:$0xff]
        %v5487 = vld [vmem:[%s5427 + $0x1d8] sm:$0xff]
        %v5488 = vld [vmem:[%s5427 + $0x1e0] sm:$0xff]
        %v5489 = vld [vmem:[%s5427 + $0x1e8] sm:$0xff]
        %v5490 = vld [vmem:[%s5427 + $0x1f0] sm:$0xff]
        %v5491 = vld [vmem:[%s5427 + $0x1f8] sm:$0xff]
        %v5492 = vld [vmem:[%s5427 + $0x200] sm:$0xff]
        %v5493 = vld [vmem:[%s5427 + $0x208] sm:$0xff]
        %v5494 = vld [vmem:[%s5427 + $0x210] sm:$0xff]
        %v5495 = vld [vmem:[%s5427 + $0x218] sm:$0xff]
        %v5496 = vld [vmem:[%s5427 + $0x220] sm:$0xff]
        %v5497 = vld [vmem:[%s5427 + $0x228] sm:$0xff]
        %v5498 = vld [vmem:[%s5427 + $0x230] sm:$0xff]
        %v5499 = vld [vmem:[%s5427 + $0x238] sm:$0xff]
        %v5500 = vld [vmem:[%s5427 + $0x240] sm:$0xff]
        %v5501 = vld [vmem:[%s5427 + $0x248] sm:$0xff]
        %v5502 = vld [vmem:[%s5427 + $0x250] sm:$0xff]
        %v5503 = vld [vmem:[%s5427 + $0x258] sm:$0xff]
        %v5504 = vld [vmem:[%s5427 + $0x260] sm:$0xff]
        %v5505 = vld [vmem:[%s5427 + $0x268] sm:$0xff]
        %v5506 = vld [vmem:[%s5427 + $0x270] sm:$0xff]
        %v5507 = vld [vmem:[%s5427 + $0x278] sm:$0xff]
        %v5508 = vld [vmem:[%s5427 + $0x280] sm:$0xff]
        %v5509 = vld [vmem:[%s5427 + $0x288] sm:$0xff]
        %v5510 = vld [vmem:[%s5427 + $0x290] sm:$0xff]
        %v5511 = vld [vmem:[%s5427 + $0x298] sm:$0xff]
        %v5512 = vld [vmem:[%s5427 + $0x2a0] sm:$0xff]
        %v5513 = vld [vmem:[%s5427 + $0x2a8] sm:$0xff]
        %v5514 = vld [vmem:[%s5427 + $0x2b0] sm:$0xff]
        %v5515 = vld [vmem:[%s5427 + $0x2b8] sm:$0xff]
        %v5516 = vld [vmem:[%s5427 + $0x2c0] sm:$0xff]
        %v5517 = vld [vmem:[%s5427 + $0x2c8] sm:$0xff]
        %v5518 = vld [vmem:[%s5427 + $0x2d0] sm:$0xff]
        %v5519 = vld [vmem:[%s5427 + $0x2d8] sm:$0xff]
        %v5520 = vld [vmem:[%s5427 + $0x2e0] sm:$0xff]
        %v5521 = vld [vmem:[%s5427 + $0x2e8] sm:$0xff]
        %v5522 = vld [vmem:[%s5427 + $0x2f0] sm:$0xff]
        %v5523 = vld [vmem:[%s5427 + $0x2f8] sm:$0xff]
        %v5524 = vld [vmem:[%s5427 + $0x300] sm:$0xff]
        %v5525 = vld [vmem:[%s5427 + $0x308] sm:$0xff]
        %v5527 = vsel %vm549, %v4995, 0
        %5529 = vmatprep.subr.mxu0 0.0
        %5530 = vmatpush1.msra.mxu0 %v5443
        %5531 = vmatprep.subr.mxu0 0.0
        %5532 = vmatpush1.msra.mxu0 %v5442
        %5533 = vmatprep.subr.mxu0 0.0
        %5534 = vmatpush1.msra.mxu0 %v5441
        %5535 = vmatprep.subr.mxu0 0.0
        %5536 = vmatpush1.msra.mxu0 %v5440
        %5537 = vmatprep.subr.mxu0 0.0
        %5538 = vmatpush1.msra.mxu0 %v5439
        %5539 = vmatprep.subr.mxu0 0.0
        %5540 = vmatpush1.msra.mxu0 %v5438
        %5541 = vmatprep.subr.mxu0 0.0
        %5542 = vmatpush1.msra.mxu0 %v5437
        %5543 = vmatprep.subr.mxu0 0.0
        %5544 = vmatpush1.msra.mxu0 %v5436
        %5545 = vmatprep.subr.mxu0 0.0
        %5546 = vmatpush1.msra.mxu0 %v5435
        %5547 = vmatprep.subr.mxu0 0.0
        %5548 = vmatpush1.msra.mxu0 %v5434
        %5549 = vmatprep.subr.mxu0 0.0
        %5550 = vmatpush1.msra.mxu0 %v5433
        %5551 = vmatprep.subr.mxu0 0.0
        %5552 = vmatpush1.msra.mxu0 %v5432
        %5553 = vmatprep.subr.mxu0 0.0
        %5554 = vmatpush1.msra.mxu0 %v5431
        %5555 = vmatprep.subr.mxu0 0.0
        %5556 = vmatpush1.msra.mxu0 %v5430
        %5557 = vmatprep.subr.mxu0 0.0
        %5558 = vmatpush1.msra.mxu0 %v5429
        %5559 = vmatprep.subr.mxu0 0.0
        %5560 = vmatpush1.msra.mxu0 %v5428
        %5561 = vmatprep.subr.mxu0 0.0
        %5562 = vmatpush2.msra.mxu0 %v5459
        %5563 = vmatprep.subr.mxu0 0.0
        %5564 = vmatpush2.msra.mxu0 %v5458
        %5565 = vmatprep.subr.mxu0 0.0
        %5566 = vmatpush2.msra.mxu0 %v5457
        %5567 = vmatprep.subr.mxu0 0.0
        %5568 = vmatpush2.msra.mxu0 %v5456
        %5569 = vmatprep.subr.mxu0 0.0
        %5570 = vmatpush2.msra.mxu0 %v5455
        %5571 = vmatprep.subr.mxu0 0.0
        %5572 = vmatpush2.msra.mxu0 %v5454
        %5573 = vmatprep.subr.mxu0 0.0
        %5574 = vmatpush2.msra.mxu0 %v5453
        %5575 = vmatprep.subr.mxu0 0.0
        %5576 = vmatpush2.msra.mxu0 %v5452
        %5577 = vmatprep.subr.mxu0 0.0
        %5578 = vmatpush2.msra.mxu0 %v5451
        %5579 = vmatprep.subr.mxu0 0.0
        %5580 = vmatpush2.msra.mxu0 %v5450
        %5581 = vmatprep.subr.mxu0 0.0
        %5582 = vmatpush2.msra.mxu0 %v5449
        %5583 = vmatprep.subr.mxu0 0.0
        %5584 = vmatpush2.msra.mxu0 %v5448
        %5585 = vmatprep.subr.mxu0 0.0
        %5586 = vmatpush2.msra.mxu0 %v5447
        %5587 = vmatprep.subr.mxu0 0.0
        %5588 = vmatpush2.msra.mxu0 %v5446
        %5589 = vmatprep.subr.mxu0 0.0
        %5590 = vmatpush2.msra.mxu0 %v5445
        %5591 = vmatprep.subr.mxu0 0.0
        %5592 = vmatpush2.msra.mxu0 %v5444
        %5593 = vmatprep.mubr.f32.mxu0 %v4990
        %5594 = vmatmul.mubr.f32.gmra.mxu0 %v4989
        %v5595 = vpop.f32.mrf.mxu0
        %v5596 = vadd.f32 0.0, %v5595
        %v5597 = vpop.f32.mrf.mxu0
        %5598 = vdwg.mxu0
        %5599 = vmatprep.subr.mxu0 0.0
        %5600 = vmatpush1.msra.mxu0 %v5475
        %5601 = vmatprep.subr.mxu0 0.0
        %5602 = vmatpush1.msra.mxu0 %v5474
        %5603 = vmatprep.subr.mxu0 0.0
        %5604 = vmatpush1.msra.mxu0 %v5473
        %5605 = vmatprep.subr.mxu0 0.0
        %5606 = vmatpush1.msra.mxu0 %v5472
        %5607 = vmatprep.subr.mxu0 0.0
        %5608 = vmatpush1.msra.mxu0 %v5471
        %5609 = vmatprep.subr.mxu0 0.0
        %5610 = vmatpush1.msra.mxu0 %v5470
        %5611 = vmatprep.subr.mxu0 0.0
        %5612 = vmatpush1.msra.mxu0 %v5469
        %5613 = vmatprep.subr.mxu0 0.0
        %5614 = vmatpush1.msra.mxu0 %v5468
        %5615 = vmatprep.subr.mxu0 0.0
        %5616 = vmatpush1.msra.mxu0 %v5467
        %5617 = vmatprep.subr.mxu0 0.0
        %5618 = vmatpush1.msra.mxu0 %v5466
        %5619 = vmatprep.subr.mxu0 0.0
        %5620 = vmatpush1.msra.mxu0 %v5465
        %5621 = vmatprep.subr.mxu0 0.0
        %5622 = vmatpush1.msra.mxu0 %v5464
        %5623 = vmatprep.subr.mxu0 0.0
        %5624 = vmatpush1.msra.mxu0 %v5463
        %5625 = vmatprep.subr.mxu0 0.0
        %5626 = vmatpush1.msra.mxu0 %v5462
        %5627 = vmatprep.subr.mxu0 0.0
        %5628 = vmatpush1.msra.mxu0 %v5461
        %5629 = vmatprep.subr.mxu0 0.0
        %5630 = vmatpush1.msra.mxu0 %v5460
        %5631 = vmatprep.subr.mxu0 0.0
        %5632 = vmatpush2.msra.mxu0 %v5491
        %5633 = vmatprep.subr.mxu0 0.0
        %5634 = vmatpush2.msra.mxu0 %v5490
        %5635 = vmatprep.subr.mxu0 0.0
        %5636 = vmatpush2.msra.mxu0 %v5489
        %5637 = vmatprep.subr.mxu0 0.0
        %5638 = vmatpush2.msra.mxu0 %v5488
        %5639 = vmatprep.subr.mxu0 0.0
        %5640 = vmatpush2.msra.mxu0 %v5487
        %5641 = vmatprep.subr.mxu0 0.0
        %5642 = vmatpush2.msra.mxu0 %v5486
        %5643 = vmatprep.subr.mxu0 0.0
        %5644 = vmatpush2.msra.mxu0 %v5485
        %5645 = vmatprep.subr.mxu0 0.0
        %5646 = vmatpush2.msra.mxu0 %v5484
        %5647 = vmatprep.subr.mxu0 0.0
        %5648 = vmatpush2.msra.mxu0 %v5483
        %5649 = vmatprep.subr.mxu0 0.0
        %5650 = vmatpush2.msra.mxu0 %v5482
        %5651 = vmatprep.subr.mxu0 0.0
        %5652 = vmatpush2.msra.mxu0 %v5481
        %5653 = vmatprep.subr.mxu0 0.0
        %5654 = vmatpush2.msra.mxu0 %v5480
        %5655 = vmatprep.subr.mxu0 0.0
        %5656 = vmatpush2.msra.mxu0 %v5479
        %5657 = vmatprep.subr.mxu0 0.0
        %5658 = vmatpush2.msra.mxu0 %v5478
        %5659 = vmatprep.subr.mxu0 0.0
        %5660 = vmatpush2.msra.mxu0 %v5477
        %5661 = vmatprep.subr.mxu0 0.0
        %5662 = vmatpush2.msra.mxu0 %v5476
        %5663 = vmatprep.mubr.f32.mxu0 %v4992
        %5664 = vmatmul.mubr.f32.gmra.mxu0 %v4991
        %v5665 = vpop.f32.mrf.mxu0
        %v5666 = vadd.f32 %v5596, %v5665
        %v5667 = vpop.f32.mrf.mxu0
        %5668 = vdwg.mxu0
        %5669 = vmatprep.subr.mxu0 0.0
        %5670 = vmatpush1.msra.mxu0 %v5507
        %5671 = vmatprep.subr.mxu0 0.0
        %5672 = vmatpush1.msra.mxu0 %v5506
        %5673 = vmatprep.subr.mxu0 0.0
        %5674 = vmatpush1.msra.mxu0 %v5505
        %5675 = vmatprep.subr.mxu0 0.0
        %5676 = vmatpush1.msra.mxu0 %v5504
        %5677 = vmatprep.subr.mxu0 0.0
        %5678 = vmatpush1.msra.mxu0 %v5503
        %5679 = vmatprep.subr.mxu0 0.0
        %5680 = vmatpush1.msra.mxu0 %v5502
        %5681 = vmatprep.subr.mxu0 0.0
        %5682 = vmatpush1.msra.mxu0 %v5501
        %5683 = vmatprep.subr.mxu0 0.0
        %5684 = vmatpush1.msra.mxu0 %v5500
        %5685 = vmatprep.subr.mxu0 0.0
        %5686 = vmatpush1.msra.mxu0 %v5499
        %5687 = vmatprep.subr.mxu0 0.0
        %5688 = vmatpush1.msra.mxu0 %v5498
        %5689 = vmatprep.subr.mxu0 0.0
        %5690 = vmatpush1.msra.mxu0 %v5497
        %5691 = vmatprep.subr.mxu0 0.0
        %5692 = vmatpush1.msra.mxu0 %v5496
        %5693 = vmatprep.subr.mxu0 0.0
        %5694 = vmatpush1.msra.mxu0 %v5495
        %5695 = vmatprep.subr.mxu0 0.0
        %5696 = vmatpush1.msra.mxu0 %v5494
        %5697 = vmatprep.subr.mxu0 0.0
        %5698 = vmatpush1.msra.mxu0 %v5493
        %5699 = vmatprep.subr.mxu0 0.0
        %5700 = vmatpush1.msra.mxu0 %v5492
        %5701 = vmatprep.subr.mxu0 0.0
        %5702 = vmatpush2.msra.mxu0 %v5523
        %5703 = vmatprep.subr.mxu0 0.0
        %5704 = vmatpush2.msra.mxu0 %v5522
        %5705 = vmatprep.subr.mxu0 0.0
        %5706 = vmatpush2.msra.mxu0 %v5521
        %5707 = vmatprep.subr.mxu0 0.0
        %5708 = vmatpush2.msra.mxu0 %v5520
        %5709 = vmatprep.subr.mxu0 0.0
        %5710 = vmatpush2.msra.mxu0 %v5519
        %5711 = vmatprep.subr.mxu0 0.0
        %5712 = vmatpush2.msra.mxu0 %v5518
        %5713 = vmatprep.subr.mxu0 0.0
        %5714 = vmatpush2.msra.mxu0 %v5517
        %5715 = vmatprep.subr.mxu0 0.0
        %5716 = vmatpush2.msra.mxu0 %v5516
        %5717 = vmatprep.subr.mxu0 0.0
        %5718 = vmatpush2.msra.mxu0 %v5515
        %5719 = vmatprep.subr.mxu0 0.0
        %5720 = vmatpush2.msra.mxu0 %v5514
        %5721 = vmatprep.subr.mxu0 0.0
        %5722 = vmatpush2.msra.mxu0 %v5513
        %5723 = vmatprep.subr.mxu0 0.0
        %5724 = vmatpush2.msra.mxu0 %v5512
        %5725 = vmatprep.subr.mxu0 0.0
        %5726 = vmatpush2.msra.mxu0 %v5511
        %5727 = vmatprep.subr.mxu0 0.0
        %5728 = vmatpush2.msra.mxu0 %v5510
        %5729 = vmatprep.subr.mxu0 0.0
        %5730 = vmatpush2.msra.mxu0 %v5509
        %5731 = vmatprep.subr.mxu0 0.0
        %5732 = vmatpush2.msra.mxu0 %v5508
        %5733 = vmatprep.mubr.f32.mxu0 %v4994
        %5734 = vmatmul.mubr.f32.gmra.mxu0 %v4993
        %v5735 = vpop.f32.mrf.mxu0
        %v5736 = vadd.f32 %v5666, %v5735
        %v5737 = vpop.f32.mrf.mxu0
        %5738 = vdwg.mxu0
        %5739 = vmatprep.subr.mxu0 0.0
        %5740 = vmatpush1.msra.mxu0 0.0
        %5741 = vmatprep.subr.mxu0 0.0
        %5742 = vmatpush1.msra.mxu0 0.0
        %5743 = vmatprep.subr.mxu0 0.0
        %5744 = vmatpush1.msra.mxu0 0.0
        %5745 = vmatprep.subr.mxu0 0.0
        %5746 = vmatpush1.msra.mxu0 0.0
        %5747 = vmatprep.subr.mxu0 0.0
        %5748 = vmatpush1.msra.mxu0 0.0
        %5749 = vmatprep.subr.mxu0 0.0
        %5750 = vmatpush1.msra.mxu0 0.0
        %5751 = vmatprep.subr.mxu0 0.0
        %5752 = vmatpush1.msra.mxu0 0.0
        %5753 = vmatprep.subr.mxu0 0.0
        %5754 = vmatpush1.msra.mxu0 0.0
        %5755 = vmatprep.subr.mxu0 0.0
        %5756 = vmatpush1.msra.mxu0 0.0
        %5757 = vmatprep.subr.mxu0 0.0
        %5758 = vmatpush1.msra.mxu0 0.0
        %5759 = vmatprep.subr.mxu0 0.0
        %5760 = vmatpush1.msra.mxu0 0.0
        %5761 = vmatprep.subr.mxu0 0.0
        %5762 = vmatpush1.msra.mxu0 0.0
        %5763 = vmatprep.subr.mxu0 0.0
        %5764 = vmatpush1.msra.mxu0 0.0
        %5765 = vmatprep.subr.mxu0 0.0
        %5766 = vmatpush1.msra.mxu0 0.0
        %5767 = vmatprep.subr.mxu0 0.0
        %5768 = vmatpush1.msra.mxu0 %v5525
        %5769 = vmatprep.subr.mxu0 0.0
        %5770 = vmatpush1.msra.mxu0 %v5524
        %5771 = vmatprep.subr.mxu0 0.0
        %5772 = vmatpush2.msra.mxu0 0.0
        %5773 = vmatprep.subr.mxu0 0.0
        %5774 = vmatpush2.msra.mxu0 0.0
        %5775 = vmatprep.subr.mxu0 0.0
        %5776 = vmatpush2.msra.mxu0 0.0
        %5777 = vmatprep.subr.mxu0 0.0
        %5778 = vmatpush2.msra.mxu0 0.0
        %5779 = vmatprep.subr.mxu0 0.0
        %5780 = vmatpush2.msra.mxu0 0.0
        %5781 = vmatprep.subr.mxu0 0.0
        %5782 = vmatpush2.msra.mxu0 0.0
        %5783 = vmatprep.subr.mxu0 0.0
        %5784 = vmatpush2.msra.mxu0 0.0
        %5785 = vmatprep.subr.mxu0 0.0
        %5786 = vmatpush2.msra.mxu0 0.0
        %5787 = vmatprep.subr.mxu0 0.0
        %5788 = vmatpush2.msra.mxu0 0.0
        %5789 = vmatprep.subr.mxu0 0.0
        %5790 = vmatpush2.msra.mxu0 0.0
        %5791 = vmatprep.subr.mxu0 0.0
        %5792 = vmatpush2.msra.mxu0 0.0
        %5793 = vmatprep.subr.mxu0 0.0
        %5794 = vmatpush2.msra.mxu0 0.0
        %5795 = vmatprep.subr.mxu0 0.0
        %5796 = vmatpush2.msra.mxu0 0.0
        %5797 = vmatprep.subr.mxu0 0.0
        %5798 = vmatpush2.msra.mxu0 0.0
        %5799 = vmatprep.subr.mxu0 0.0
        %5800 = vmatpush2.msra.mxu0 0.0
        %5801 = vmatprep.subr.mxu0 0.0
        %5802 = vmatpush2.msra.mxu0 0.0
        %5803 = vmatprep.mubr.f32.mxu0 0.0
        %5804 = vmatmul.mubr.f32.gmra.mxu0 %v5527
        %v5805 = vpop.f32.mrf.mxu0
        %v5806 = vadd.f32 %v5736, %v5805
        %v5807 = vpop.f32.mrf.mxu0
        %5808 = vdwg.mxu0
        %v5809 = vadd.f32 %v5426, %v5806
        %s5810 = scalar_lea.vmem %s6, 1568
        %v5811 = vld [vmem:[%s5810] sm:$0xff]
        %v5812 = vld [vmem:[%s5810 + $0x8] sm:$0xff]
        %v5813 = vld [vmem:[%s5810 + $0x10] sm:$0xff]
        %v5814 = vld [vmem:[%s5810 + $0x18] sm:$0xff]
        %v5815 = vld [vmem:[%s5810 + $0x20] sm:$0xff]
        %v5816 = vld [vmem:[%s5810 + $0x28] sm:$0xff]
        %v5817 = vld [vmem:[%s5810 + $0x30] sm:$0xff]
        %v5818 = vld [vmem:[%s5810 + $0x38] sm:$0xff]
        %v5819 = vld [vmem:[%s5810 + $0x40] sm:$0xff]
        %v5820 = vld [vmem:[%s5810 + $0x48] sm:$0xff]
        %v5821 = vld [vmem:[%s5810 + $0x50] sm:$0xff]
        %v5822 = vld [vmem:[%s5810 + $0x58] sm:$0xff]
        %v5823 = vld [vmem:[%s5810 + $0x60] sm:$0xff]
        %v5824 = vld [vmem:[%s5810 + $0x68] sm:$0xff]
        %v5825 = vld [vmem:[%s5810 + $0x70] sm:$0xff]
        %v5826 = vld [vmem:[%s5810 + $0x78] sm:$0xff]
        %v5827 = vld [vmem:[%s5810 + $0x80] sm:$0xff]
        %v5828 = vld [vmem:[%s5810 + $0x88] sm:$0xff]
        %v5829 = vld [vmem:[%s5810 + $0x90] sm:$0xff]
        %v5830 = vld [vmem:[%s5810 + $0x98] sm:$0xff]
        %v5831 = vld [vmem:[%s5810 + $0xa0] sm:$0xff]
        %v5832 = vld [vmem:[%s5810 + $0xa8] sm:$0xff]
        %v5833 = vld [vmem:[%s5810 + $0xb0] sm:$0xff]
        %v5834 = vld [vmem:[%s5810 + $0xb8] sm:$0xff]
        %v5835 = vld [vmem:[%s5810 + $0xc0] sm:$0xff]
        %v5836 = vld [vmem:[%s5810 + $0xc8] sm:$0xff]
        %v5837 = vld [vmem:[%s5810 + $0xd0] sm:$0xff]
        %v5838 = vld [vmem:[%s5810 + $0xd8] sm:$0xff]
        %v5839 = vld [vmem:[%s5810 + $0xe0] sm:$0xff]
        %v5840 = vld [vmem:[%s5810 + $0xe8] sm:$0xff]
        %v5841 = vld [vmem:[%s5810 + $0xf0] sm:$0xff]
        %v5842 = vld [vmem:[%s5810 + $0xf8] sm:$0xff]
        %v5843 = vld [vmem:[%s5810 + $0x100] sm:$0xff]
        %v5844 = vld [vmem:[%s5810 + $0x108] sm:$0xff]
        %v5845 = vld [vmem:[%s5810 + $0x110] sm:$0xff]
        %v5846 = vld [vmem:[%s5810 + $0x118] sm:$0xff]
        %v5847 = vld [vmem:[%s5810 + $0x120] sm:$0xff]
        %v5848 = vld [vmem:[%s5810 + $0x128] sm:$0xff]
        %v5849 = vld [vmem:[%s5810 + $0x130] sm:$0xff]
        %v5850 = vld [vmem:[%s5810 + $0x138] sm:$0xff]
        %v5851 = vld [vmem:[%s5810 + $0x140] sm:$0xff]
        %v5852 = vld [vmem:[%s5810 + $0x148] sm:$0xff]
        %v5853 = vld [vmem:[%s5810 + $0x150] sm:$0xff]
        %v5854 = vld [vmem:[%s5810 + $0x158] sm:$0xff]
        %v5855 = vld [vmem:[%s5810 + $0x160] sm:$0xff]
        %v5856 = vld [vmem:[%s5810 + $0x168] sm:$0xff]
        %v5857 = vld [vmem:[%s5810 + $0x170] sm:$0xff]
        %v5858 = vld [vmem:[%s5810 + $0x178] sm:$0xff]
        %v5859 = vld [vmem:[%s5810 + $0x180] sm:$0xff]
        %v5860 = vld [vmem:[%s5810 + $0x188] sm:$0xff]
        %v5861 = vld [vmem:[%s5810 + $0x190] sm:$0xff]
        %v5862 = vld [vmem:[%s5810 + $0x198] sm:$0xff]
        %v5863 = vld [vmem:[%s5810 + $0x1a0] sm:$0xff]
        %v5864 = vld [vmem:[%s5810 + $0x1a8] sm:$0xff]
        %v5865 = vld [vmem:[%s5810 + $0x1b0] sm:$0xff]
        %v5866 = vld [vmem:[%s5810 + $0x1b8] sm:$0xff]
        %v5867 = vld [vmem:[%s5810 + $0x1c0] sm:$0xff]
        %v5868 = vld [vmem:[%s5810 + $0x1c8] sm:$0xff]
        %v5869 = vld [vmem:[%s5810 + $0x1d0] sm:$0xff]
        %v5870 = vld [vmem:[%s5810 + $0x1d8] sm:$0xff]
        %v5871 = vld [vmem:[%s5810 + $0x1e0] sm:$0xff]
        %v5872 = vld [vmem:[%s5810 + $0x1e8] sm:$0xff]
        %v5873 = vld [vmem:[%s5810 + $0x1f0] sm:$0xff]
        %v5874 = vld [vmem:[%s5810 + $0x1f8] sm:$0xff]
        %v5875 = vld [vmem:[%s5810 + $0x200] sm:$0xff]
        %v5876 = vld [vmem:[%s5810 + $0x208] sm:$0xff]
        %v5877 = vld [vmem:[%s5810 + $0x210] sm:$0xff]
        %v5878 = vld [vmem:[%s5810 + $0x218] sm:$0xff]
        %v5879 = vld [vmem:[%s5810 + $0x220] sm:$0xff]
        %v5880 = vld [vmem:[%s5810 + $0x228] sm:$0xff]
        %v5881 = vld [vmem:[%s5810 + $0x230] sm:$0xff]
        %v5882 = vld [vmem:[%s5810 + $0x238] sm:$0xff]
        %v5883 = vld [vmem:[%s5810 + $0x240] sm:$0xff]
        %v5884 = vld [vmem:[%s5810 + $0x248] sm:$0xff]
        %v5885 = vld [vmem:[%s5810 + $0x250] sm:$0xff]
        %v5886 = vld [vmem:[%s5810 + $0x258] sm:$0xff]
        %v5887 = vld [vmem:[%s5810 + $0x260] sm:$0xff]
        %v5888 = vld [vmem:[%s5810 + $0x268] sm:$0xff]
        %v5889 = vld [vmem:[%s5810 + $0x270] sm:$0xff]
        %v5890 = vld [vmem:[%s5810 + $0x278] sm:$0xff]
        %v5891 = vld [vmem:[%s5810 + $0x280] sm:$0xff]
        %v5892 = vld [vmem:[%s5810 + $0x288] sm:$0xff]
        %v5893 = vld [vmem:[%s5810 + $0x290] sm:$0xff]
        %v5894 = vld [vmem:[%s5810 + $0x298] sm:$0xff]
        %v5895 = vld [vmem:[%s5810 + $0x2a0] sm:$0xff]
        %v5896 = vld [vmem:[%s5810 + $0x2a8] sm:$0xff]
        %v5897 = vld [vmem:[%s5810 + $0x2b0] sm:$0xff]
        %v5898 = vld [vmem:[%s5810 + $0x2b8] sm:$0xff]
        %v5899 = vld [vmem:[%s5810 + $0x2c0] sm:$0xff]
        %v5900 = vld [vmem:[%s5810 + $0x2c8] sm:$0xff]
        %v5901 = vld [vmem:[%s5810 + $0x2d0] sm:$0xff]
        %v5902 = vld [vmem:[%s5810 + $0x2d8] sm:$0xff]
        %v5903 = vld [vmem:[%s5810 + $0x2e0] sm:$0xff]
        %v5904 = vld [vmem:[%s5810 + $0x2e8] sm:$0xff]
        %v5905 = vld [vmem:[%s5810 + $0x2f0] sm:$0xff]
        %v5906 = vld [vmem:[%s5810 + $0x2f8] sm:$0xff]
        %v5907 = vld [vmem:[%s5810 + $0x300] sm:$0xff]
        %v5908 = vld [vmem:[%s5810 + $0x308] sm:$0xff]
        %v5910 = vsel %vm549, %v5002, 0
        %5912 = vmatprep.subr.mxu0 0.0
        %5913 = vmatpush1.msra.mxu0 %v5826
        %5914 = vmatprep.subr.mxu0 0.0
        %5915 = vmatpush1.msra.mxu0 %v5825
        %5916 = vmatprep.subr.mxu0 0.0
        %5917 = vmatpush1.msra.mxu0 %v5824
        %5918 = vmatprep.subr.mxu0 0.0
        %5919 = vmatpush1.msra.mxu0 %v5823
        %5920 = vmatprep.subr.mxu0 0.0
        %5921 = vmatpush1.msra.mxu0 %v5822
        %5922 = vmatprep.subr.mxu0 0.0
        %5923 = vmatpush1.msra.mxu0 %v5821
        %5924 = vmatprep.subr.mxu0 0.0
        %5925 = vmatpush1.msra.mxu0 %v5820
        %5926 = vmatprep.subr.mxu0 0.0
        %5927 = vmatpush1.msra.mxu0 %v5819
        %5928 = vmatprep.subr.mxu0 0.0
        %5929 = vmatpush1.msra.mxu0 %v5818
        %5930 = vmatprep.subr.mxu0 0.0
        %5931 = vmatpush1.msra.mxu0 %v5817
        %5932 = vmatprep.subr.mxu0 0.0
        %5933 = vmatpush1.msra.mxu0 %v5816
        %5934 = vmatprep.subr.mxu0 0.0
        %5935 = vmatpush1.msra.mxu0 %v5815
        %5936 = vmatprep.subr.mxu0 0.0
        %5937 = vmatpush1.msra.mxu0 %v5814
        %5938 = vmatprep.subr.mxu0 0.0
        %5939 = vmatpush1.msra.mxu0 %v5813
        %5940 = vmatprep.subr.mxu0 0.0
        %5941 = vmatpush1.msra.mxu0 %v5812
        %5942 = vmatprep.subr.mxu0 0.0
        %5943 = vmatpush1.msra.mxu0 %v5811
        %5944 = vmatprep.subr.mxu0 0.0
        %5945 = vmatpush2.msra.mxu0 %v5842
        %5946 = vmatprep.subr.mxu0 0.0
        %5947 = vmatpush2.msra.mxu0 %v5841
        %5948 = vmatprep.subr.mxu0 0.0
        %5949 = vmatpush2.msra.mxu0 %v5840
        %5950 = vmatprep.subr.mxu0 0.0
        %5951 = vmatpush2.msra.mxu0 %v5839
        %5952 = vmatprep.subr.mxu0 0.0
        %5953 = vmatpush2.msra.mxu0 %v5838
        %5954 = vmatprep.subr.mxu0 0.0
        %5955 = vmatpush2.msra.mxu0 %v5837
        %5956 = vmatprep.subr.mxu0 0.0
        %5957 = vmatpush2.msra.mxu0 %v5836
        %5958 = vmatprep.subr.mxu0 0.0
        %5959 = vmatpush2.msra.mxu0 %v5835
        %5960 = vmatprep.subr.mxu0 0.0
        %5961 = vmatpush2.msra.mxu0 %v5834
        %5962 = vmatprep.subr.mxu0 0.0
        %5963 = vmatpush2.msra.mxu0 %v5833
        %5964 = vmatprep.subr.mxu0 0.0
        %5965 = vmatpush2.msra.mxu0 %v5832
        %5966 = vmatprep.subr.mxu0 0.0
        %5967 = vmatpush2.msra.mxu0 %v5831
        %5968 = vmatprep.subr.mxu0 0.0
        %5969 = vmatpush2.msra.mxu0 %v5830
        %5970 = vmatprep.subr.mxu0 0.0
        %5971 = vmatpush2.msra.mxu0 %v5829
        %5972 = vmatprep.subr.mxu0 0.0
        %5973 = vmatpush2.msra.mxu0 %v5828
        %5974 = vmatprep.subr.mxu0 0.0
        %5975 = vmatpush2.msra.mxu0 %v5827
        %5976 = vmatprep.mubr.f32.mxu0 %v4997
        %5977 = vmatmul.mubr.f32.gmra.mxu0 %v4996
        %v5978 = vpop.f32.mrf.mxu0
        %v5979 = vadd.f32 0.0, %v5978
        %v5980 = vpop.f32.mrf.mxu0
        %5981 = vdwg.mxu0
        %5982 = vmatprep.subr.mxu0 0.0
        %5983 = vmatpush1.msra.mxu0 %v5858
        %5984 = vmatprep.subr.mxu0 0.0
        %5985 = vmatpush1.msra.mxu0 %v5857
        %5986 = vmatprep.subr.mxu0 0.0
        %5987 = vmatpush1.msra.mxu0 %v5856
        %5988 = vmatprep.subr.mxu0 0.0
        %5989 = vmatpush1.msra.mxu0 %v5855
        %5990 = vmatprep.subr.mxu0 0.0
        %5991 = vmatpush1.msra.mxu0 %v5854
        %5992 = vmatprep.subr.mxu0 0.0
        %5993 = vmatpush1.msra.mxu0 %v5853
        %5994 = vmatprep.subr.mxu0 0.0
        %5995 = vmatpush1.msra.mxu0 %v5852
        %5996 = vmatprep.subr.mxu0 0.0
        %5997 = vmatpush1.msra.mxu0 %v5851
        %5998 = vmatprep.subr.mxu0 0.0
        %5999 = vmatpush1.msra.mxu0 %v5850
        %6000 = vmatprep.subr.mxu0 0.0
        %6001 = vmatpush1.msra.mxu0 %v5849
        %6002 = vmatprep.subr.mxu0 0.0
        %6003 = vmatpush1.msra.mxu0 %v5848
        %6004 = vmatprep.subr.mxu0 0.0
        %6005 = vmatpush1.msra.mxu0 %v5847
        %6006 = vmatprep.subr.mxu0 0.0
        %6007 = vmatpush1.msra.mxu0 %v5846
        %6008 = vmatprep.subr.mxu0 0.0
        %6009 = vmatpush1.msra.mxu0 %v5845
        %6010 = vmatprep.subr.mxu0 0.0
        %6011 = vmatpush1.msra.mxu0 %v5844
        %6012 = vmatprep.subr.mxu0 0.0
        %6013 = vmatpush1.msra.mxu0 %v5843
        %6014 = vmatprep.subr.mxu0 0.0
        %6015 = vmatpush2.msra.mxu0 %v5874
        %6016 = vmatprep.subr.mxu0 0.0
        %6017 = vmatpush2.msra.mxu0 %v5873
        %6018 = vmatprep.subr.mxu0 0.0
        %6019 = vmatpush2.msra.mxu0 %v5872
        %6020 = vmatprep.subr.mxu0 0.0
        %6021 = vmatpush2.msra.mxu0 %v5871
        %6022 = vmatprep.subr.mxu0 0.0
        %6023 = vmatpush2.msra.mxu0 %v5870
        %6024 = vmatprep.subr.mxu0 0.0
        %6025 = vmatpush2.msra.mxu0 %v5869
        %6026 = vmatprep.subr.mxu0 0.0
        %6027 = vmatpush2.msra.mxu0 %v5868
        %6028 = vmatprep.subr.mxu0 0.0
        %6029 = vmatpush2.msra.mxu0 %v5867
        %6030 = vmatprep.subr.mxu0 0.0
        %6031 = vmatpush2.msra.mxu0 %v5866
        %6032 = vmatprep.subr.mxu0 0.0
        %6033 = vmatpush2.msra.mxu0 %v5865
        %6034 = vmatprep.subr.mxu0 0.0
        %6035 = vmatpush2.msra.mxu0 %v5864
        %6036 = vmatprep.subr.mxu0 0.0
        %6037 = vmatpush2.msra.mxu0 %v5863
        %6038 = vmatprep.subr.mxu0 0.0
        %6039 = vmatpush2.msra.mxu0 %v5862
        %6040 = vmatprep.subr.mxu0 0.0
        %6041 = vmatpush2.msra.mxu0 %v5861
        %6042 = vmatprep.subr.mxu0 0.0
        %6043 = vmatpush2.msra.mxu0 %v5860
        %6044 = vmatprep.subr.mxu0 0.0
        %6045 = vmatpush2.msra.mxu0 %v5859
        %6046 = vmatprep.mubr.f32.mxu0 %v4999
        %6047 = vmatmul.mubr.f32.gmra.mxu0 %v4998
        %v6048 = vpop.f32.mrf.mxu0
        %v6049 = vadd.f32 %v5979, %v6048
        %v6050 = vpop.f32.mrf.mxu0
        %6051 = vdwg.mxu0
        %6052 = vmatprep.subr.mxu0 0.0
        %6053 = vmatpush1.msra.mxu0 %v5890
        %6054 = vmatprep.subr.mxu0 0.0
        %6055 = vmatpush1.msra.mxu0 %v5889
        %6056 = vmatprep.subr.mxu0 0.0
        %6057 = vmatpush1.msra.mxu0 %v5888
        %6058 = vmatprep.subr.mxu0 0.0
        %6059 = vmatpush1.msra.mxu0 %v5887
        %6060 = vmatprep.subr.mxu0 0.0
        %6061 = vmatpush1.msra.mxu0 %v5886
        %6062 = vmatprep.subr.mxu0 0.0
        %6063 = vmatpush1.msra.mxu0 %v5885
        %6064 = vmatprep.subr.mxu0 0.0
        %6065 = vmatpush1.msra.mxu0 %v5884
        %6066 = vmatprep.subr.mxu0 0.0
        %6067 = vmatpush1.msra.mxu0 %v5883
        %6068 = vmatprep.subr.mxu0 0.0
        %6069 = vmatpush1.msra.mxu0 %v5882
        %6070 = vmatprep.subr.mxu0 0.0
        %6071 = vmatpush1.msra.mxu0 %v5881
        %6072 = vmatprep.subr.mxu0 0.0
        %6073 = vmatpush1.msra.mxu0 %v5880
        %6074 = vmatprep.subr.mxu0 0.0
        %6075 = vmatpush1.msra.mxu0 %v5879
        %6076 = vmatprep.subr.mxu0 0.0
        %6077 = vmatpush1.msra.mxu0 %v5878
        %6078 = vmatprep.subr.mxu0 0.0
        %6079 = vmatpush1.msra.mxu0 %v5877
        %6080 = vmatprep.subr.mxu0 0.0
        %6081 = vmatpush1.msra.mxu0 %v5876
        %6082 = vmatprep.subr.mxu0 0.0
        %6083 = vmatpush1.msra.mxu0 %v5875
        %6084 = vmatprep.subr.mxu0 0.0
        %6085 = vmatpush2.msra.mxu0 %v5906
        %6086 = vmatprep.subr.mxu0 0.0
        %6087 = vmatpush2.msra.mxu0 %v5905
        %6088 = vmatprep.subr.mxu0 0.0
        %6089 = vmatpush2.msra.mxu0 %v5904
        %6090 = vmatprep.subr.mxu0 0.0
        %6091 = vmatpush2.msra.mxu0 %v5903
        %6092 = vmatprep.subr.mxu0 0.0
        %6093 = vmatpush2.msra.mxu0 %v5902
        %6094 = vmatprep.subr.mxu0 0.0
        %6095 = vmatpush2.msra.mxu0 %v5901
        %6096 = vmatprep.subr.mxu0 0.0
        %6097 = vmatpush2.msra.mxu0 %v5900
        %6098 = vmatprep.subr.mxu0 0.0
        %6099 = vmatpush2.msra.mxu0 %v5899
        %6100 = vmatprep.subr.mxu0 0.0
        %6101 = vmatpush2.msra.mxu0 %v5898
        %6102 = vmatprep.subr.mxu0 0.0
        %6103 = vmatpush2.msra.mxu0 %v5897
        %6104 = vmatprep.subr.mxu0 0.0
        %6105 = vmatpush2.msra.mxu0 %v5896
        %6106 = vmatprep.subr.mxu0 0.0
        %6107 = vmatpush2.msra.mxu0 %v5895
        %6108 = vmatprep.subr.mxu0 0.0
        %6109 = vmatpush2.msra.mxu0 %v5894
        %6110 = vmatprep.subr.mxu0 0.0
        %6111 = vmatpush2.msra.mxu0 %v5893
        %6112 = vmatprep.subr.mxu0 0.0
        %6113 = vmatpush2.msra.mxu0 %v5892
        %6114 = vmatprep.subr.mxu0 0.0
        %6115 = vmatpush2.msra.mxu0 %v5891
        %6116 = vmatprep.mubr.f32.mxu0 %v5001
        %6117 = vmatmul.mubr.f32.gmra.mxu0 %v5000
        %v6118 = vpop.f32.mrf.mxu0
        %v6119 = vadd.f32 %v6049, %v6118
        %v6120 = vpop.f32.mrf.mxu0
        %6121 = vdwg.mxu0
        %6122 = vmatprep.subr.mxu0 0.0
        %6123 = vmatpush1.msra.mxu0 0.0
        %6124 = vmatprep.subr.mxu0 0.0
        %6125 = vmatpush1.msra.mxu0 0.0
        %6126 = vmatprep.subr.mxu0 0.0
        %6127 = vmatpush1.msra.mxu0 0.0
        %6128 = vmatprep.subr.mxu0 0.0
        %6129 = vmatpush1.msra.mxu0 0.0
        %6130 = vmatprep.subr.mxu0 0.0
        %6131 = vmatpush1.msra.mxu0 0.0
        %6132 = vmatprep.subr.mxu0 0.0
        %6133 = vmatpush1.msra.mxu0 0.0
        %6134 = vmatprep.subr.mxu0 0.0
        %6135 = vmatpush1.msra.mxu0 0.0
        %6136 = vmatprep.subr.mxu0 0.0
        %6137 = vmatpush1.msra.mxu0 0.0
        %6138 = vmatprep.subr.mxu0 0.0
        %6139 = vmatpush1.msra.mxu0 0.0
        %6140 = vmatprep.subr.mxu0 0.0
        %6141 = vmatpush1.msra.mxu0 0.0
        %6142 = vmatprep.subr.mxu0 0.0
        %6143 = vmatpush1.msra.mxu0 0.0
        %6144 = vmatprep.subr.mxu0 0.0
        %6145 = vmatpush1.msra.mxu0 0.0
        %6146 = vmatprep.subr.mxu0 0.0
        %6147 = vmatpush1.msra.mxu0 0.0
        %6148 = vmatprep.subr.mxu0 0.0
        %6149 = vmatpush1.msra.mxu0 0.0
        %6150 = vmatprep.subr.mxu0 0.0
        %6151 = vmatpush1.msra.mxu0 %v5908
        %6152 = vmatprep.subr.mxu0 0.0
        %6153 = vmatpush1.msra.mxu0 %v5907
        %6154 = vmatprep.subr.mxu0 0.0
        %6155 = vmatpush2.msra.mxu0 0.0
        %6156 = vmatprep.subr.mxu0 0.0
        %6157 = vmatpush2.msra.mxu0 0.0
        %6158 = vmatprep.subr.mxu0 0.0
        %6159 = vmatpush2.msra.mxu0 0.0
        %6160 = vmatprep.subr.mxu0 0.0
        %6161 = vmatpush2.msra.mxu0 0.0
        %6162 = vmatprep.subr.mxu0 0.0
        %6163 = vmatpush2.msra.mxu0 0.0
        %6164 = vmatprep.subr.mxu0 0.0
        %6165 = vmatpush2.msra.mxu0 0.0
        %6166 = vmatprep.subr.mxu0 0.0
        %6167 = vmatpush2.msra.mxu0 0.0
        %6168 = vmatprep.subr.mxu0 0.0
        %6169 = vmatpush2.msra.mxu0 0.0
        %6170 = vmatprep.subr.mxu0 0.0
        %6171 = vmatpush2.msra.mxu0 0.0
        %6172 = vmatprep.subr.mxu0 0.0
        %6173 = vmatpush2.msra.mxu0 0.0
        %6174 = vmatprep.subr.mxu0 0.0
        %6175 = vmatpush2.msra.mxu0 0.0
        %6176 = vmatprep.subr.mxu0 0.0
        %6177 = vmatpush2.msra.mxu0 0.0
        %6178 = vmatprep.subr.mxu0 0.0
        %6179 = vmatpush2.msra.mxu0 0.0
        %6180 = vmatprep.subr.mxu0 0.0
        %6181 = vmatpush2.msra.mxu0 0.0
        %6182 = vmatprep.subr.mxu0 0.0
        %6183 = vmatpush2.msra.mxu0 0.0
        %6184 = vmatprep.subr.mxu0 0.0
        %6185 = vmatpush2.msra.mxu0 0.0
        %6186 = vmatprep.mubr.f32.mxu0 0.0
        %6187 = vmatmul.mubr.f32.gmra.mxu0 %v5910
        %v6188 = vpop.f32.mrf.mxu0
        %v6189 = vadd.f32 %v6119, %v6188
        %v6190 = vpop.f32.mrf.mxu0
        %6191 = vdwg.mxu0
        %v6192 = vadd.f32 %v5809, %v6189
        %s6193 = scalar_lea.vmem %s6, 2352
        %v6194 = vld [vmem:[%s6193] sm:$0xff]
        %v6195 = vld [vmem:[%s6193 + $0x8] sm:$0xff]
        %v6196 = vld [vmem:[%s6193 + $0x10] sm:$0xff]
        %v6197 = vld [vmem:[%s6193 + $0x18] sm:$0xff]
        %v6198 = vld [vmem:[%s6193 + $0x20] sm:$0xff]
        %v6199 = vld [vmem:[%s6193 + $0x28] sm:$0xff]
        %v6200 = vld [vmem:[%s6193 + $0x30] sm:$0xff]
        %v6201 = vld [vmem:[%s6193 + $0x38] sm:$0xff]
        %v6202 = vld [vmem:[%s6193 + $0x40] sm:$0xff]
        %v6203 = vld [vmem:[%s6193 + $0x48] sm:$0xff]
        %v6204 = vld [vmem:[%s6193 + $0x50] sm:$0xff]
        %v6205 = vld [vmem:[%s6193 + $0x58] sm:$0xff]
        %v6206 = vld [vmem:[%s6193 + $0x60] sm:$0xff]
        %v6207 = vld [vmem:[%s6193 + $0x68] sm:$0xff]
        %v6208 = vld [vmem:[%s6193 + $0x70] sm:$0xff]
        %v6209 = vld [vmem:[%s6193 + $0x78] sm:$0xff]
        %v6210 = vld [vmem:[%s6193 + $0x80] sm:$0xff]
        %v6211 = vld [vmem:[%s6193 + $0x88] sm:$0xff]
        %v6212 = vld [vmem:[%s6193 + $0x90] sm:$0xff]
        %v6213 = vld [vmem:[%s6193 + $0x98] sm:$0xff]
        %v6214 = vld [vmem:[%s6193 + $0xa0] sm:$0xff]
        %v6215 = vld [vmem:[%s6193 + $0xa8] sm:$0xff]
        %v6216 = vld [vmem:[%s6193 + $0xb0] sm:$0xff]
        %v6217 = vld [vmem:[%s6193 + $0xb8] sm:$0xff]
        %v6218 = vld [vmem:[%s6193 + $0xc0] sm:$0xff]
        %v6219 = vld [vmem:[%s6193 + $0xc8] sm:$0xff]
        %v6220 = vld [vmem:[%s6193 + $0xd0] sm:$0xff]
        %v6221 = vld [vmem:[%s6193 + $0xd8] sm:$0xff]
        %v6222 = vld [vmem:[%s6193 + $0xe0] sm:$0xff]
        %v6223 = vld [vmem:[%s6193 + $0xe8] sm:$0xff]
        %v6224 = vld [vmem:[%s6193 + $0xf0] sm:$0xff]
        %v6225 = vld [vmem:[%s6193 + $0xf8] sm:$0xff]
        %v6226 = vld [vmem:[%s6193 + $0x100] sm:$0xff]
        %v6227 = vld [vmem:[%s6193 + $0x108] sm:$0xff]
        %v6228 = vld [vmem:[%s6193 + $0x110] sm:$0xff]
        %v6229 = vld [vmem:[%s6193 + $0x118] sm:$0xff]
        %v6230 = vld [vmem:[%s6193 + $0x120] sm:$0xff]
        %v6231 = vld [vmem:[%s6193 + $0x128] sm:$0xff]
        %v6232 = vld [vmem:[%s6193 + $0x130] sm:$0xff]
        %v6233 = vld [vmem:[%s6193 + $0x138] sm:$0xff]
        %v6234 = vld [vmem:[%s6193 + $0x140] sm:$0xff]
        %v6235 = vld [vmem:[%s6193 + $0x148] sm:$0xff]
        %v6236 = vld [vmem:[%s6193 + $0x150] sm:$0xff]
        %v6237 = vld [vmem:[%s6193 + $0x158] sm:$0xff]
        %v6238 = vld [vmem:[%s6193 + $0x160] sm:$0xff]
        %v6239 = vld [vmem:[%s6193 + $0x168] sm:$0xff]
        %v6240 = vld [vmem:[%s6193 + $0x170] sm:$0xff]
        %v6241 = vld [vmem:[%s6193 + $0x178] sm:$0xff]
        %v6242 = vld [vmem:[%s6193 + $0x180] sm:$0xff]
        %v6243 = vld [vmem:[%s6193 + $0x188] sm:$0xff]
        %v6244 = vld [vmem:[%s6193 + $0x190] sm:$0xff]
        %v6245 = vld [vmem:[%s6193 + $0x198] sm:$0xff]
        %v6246 = vld [vmem:[%s6193 + $0x1a0] sm:$0xff]
        %v6247 = vld [vmem:[%s6193 + $0x1a8] sm:$0xff]
        %v6248 = vld [vmem:[%s6193 + $0x1b0] sm:$0xff]
        %v6249 = vld [vmem:[%s6193 + $0x1b8] sm:$0xff]
        %v6250 = vld [vmem:[%s6193 + $0x1c0] sm:$0xff]
        %v6251 = vld [vmem:[%s6193 + $0x1c8] sm:$0xff]
        %v6252 = vld [vmem:[%s6193 + $0x1d0] sm:$0xff]
        %v6253 = vld [vmem:[%s6193 + $0x1d8] sm:$0xff]
        %v6254 = vld [vmem:[%s6193 + $0x1e0] sm:$0xff]
        %v6255 = vld [vmem:[%s6193 + $0x1e8] sm:$0xff]
        %v6256 = vld [vmem:[%s6193 + $0x1f0] sm:$0xff]
        %v6257 = vld [vmem:[%s6193 + $0x1f8] sm:$0xff]
        %v6258 = vld [vmem:[%s6193 + $0x200] sm:$0xff]
        %v6259 = vld [vmem:[%s6193 + $0x208] sm:$0xff]
        %v6260 = vld [vmem:[%s6193 + $0x210] sm:$0xff]
        %v6261 = vld [vmem:[%s6193 + $0x218] sm:$0xff]
        %v6262 = vld [vmem:[%s6193 + $0x220] sm:$0xff]
        %v6263 = vld [vmem:[%s6193 + $0x228] sm:$0xff]
        %v6264 = vld [vmem:[%s6193 + $0x230] sm:$0xff]
        %v6265 = vld [vmem:[%s6193 + $0x238] sm:$0xff]
        %v6266 = vld [vmem:[%s6193 + $0x240] sm:$0xff]
        %v6267 = vld [vmem:[%s6193 + $0x248] sm:$0xff]
        %v6268 = vld [vmem:[%s6193 + $0x250] sm:$0xff]
        %v6269 = vld [vmem:[%s6193 + $0x258] sm:$0xff]
        %v6270 = vld [vmem:[%s6193 + $0x260] sm:$0xff]
        %v6271 = vld [vmem:[%s6193 + $0x268] sm:$0xff]
        %v6272 = vld [vmem:[%s6193 + $0x270] sm:$0xff]
        %v6273 = vld [vmem:[%s6193 + $0x278] sm:$0xff]
        %v6274 = vld [vmem:[%s6193 + $0x280] sm:$0xff]
        %v6275 = vld [vmem:[%s6193 + $0x288] sm:$0xff]
        %v6276 = vld [vmem:[%s6193 + $0x290] sm:$0xff]
        %v6277 = vld [vmem:[%s6193 + $0x298] sm:$0xff]
        %v6278 = vld [vmem:[%s6193 + $0x2a0] sm:$0xff]
        %v6279 = vld [vmem:[%s6193 + $0x2a8] sm:$0xff]
        %v6280 = vld [vmem:[%s6193 + $0x2b0] sm:$0xff]
        %v6281 = vld [vmem:[%s6193 + $0x2b8] sm:$0xff]
        %v6282 = vld [vmem:[%s6193 + $0x2c0] sm:$0xff]
        %v6283 = vld [vmem:[%s6193 + $0x2c8] sm:$0xff]
        %v6284 = vld [vmem:[%s6193 + $0x2d0] sm:$0xff]
        %v6285 = vld [vmem:[%s6193 + $0x2d8] sm:$0xff]
        %v6286 = vld [vmem:[%s6193 + $0x2e0] sm:$0xff]
        %v6287 = vld [vmem:[%s6193 + $0x2e8] sm:$0xff]
        %v6288 = vld [vmem:[%s6193 + $0x2f0] sm:$0xff]
        %v6289 = vld [vmem:[%s6193 + $0x2f8] sm:$0xff]
        %v6290 = vld [vmem:[%s6193 + $0x300] sm:$0xff]
        %v6291 = vld [vmem:[%s6193 + $0x308] sm:$0xff]
        %v6293 = vsel %vm549, %v5009, 0
        %6295 = vmatprep.subr.mxu0 0.0
        %6296 = vmatpush1.msra.mxu0 %v6209
        %6297 = vmatprep.subr.mxu0 0.0
        %6298 = vmatpush1.msra.mxu0 %v6208
        %6299 = vmatprep.subr.mxu0 0.0
        %6300 = vmatpush1.msra.mxu0 %v6207
        %6301 = vmatprep.subr.mxu0 0.0
        %6302 = vmatpush1.msra.mxu0 %v6206
        %6303 = vmatprep.subr.mxu0 0.0
        %6304 = vmatpush1.msra.mxu0 %v6205
        %6305 = vmatprep.subr.mxu0 0.0
        %6306 = vmatpush1.msra.mxu0 %v6204
        %6307 = vmatprep.subr.mxu0 0.0
        %6308 = vmatpush1.msra.mxu0 %v6203
        %6309 = vmatprep.subr.mxu0 0.0
        %6310 = vmatpush1.msra.mxu0 %v6202
        %6311 = vmatprep.subr.mxu0 0.0
        %6312 = vmatpush1.msra.mxu0 %v6201
        %6313 = vmatprep.subr.mxu0 0.0
        %6314 = vmatpush1.msra.mxu0 %v6200
        %6315 = vmatprep.subr.mxu0 0.0
        %6316 = vmatpush1.msra.mxu0 %v6199
        %6317 = vmatprep.subr.mxu0 0.0
        %6318 = vmatpush1.msra.mxu0 %v6198
        %6319 = vmatprep.subr.mxu0 0.0
        %6320 = vmatpush1.msra.mxu0 %v6197
        %6321 = vmatprep.subr.mxu0 0.0
        %6322 = vmatpush1.msra.mxu0 %v6196
        %6323 = vmatprep.subr.mxu0 0.0
        %6324 = vmatpush1.msra.mxu0 %v6195
        %6325 = vmatprep.subr.mxu0 0.0
        %6326 = vmatpush1.msra.mxu0 %v6194
        %6327 = vmatprep.subr.mxu0 0.0
        %6328 = vmatpush2.msra.mxu0 %v6225
        %6329 = vmatprep.subr.mxu0 0.0
        %6330 = vmatpush2.msra.mxu0 %v6224
        %6331 = vmatprep.subr.mxu0 0.0
        %6332 = vmatpush2.msra.mxu0 %v6223
        %6333 = vmatprep.subr.mxu0 0.0
        %6334 = vmatpush2.msra.mxu0 %v6222
        %6335 = vmatprep.subr.mxu0 0.0
        %6336 = vmatpush2.msra.mxu0 %v6221
        %6337 = vmatprep.subr.mxu0 0.0
        %6338 = vmatpush2.msra.mxu0 %v6220
        %6339 = vmatprep.subr.mxu0 0.0
        %6340 = vmatpush2.msra.mxu0 %v6219
        %6341 = vmatprep.subr.mxu0 0.0
        %6342 = vmatpush2.msra.mxu0 %v6218
        %6343 = vmatprep.subr.mxu0 0.0
        %6344 = vmatpush2.msra.mxu0 %v6217
        %6345 = vmatprep.subr.mxu0 0.0
        %6346 = vmatpush2.msra.mxu0 %v6216
        %6347 = vmatprep.subr.mxu0 0.0
        %6348 = vmatpush2.msra.mxu0 %v6215
        %6349 = vmatprep.subr.mxu0 0.0
        %6350 = vmatpush2.msra.mxu0 %v6214
        %6351 = vmatprep.subr.mxu0 0.0
        %6352 = vmatpush2.msra.mxu0 %v6213
        %6353 = vmatprep.subr.mxu0 0.0
        %6354 = vmatpush2.msra.mxu0 %v6212
        %6355 = vmatprep.subr.mxu0 0.0
        %6356 = vmatpush2.msra.mxu0 %v6211
        %6357 = vmatprep.subr.mxu0 0.0
        %6358 = vmatpush2.msra.mxu0 %v6210
        %6359 = vmatprep.mubr.f32.mxu0 %v5004
        %6360 = vmatmul.mubr.f32.gmra.mxu0 %v5003
        %v6361 = vpop.f32.mrf.mxu0
        %v6362 = vadd.f32 0.0, %v6361
        %v6363 = vpop.f32.mrf.mxu0
        %6364 = vdwg.mxu0
        %6365 = vmatprep.subr.mxu0 0.0
        %6366 = vmatpush1.msra.mxu0 %v6241
        %6367 = vmatprep.subr.mxu0 0.0
        %6368 = vmatpush1.msra.mxu0 %v6240
        %6369 = vmatprep.subr.mxu0 0.0
        %6370 = vmatpush1.msra.mxu0 %v6239
        %6371 = vmatprep.subr.mxu0 0.0
        %6372 = vmatpush1.msra.mxu0 %v6238
        %6373 = vmatprep.subr.mxu0 0.0
        %6374 = vmatpush1.msra.mxu0 %v6237
        %6375 = vmatprep.subr.mxu0 0.0
        %6376 = vmatpush1.msra.mxu0 %v6236
        %6377 = vmatprep.subr.mxu0 0.0
        %6378 = vmatpush1.msra.mxu0 %v6235
        %6379 = vmatprep.subr.mxu0 0.0
        %6380 = vmatpush1.msra.mxu0 %v6234
        %6381 = vmatprep.subr.mxu0 0.0
        %6382 = vmatpush1.msra.mxu0 %v6233
        %6383 = vmatprep.subr.mxu0 0.0
        %6384 = vmatpush1.msra.mxu0 %v6232
        %6385 = vmatprep.subr.mxu0 0.0
        %6386 = vmatpush1.msra.mxu0 %v6231
        %6387 = vmatprep.subr.mxu0 0.0
        %6388 = vmatpush1.msra.mxu0 %v6230
        %6389 = vmatprep.subr.mxu0 0.0
        %6390 = vmatpush1.msra.mxu0 %v6229
        %6391 = vmatprep.subr.mxu0 0.0
        %6392 = vmatpush1.msra.mxu0 %v6228
        %6393 = vmatprep.subr.mxu0 0.0
        %6394 = vmatpush1.msra.mxu0 %v6227
        %6395 = vmatprep.subr.mxu0 0.0
        %6396 = vmatpush1.msra.mxu0 %v6226
        %6397 = vmatprep.subr.mxu0 0.0
        %6398 = vmatpush2.msra.mxu0 %v6257
        %6399 = vmatprep.subr.mxu0 0.0
        %6400 = vmatpush2.msra.mxu0 %v6256
        %6401 = vmatprep.subr.mxu0 0.0
        %6402 = vmatpush2.msra.mxu0 %v6255
        %6403 = vmatprep.subr.mxu0 0.0
        %6404 = vmatpush2.msra.mxu0 %v6254
        %6405 = vmatprep.subr.mxu0 0.0
        %6406 = vmatpush2.msra.mxu0 %v6253
        %6407 = vmatprep.subr.mxu0 0.0
        %6408 = vmatpush2.msra.mxu0 %v6252
        %6409 = vmatprep.subr.mxu0 0.0
        %6410 = vmatpush2.msra.mxu0 %v6251
        %6411 = vmatprep.subr.mxu0 0.0
        %6412 = vmatpush2.msra.mxu0 %v6250
        %6413 = vmatprep.subr.mxu0 0.0
        %6414 = vmatpush2.msra.mxu0 %v6249
        %6415 = vmatprep.subr.mxu0 0.0
        %6416 = vmatpush2.msra.mxu0 %v6248
        %6417 = vmatprep.subr.mxu0 0.0
        %6418 = vmatpush2.msra.mxu0 %v6247
        %6419 = vmatprep.subr.mxu0 0.0
        %6420 = vmatpush2.msra.mxu0 %v6246
        %6421 = vmatprep.subr.mxu0 0.0
        %6422 = vmatpush2.msra.mxu0 %v6245
        %6423 = vmatprep.subr.mxu0 0.0
        %6424 = vmatpush2.msra.mxu0 %v6244
        %6425 = vmatprep.subr.mxu0 0.0
        %6426 = vmatpush2.msra.mxu0 %v6243
        %6427 = vmatprep.subr.mxu0 0.0
        %6428 = vmatpush2.msra.mxu0 %v6242
        %6429 = vmatprep.mubr.f32.mxu0 %v5006
        %6430 = vmatmul.mubr.f32.gmra.mxu0 %v5005
        %v6431 = vpop.f32.mrf.mxu0
        %v6432 = vadd.f32 %v6362, %v6431
        %v6433 = vpop.f32.mrf.mxu0
        %6434 = vdwg.mxu0
        %6435 = vmatprep.subr.mxu0 0.0
        %6436 = vmatpush1.msra.mxu0 %v6273
        %6437 = vmatprep.subr.mxu0 0.0
        %6438 = vmatpush1.msra.mxu0 %v6272
        %6439 = vmatprep.subr.mxu0 0.0
        %6440 = vmatpush1.msra.mxu0 %v6271
        %6441 = vmatprep.subr.mxu0 0.0
        %6442 = vmatpush1.msra.mxu0 %v6270
        %6443 = vmatprep.subr.mxu0 0.0
        %6444 = vmatpush1.msra.mxu0 %v6269
        %6445 = vmatprep.subr.mxu0 0.0
        %6446 = vmatpush1.msra.mxu0 %v6268
        %6447 = vmatprep.subr.mxu0 0.0
        %6448 = vmatpush1.msra.mxu0 %v6267
        %6449 = vmatprep.subr.mxu0 0.0
        %6450 = vmatpush1.msra.mxu0 %v6266
        %6451 = vmatprep.subr.mxu0 0.0
        %6452 = vmatpush1.msra.mxu0 %v6265
        %6453 = vmatprep.subr.mxu0 0.0
        %6454 = vmatpush1.msra.mxu0 %v6264
        %6455 = vmatprep.subr.mxu0 0.0
        %6456 = vmatpush1.msra.mxu0 %v6263
        %6457 = vmatprep.subr.mxu0 0.0
        %6458 = vmatpush1.msra.mxu0 %v6262
        %6459 = vmatprep.subr.mxu0 0.0
        %6460 = vmatpush1.msra.mxu0 %v6261
        %6461 = vmatprep.subr.mxu0 0.0
        %6462 = vmatpush1.msra.mxu0 %v6260
        %6463 = vmatprep.subr.mxu0 0.0
        %6464 = vmatpush1.msra.mxu0 %v6259
        %6465 = vmatprep.subr.mxu0 0.0
        %6466 = vmatpush1.msra.mxu0 %v6258
        %6467 = vmatprep.subr.mxu0 0.0
        %6468 = vmatpush2.msra.mxu0 %v6289
        %6469 = vmatprep.subr.mxu0 0.0
        %6470 = vmatpush2.msra.mxu0 %v6288
        %6471 = vmatprep.subr.mxu0 0.0
        %6472 = vmatpush2.msra.mxu0 %v6287
        %6473 = vmatprep.subr.mxu0 0.0
        %6474 = vmatpush2.msra.mxu0 %v6286
        %6475 = vmatprep.subr.mxu0 0.0
        %6476 = vmatpush2.msra.mxu0 %v6285
        %6477 = vmatprep.subr.mxu0 0.0
        %6478 = vmatpush2.msra.mxu0 %v6284
        %6479 = vmatprep.subr.mxu0 0.0
        %6480 = vmatpush2.msra.mxu0 %v6283
        %6481 = vmatprep.subr.mxu0 0.0
        %6482 = vmatpush2.msra.mxu0 %v6282
        %6483 = vmatprep.subr.mxu0 0.0
        %6484 = vmatpush2.msra.mxu0 %v6281
        %6485 = vmatprep.subr.mxu0 0.0
        %6486 = vmatpush2.msra.mxu0 %v6280
        %6487 = vmatprep.subr.mxu0 0.0
        %6488 = vmatpush2.msra.mxu0 %v6279
        %6489 = vmatprep.subr.mxu0 0.0
        %6490 = vmatpush2.msra.mxu0 %v6278
        %6491 = vmatprep.subr.mxu0 0.0
        %6492 = vmatpush2.msra.mxu0 %v6277
        %6493 = vmatprep.subr.mxu0 0.0
        %6494 = vmatpush2.msra.mxu0 %v6276
        %6495 = vmatprep.subr.mxu0 0.0
        %6496 = vmatpush2.msra.mxu0 %v6275
        %6497 = vmatprep.subr.mxu0 0.0
        %6498 = vmatpush2.msra.mxu0 %v6274
        %6499 = vmatprep.mubr.f32.mxu0 %v5008
        %6500 = vmatmul.mubr.f32.gmra.mxu0 %v5007
        %v6501 = vpop.f32.mrf.mxu0
        %v6502 = vadd.f32 %v6432, %v6501
        %v6503 = vpop.f32.mrf.mxu0
        %6504 = vdwg.mxu0
        %6505 = vmatprep.subr.mxu0 0.0
        %6506 = vmatpush1.msra.mxu0 0.0
        %6507 = vmatprep.subr.mxu0 0.0
        %6508 = vmatpush1.msra.mxu0 0.0
        %6509 = vmatprep.subr.mxu0 0.0
        %6510 = vmatpush1.msra.mxu0 0.0
        %6511 = vmatprep.subr.mxu0 0.0
        %6512 = vmatpush1.msra.mxu0 0.0
        %6513 = vmatprep.subr.mxu0 0.0
        %6514 = vmatpush1.msra.mxu0 0.0
        %6515 = vmatprep.subr.mxu0 0.0
        %6516 = vmatpush1.msra.mxu0 0.0
        %6517 = vmatprep.subr.mxu0 0.0
        %6518 = vmatpush1.msra.mxu0 0.0
        %6519 = vmatprep.subr.mxu0 0.0
        %6520 = vmatpush1.msra.mxu0 0.0
        %6521 = vmatprep.subr.mxu0 0.0
        %6522 = vmatpush1.msra.mxu0 0.0
        %6523 = vmatprep.subr.mxu0 0.0
        %6524 = vmatpush1.msra.mxu0 0.0
        %6525 = vmatprep.subr.mxu0 0.0
        %6526 = vmatpush1.msra.mxu0 0.0
        %6527 = vmatprep.subr.mxu0 0.0
        %6528 = vmatpush1.msra.mxu0 0.0
        %6529 = vmatprep.subr.mxu0 0.0
        %6530 = vmatpush1.msra.mxu0 0.0
        %6531 = vmatprep.subr.mxu0 0.0
        %6532 = vmatpush1.msra.mxu0 0.0
        %6533 = vmatprep.subr.mxu0 0.0
        %6534 = vmatpush1.msra.mxu0 %v6291
        %6535 = vmatprep.subr.mxu0 0.0
        %6536 = vmatpush1.msra.mxu0 %v6290
        %6537 = vmatprep.subr.mxu0 0.0
        %6538 = vmatpush2.msra.mxu0 0.0
        %6539 = vmatprep.subr.mxu0 0.0
        %6540 = vmatpush2.msra.mxu0 0.0
        %6541 = vmatprep.subr.mxu0 0.0
        %6542 = vmatpush2.msra.mxu0 0.0
        %6543 = vmatprep.subr.mxu0 0.0
        %6544 = vmatpush2.msra.mxu0 0.0
        %6545 = vmatprep.subr.mxu0 0.0
        %6546 = vmatpush2.msra.mxu0 0.0
        %6547 = vmatprep.subr.mxu0 0.0
        %6548 = vmatpush2.msra.mxu0 0.0
        %6549 = vmatprep.subr.mxu0 0.0
        %6550 = vmatpush2.msra.mxu0 0.0
        %6551 = vmatprep.subr.mxu0 0.0
        %6552 = vmatpush2.msra.mxu0 0.0
        %6553 = vmatprep.subr.mxu0 0.0
        %6554 = vmatpush2.msra.mxu0 0.0
        %6555 = vmatprep.subr.mxu0 0.0
        %6556 = vmatpush2.msra.mxu0 0.0
        %6557 = vmatprep.subr.mxu0 0.0
        %6558 = vmatpush2.msra.mxu0 0.0
        %6559 = vmatprep.subr.mxu0 0.0
        %6560 = vmatpush2.msra.mxu0 0.0
        %6561 = vmatprep.subr.mxu0 0.0
        %6562 = vmatpush2.msra.mxu0 0.0
        %6563 = vmatprep.subr.mxu0 0.0
        %6564 = vmatpush2.msra.mxu0 0.0
        %6565 = vmatprep.subr.mxu0 0.0
        %6566 = vmatpush2.msra.mxu0 0.0
        %6567 = vmatprep.subr.mxu0 0.0
        %6568 = vmatpush2.msra.mxu0 0.0
        %6569 = vmatprep.mubr.f32.mxu0 0.0
        %6570 = vmatmul.mubr.f32.gmra.mxu0 %v6293
        %v6571 = vpop.f32.mrf.mxu0
        %v6572 = vadd.f32 %v6502, %v6571
        %v6573 = vpop.f32.mrf.mxu0
        %6574 = vdwg.mxu0
        %v6575 = vadd.f32 %v6192, %v6572
        %s6576 = scalar_lea.vmem %s6, 3136
        %v6577 = vld [vmem:[%s6576] sm:$0xff]
        %v6578 = vld [vmem:[%s6576 + $0x8] sm:$0xff]
        %v6579 = vld [vmem:[%s6576 + $0x10] sm:$0xff]
        %v6580 = vld [vmem:[%s6576 + $0x18] sm:$0xff]
        %v6581 = vld [vmem:[%s6576 + $0x20] sm:$0xff]
        %v6582 = vld [vmem:[%s6576 + $0x28] sm:$0xff]
        %v6583 = vld [vmem:[%s6576 + $0x30] sm:$0xff]
        %v6584 = vld [vmem:[%s6576 + $0x38] sm:$0xff]
        %v6585 = vld [vmem:[%s6576 + $0x40] sm:$0xff]
        %v6586 = vld [vmem:[%s6576 + $0x48] sm:$0xff]
        %v6587 = vld [vmem:[%s6576 + $0x50] sm:$0xff]
        %v6588 = vld [vmem:[%s6576 + $0x58] sm:$0xff]
        %v6589 = vld [vmem:[%s6576 + $0x60] sm:$0xff]
        %v6590 = vld [vmem:[%s6576 + $0x68] sm:$0xff]
        %v6591 = vld [vmem:[%s6576 + $0x70] sm:$0xff]
        %v6592 = vld [vmem:[%s6576 + $0x78] sm:$0xff]
        %v6593 = vld [vmem:[%s6576 + $0x80] sm:$0xff]
        %v6594 = vld [vmem:[%s6576 + $0x88] sm:$0xff]
        %v6595 = vld [vmem:[%s6576 + $0x90] sm:$0xff]
        %v6596 = vld [vmem:[%s6576 + $0x98] sm:$0xff]
        %v6597 = vld [vmem:[%s6576 + $0xa0] sm:$0xff]
        %v6598 = vld [vmem:[%s6576 + $0xa8] sm:$0xff]
        %v6599 = vld [vmem:[%s6576 + $0xb0] sm:$0xff]
        %v6600 = vld [vmem:[%s6576 + $0xb8] sm:$0xff]
        %v6601 = vld [vmem:[%s6576 + $0xc0] sm:$0xff]
        %v6602 = vld [vmem:[%s6576 + $0xc8] sm:$0xff]
        %v6603 = vld [vmem:[%s6576 + $0xd0] sm:$0xff]
        %v6604 = vld [vmem:[%s6576 + $0xd8] sm:$0xff]
        %v6605 = vld [vmem:[%s6576 + $0xe0] sm:$0xff]
        %v6606 = vld [vmem:[%s6576 + $0xe8] sm:$0xff]
        %v6607 = vld [vmem:[%s6576 + $0xf0] sm:$0xff]
        %v6608 = vld [vmem:[%s6576 + $0xf8] sm:$0xff]
        %v6609 = vld [vmem:[%s6576 + $0x100] sm:$0xff]
        %v6610 = vld [vmem:[%s6576 + $0x108] sm:$0xff]
        %v6611 = vld [vmem:[%s6576 + $0x110] sm:$0xff]
        %v6612 = vld [vmem:[%s6576 + $0x118] sm:$0xff]
        %v6613 = vld [vmem:[%s6576 + $0x120] sm:$0xff]
        %v6614 = vld [vmem:[%s6576 + $0x128] sm:$0xff]
        %v6615 = vld [vmem:[%s6576 + $0x130] sm:$0xff]
        %v6616 = vld [vmem:[%s6576 + $0x138] sm:$0xff]
        %v6617 = vld [vmem:[%s6576 + $0x140] sm:$0xff]
        %v6618 = vld [vmem:[%s6576 + $0x148] sm:$0xff]
        %v6619 = vld [vmem:[%s6576 + $0x150] sm:$0xff]
        %v6620 = vld [vmem:[%s6576 + $0x158] sm:$0xff]
        %v6621 = vld [vmem:[%s6576 + $0x160] sm:$0xff]
        %v6622 = vld [vmem:[%s6576 + $0x168] sm:$0xff]
        %v6623 = vld [vmem:[%s6576 + $0x170] sm:$0xff]
        %v6624 = vld [vmem:[%s6576 + $0x178] sm:$0xff]
        %v6625 = vld [vmem:[%s6576 + $0x180] sm:$0xff]
        %v6626 = vld [vmem:[%s6576 + $0x188] sm:$0xff]
        %v6627 = vld [vmem:[%s6576 + $0x190] sm:$0xff]
        %v6628 = vld [vmem:[%s6576 + $0x198] sm:$0xff]
        %v6629 = vld [vmem:[%s6576 + $0x1a0] sm:$0xff]
        %v6630 = vld [vmem:[%s6576 + $0x1a8] sm:$0xff]
        %v6631 = vld [vmem:[%s6576 + $0x1b0] sm:$0xff]
        %v6632 = vld [vmem:[%s6576 + $0x1b8] sm:$0xff]
        %v6633 = vld [vmem:[%s6576 + $0x1c0] sm:$0xff]
        %v6634 = vld [vmem:[%s6576 + $0x1c8] sm:$0xff]
        %v6635 = vld [vmem:[%s6576 + $0x1d0] sm:$0xff]
        %v6636 = vld [vmem:[%s6576 + $0x1d8] sm:$0xff]
        %v6637 = vld [vmem:[%s6576 + $0x1e0] sm:$0xff]
        %v6638 = vld [vmem:[%s6576 + $0x1e8] sm:$0xff]
        %v6639 = vld [vmem:[%s6576 + $0x1f0] sm:$0xff]
        %v6640 = vld [vmem:[%s6576 + $0x1f8] sm:$0xff]
        %v6641 = vld [vmem:[%s6576 + $0x200] sm:$0xff]
        %v6642 = vld [vmem:[%s6576 + $0x208] sm:$0xff]
        %v6643 = vld [vmem:[%s6576 + $0x210] sm:$0xff]
        %v6644 = vld [vmem:[%s6576 + $0x218] sm:$0xff]
        %v6645 = vld [vmem:[%s6576 + $0x220] sm:$0xff]
        %v6646 = vld [vmem:[%s6576 + $0x228] sm:$0xff]
        %v6647 = vld [vmem:[%s6576 + $0x230] sm:$0xff]
        %v6648 = vld [vmem:[%s6576 + $0x238] sm:$0xff]
        %v6649 = vld [vmem:[%s6576 + $0x240] sm:$0xff]
        %v6650 = vld [vmem:[%s6576 + $0x248] sm:$0xff]
        %v6651 = vld [vmem:[%s6576 + $0x250] sm:$0xff]
        %v6652 = vld [vmem:[%s6576 + $0x258] sm:$0xff]
        %v6653 = vld [vmem:[%s6576 + $0x260] sm:$0xff]
        %v6654 = vld [vmem:[%s6576 + $0x268] sm:$0xff]
        %v6655 = vld [vmem:[%s6576 + $0x270] sm:$0xff]
        %v6656 = vld [vmem:[%s6576 + $0x278] sm:$0xff]
        %v6657 = vld [vmem:[%s6576 + $0x280] sm:$0xff]
        %v6658 = vld [vmem:[%s6576 + $0x288] sm:$0xff]
        %v6659 = vld [vmem:[%s6576 + $0x290] sm:$0xff]
        %v6660 = vld [vmem:[%s6576 + $0x298] sm:$0xff]
        %v6661 = vld [vmem:[%s6576 + $0x2a0] sm:$0xff]
        %v6662 = vld [vmem:[%s6576 + $0x2a8] sm:$0xff]
        %v6663 = vld [vmem:[%s6576 + $0x2b0] sm:$0xff]
        %v6664 = vld [vmem:[%s6576 + $0x2b8] sm:$0xff]
        %v6665 = vld [vmem:[%s6576 + $0x2c0] sm:$0xff]
        %v6666 = vld [vmem:[%s6576 + $0x2c8] sm:$0xff]
        %v6667 = vld [vmem:[%s6576 + $0x2d0] sm:$0xff]
        %v6668 = vld [vmem:[%s6576 + $0x2d8] sm:$0xff]
        %v6669 = vld [vmem:[%s6576 + $0x2e0] sm:$0xff]
        %v6670 = vld [vmem:[%s6576 + $0x2e8] sm:$0xff]
        %v6671 = vld [vmem:[%s6576 + $0x2f0] sm:$0xff]
        %v6672 = vld [vmem:[%s6576 + $0x2f8] sm:$0xff]
        %v6673 = vld [vmem:[%s6576 + $0x300] sm:$0xff]
        %v6674 = vld [vmem:[%s6576 + $0x308] sm:$0xff]
        %v6676 = vsel %vm549, %v5016, 0
        %6678 = vmatprep.subr.mxu0 0.0
        %6679 = vmatpush1.msra.mxu0 %v6592
        %6680 = vmatprep.subr.mxu0 0.0
        %6681 = vmatpush1.msra.mxu0 %v6591
        %6682 = vmatprep.subr.mxu0 0.0
        %6683 = vmatpush1.msra.mxu0 %v6590
        %6684 = vmatprep.subr.mxu0 0.0
        %6685 = vmatpush1.msra.mxu0 %v6589
        %6686 = vmatprep.subr.mxu0 0.0
        %6687 = vmatpush1.msra.mxu0 %v6588
        %6688 = vmatprep.subr.mxu0 0.0
        %6689 = vmatpush1.msra.mxu0 %v6587
        %6690 = vmatprep.subr.mxu0 0.0
        %6691 = vmatpush1.msra.mxu0 %v6586
        %6692 = vmatprep.subr.mxu0 0.0
        %6693 = vmatpush1.msra.mxu0 %v6585
        %6694 = vmatprep.subr.mxu0 0.0
        %6695 = vmatpush1.msra.mxu0 %v6584
        %6696 = vmatprep.subr.mxu0 0.0
        %6697 = vmatpush1.msra.mxu0 %v6583
        %6698 = vmatprep.subr.mxu0 0.0
        %6699 = vmatpush1.msra.mxu0 %v6582
        %6700 = vmatprep.subr.mxu0 0.0
        %6701 = vmatpush1.msra.mxu0 %v6581
        %6702 = vmatprep.subr.mxu0 0.0
        %6703 = vmatpush1.msra.mxu0 %v6580
        %6704 = vmatprep.subr.mxu0 0.0
        %6705 = vmatpush1.msra.mxu0 %v6579
        %6706 = vmatprep.subr.mxu0 0.0
        %6707 = vmatpush1.msra.mxu0 %v6578
        %6708 = vmatprep.subr.mxu0 0.0
        %6709 = vmatpush1.msra.mxu0 %v6577
        %6710 = vmatprep.subr.mxu0 0.0
        %6711 = vmatpush2.msra.mxu0 %v6608
        %6712 = vmatprep.subr.mxu0 0.0
        %6713 = vmatpush2.msra.mxu0 %v6607
        %6714 = vmatprep.subr.mxu0 0.0
        %6715 = vmatpush2.msra.mxu0 %v6606
        %6716 = vmatprep.subr.mxu0 0.0
        %6717 = vmatpush2.msra.mxu0 %v6605
        %6718 = vmatprep.subr.mxu0 0.0
        %6719 = vmatpush2.msra.mxu0 %v6604
        %6720 = vmatprep.subr.mxu0 0.0
        %6721 = vmatpush2.msra.mxu0 %v6603
        %6722 = vmatprep.subr.mxu0 0.0
        %6723 = vmatpush2.msra.mxu0 %v6602
        %6724 = vmatprep.subr.mxu0 0.0
        %6725 = vmatpush2.msra.mxu0 %v6601
        %6726 = vmatprep.subr.mxu0 0.0
        %6727 = vmatpush2.msra.mxu0 %v6600
        %6728 = vmatprep.subr.mxu0 0.0
        %6729 = vmatpush2.msra.mxu0 %v6599
        %6730 = vmatprep.subr.mxu0 0.0
        %6731 = vmatpush2.msra.mxu0 %v6598
        %6732 = vmatprep.subr.mxu0 0.0
        %6733 = vmatpush2.msra.mxu0 %v6597
        %6734 = vmatprep.subr.mxu0 0.0
        %6735 = vmatpush2.msra.mxu0 %v6596
        %6736 = vmatprep.subr.mxu0 0.0
        %6737 = vmatpush2.msra.mxu0 %v6595
        %6738 = vmatprep.subr.mxu0 0.0
        %6739 = vmatpush2.msra.mxu0 %v6594
        %6740 = vmatprep.subr.mxu0 0.0
        %6741 = vmatpush2.msra.mxu0 %v6593
        %6742 = vmatprep.mubr.f32.mxu0 %v5011
        %6743 = vmatmul.mubr.f32.gmra.mxu0 %v5010
        %v6744 = vpop.f32.mrf.mxu0
        %v6745 = vadd.f32 0.0, %v6744
        %v6746 = vpop.f32.mrf.mxu0
        %6747 = vdwg.mxu0
        %6748 = vmatprep.subr.mxu0 0.0
        %6749 = vmatpush1.msra.mxu0 %v6624
        %6750 = vmatprep.subr.mxu0 0.0
        %6751 = vmatpush1.msra.mxu0 %v6623
        %6752 = vmatprep.subr.mxu0 0.0
        %6753 = vmatpush1.msra.mxu0 %v6622
        %6754 = vmatprep.subr.mxu0 0.0
        %6755 = vmatpush1.msra.mxu0 %v6621
        %6756 = vmatprep.subr.mxu0 0.0
        %6757 = vmatpush1.msra.mxu0 %v6620
        %6758 = vmatprep.subr.mxu0 0.0
        %6759 = vmatpush1.msra.mxu0 %v6619
        %6760 = vmatprep.subr.mxu0 0.0
        %6761 = vmatpush1.msra.mxu0 %v6618
        %6762 = vmatprep.subr.mxu0 0.0
        %6763 = vmatpush1.msra.mxu0 %v6617
        %6764 = vmatprep.subr.mxu0 0.0
        %6765 = vmatpush1.msra.mxu0 %v6616
        %6766 = vmatprep.subr.mxu0 0.0
        %6767 = vmatpush1.msra.mxu0 %v6615
        %6768 = vmatprep.subr.mxu0 0.0
        %6769 = vmatpush1.msra.mxu0 %v6614
        %6770 = vmatprep.subr.mxu0 0.0
        %6771 = vmatpush1.msra.mxu0 %v6613
        %6772 = vmatprep.subr.mxu0 0.0
        %6773 = vmatpush1.msra.mxu0 %v6612
        %6774 = vmatprep.subr.mxu0 0.0
        %6775 = vmatpush1.msra.mxu0 %v6611
        %6776 = vmatprep.subr.mxu0 0.0
        %6777 = vmatpush1.msra.mxu0 %v6610
        %6778 = vmatprep.subr.mxu0 0.0
        %6779 = vmatpush1.msra.mxu0 %v6609
        %6780 = vmatprep.subr.mxu0 0.0
        %6781 = vmatpush2.msra.mxu0 %v6640
        %6782 = vmatprep.subr.mxu0 0.0
        %6783 = vmatpush2.msra.mxu0 %v6639
        %6784 = vmatprep.subr.mxu0 0.0
        %6785 = vmatpush2.msra.mxu0 %v6638
        %6786 = vmatprep.subr.mxu0 0.0
        %6787 = vmatpush2.msra.mxu0 %v6637
        %6788 = vmatprep.subr.mxu0 0.0
        %6789 = vmatpush2.msra.mxu0 %v6636
        %6790 = vmatprep.subr.mxu0 0.0
        %6791 = vmatpush2.msra.mxu0 %v6635
        %6792 = vmatprep.subr.mxu0 0.0
        %6793 = vmatpush2.msra.mxu0 %v6634
        %6794 = vmatprep.subr.mxu0 0.0
        %6795 = vmatpush2.msra.mxu0 %v6633
        %6796 = vmatprep.subr.mxu0 0.0
        %6797 = vmatpush2.msra.mxu0 %v6632
        %6798 = vmatprep.subr.mxu0 0.0
        %6799 = vmatpush2.msra.mxu0 %v6631
        %6800 = vmatprep.subr.mxu0 0.0
        %6801 = vmatpush2.msra.mxu0 %v6630
        %6802 = vmatprep.subr.mxu0 0.0
        %6803 = vmatpush2.msra.mxu0 %v6629
        %6804 = vmatprep.subr.mxu0 0.0
        %6805 = vmatpush2.msra.mxu0 %v6628
        %6806 = vmatprep.subr.mxu0 0.0
        %6807 = vmatpush2.msra.mxu0 %v6627
        %6808 = vmatprep.subr.mxu0 0.0
        %6809 = vmatpush2.msra.mxu0 %v6626
        %6810 = vmatprep.subr.mxu0 0.0
        %6811 = vmatpush2.msra.mxu0 %v6625
        %6812 = vmatprep.mubr.f32.mxu0 %v5013
        %6813 = vmatmul.mubr.f32.gmra.mxu0 %v5012
        %v6814 = vpop.f32.mrf.mxu0
        %v6815 = vadd.f32 %v6745, %v6814
        %v6816 = vpop.f32.mrf.mxu0
        %6817 = vdwg.mxu0
        %6818 = vmatprep.subr.mxu0 0.0
        %6819 = vmatpush1.msra.mxu0 %v6656
        %6820 = vmatprep.subr.mxu0 0.0
        %6821 = vmatpush1.msra.mxu0 %v6655
        %6822 = vmatprep.subr.mxu0 0.0
        %6823 = vmatpush1.msra.mxu0 %v6654
        %6824 = vmatprep.subr.mxu0 0.0
        %6825 = vmatpush1.msra.mxu0 %v6653
        %6826 = vmatprep.subr.mxu0 0.0
        %6827 = vmatpush1.msra.mxu0 %v6652
        %6828 = vmatprep.subr.mxu0 0.0
        %6829 = vmatpush1.msra.mxu0 %v6651
        %6830 = vmatprep.subr.mxu0 0.0
        %6831 = vmatpush1.msra.mxu0 %v6650
        %6832 = vmatprep.subr.mxu0 0.0
        %6833 = vmatpush1.msra.mxu0 %v6649
        %6834 = vmatprep.subr.mxu0 0.0
        %6835 = vmatpush1.msra.mxu0 %v6648
        %6836 = vmatprep.subr.mxu0 0.0
        %6837 = vmatpush1.msra.mxu0 %v6647
        %6838 = vmatprep.subr.mxu0 0.0
        %6839 = vmatpush1.msra.mxu0 %v6646
        %6840 = vmatprep.subr.mxu0 0.0
        %6841 = vmatpush1.msra.mxu0 %v6645
        %6842 = vmatprep.subr.mxu0 0.0
        %6843 = vmatpush1.msra.mxu0 %v6644
        %6844 = vmatprep.subr.mxu0 0.0
        %6845 = vmatpush1.msra.mxu0 %v6643
        %6846 = vmatprep.subr.mxu0 0.0
        %6847 = vmatpush1.msra.mxu0 %v6642
        %6848 = vmatprep.subr.mxu0 0.0
        %6849 = vmatpush1.msra.mxu0 %v6641
        %6850 = vmatprep.subr.mxu0 0.0
        %6851 = vmatpush2.msra.mxu0 %v6672
        %6852 = vmatprep.subr.mxu0 0.0
        %6853 = vmatpush2.msra.mxu0 %v6671
        %6854 = vmatprep.subr.mxu0 0.0
        %6855 = vmatpush2.msra.mxu0 %v6670
        %6856 = vmatprep.subr.mxu0 0.0
        %6857 = vmatpush2.msra.mxu0 %v6669
        %6858 = vmatprep.subr.mxu0 0.0
        %6859 = vmatpush2.msra.mxu0 %v6668
        %6860 = vmatprep.subr.mxu0 0.0
        %6861 = vmatpush2.msra.mxu0 %v6667
        %6862 = vmatprep.subr.mxu0 0.0
        %6863 = vmatpush2.msra.mxu0 %v6666
        %6864 = vmatprep.subr.mxu0 0.0
        %6865 = vmatpush2.msra.mxu0 %v6665
        %6866 = vmatprep.subr.mxu0 0.0
        %6867 = vmatpush2.msra.mxu0 %v6664
        %6868 = vmatprep.subr.mxu0 0.0
        %6869 = vmatpush2.msra.mxu0 %v6663
        %6870 = vmatprep.subr.mxu0 0.0
        %6871 = vmatpush2.msra.mxu0 %v6662
        %6872 = vmatprep.subr.mxu0 0.0
        %6873 = vmatpush2.msra.mxu0 %v6661
        %6874 = vmatprep.subr.mxu0 0.0
        %6875 = vmatpush2.msra.mxu0 %v6660
        %6876 = vmatprep.subr.mxu0 0.0
        %6877 = vmatpush2.msra.mxu0 %v6659
        %6878 = vmatprep.subr.mxu0 0.0
        %6879 = vmatpush2.msra.mxu0 %v6658
        %6880 = vmatprep.subr.mxu0 0.0
        %6881 = vmatpush2.msra.mxu0 %v6657
        %6882 = vmatprep.mubr.f32.mxu0 %v5015
        %6883 = vmatmul.mubr.f32.gmra.mxu0 %v5014
        %v6884 = vpop.f32.mrf.mxu0
        %v6885 = vadd.f32 %v6815, %v6884
        %v6886 = vpop.f32.mrf.mxu0
        %6887 = vdwg.mxu0
        %6888 = vmatprep.subr.mxu0 0.0
        %6889 = vmatpush1.msra.mxu0 0.0
        %6890 = vmatprep.subr.mxu0 0.0
        %6891 = vmatpush1.msra.mxu0 0.0
        %6892 = vmatprep.subr.mxu0 0.0
        %6893 = vmatpush1.msra.mxu0 0.0
        %6894 = vmatprep.subr.mxu0 0.0
        %6895 = vmatpush1.msra.mxu0 0.0
        %6896 = vmatprep.subr.mxu0 0.0
        %6897 = vmatpush1.msra.mxu0 0.0
        %6898 = vmatprep.subr.mxu0 0.0
        %6899 = vmatpush1.msra.mxu0 0.0
        %6900 = vmatprep.subr.mxu0 0.0
        %6901 = vmatpush1.msra.mxu0 0.0
        %6902 = vmatprep.subr.mxu0 0.0
        %6903 = vmatpush1.msra.mxu0 0.0
        %6904 = vmatprep.subr.mxu0 0.0
        %6905 = vmatpush1.msra.mxu0 0.0
        %6906 = vmatprep.subr.mxu0 0.0
        %6907 = vmatpush1.msra.mxu0 0.0
        %6908 = vmatprep.subr.mxu0 0.0
        %6909 = vmatpush1.msra.mxu0 0.0
        %6910 = vmatprep.subr.mxu0 0.0
        %6911 = vmatpush1.msra.mxu0 0.0
        %6912 = vmatprep.subr.mxu0 0.0
        %6913 = vmatpush1.msra.mxu0 0.0
        %6914 = vmatprep.subr.mxu0 0.0
        %6915 = vmatpush1.msra.mxu0 0.0
        %6916 = vmatprep.subr.mxu0 0.0
        %6917 = vmatpush1.msra.mxu0 %v6674
        %6918 = vmatprep.subr.mxu0 0.0
        %6919 = vmatpush1.msra.mxu0 %v6673
        %6920 = vmatprep.subr.mxu0 0.0
        %6921 = vmatpush2.msra.mxu0 0.0
        %6922 = vmatprep.subr.mxu0 0.0
        %6923 = vmatpush2.msra.mxu0 0.0
        %6924 = vmatprep.subr.mxu0 0.0
        %6925 = vmatpush2.msra.mxu0 0.0
        %6926 = vmatprep.subr.mxu0 0.0
        %6927 = vmatpush2.msra.mxu0 0.0
        %6928 = vmatprep.subr.mxu0 0.0
        %6929 = vmatpush2.msra.mxu0 0.0
        %6930 = vmatprep.subr.mxu0 0.0
        %6931 = vmatpush2.msra.mxu0 0.0
        %6932 = vmatprep.subr.mxu0 0.0
        %6933 = vmatpush2.msra.mxu0 0.0
        %6934 = vmatprep.subr.mxu0 0.0
        %6935 = vmatpush2.msra.mxu0 0.0
        %6936 = vmatprep.subr.mxu0 0.0
        %6937 = vmatpush2.msra.mxu0 0.0
        %6938 = vmatprep.subr.mxu0 0.0
        %6939 = vmatpush2.msra.mxu0 0.0
        %6940 = vmatprep.subr.mxu0 0.0
        %6941 = vmatpush2.msra.mxu0 0.0
        %6942 = vmatprep.subr.mxu0 0.0
        %6943 = vmatpush2.msra.mxu0 0.0
        %6944 = vmatprep.subr.mxu0 0.0
        %6945 = vmatpush2.msra.mxu0 0.0
        %6946 = vmatprep.subr.mxu0 0.0
        %6947 = vmatpush2.msra.mxu0 0.0
        %6948 = vmatprep.subr.mxu0 0.0
        %6949 = vmatpush2.msra.mxu0 0.0
        %6950 = vmatprep.subr.mxu0 0.0
        %6951 = vmatpush2.msra.mxu0 0.0
        %6952 = vmatprep.mubr.f32.mxu0 0.0
        %6953 = vmatmul.mubr.f32.gmra.mxu0 %v6676
        %v6954 = vpop.f32.mrf.mxu0
        %v6955 = vadd.f32 %v6885, %v6954
        %v6956 = vpop.f32.mrf.mxu0
        %6957 = vdwg.mxu0
        %v6958 = vadd.f32 %v6575, %v6955
        %s6959 = scalar_lea.vmem %s6, 3920
        %v6960 = vld [vmem:[%s6959] sm:$0xff]
        %v6961 = vld [vmem:[%s6959 + $0x8] sm:$0xff]
        %v6962 = vld [vmem:[%s6959 + $0x10] sm:$0xff]
        %v6963 = vld [vmem:[%s6959 + $0x18] sm:$0xff]
        %v6964 = vld [vmem:[%s6959 + $0x20] sm:$0xff]
        %v6965 = vld [vmem:[%s6959 + $0x28] sm:$0xff]
        %v6966 = vld [vmem:[%s6959 + $0x30] sm:$0xff]
        %v6967 = vld [vmem:[%s6959 + $0x38] sm:$0xff]
        %v6968 = vld [vmem:[%s6959 + $0x40] sm:$0xff]
        %v6969 = vld [vmem:[%s6959 + $0x48] sm:$0xff]
        %v6970 = vld [vmem:[%s6959 + $0x50] sm:$0xff]
        %v6971 = vld [vmem:[%s6959 + $0x58] sm:$0xff]
        %v6972 = vld [vmem:[%s6959 + $0x60] sm:$0xff]
        %v6973 = vld [vmem:[%s6959 + $0x68] sm:$0xff]
        %v6974 = vld [vmem:[%s6959 + $0x70] sm:$0xff]
        %v6975 = vld [vmem:[%s6959 + $0x78] sm:$0xff]
        %v6976 = vld [vmem:[%s6959 + $0x80] sm:$0xff]
        %v6977 = vld [vmem:[%s6959 + $0x88] sm:$0xff]
        %v6978 = vld [vmem:[%s6959 + $0x90] sm:$0xff]
        %v6979 = vld [vmem:[%s6959 + $0x98] sm:$0xff]
        %v6980 = vld [vmem:[%s6959 + $0xa0] sm:$0xff]
        %v6981 = vld [vmem:[%s6959 + $0xa8] sm:$0xff]
        %v6982 = vld [vmem:[%s6959 + $0xb0] sm:$0xff]
        %v6983 = vld [vmem:[%s6959 + $0xb8] sm:$0xff]
        %v6984 = vld [vmem:[%s6959 + $0xc0] sm:$0xff]
        %v6985 = vld [vmem:[%s6959 + $0xc8] sm:$0xff]
        %v6986 = vld [vmem:[%s6959 + $0xd0] sm:$0xff]
        %v6987 = vld [vmem:[%s6959 + $0xd8] sm:$0xff]
        %v6988 = vld [vmem:[%s6959 + $0xe0] sm:$0xff]
        %v6989 = vld [vmem:[%s6959 + $0xe8] sm:$0xff]
        %v6990 = vld [vmem:[%s6959 + $0xf0] sm:$0xff]
        %v6991 = vld [vmem:[%s6959 + $0xf8] sm:$0xff]
        %v6992 = vld [vmem:[%s6959 + $0x100] sm:$0xff]
        %v6993 = vld [vmem:[%s6959 + $0x108] sm:$0xff]
        %v6994 = vld [vmem:[%s6959 + $0x110] sm:$0xff]
        %v6995 = vld [vmem:[%s6959 + $0x118] sm:$0xff]
        %v6996 = vld [vmem:[%s6959 + $0x120] sm:$0xff]
        %v6997 = vld [vmem:[%s6959 + $0x128] sm:$0xff]
        %v6998 = vld [vmem:[%s6959 + $0x130] sm:$0xff]
        %v6999 = vld [vmem:[%s6959 + $0x138] sm:$0xff]
        %v7000 = vld [vmem:[%s6959 + $0x140] sm:$0xff]
        %v7001 = vld [vmem:[%s6959 + $0x148] sm:$0xff]
        %v7002 = vld [vmem:[%s6959 + $0x150] sm:$0xff]
        %v7003 = vld [vmem:[%s6959 + $0x158] sm:$0xff]
        %v7004 = vld [vmem:[%s6959 + $0x160] sm:$0xff]
        %v7005 = vld [vmem:[%s6959 + $0x168] sm:$0xff]
        %v7006 = vld [vmem:[%s6959 + $0x170] sm:$0xff]
        %v7007 = vld [vmem:[%s6959 + $0x178] sm:$0xff]
        %v7008 = vld [vmem:[%s6959 + $0x180] sm:$0xff]
        %v7009 = vld [vmem:[%s6959 + $0x188] sm:$0xff]
        %v7010 = vld [vmem:[%s6959 + $0x190] sm:$0xff]
        %v7011 = vld [vmem:[%s6959 + $0x198] sm:$0xff]
        %v7012 = vld [vmem:[%s6959 + $0x1a0] sm:$0xff]
        %v7013 = vld [vmem:[%s6959 + $0x1a8] sm:$0xff]
        %v7014 = vld [vmem:[%s6959 + $0x1b0] sm:$0xff]
        %v7015 = vld [vmem:[%s6959 + $0x1b8] sm:$0xff]
        %v7016 = vld [vmem:[%s6959 + $0x1c0] sm:$0xff]
        %v7017 = vld [vmem:[%s6959 + $0x1c8] sm:$0xff]
        %v7018 = vld [vmem:[%s6959 + $0x1d0] sm:$0xff]
        %v7019 = vld [vmem:[%s6959 + $0x1d8] sm:$0xff]
        %v7020 = vld [vmem:[%s6959 + $0x1e0] sm:$0xff]
        %v7021 = vld [vmem:[%s6959 + $0x1e8] sm:$0xff]
        %v7022 = vld [vmem:[%s6959 + $0x1f0] sm:$0xff]
        %v7023 = vld [vmem:[%s6959 + $0x1f8] sm:$0xff]
        %v7024 = vld [vmem:[%s6959 + $0x200] sm:$0xff]
        %v7025 = vld [vmem:[%s6959 + $0x208] sm:$0xff]
        %v7026 = vld [vmem:[%s6959 + $0x210] sm:$0xff]
        %v7027 = vld [vmem:[%s6959 + $0x218] sm:$0xff]
        %v7028 = vld [vmem:[%s6959 + $0x220] sm:$0xff]
        %v7029 = vld [vmem:[%s6959 + $0x228] sm:$0xff]
        %v7030 = vld [vmem:[%s6959 + $0x230] sm:$0xff]
        %v7031 = vld [vmem:[%s6959 + $0x238] sm:$0xff]
        %v7032 = vld [vmem:[%s6959 + $0x240] sm:$0xff]
        %v7033 = vld [vmem:[%s6959 + $0x248] sm:$0xff]
        %v7034 = vld [vmem:[%s6959 + $0x250] sm:$0xff]
        %v7035 = vld [vmem:[%s6959 + $0x258] sm:$0xff]
        %v7036 = vld [vmem:[%s6959 + $0x260] sm:$0xff]
        %v7037 = vld [vmem:[%s6959 + $0x268] sm:$0xff]
        %v7038 = vld [vmem:[%s6959 + $0x270] sm:$0xff]
        %v7039 = vld [vmem:[%s6959 + $0x278] sm:$0xff]
        %v7040 = vld [vmem:[%s6959 + $0x280] sm:$0xff]
        %v7041 = vld [vmem:[%s6959 + $0x288] sm:$0xff]
        %v7042 = vld [vmem:[%s6959 + $0x290] sm:$0xff]
        %v7043 = vld [vmem:[%s6959 + $0x298] sm:$0xff]
        %v7044 = vld [vmem:[%s6959 + $0x2a0] sm:$0xff]
        %v7045 = vld [vmem:[%s6959 + $0x2a8] sm:$0xff]
        %v7046 = vld [vmem:[%s6959 + $0x2b0] sm:$0xff]
        %v7047 = vld [vmem:[%s6959 + $0x2b8] sm:$0xff]
        %v7048 = vld [vmem:[%s6959 + $0x2c0] sm:$0xff]
        %v7049 = vld [vmem:[%s6959 + $0x2c8] sm:$0xff]
        %v7050 = vld [vmem:[%s6959 + $0x2d0] sm:$0xff]
        %v7051 = vld [vmem:[%s6959 + $0x2d8] sm:$0xff]
        %v7052 = vld [vmem:[%s6959 + $0x2e0] sm:$0xff]
        %v7053 = vld [vmem:[%s6959 + $0x2e8] sm:$0xff]
        %v7054 = vld [vmem:[%s6959 + $0x2f0] sm:$0xff]
        %v7055 = vld [vmem:[%s6959 + $0x2f8] sm:$0xff]
        %v7056 = vld [vmem:[%s6959 + $0x300] sm:$0xff]
        %v7057 = vld [vmem:[%s6959 + $0x308] sm:$0xff]
        %v7059 = vsel %vm549, %v5023, 0
        %7061 = vmatprep.subr.mxu0 0.0
        %7062 = vmatpush1.msra.mxu0 %v6975
        %7063 = vmatprep.subr.mxu0 0.0
        %7064 = vmatpush1.msra.mxu0 %v6974
        %7065 = vmatprep.subr.mxu0 0.0
        %7066 = vmatpush1.msra.mxu0 %v6973
        %7067 = vmatprep.subr.mxu0 0.0
        %7068 = vmatpush1.msra.mxu0 %v6972
        %7069 = vmatprep.subr.mxu0 0.0
        %7070 = vmatpush1.msra.mxu0 %v6971
        %7071 = vmatprep.subr.mxu0 0.0
        %7072 = vmatpush1.msra.mxu0 %v6970
        %7073 = vmatprep.subr.mxu0 0.0
        %7074 = vmatpush1.msra.mxu0 %v6969
        %7075 = vmatprep.subr.mxu0 0.0
        %7076 = vmatpush1.msra.mxu0 %v6968
        %7077 = vmatprep.subr.mxu0 0.0
        %7078 = vmatpush1.msra.mxu0 %v6967
        %7079 = vmatprep.subr.mxu0 0.0
        %7080 = vmatpush1.msra.mxu0 %v6966
        %7081 = vmatprep.subr.mxu0 0.0
        %7082 = vmatpush1.msra.mxu0 %v6965
        %7083 = vmatprep.subr.mxu0 0.0
        %7084 = vmatpush1.msra.mxu0 %v6964
        %7085 = vmatprep.subr.mxu0 0.0
        %7086 = vmatpush1.msra.mxu0 %v6963
        %7087 = vmatprep.subr.mxu0 0.0
        %7088 = vmatpush1.msra.mxu0 %v6962
        %7089 = vmatprep.subr.mxu0 0.0
        %7090 = vmatpush1.msra.mxu0 %v6961
        %7091 = vmatprep.subr.mxu0 0.0
        %7092 = vmatpush1.msra.mxu0 %v6960
        %7093 = vmatprep.subr.mxu0 0.0
        %7094 = vmatpush2.msra.mxu0 %v6991
        %7095 = vmatprep.subr.mxu0 0.0
        %7096 = vmatpush2.msra.mxu0 %v6990
        %7097 = vmatprep.subr.mxu0 0.0
        %7098 = vmatpush2.msra.mxu0 %v6989
        %7099 = vmatprep.subr.mxu0 0.0
        %7100 = vmatpush2.msra.mxu0 %v6988
        %7101 = vmatprep.subr.mxu0 0.0
        %7102 = vmatpush2.msra.mxu0 %v6987
        %7103 = vmatprep.subr.mxu0 0.0
        %7104 = vmatpush2.msra.mxu0 %v6986
        %7105 = vmatprep.subr.mxu0 0.0
        %7106 = vmatpush2.msra.mxu0 %v6985
        %7107 = vmatprep.subr.mxu0 0.0
        %7108 = vmatpush2.msra.mxu0 %v6984
        %7109 = vmatprep.subr.mxu0 0.0
        %7110 = vmatpush2.msra.mxu0 %v6983
        %7111 = vmatprep.subr.mxu0 0.0
        %7112 = vmatpush2.msra.mxu0 %v6982
        %7113 = vmatprep.subr.mxu0 0.0
        %7114 = vmatpush2.msra.mxu0 %v6981
        %7115 = vmatprep.subr.mxu0 0.0
        %7116 = vmatpush2.msra.mxu0 %v6980
        %7117 = vmatprep.subr.mxu0 0.0
        %7118 = vmatpush2.msra.mxu0 %v6979
        %7119 = vmatprep.subr.mxu0 0.0
        %7120 = vmatpush2.msra.mxu0 %v6978
        %7121 = vmatprep.subr.mxu0 0.0
        %7122 = vmatpush2.msra.mxu0 %v6977
        %7123 = vmatprep.subr.mxu0 0.0
        %7124 = vmatpush2.msra.mxu0 %v6976
        %7125 = vmatprep.mubr.f32.mxu0 %v5018
        %7126 = vmatmul.mubr.f32.gmra.mxu0 %v5017
        %v7127 = vpop.f32.mrf.mxu0
        %v7128 = vadd.f32 0.0, %v7127
        %v7129 = vpop.f32.mrf.mxu0
        %7130 = vdwg.mxu0
        %7131 = vmatprep.subr.mxu0 0.0
        %7132 = vmatpush1.msra.mxu0 %v7007
        %7133 = vmatprep.subr.mxu0 0.0
        %7134 = vmatpush1.msra.mxu0 %v7006
        %7135 = vmatprep.subr.mxu0 0.0
        %7136 = vmatpush1.msra.mxu0 %v7005
        %7137 = vmatprep.subr.mxu0 0.0
        %7138 = vmatpush1.msra.mxu0 %v7004
        %7139 = vmatprep.subr.mxu0 0.0
        %7140 = vmatpush1.msra.mxu0 %v7003
        %7141 = vmatprep.subr.mxu0 0.0
        %7142 = vmatpush1.msra.mxu0 %v7002
        %7143 = vmatprep.subr.mxu0 0.0
        %7144 = vmatpush1.msra.mxu0 %v7001
        %7145 = vmatprep.subr.mxu0 0.0
        %7146 = vmatpush1.msra.mxu0 %v7000
        %7147 = vmatprep.subr.mxu0 0.0
        %7148 = vmatpush1.msra.mxu0 %v6999
        %7149 = vmatprep.subr.mxu0 0.0
        %7150 = vmatpush1.msra.mxu0 %v6998
        %7151 = vmatprep.subr.mxu0 0.0
        %7152 = vmatpush1.msra.mxu0 %v6997
        %7153 = vmatprep.subr.mxu0 0.0
        %7154 = vmatpush1.msra.mxu0 %v6996
        %7155 = vmatprep.subr.mxu0 0.0
        %7156 = vmatpush1.msra.mxu0 %v6995
        %7157 = vmatprep.subr.mxu0 0.0
        %7158 = vmatpush1.msra.mxu0 %v6994
        %7159 = vmatprep.subr.mxu0 0.0
        %7160 = vmatpush1.msra.mxu0 %v6993
        %7161 = vmatprep.subr.mxu0 0.0
        %7162 = vmatpush1.msra.mxu0 %v6992
        %7163 = vmatprep.subr.mxu0 0.0
        %7164 = vmatpush2.msra.mxu0 %v7023
        %7165 = vmatprep.subr.mxu0 0.0
        %7166 = vmatpush2.msra.mxu0 %v7022
        %7167 = vmatprep.subr.mxu0 0.0
        %7168 = vmatpush2.msra.mxu0 %v7021
        %7169 = vmatprep.subr.mxu0 0.0
        %7170 = vmatpush2.msra.mxu0 %v7020
        %7171 = vmatprep.subr.mxu0 0.0
        %7172 = vmatpush2.msra.mxu0 %v7019
        %7173 = vmatprep.subr.mxu0 0.0
        %7174 = vmatpush2.msra.mxu0 %v7018
        %7175 = vmatprep.subr.mxu0 0.0
        %7176 = vmatpush2.msra.mxu0 %v7017
        %7177 = vmatprep.subr.mxu0 0.0
        %7178 = vmatpush2.msra.mxu0 %v7016
        %7179 = vmatprep.subr.mxu0 0.0
        %7180 = vmatpush2.msra.mxu0 %v7015
        %7181 = vmatprep.subr.mxu0 0.0
        %7182 = vmatpush2.msra.mxu0 %v7014
        %7183 = vmatprep.subr.mxu0 0.0
        %7184 = vmatpush2.msra.mxu0 %v7013
        %7185 = vmatprep.subr.mxu0 0.0
        %7186 = vmatpush2.msra.mxu0 %v7012
        %7187 = vmatprep.subr.mxu0 0.0
        %7188 = vmatpush2.msra.mxu0 %v7011
        %7189 = vmatprep.subr.mxu0 0.0
        %7190 = vmatpush2.msra.mxu0 %v7010
        %7191 = vmatprep.subr.mxu0 0.0
        %7192 = vmatpush2.msra.mxu0 %v7009
        %7193 = vmatprep.subr.mxu0 0.0
        %7194 = vmatpush2.msra.mxu0 %v7008
        %7195 = vmatprep.mubr.f32.mxu0 %v5020
        %7196 = vmatmul.mubr.f32.gmra.mxu0 %v5019
        %v7197 = vpop.f32.mrf.mxu0
        %v7198 = vadd.f32 %v7128, %v7197
        %v7199 = vpop.f32.mrf.mxu0
        %7200 = vdwg.mxu0
        %7201 = vmatprep.subr.mxu0 0.0
        %7202 = vmatpush1.msra.mxu0 %v7039
        %7203 = vmatprep.subr.mxu0 0.0
        %7204 = vmatpush1.msra.mxu0 %v7038
        %7205 = vmatprep.subr.mxu0 0.0
        %7206 = vmatpush1.msra.mxu0 %v7037
        %7207 = vmatprep.subr.mxu0 0.0
        %7208 = vmatpush1.msra.mxu0 %v7036
        %7209 = vmatprep.subr.mxu0 0.0
        %7210 = vmatpush1.msra.mxu0 %v7035
        %7211 = vmatprep.subr.mxu0 0.0
        %7212 = vmatpush1.msra.mxu0 %v7034
        %7213 = vmatprep.subr.mxu0 0.0
        %7214 = vmatpush1.msra.mxu0 %v7033
        %7215 = vmatprep.subr.mxu0 0.0
        %7216 = vmatpush1.msra.mxu0 %v7032
        %7217 = vmatprep.subr.mxu0 0.0
        %7218 = vmatpush1.msra.mxu0 %v7031
        %7219 = vmatprep.subr.mxu0 0.0
        %7220 = vmatpush1.msra.mxu0 %v7030
        %7221 = vmatprep.subr.mxu0 0.0
        %7222 = vmatpush1.msra.mxu0 %v7029
        %7223 = vmatprep.subr.mxu0 0.0
        %7224 = vmatpush1.msra.mxu0 %v7028
        %7225 = vmatprep.subr.mxu0 0.0
        %7226 = vmatpush1.msra.mxu0 %v7027
        %7227 = vmatprep.subr.mxu0 0.0
        %7228 = vmatpush1.msra.mxu0 %v7026
        %7229 = vmatprep.subr.mxu0 0.0
        %7230 = vmatpush1.msra.mxu0 %v7025
        %7231 = vmatprep.subr.mxu0 0.0
        %7232 = vmatpush1.msra.mxu0 %v7024
        %7233 = vmatprep.subr.mxu0 0.0
        %7234 = vmatpush2.msra.mxu0 %v7055
        %7235 = vmatprep.subr.mxu0 0.0
        %7236 = vmatpush2.msra.mxu0 %v7054
        %7237 = vmatprep.subr.mxu0 0.0
        %7238 = vmatpush2.msra.mxu0 %v7053
        %7239 = vmatprep.subr.mxu0 0.0
        %7240 = vmatpush2.msra.mxu0 %v7052
        %7241 = vmatprep.subr.mxu0 0.0
        %7242 = vmatpush2.msra.mxu0 %v7051
        %7243 = vmatprep.subr.mxu0 0.0
        %7244 = vmatpush2.msra.mxu0 %v7050
        %7245 = vmatprep.subr.mxu0 0.0
        %7246 = vmatpush2.msra.mxu0 %v7049
        %7247 = vmatprep.subr.mxu0 0.0
        %7248 = vmatpush2.msra.mxu0 %v7048
        %7249 = vmatprep.subr.mxu0 0.0
        %7250 = vmatpush2.msra.mxu0 %v7047
        %7251 = vmatprep.subr.mxu0 0.0
        %7252 = vmatpush2.msra.mxu0 %v7046
        %7253 = vmatprep.subr.mxu0 0.0
        %7254 = vmatpush2.msra.mxu0 %v7045
        %7255 = vmatprep.subr.mxu0 0.0
        %7256 = vmatpush2.msra.mxu0 %v7044
        %7257 = vmatprep.subr.mxu0 0.0
        %7258 = vmatpush2.msra.mxu0 %v7043
        %7259 = vmatprep.subr.mxu0 0.0
        %7260 = vmatpush2.msra.mxu0 %v7042
        %7261 = vmatprep.subr.mxu0 0.0
        %7262 = vmatpush2.msra.mxu0 %v7041
        %7263 = vmatprep.subr.mxu0 0.0
        %7264 = vmatpush2.msra.mxu0 %v7040
        %7265 = vmatprep.mubr.f32.mxu0 %v5022
        %7266 = vmatmul.mubr.f32.gmra.mxu0 %v5021
        %v7267 = vpop.f32.mrf.mxu0
        %v7268 = vadd.f32 %v7198, %v7267
        %v7269 = vpop.f32.mrf.mxu0
        %7270 = vdwg.mxu0
        %7271 = vmatprep.subr.mxu0 0.0
        %7272 = vmatpush1.msra.mxu0 0.0
        %7273 = vmatprep.subr.mxu0 0.0
        %7274 = vmatpush1.msra.mxu0 0.0
        %7275 = vmatprep.subr.mxu0 0.0
        %7276 = vmatpush1.msra.mxu0 0.0
        %7277 = vmatprep.subr.mxu0 0.0
        %7278 = vmatpush1.msra.mxu0 0.0
        %7279 = vmatprep.subr.mxu0 0.0
        %7280 = vmatpush1.msra.mxu0 0.0
        %7281 = vmatprep.subr.mxu0 0.0
        %7282 = vmatpush1.msra.mxu0 0.0
        %7283 = vmatprep.subr.mxu0 0.0
        %7284 = vmatpush1.msra.mxu0 0.0
        %7285 = vmatprep.subr.mxu0 0.0
        %7286 = vmatpush1.msra.mxu0 0.0
        %7287 = vmatprep.subr.mxu0 0.0
        %7288 = vmatpush1.msra.mxu0 0.0
        %7289 = vmatprep.subr.mxu0 0.0
        %7290 = vmatpush1.msra.mxu0 0.0
        %7291 = vmatprep.subr.mxu0 0.0
        %7292 = vmatpush1.msra.mxu0 0.0
        %7293 = vmatprep.subr.mxu0 0.0
        %7294 = vmatpush1.msra.mxu0 0.0
        %7295 = vmatprep.subr.mxu0 0.0
        %7296 = vmatpush1.msra.mxu0 0.0
        %7297 = vmatprep.subr.mxu0 0.0
        %7298 = vmatpush1.msra.mxu0 0.0
        %7299 = vmatprep.subr.mxu0 0.0
        %7300 = vmatpush1.msra.mxu0 %v7057
        %7301 = vmatprep.subr.mxu0 0.0
        %7302 = vmatpush1.msra.mxu0 %v7056
        %7303 = vmatprep.subr.mxu0 0.0
        %7304 = vmatpush2.msra.mxu0 0.0
        %7305 = vmatprep.subr.mxu0 0.0
        %7306 = vmatpush2.msra.mxu0 0.0
        %7307 = vmatprep.subr.mxu0 0.0
        %7308 = vmatpush2.msra.mxu0 0.0
        %7309 = vmatprep.subr.mxu0 0.0
        %7310 = vmatpush2.msra.mxu0 0.0
        %7311 = vmatprep.subr.mxu0 0.0
        %7312 = vmatpush2.msra.mxu0 0.0
        %7313 = vmatprep.subr.mxu0 0.0
        %7314 = vmatpush2.msra.mxu0 0.0
        %7315 = vmatprep.subr.mxu0 0.0
        %7316 = vmatpush2.msra.mxu0 0.0
        %7317 = vmatprep.subr.mxu0 0.0
        %7318 = vmatpush2.msra.mxu0 0.0
        %7319 = vmatprep.subr.mxu0 0.0
        %7320 = vmatpush2.msra.mxu0 0.0
        %7321 = vmatprep.subr.mxu0 0.0
        %7322 = vmatpush2.msra.mxu0 0.0
        %7323 = vmatprep.subr.mxu0 0.0
        %7324 = vmatpush2.msra.mxu0 0.0
        %7325 = vmatprep.subr.mxu0 0.0
        %7326 = vmatpush2.msra.mxu0 0.0
        %7327 = vmatprep.subr.mxu0 0.0
        %7328 = vmatpush2.msra.mxu0 0.0
        %7329 = vmatprep.subr.mxu0 0.0
        %7330 = vmatpush2.msra.mxu0 0.0
        %7331 = vmatprep.subr.mxu0 0.0
        %7332 = vmatpush2.msra.mxu0 0.0
        %7333 = vmatprep.subr.mxu0 0.0
        %7334 = vmatpush2.msra.mxu0 0.0
        %7335 = vmatprep.mubr.f32.mxu0 0.0
        %7336 = vmatmul.mubr.f32.gmra.mxu0 %v7059
        %v7337 = vpop.f32.mrf.mxu0
        %v7338 = vadd.f32 %v7268, %v7337
        %v7339 = vpop.f32.mrf.mxu0
        %7340 = vdwg.mxu0
        %v7341 = vadd.f32 %v6958, %v7338
        %s7342 = scalar_lea.vmem %s6, 4704
        %v7343 = vld [vmem:[%s7342] sm:$0xff]
        %v7344 = vld [vmem:[%s7342 + $0x8] sm:$0xff]
        %v7345 = vld [vmem:[%s7342 + $0x10] sm:$0xff]
        %v7346 = vld [vmem:[%s7342 + $0x18] sm:$0xff]
        %v7347 = vld [vmem:[%s7342 + $0x20] sm:$0xff]
        %v7348 = vld [vmem:[%s7342 + $0x28] sm:$0xff]
        %v7349 = vld [vmem:[%s7342 + $0x30] sm:$0xff]
        %v7350 = vld [vmem:[%s7342 + $0x38] sm:$0xff]
        %v7351 = vld [vmem:[%s7342 + $0x40] sm:$0xff]
        %v7352 = vld [vmem:[%s7342 + $0x48] sm:$0xff]
        %v7353 = vld [vmem:[%s7342 + $0x50] sm:$0xff]
        %v7354 = vld [vmem:[%s7342 + $0x58] sm:$0xff]
        %v7355 = vld [vmem:[%s7342 + $0x60] sm:$0xff]
        %v7356 = vld [vmem:[%s7342 + $0x68] sm:$0xff]
        %v7357 = vld [vmem:[%s7342 + $0x70] sm:$0xff]
        %v7358 = vld [vmem:[%s7342 + $0x78] sm:$0xff]
        %v7359 = vld [vmem:[%s7342 + $0x80] sm:$0xff]
        %v7360 = vld [vmem:[%s7342 + $0x88] sm:$0xff]
        %v7361 = vld [vmem:[%s7342 + $0x90] sm:$0xff]
        %v7362 = vld [vmem:[%s7342 + $0x98] sm:$0xff]
        %v7363 = vld [vmem:[%s7342 + $0xa0] sm:$0xff]
        %v7364 = vld [vmem:[%s7342 + $0xa8] sm:$0xff]
        %v7365 = vld [vmem:[%s7342 + $0xb0] sm:$0xff]
        %v7366 = vld [vmem:[%s7342 + $0xb8] sm:$0xff]
        %v7367 = vld [vmem:[%s7342 + $0xc0] sm:$0xff]
        %v7368 = vld [vmem:[%s7342 + $0xc8] sm:$0xff]
        %v7369 = vld [vmem:[%s7342 + $0xd0] sm:$0xff]
        %v7370 = vld [vmem:[%s7342 + $0xd8] sm:$0xff]
        %v7371 = vld [vmem:[%s7342 + $0xe0] sm:$0xff]
        %v7372 = vld [vmem:[%s7342 + $0xe8] sm:$0xff]
        %v7373 = vld [vmem:[%s7342 + $0xf0] sm:$0xff]
        %v7374 = vld [vmem:[%s7342 + $0xf8] sm:$0xff]
        %v7375 = vld [vmem:[%s7342 + $0x100] sm:$0xff]
        %v7376 = vld [vmem:[%s7342 + $0x108] sm:$0xff]
        %v7377 = vld [vmem:[%s7342 + $0x110] sm:$0xff]
        %v7378 = vld [vmem:[%s7342 + $0x118] sm:$0xff]
        %v7379 = vld [vmem:[%s7342 + $0x120] sm:$0xff]
        %v7380 = vld [vmem:[%s7342 + $0x128] sm:$0xff]
        %v7381 = vld [vmem:[%s7342 + $0x130] sm:$0xff]
        %v7382 = vld [vmem:[%s7342 + $0x138] sm:$0xff]
        %v7383 = vld [vmem:[%s7342 + $0x140] sm:$0xff]
        %v7384 = vld [vmem:[%s7342 + $0x148] sm:$0xff]
        %v7385 = vld [vmem:[%s7342 + $0x150] sm:$0xff]
        %v7386 = vld [vmem:[%s7342 + $0x158] sm:$0xff]
        %v7387 = vld [vmem:[%s7342 + $0x160] sm:$0xff]
        %v7388 = vld [vmem:[%s7342 + $0x168] sm:$0xff]
        %v7389 = vld [vmem:[%s7342 + $0x170] sm:$0xff]
        %v7390 = vld [vmem:[%s7342 + $0x178] sm:$0xff]
        %v7391 = vld [vmem:[%s7342 + $0x180] sm:$0xff]
        %v7392 = vld [vmem:[%s7342 + $0x188] sm:$0xff]
        %v7393 = vld [vmem:[%s7342 + $0x190] sm:$0xff]
        %v7394 = vld [vmem:[%s7342 + $0x198] sm:$0xff]
        %v7395 = vld [vmem:[%s7342 + $0x1a0] sm:$0xff]
        %v7396 = vld [vmem:[%s7342 + $0x1a8] sm:$0xff]
        %v7397 = vld [vmem:[%s7342 + $0x1b0] sm:$0xff]
        %v7398 = vld [vmem:[%s7342 + $0x1b8] sm:$0xff]
        %v7399 = vld [vmem:[%s7342 + $0x1c0] sm:$0xff]
        %v7400 = vld [vmem:[%s7342 + $0x1c8] sm:$0xff]
        %v7401 = vld [vmem:[%s7342 + $0x1d0] sm:$0xff]
        %v7402 = vld [vmem:[%s7342 + $0x1d8] sm:$0xff]
        %v7403 = vld [vmem:[%s7342 + $0x1e0] sm:$0xff]
        %v7404 = vld [vmem:[%s7342 + $0x1e8] sm:$0xff]
        %v7405 = vld [vmem:[%s7342 + $0x1f0] sm:$0xff]
        %v7406 = vld [vmem:[%s7342 + $0x1f8] sm:$0xff]
        %v7407 = vld [vmem:[%s7342 + $0x200] sm:$0xff]
        %v7408 = vld [vmem:[%s7342 + $0x208] sm:$0xff]
        %v7409 = vld [vmem:[%s7342 + $0x210] sm:$0xff]
        %v7410 = vld [vmem:[%s7342 + $0x218] sm:$0xff]
        %v7411 = vld [vmem:[%s7342 + $0x220] sm:$0xff]
        %v7412 = vld [vmem:[%s7342 + $0x228] sm:$0xff]
        %v7413 = vld [vmem:[%s7342 + $0x230] sm:$0xff]
        %v7414 = vld [vmem:[%s7342 + $0x238] sm:$0xff]
        %v7415 = vld [vmem:[%s7342 + $0x240] sm:$0xff]
        %v7416 = vld [vmem:[%s7342 + $0x248] sm:$0xff]
        %v7417 = vld [vmem:[%s7342 + $0x250] sm:$0xff]
        %v7418 = vld [vmem:[%s7342 + $0x258] sm:$0xff]
        %v7419 = vld [vmem:[%s7342 + $0x260] sm:$0xff]
        %v7420 = vld [vmem:[%s7342 + $0x268] sm:$0xff]
        %v7421 = vld [vmem:[%s7342 + $0x270] sm:$0xff]
        %v7422 = vld [vmem:[%s7342 + $0x278] sm:$0xff]
        %v7423 = vld [vmem:[%s7342 + $0x280] sm:$0xff]
        %v7424 = vld [vmem:[%s7342 + $0x288] sm:$0xff]
        %v7425 = vld [vmem:[%s7342 + $0x290] sm:$0xff]
        %v7426 = vld [vmem:[%s7342 + $0x298] sm:$0xff]
        %v7427 = vld [vmem:[%s7342 + $0x2a0] sm:$0xff]
        %v7428 = vld [vmem:[%s7342 + $0x2a8] sm:$0xff]
        %v7429 = vld [vmem:[%s7342 + $0x2b0] sm:$0xff]
        %v7430 = vld [vmem:[%s7342 + $0x2b8] sm:$0xff]
        %v7431 = vld [vmem:[%s7342 + $0x2c0] sm:$0xff]
        %v7432 = vld [vmem:[%s7342 + $0x2c8] sm:$0xff]
        %v7433 = vld [vmem:[%s7342 + $0x2d0] sm:$0xff]
        %v7434 = vld [vmem:[%s7342 + $0x2d8] sm:$0xff]
        %v7435 = vld [vmem:[%s7342 + $0x2e0] sm:$0xff]
        %v7436 = vld [vmem:[%s7342 + $0x2e8] sm:$0xff]
        %v7437 = vld [vmem:[%s7342 + $0x2f0] sm:$0xff]
        %v7438 = vld [vmem:[%s7342 + $0x2f8] sm:$0xff]
        %v7439 = vld [vmem:[%s7342 + $0x300] sm:$0xff]
        %v7440 = vld [vmem:[%s7342 + $0x308] sm:$0xff]
        %v7442 = vsel %vm549, %v5030, 0
        %7444 = vmatprep.subr.mxu0 0.0
        %7445 = vmatpush1.msra.mxu0 %v7358
        %7446 = vmatprep.subr.mxu0 0.0
        %7447 = vmatpush1.msra.mxu0 %v7357
        %7448 = vmatprep.subr.mxu0 0.0
        %7449 = vmatpush1.msra.mxu0 %v7356
        %7450 = vmatprep.subr.mxu0 0.0
        %7451 = vmatpush1.msra.mxu0 %v7355
        %7452 = vmatprep.subr.mxu0 0.0
        %7453 = vmatpush1.msra.mxu0 %v7354
        %7454 = vmatprep.subr.mxu0 0.0
        %7455 = vmatpush1.msra.mxu0 %v7353
        %7456 = vmatprep.subr.mxu0 0.0
        %7457 = vmatpush1.msra.mxu0 %v7352
        %7458 = vmatprep.subr.mxu0 0.0
        %7459 = vmatpush1.msra.mxu0 %v7351
        %7460 = vmatprep.subr.mxu0 0.0
        %7461 = vmatpush1.msra.mxu0 %v7350
        %7462 = vmatprep.subr.mxu0 0.0
        %7463 = vmatpush1.msra.mxu0 %v7349
        %7464 = vmatprep.subr.mxu0 0.0
        %7465 = vmatpush1.msra.mxu0 %v7348
        %7466 = vmatprep.subr.mxu0 0.0
        %7467 = vmatpush1.msra.mxu0 %v7347
        %7468 = vmatprep.subr.mxu0 0.0
        %7469 = vmatpush1.msra.mxu0 %v7346
        %7470 = vmatprep.subr.mxu0 0.0
        %7471 = vmatpush1.msra.mxu0 %v7345
        %7472 = vmatprep.subr.mxu0 0.0
        %7473 = vmatpush1.msra.mxu0 %v7344
        %7474 = vmatprep.subr.mxu0 0.0
        %7475 = vmatpush1.msra.mxu0 %v7343
        %7476 = vmatprep.subr.mxu0 0.0
        %7477 = vmatpush2.msra.mxu0 %v7374
        %7478 = vmatprep.subr.mxu0 0.0
        %7479 = vmatpush2.msra.mxu0 %v7373
        %7480 = vmatprep.subr.mxu0 0.0
        %7481 = vmatpush2.msra.mxu0 %v7372
        %7482 = vmatprep.subr.mxu0 0.0
        %7483 = vmatpush2.msra.mxu0 %v7371
        %7484 = vmatprep.subr.mxu0 0.0
        %7485 = vmatpush2.msra.mxu0 %v7370
        %7486 = vmatprep.subr.mxu0 0.0
        %7487 = vmatpush2.msra.mxu0 %v7369
        %7488 = vmatprep.subr.mxu0 0.0
        %7489 = vmatpush2.msra.mxu0 %v7368
        %7490 = vmatprep.subr.mxu0 0.0
        %7491 = vmatpush2.msra.mxu0 %v7367
        %7492 = vmatprep.subr.mxu0 0.0
        %7493 = vmatpush2.msra.mxu0 %v7366
        %7494 = vmatprep.subr.mxu0 0.0
        %7495 = vmatpush2.msra.mxu0 %v7365
        %7496 = vmatprep.subr.mxu0 0.0
        %7497 = vmatpush2.msra.mxu0 %v7364
        %7498 = vmatprep.subr.mxu0 0.0
        %7499 = vmatpush2.msra.mxu0 %v7363
        %7500 = vmatprep.subr.mxu0 0.0
        %7501 = vmatpush2.msra.mxu0 %v7362
        %7502 = vmatprep.subr.mxu0 0.0
        %7503 = vmatpush2.msra.mxu0 %v7361
        %7504 = vmatprep.subr.mxu0 0.0
        %7505 = vmatpush2.msra.mxu0 %v7360
        %7506 = vmatprep.subr.mxu0 0.0
        %7507 = vmatpush2.msra.mxu0 %v7359
        %7508 = vmatprep.mubr.f32.mxu0 %v5025
        %7509 = vmatmul.mubr.f32.gmra.mxu0 %v5024
        %v7510 = vpop.f32.mrf.mxu0
        %v7511 = vadd.f32 0.0, %v7510
        %v7512 = vpop.f32.mrf.mxu0
        %7513 = vdwg.mxu0
        %7514 = vmatprep.subr.mxu0 0.0
        %7515 = vmatpush1.msra.mxu0 %v7390
        %7516 = vmatprep.subr.mxu0 0.0
        %7517 = vmatpush1.msra.mxu0 %v7389
        %7518 = vmatprep.subr.mxu0 0.0
        %7519 = vmatpush1.msra.mxu0 %v7388
        %7520 = vmatprep.subr.mxu0 0.0
        %7521 = vmatpush1.msra.mxu0 %v7387
        %7522 = vmatprep.subr.mxu0 0.0
        %7523 = vmatpush1.msra.mxu0 %v7386
        %7524 = vmatprep.subr.mxu0 0.0
        %7525 = vmatpush1.msra.mxu0 %v7385
        %7526 = vmatprep.subr.mxu0 0.0
        %7527 = vmatpush1.msra.mxu0 %v7384
        %7528 = vmatprep.subr.mxu0 0.0
        %7529 = vmatpush1.msra.mxu0 %v7383
        %7530 = vmatprep.subr.mxu0 0.0
        %7531 = vmatpush1.msra.mxu0 %v7382
        %7532 = vmatprep.subr.mxu0 0.0
        %7533 = vmatpush1.msra.mxu0 %v7381
        %7534 = vmatprep.subr.mxu0 0.0
        %7535 = vmatpush1.msra.mxu0 %v7380
        %7536 = vmatprep.subr.mxu0 0.0
        %7537 = vmatpush1.msra.mxu0 %v7379
        %7538 = vmatprep.subr.mxu0 0.0
        %7539 = vmatpush1.msra.mxu0 %v7378
        %7540 = vmatprep.subr.mxu0 0.0
        %7541 = vmatpush1.msra.mxu0 %v7377
        %7542 = vmatprep.subr.mxu0 0.0
        %7543 = vmatpush1.msra.mxu0 %v7376
        %7544 = vmatprep.subr.mxu0 0.0
        %7545 = vmatpush1.msra.mxu0 %v7375
        %7546 = vmatprep.subr.mxu0 0.0
        %7547 = vmatpush2.msra.mxu0 %v7406
        %7548 = vmatprep.subr.mxu0 0.0
        %7549 = vmatpush2.msra.mxu0 %v7405
        %7550 = vmatprep.subr.mxu0 0.0
        %7551 = vmatpush2.msra.mxu0 %v7404
        %7552 = vmatprep.subr.mxu0 0.0
        %7553 = vmatpush2.msra.mxu0 %v7403
        %7554 = vmatprep.subr.mxu0 0.0
        %7555 = vmatpush2.msra.mxu0 %v7402
        %7556 = vmatprep.subr.mxu0 0.0
        %7557 = vmatpush2.msra.mxu0 %v7401
        %7558 = vmatprep.subr.mxu0 0.0
        %7559 = vmatpush2.msra.mxu0 %v7400
        %7560 = vmatprep.subr.mxu0 0.0
        %7561 = vmatpush2.msra.mxu0 %v7399
        %7562 = vmatprep.subr.mxu0 0.0
        %7563 = vmatpush2.msra.mxu0 %v7398
        %7564 = vmatprep.subr.mxu0 0.0
        %7565 = vmatpush2.msra.mxu0 %v7397
        %7566 = vmatprep.subr.mxu0 0.0
        %7567 = vmatpush2.msra.mxu0 %v7396
        %7568 = vmatprep.subr.mxu0 0.0
        %7569 = vmatpush2.msra.mxu0 %v7395
        %7570 = vmatprep.subr.mxu0 0.0
        %7571 = vmatpush2.msra.mxu0 %v7394
        %7572 = vmatprep.subr.mxu0 0.0
        %7573 = vmatpush2.msra.mxu0 %v7393
        %7574 = vmatprep.subr.mxu0 0.0
        %7575 = vmatpush2.msra.mxu0 %v7392
        %7576 = vmatprep.subr.mxu0 0.0
        %7577 = vmatpush2.msra.mxu0 %v7391
        %7578 = vmatprep.mubr.f32.mxu0 %v5027
        %7579 = vmatmul.mubr.f32.gmra.mxu0 %v5026
        %v7580 = vpop.f32.mrf.mxu0
        %v7581 = vadd.f32 %v7511, %v7580
        %v7582 = vpop.f32.mrf.mxu0
        %7583 = vdwg.mxu0
        %7584 = vmatprep.subr.mxu0 0.0
        %7585 = vmatpush1.msra.mxu0 %v7422
        %7586 = vmatprep.subr.mxu0 0.0
        %7587 = vmatpush1.msra.mxu0 %v7421
        %7588 = vmatprep.subr.mxu0 0.0
        %7589 = vmatpush1.msra.mxu0 %v7420
        %7590 = vmatprep.subr.mxu0 0.0
        %7591 = vmatpush1.msra.mxu0 %v7419
        %7592 = vmatprep.subr.mxu0 0.0
        %7593 = vmatpush1.msra.mxu0 %v7418
        %7594 = vmatprep.subr.mxu0 0.0
        %7595 = vmatpush1.msra.mxu0 %v7417
        %7596 = vmatprep.subr.mxu0 0.0
        %7597 = vmatpush1.msra.mxu0 %v7416
        %7598 = vmatprep.subr.mxu0 0.0
        %7599 = vmatpush1.msra.mxu0 %v7415
        %7600 = vmatprep.subr.mxu0 0.0
        %7601 = vmatpush1.msra.mxu0 %v7414
        %7602 = vmatprep.subr.mxu0 0.0
        %7603 = vmatpush1.msra.mxu0 %v7413
        %7604 = vmatprep.subr.mxu0 0.0
        %7605 = vmatpush1.msra.mxu0 %v7412
        %7606 = vmatprep.subr.mxu0 0.0
        %7607 = vmatpush1.msra.mxu0 %v7411
        %7608 = vmatprep.subr.mxu0 0.0
        %7609 = vmatpush1.msra.mxu0 %v7410
        %7610 = vmatprep.subr.mxu0 0.0
        %7611 = vmatpush1.msra.mxu0 %v7409
        %7612 = vmatprep.subr.mxu0 0.0
        %7613 = vmatpush1.msra.mxu0 %v7408
        %7614 = vmatprep.subr.mxu0 0.0
        %7615 = vmatpush1.msra.mxu0 %v7407
        %7616 = vmatprep.subr.mxu0 0.0
        %7617 = vmatpush2.msra.mxu0 %v7438
        %7618 = vmatprep.subr.mxu0 0.0
        %7619 = vmatpush2.msra.mxu0 %v7437
        %7620 = vmatprep.subr.mxu0 0.0
        %7621 = vmatpush2.msra.mxu0 %v7436
        %7622 = vmatprep.subr.mxu0 0.0
        %7623 = vmatpush2.msra.mxu0 %v7435
        %7624 = vmatprep.subr.mxu0 0.0
        %7625 = vmatpush2.msra.mxu0 %v7434
        %7626 = vmatprep.subr.mxu0 0.0
        %7627 = vmatpush2.msra.mxu0 %v7433
        %7628 = vmatprep.subr.mxu0 0.0
        %7629 = vmatpush2.msra.mxu0 %v7432
        %7630 = vmatprep.subr.mxu0 0.0
        %7631 = vmatpush2.msra.mxu0 %v7431
        %7632 = vmatprep.subr.mxu0 0.0
        %7633 = vmatpush2.msra.mxu0 %v7430
        %7634 = vmatprep.subr.mxu0 0.0
        %7635 = vmatpush2.msra.mxu0 %v7429
        %7636 = vmatprep.subr.mxu0 0.0
        %7637 = vmatpush2.msra.mxu0 %v7428
        %7638 = vmatprep.subr.mxu0 0.0
        %7639 = vmatpush2.msra.mxu0 %v7427
        %7640 = vmatprep.subr.mxu0 0.0
        %7641 = vmatpush2.msra.mxu0 %v7426
        %7642 = vmatprep.subr.mxu0 0.0
        %7643 = vmatpush2.msra.mxu0 %v7425
        %7644 = vmatprep.subr.mxu0 0.0
        %7645 = vmatpush2.msra.mxu0 %v7424
        %7646 = vmatprep.subr.mxu0 0.0
        %7647 = vmatpush2.msra.mxu0 %v7423
        %7648 = vmatprep.mubr.f32.mxu0 %v5029
        %7649 = vmatmul.mubr.f32.gmra.mxu0 %v5028
        %v7650 = vpop.f32.mrf.mxu0
        %v7651 = vadd.f32 %v7581, %v7650
        %v7652 = vpop.f32.mrf.mxu0
        %7653 = vdwg.mxu0
        %7654 = vmatprep.subr.mxu0 0.0
        %7655 = vmatpush1.msra.mxu0 0.0
        %7656 = vmatprep.subr.mxu0 0.0
        %7657 = vmatpush1.msra.mxu0 0.0
        %7658 = vmatprep.subr.mxu0 0.0
        %7659 = vmatpush1.msra.mxu0 0.0
        %7660 = vmatprep.subr.mxu0 0.0
        %7661 = vmatpush1.msra.mxu0 0.0
        %7662 = vmatprep.subr.mxu0 0.0
        %7663 = vmatpush1.msra.mxu0 0.0
        %7664 = vmatprep.subr.mxu0 0.0
        %7665 = vmatpush1.msra.mxu0 0.0
        %7666 = vmatprep.subr.mxu0 0.0
        %7667 = vmatpush1.msra.mxu0 0.0
        %7668 = vmatprep.subr.mxu0 0.0
        %7669 = vmatpush1.msra.mxu0 0.0
        %7670 = vmatprep.subr.mxu0 0.0
        %7671 = vmatpush1.msra.mxu0 0.0
        %7672 = vmatprep.subr.mxu0 0.0
        %7673 = vmatpush1.msra.mxu0 0.0
        %7674 = vmatprep.subr.mxu0 0.0
        %7675 = vmatpush1.msra.mxu0 0.0
        %7676 = vmatprep.subr.mxu0 0.0
        %7677 = vmatpush1.msra.mxu0 0.0
        %7678 = vmatprep.subr.mxu0 0.0
        %7679 = vmatpush1.msra.mxu0 0.0
        %7680 = vmatprep.subr.mxu0 0.0
        %7681 = vmatpush1.msra.mxu0 0.0
        %7682 = vmatprep.subr.mxu0 0.0
        %7683 = vmatpush1.msra.mxu0 %v7440
        %7684 = vmatprep.subr.mxu0 0.0
        %7685 = vmatpush1.msra.mxu0 %v7439
        %7686 = vmatprep.subr.mxu0 0.0
        %7687 = vmatpush2.msra.mxu0 0.0
        %7688 = vmatprep.subr.mxu0 0.0
        %7689 = vmatpush2.msra.mxu0 0.0
        %7690 = vmatprep.subr.mxu0 0.0
        %7691 = vmatpush2.msra.mxu0 0.0
        %7692 = vmatprep.subr.mxu0 0.0
        %7693 = vmatpush2.msra.mxu0 0.0
        %7694 = vmatprep.subr.mxu0 0.0
        %7695 = vmatpush2.msra.mxu0 0.0
        %7696 = vmatprep.subr.mxu0 0.0
        %7697 = vmatpush2.msra.mxu0 0.0
        %7698 = vmatprep.subr.mxu0 0.0
        %7699 = vmatpush2.msra.mxu0 0.0
        %7700 = vmatprep.subr.mxu0 0.0
        %7701 = vmatpush2.msra.mxu0 0.0
        %7702 = vmatprep.subr.mxu0 0.0
        %7703 = vmatpush2.msra.mxu0 0.0
        %7704 = vmatprep.subr.mxu0 0.0
        %7705 = vmatpush2.msra.mxu0 0.0
        %7706 = vmatprep.subr.mxu0 0.0
        %7707 = vmatpush2.msra.mxu0 0.0
        %7708 = vmatprep.subr.mxu0 0.0
        %7709 = vmatpush2.msra.mxu0 0.0
        %7710 = vmatprep.subr.mxu0 0.0
        %7711 = vmatpush2.msra.mxu0 0.0
        %7712 = vmatprep.subr.mxu0 0.0
        %7713 = vmatpush2.msra.mxu0 0.0
        %7714 = vmatprep.subr.mxu0 0.0
        %7715 = vmatpush2.msra.mxu0 0.0
        %7716 = vmatprep.subr.mxu0 0.0
        %7717 = vmatpush2.msra.mxu0 0.0
        %7718 = vmatprep.mubr.f32.mxu0 0.0
        %7719 = vmatmul.mubr.f32.gmra.mxu0 %v7442
        %v7720 = vpop.f32.mrf.mxu0
        %v7721 = vadd.f32 %v7651, %v7720
        %v7722 = vpop.f32.mrf.mxu0
        %7723 = vdwg.mxu0
        %v7724 = vadd.f32 %v7341, %v7721
        %s7725 = scalar_lea.vmem %s6, 5488
        %v7726 = vld [vmem:[%s7725] sm:$0xff]
        %v7727 = vld [vmem:[%s7725 + $0x8] sm:$0xff]
        %v7728 = vld [vmem:[%s7725 + $0x10] sm:$0xff]
        %v7729 = vld [vmem:[%s7725 + $0x18] sm:$0xff]
        %v7730 = vld [vmem:[%s7725 + $0x20] sm:$0xff]
        %v7731 = vld [vmem:[%s7725 + $0x28] sm:$0xff]
        %v7732 = vld [vmem:[%s7725 + $0x30] sm:$0xff]
        %v7733 = vld [vmem:[%s7725 + $0x38] sm:$0xff]
        %v7734 = vld [vmem:[%s7725 + $0x40] sm:$0xff]
        %v7735 = vld [vmem:[%s7725 + $0x48] sm:$0xff]
        %v7736 = vld [vmem:[%s7725 + $0x50] sm:$0xff]
        %v7737 = vld [vmem:[%s7725 + $0x58] sm:$0xff]
        %v7738 = vld [vmem:[%s7725 + $0x60] sm:$0xff]
        %v7739 = vld [vmem:[%s7725 + $0x68] sm:$0xff]
        %v7740 = vld [vmem:[%s7725 + $0x70] sm:$0xff]
        %v7741 = vld [vmem:[%s7725 + $0x78] sm:$0xff]
        %v7742 = vld [vmem:[%s7725 + $0x80] sm:$0xff]
        %v7743 = vld [vmem:[%s7725 + $0x88] sm:$0xff]
        %v7744 = vld [vmem:[%s7725 + $0x90] sm:$0xff]
        %v7745 = vld [vmem:[%s7725 + $0x98] sm:$0xff]
        %v7746 = vld [vmem:[%s7725 + $0xa0] sm:$0xff]
        %v7747 = vld [vmem:[%s7725 + $0xa8] sm:$0xff]
        %v7748 = vld [vmem:[%s7725 + $0xb0] sm:$0xff]
        %v7749 = vld [vmem:[%s7725 + $0xb8] sm:$0xff]
        %v7750 = vld [vmem:[%s7725 + $0xc0] sm:$0xff]
        %v7751 = vld [vmem:[%s7725 + $0xc8] sm:$0xff]
        %v7752 = vld [vmem:[%s7725 + $0xd0] sm:$0xff]
        %v7753 = vld [vmem:[%s7725 + $0xd8] sm:$0xff]
        %v7754 = vld [vmem:[%s7725 + $0xe0] sm:$0xff]
        %v7755 = vld [vmem:[%s7725 + $0xe8] sm:$0xff]
        %v7756 = vld [vmem:[%s7725 + $0xf0] sm:$0xff]
        %v7757 = vld [vmem:[%s7725 + $0xf8] sm:$0xff]
        %v7758 = vld [vmem:[%s7725 + $0x100] sm:$0xff]
        %v7759 = vld [vmem:[%s7725 + $0x108] sm:$0xff]
        %v7760 = vld [vmem:[%s7725 + $0x110] sm:$0xff]
        %v7761 = vld [vmem:[%s7725 + $0x118] sm:$0xff]
        %v7762 = vld [vmem:[%s7725 + $0x120] sm:$0xff]
        %v7763 = vld [vmem:[%s7725 + $0x128] sm:$0xff]
        %v7764 = vld [vmem:[%s7725 + $0x130] sm:$0xff]
        %v7765 = vld [vmem:[%s7725 + $0x138] sm:$0xff]
        %v7766 = vld [vmem:[%s7725 + $0x140] sm:$0xff]
        %v7767 = vld [vmem:[%s7725 + $0x148] sm:$0xff]
        %v7768 = vld [vmem:[%s7725 + $0x150] sm:$0xff]
        %v7769 = vld [vmem:[%s7725 + $0x158] sm:$0xff]
        %v7770 = vld [vmem:[%s7725 + $0x160] sm:$0xff]
        %v7771 = vld [vmem:[%s7725 + $0x168] sm:$0xff]
        %v7772 = vld [vmem:[%s7725 + $0x170] sm:$0xff]
        %v7773 = vld [vmem:[%s7725 + $0x178] sm:$0xff]
        %v7774 = vld [vmem:[%s7725 + $0x180] sm:$0xff]
        %v7775 = vld [vmem:[%s7725 + $0x188] sm:$0xff]
        %v7776 = vld [vmem:[%s7725 + $0x190] sm:$0xff]
        %v7777 = vld [vmem:[%s7725 + $0x198] sm:$0xff]
        %v7778 = vld [vmem:[%s7725 + $0x1a0] sm:$0xff]
        %v7779 = vld [vmem:[%s7725 + $0x1a8] sm:$0xff]
        %v7780 = vld [vmem:[%s7725 + $0x1b0] sm:$0xff]
        %v7781 = vld [vmem:[%s7725 + $0x1b8] sm:$0xff]
        %v7782 = vld [vmem:[%s7725 + $0x1c0] sm:$0xff]
        %v7783 = vld [vmem:[%s7725 + $0x1c8] sm:$0xff]
        %v7784 = vld [vmem:[%s7725 + $0x1d0] sm:$0xff]
        %v7785 = vld [vmem:[%s7725 + $0x1d8] sm:$0xff]
        %v7786 = vld [vmem:[%s7725 + $0x1e0] sm:$0xff]
        %v7787 = vld [vmem:[%s7725 + $0x1e8] sm:$0xff]
        %v7788 = vld [vmem:[%s7725 + $0x1f0] sm:$0xff]
        %v7789 = vld [vmem:[%s7725 + $0x1f8] sm:$0xff]
        %v7790 = vld [vmem:[%s7725 + $0x200] sm:$0xff]
        %v7791 = vld [vmem:[%s7725 + $0x208] sm:$0xff]
        %v7792 = vld [vmem:[%s7725 + $0x210] sm:$0xff]
        %v7793 = vld [vmem:[%s7725 + $0x218] sm:$0xff]
        %v7794 = vld [vmem:[%s7725 + $0x220] sm:$0xff]
        %v7795 = vld [vmem:[%s7725 + $0x228] sm:$0xff]
        %v7796 = vld [vmem:[%s7725 + $0x230] sm:$0xff]
        %v7797 = vld [vmem:[%s7725 + $0x238] sm:$0xff]
        %v7798 = vld [vmem:[%s7725 + $0x240] sm:$0xff]
        %v7799 = vld [vmem:[%s7725 + $0x248] sm:$0xff]
        %v7800 = vld [vmem:[%s7725 + $0x250] sm:$0xff]
        %v7801 = vld [vmem:[%s7725 + $0x258] sm:$0xff]
        %v7802 = vld [vmem:[%s7725 + $0x260] sm:$0xff]
        %v7803 = vld [vmem:[%s7725 + $0x268] sm:$0xff]
        %v7804 = vld [vmem:[%s7725 + $0x270] sm:$0xff]
        %v7805 = vld [vmem:[%s7725 + $0x278] sm:$0xff]
        %v7806 = vld [vmem:[%s7725 + $0x280] sm:$0xff]
        %v7807 = vld [vmem:[%s7725 + $0x288] sm:$0xff]
        %v7808 = vld [vmem:[%s7725 + $0x290] sm:$0xff]
        %v7809 = vld [vmem:[%s7725 + $0x298] sm:$0xff]
        %v7810 = vld [vmem:[%s7725 + $0x2a0] sm:$0xff]
        %v7811 = vld [vmem:[%s7725 + $0x2a8] sm:$0xff]
        %v7812 = vld [vmem:[%s7725 + $0x2b0] sm:$0xff]
        %v7813 = vld [vmem:[%s7725 + $0x2b8] sm:$0xff]
        %v7814 = vld [vmem:[%s7725 + $0x2c0] sm:$0xff]
        %v7815 = vld [vmem:[%s7725 + $0x2c8] sm:$0xff]
        %v7816 = vld [vmem:[%s7725 + $0x2d0] sm:$0xff]
        %v7817 = vld [vmem:[%s7725 + $0x2d8] sm:$0xff]
        %v7818 = vld [vmem:[%s7725 + $0x2e0] sm:$0xff]
        %v7819 = vld [vmem:[%s7725 + $0x2e8] sm:$0xff]
        %v7820 = vld [vmem:[%s7725 + $0x2f0] sm:$0xff]
        %v7821 = vld [vmem:[%s7725 + $0x2f8] sm:$0xff]
        %v7822 = vld [vmem:[%s7725 + $0x300] sm:$0xff]
        %v7823 = vld [vmem:[%s7725 + $0x308] sm:$0xff]
        %v7825 = vsel %vm549, %v5037, 0
        %7827 = vmatprep.subr.mxu0 0.0
        %7828 = vmatpush1.msra.mxu0 %v7741
        %7829 = vmatprep.subr.mxu0 0.0
        %7830 = vmatpush1.msra.mxu0 %v7740
        %7831 = vmatprep.subr.mxu0 0.0
        %7832 = vmatpush1.msra.mxu0 %v7739
        %7833 = vmatprep.subr.mxu0 0.0
        %7834 = vmatpush1.msra.mxu0 %v7738
        %7835 = vmatprep.subr.mxu0 0.0
        %7836 = vmatpush1.msra.mxu0 %v7737
        %7837 = vmatprep.subr.mxu0 0.0
        %7838 = vmatpush1.msra.mxu0 %v7736
        %7839 = vmatprep.subr.mxu0 0.0
        %7840 = vmatpush1.msra.mxu0 %v7735
        %7841 = vmatprep.subr.mxu0 0.0
        %7842 = vmatpush1.msra.mxu0 %v7734
        %7843 = vmatprep.subr.mxu0 0.0
        %7844 = vmatpush1.msra.mxu0 %v7733
        %7845 = vmatprep.subr.mxu0 0.0
        %7846 = vmatpush1.msra.mxu0 %v7732
        %7847 = vmatprep.subr.mxu0 0.0
        %7848 = vmatpush1.msra.mxu0 %v7731
        %7849 = vmatprep.subr.mxu0 0.0
        %7850 = vmatpush1.msra.mxu0 %v7730
        %7851 = vmatprep.subr.mxu0 0.0
        %7852 = vmatpush1.msra.mxu0 %v7729
        %7853 = vmatprep.subr.mxu0 0.0
        %7854 = vmatpush1.msra.mxu0 %v7728
        %7855 = vmatprep.subr.mxu0 0.0
        %7856 = vmatpush1.msra.mxu0 %v7727
        %7857 = vmatprep.subr.mxu0 0.0
        %7858 = vmatpush1.msra.mxu0 %v7726
        %7859 = vmatprep.subr.mxu0 0.0
        %7860 = vmatpush2.msra.mxu0 %v7757
        %7861 = vmatprep.subr.mxu0 0.0
        %7862 = vmatpush2.msra.mxu0 %v7756
        %7863 = vmatprep.subr.mxu0 0.0
        %7864 = vmatpush2.msra.mxu0 %v7755
        %7865 = vmatprep.subr.mxu0 0.0
        %7866 = vmatpush2.msra.mxu0 %v7754
        %7867 = vmatprep.subr.mxu0 0.0
        %7868 = vmatpush2.msra.mxu0 %v7753
        %7869 = vmatprep.subr.mxu0 0.0
        %7870 = vmatpush2.msra.mxu0 %v7752
        %7871 = vmatprep.subr.mxu0 0.0
        %7872 = vmatpush2.msra.mxu0 %v7751
        %7873 = vmatprep.subr.mxu0 0.0
        %7874 = vmatpush2.msra.mxu0 %v7750
        %7875 = vmatprep.subr.mxu0 0.0
        %7876 = vmatpush2.msra.mxu0 %v7749
        %7877 = vmatprep.subr.mxu0 0.0
        %7878 = vmatpush2.msra.mxu0 %v7748
        %7879 = vmatprep.subr.mxu0 0.0
        %7880 = vmatpush2.msra.mxu0 %v7747
        %7881 = vmatprep.subr.mxu0 0.0
        %7882 = vmatpush2.msra.mxu0 %v7746
        %7883 = vmatprep.subr.mxu0 0.0
        %7884 = vmatpush2.msra.mxu0 %v7745
        %7885 = vmatprep.subr.mxu0 0.0
        %7886 = vmatpush2.msra.mxu0 %v7744
        %7887 = vmatprep.subr.mxu0 0.0
        %7888 = vmatpush2.msra.mxu0 %v7743
        %7889 = vmatprep.subr.mxu0 0.0
        %7890 = vmatpush2.msra.mxu0 %v7742
        %7891 = vmatprep.mubr.f32.mxu0 %v5032
        %7892 = vmatmul.mubr.f32.gmra.mxu0 %v5031
        %v7893 = vpop.f32.mrf.mxu0
        %v7894 = vadd.f32 0.0, %v7893
        %v7895 = vpop.f32.mrf.mxu0
        %7896 = vdwg.mxu0
        %7897 = vmatprep.subr.mxu0 0.0
        %7898 = vmatpush1.msra.mxu0 %v7773
        %7899 = vmatprep.subr.mxu0 0.0
        %7900 = vmatpush1.msra.mxu0 %v7772
        %7901 = vmatprep.subr.mxu0 0.0
        %7902 = vmatpush1.msra.mxu0 %v7771
        %7903 = vmatprep.subr.mxu0 0.0
        %7904 = vmatpush1.msra.mxu0 %v7770
        %7905 = vmatprep.subr.mxu0 0.0
        %7906 = vmatpush1.msra.mxu0 %v7769
        %7907 = vmatprep.subr.mxu0 0.0
        %7908 = vmatpush1.msra.mxu0 %v7768
        %7909 = vmatprep.subr.mxu0 0.0
        %7910 = vmatpush1.msra.mxu0 %v7767
        %7911 = vmatprep.subr.mxu0 0.0
        %7912 = vmatpush1.msra.mxu0 %v7766
        %7913 = vmatprep.subr.mxu0 0.0
        %7914 = vmatpush1.msra.mxu0 %v7765
        %7915 = vmatprep.subr.mxu0 0.0
        %7916 = vmatpush1.msra.mxu0 %v7764
        %7917 = vmatprep.subr.mxu0 0.0
        %7918 = vmatpush1.msra.mxu0 %v7763
        %7919 = vmatprep.subr.mxu0 0.0
        %7920 = vmatpush1.msra.mxu0 %v7762
        %7921 = vmatprep.subr.mxu0 0.0
        %7922 = vmatpush1.msra.mxu0 %v7761
        %7923 = vmatprep.subr.mxu0 0.0
        %7924 = vmatpush1.msra.mxu0 %v7760
        %7925 = vmatprep.subr.mxu0 0.0
        %7926 = vmatpush1.msra.mxu0 %v7759
        %7927 = vmatprep.subr.mxu0 0.0
        %7928 = vmatpush1.msra.mxu0 %v7758
        %7929 = vmatprep.subr.mxu0 0.0
        %7930 = vmatpush2.msra.mxu0 %v7789
        %7931 = vmatprep.subr.mxu0 0.0
        %7932 = vmatpush2.msra.mxu0 %v7788
        %7933 = vmatprep.subr.mxu0 0.0
        %7934 = vmatpush2.msra.mxu0 %v7787
        %7935 = vmatprep.subr.mxu0 0.0
        %7936 = vmatpush2.msra.mxu0 %v7786
        %7937 = vmatprep.subr.mxu0 0.0
        %7938 = vmatpush2.msra.mxu0 %v7785
        %7939 = vmatprep.subr.mxu0 0.0
        %7940 = vmatpush2.msra.mxu0 %v7784
        %7941 = vmatprep.subr.mxu0 0.0
        %7942 = vmatpush2.msra.mxu0 %v7783
        %7943 = vmatprep.subr.mxu0 0.0
        %7944 = vmatpush2.msra.mxu0 %v7782
        %7945 = vmatprep.subr.mxu0 0.0
        %7946 = vmatpush2.msra.mxu0 %v7781
        %7947 = vmatprep.subr.mxu0 0.0
        %7948 = vmatpush2.msra.mxu0 %v7780
        %7949 = vmatprep.subr.mxu0 0.0
        %7950 = vmatpush2.msra.mxu0 %v7779
        %7951 = vmatprep.subr.mxu0 0.0
        %7952 = vmatpush2.msra.mxu0 %v7778
        %7953 = vmatprep.subr.mxu0 0.0
        %7954 = vmatpush2.msra.mxu0 %v7777
        %7955 = vmatprep.subr.mxu0 0.0
        %7956 = vmatpush2.msra.mxu0 %v7776
        %7957 = vmatprep.subr.mxu0 0.0
        %7958 = vmatpush2.msra.mxu0 %v7775
        %7959 = vmatprep.subr.mxu0 0.0
        %7960 = vmatpush2.msra.mxu0 %v7774
        %7961 = vmatprep.mubr.f32.mxu0 %v5034
        %7962 = vmatmul.mubr.f32.gmra.mxu0 %v5033
        %v7963 = vpop.f32.mrf.mxu0
        %v7964 = vadd.f32 %v7894, %v7963
        %v7965 = vpop.f32.mrf.mxu0
        %7966 = vdwg.mxu0
        %7967 = vmatprep.subr.mxu0 0.0
        %7968 = vmatpush1.msra.mxu0 %v7805
        %7969 = vmatprep.subr.mxu0 0.0
        %7970 = vmatpush1.msra.mxu0 %v7804
        %7971 = vmatprep.subr.mxu0 0.0
        %7972 = vmatpush1.msra.mxu0 %v7803
        %7973 = vmatprep.subr.mxu0 0.0
        %7974 = vmatpush1.msra.mxu0 %v7802
        %7975 = vmatprep.subr.mxu0 0.0
        %7976 = vmatpush1.msra.mxu0 %v7801
        %7977 = vmatprep.subr.mxu0 0.0
        %7978 = vmatpush1.msra.mxu0 %v7800
        %7979 = vmatprep.subr.mxu0 0.0
        %7980 = vmatpush1.msra.mxu0 %v7799
        %7981 = vmatprep.subr.mxu0 0.0
        %7982 = vmatpush1.msra.mxu0 %v7798
        %7983 = vmatprep.subr.mxu0 0.0
        %7984 = vmatpush1.msra.mxu0 %v7797
        %7985 = vmatprep.subr.mxu0 0.0
        %7986 = vmatpush1.msra.mxu0 %v7796
        %7987 = vmatprep.subr.mxu0 0.0
        %7988 = vmatpush1.msra.mxu0 %v7795
        %7989 = vmatprep.subr.mxu0 0.0
        %7990 = vmatpush1.msra.mxu0 %v7794
        %7991 = vmatprep.subr.mxu0 0.0
        %7992 = vmatpush1.msra.mxu0 %v7793
        %7993 = vmatprep.subr.mxu0 0.0
        %7994 = vmatpush1.msra.mxu0 %v7792
        %7995 = vmatprep.subr.mxu0 0.0
        %7996 = vmatpush1.msra.mxu0 %v7791
        %7997 = vmatprep.subr.mxu0 0.0
        %7998 = vmatpush1.msra.mxu0 %v7790
        %7999 = vmatprep.subr.mxu0 0.0
        %8000 = vmatpush2.msra.mxu0 %v7821
        %8001 = vmatprep.subr.mxu0 0.0
        %8002 = vmatpush2.msra.mxu0 %v7820
        %8003 = vmatprep.subr.mxu0 0.0
        %8004 = vmatpush2.msra.mxu0 %v7819
        %8005 = vmatprep.subr.mxu0 0.0
        %8006 = vmatpush2.msra.mxu0 %v7818
        %8007 = vmatprep.subr.mxu0 0.0
        %8008 = vmatpush2.msra.mxu0 %v7817
        %8009 = vmatprep.subr.mxu0 0.0
        %8010 = vmatpush2.msra.mxu0 %v7816
        %8011 = vmatprep.subr.mxu0 0.0
        %8012 = vmatpush2.msra.mxu0 %v7815
        %8013 = vmatprep.subr.mxu0 0.0
        %8014 = vmatpush2.msra.mxu0 %v7814
        %8015 = vmatprep.subr.mxu0 0.0
        %8016 = vmatpush2.msra.mxu0 %v7813
        %8017 = vmatprep.subr.mxu0 0.0
        %8018 = vmatpush2.msra.mxu0 %v7812
        %8019 = vmatprep.subr.mxu0 0.0
        %8020 = vmatpush2.msra.mxu0 %v7811
        %8021 = vmatprep.subr.mxu0 0.0
        %8022 = vmatpush2.msra.mxu0 %v7810
        %8023 = vmatprep.subr.mxu0 0.0
        %8024 = vmatpush2.msra.mxu0 %v7809
        %8025 = vmatprep.subr.mxu0 0.0
        %8026 = vmatpush2.msra.mxu0 %v7808
        %8027 = vmatprep.subr.mxu0 0.0
        %8028 = vmatpush2.msra.mxu0 %v7807
        %8029 = vmatprep.subr.mxu0 0.0
        %8030 = vmatpush2.msra.mxu0 %v7806
        %8031 = vmatprep.mubr.f32.mxu0 %v5036
        %8032 = vmatmul.mubr.f32.gmra.mxu0 %v5035
        %v8033 = vpop.f32.mrf.mxu0
        %v8034 = vadd.f32 %v7964, %v8033
        %v8035 = vpop.f32.mrf.mxu0
        %8036 = vdwg.mxu0
        %8037 = vmatprep.subr.mxu0 0.0
        %8038 = vmatpush1.msra.mxu0 0.0
        %8039 = vmatprep.subr.mxu0 0.0
        %8040 = vmatpush1.msra.mxu0 0.0
        %8041 = vmatprep.subr.mxu0 0.0
        %8042 = vmatpush1.msra.mxu0 0.0
        %8043 = vmatprep.subr.mxu0 0.0
        %8044 = vmatpush1.msra.mxu0 0.0
        %8045 = vmatprep.subr.mxu0 0.0
        %8046 = vmatpush1.msra.mxu0 0.0
        %8047 = vmatprep.subr.mxu0 0.0
        %8048 = vmatpush1.msra.mxu0 0.0
        %8049 = vmatprep.subr.mxu0 0.0
        %8050 = vmatpush1.msra.mxu0 0.0
        %8051 = vmatprep.subr.mxu0 0.0
        %8052 = vmatpush1.msra.mxu0 0.0
        %8053 = vmatprep.subr.mxu0 0.0
        %8054 = vmatpush1.msra.mxu0 0.0
        %8055 = vmatprep.subr.mxu0 0.0
        %8056 = vmatpush1.msra.mxu0 0.0
        %8057 = vmatprep.subr.mxu0 0.0
        %8058 = vmatpush1.msra.mxu0 0.0
        %8059 = vmatprep.subr.mxu0 0.0
        %8060 = vmatpush1.msra.mxu0 0.0
        %8061 = vmatprep.subr.mxu0 0.0
        %8062 = vmatpush1.msra.mxu0 0.0
        %8063 = vmatprep.subr.mxu0 0.0
        %8064 = vmatpush1.msra.mxu0 0.0
        %8065 = vmatprep.subr.mxu0 0.0
        %8066 = vmatpush1.msra.mxu0 %v7823
        %8067 = vmatprep.subr.mxu0 0.0
        %8068 = vmatpush1.msra.mxu0 %v7822
        %8069 = vmatprep.subr.mxu0 0.0
        %8070 = vmatpush2.msra.mxu0 0.0
        %8071 = vmatprep.subr.mxu0 0.0
        %8072 = vmatpush2.msra.mxu0 0.0
        %8073 = vmatprep.subr.mxu0 0.0
        %8074 = vmatpush2.msra.mxu0 0.0
        %8075 = vmatprep.subr.mxu0 0.0
        %8076 = vmatpush2.msra.mxu0 0.0
        %8077 = vmatprep.subr.mxu0 0.0
        %8078 = vmatpush2.msra.mxu0 0.0
        %8079 = vmatprep.subr.mxu0 0.0
        %8080 = vmatpush2.msra.mxu0 0.0
        %8081 = vmatprep.subr.mxu0 0.0
        %8082 = vmatpush2.msra.mxu0 0.0
        %8083 = vmatprep.subr.mxu0 0.0
        %8084 = vmatpush2.msra.mxu0 0.0
        %8085 = vmatprep.subr.mxu0 0.0
        %8086 = vmatpush2.msra.mxu0 0.0
        %8087 = vmatprep.subr.mxu0 0.0
        %8088 = vmatpush2.msra.mxu0 0.0
        %8089 = vmatprep.subr.mxu0 0.0
        %8090 = vmatpush2.msra.mxu0 0.0
        %8091 = vmatprep.subr.mxu0 0.0
        %8092 = vmatpush2.msra.mxu0 0.0
        %8093 = vmatprep.subr.mxu0 0.0
        %8094 = vmatpush2.msra.mxu0 0.0
        %8095 = vmatprep.subr.mxu0 0.0
        %8096 = vmatpush2.msra.mxu0 0.0
        %8097 = vmatprep.subr.mxu0 0.0
        %8098 = vmatpush2.msra.mxu0 0.0
        %8099 = vmatprep.subr.mxu0 0.0
        %8100 = vmatpush2.msra.mxu0 0.0
        %8101 = vmatprep.mubr.f32.mxu0 0.0
        %8102 = vmatmul.mubr.f32.gmra.mxu0 %v7825
        %v8103 = vpop.f32.mrf.mxu0
        %v8104 = vadd.f32 %v8034, %v8103
        %v8105 = vpop.f32.mrf.mxu0
        %8106 = vdwg.mxu0
        %v8107 = vadd.f32 %v7724, %v8104
        %v8108 = vmax.f32 %v8107, 0.0
        %v8109 = vld [vmem:[%s8] sm:$0xff]
        %v8110 = vld [vmem:[%s8 + $0x8] sm:$0xff]
        %v8111 = vld [vmem:[%s8 + $0x10] sm:$0xff]
        %v8112 = vld [vmem:[%s8 + $0x18] sm:$0xff]
        %v8113 = vld [vmem:[%s9] sm:$0x1]
        %v8115 = vlaneseq
        %v8116 = vshrl.u32 %v8115, 7
        %v8117 = vsub.s32 0, %v8116
        %v8118 = vrot.slane %v8113, %v8117
        %v8121 = vsel %vm358, %v8108, 0
        %8123 = vmatprep.subr.mxu0 0.0
        %8124 = vmatpush1.msra.mxu0 0.0
        %8125 = vmatprep.subr.mxu0 0.0
        %8126 = vmatpush1.msra.mxu0 0.0
        %8127 = vmatprep.subr.mxu0 0.0
        %8128 = vmatpush1.msra.mxu0 0.0
        %8129 = vmatprep.subr.mxu0 0.0
        %8130 = vmatpush1.msra.mxu0 0.0
        %8131 = vmatprep.subr.mxu0 0.0
        %8132 = vmatpush1.msra.mxu0 0.0
        %8133 = vmatprep.subr.mxu0 0.0
        %8134 = vmatpush1.msra.mxu0 0.0
        %8135 = vmatprep.subr.mxu0 0.0
        %8136 = vmatpush1.msra.mxu0 0.0
        %8137 = vmatprep.subr.mxu0 0.0
        %8138 = vmatpush1.msra.mxu0 0.0
        %8139 = vmatprep.subr.mxu0 0.0
        %8140 = vmatpush1.msra.mxu0 0.0
        %8141 = vmatprep.subr.mxu0 0.0
        %8142 = vmatpush1.msra.mxu0 0.0
        %8143 = vmatprep.subr.mxu0 0.0
        %8144 = vmatpush1.msra.mxu0 0.0
        %8145 = vmatprep.subr.mxu0 0.0
        %8146 = vmatpush1.msra.mxu0 0.0
        %8147 = vmatprep.subr.mxu0 0.0
        %8148 = vmatpush1.msra.mxu0 %v8112
        %8149 = vmatprep.subr.mxu0 0.0
        %8150 = vmatpush1.msra.mxu0 %v8111
        %8151 = vmatprep.subr.mxu0 0.0
        %8152 = vmatpush1.msra.mxu0 %v8110
        %8153 = vmatprep.subr.mxu0 0.0
        %8154 = vmatpush1.msra.mxu0 %v8109
        %8155 = vmatprep.subr.mxu0 0.0
        %8156 = vmatpush2.msra.mxu0 0.0
        %8157 = vmatprep.subr.mxu0 0.0
        %8158 = vmatpush2.msra.mxu0 0.0
        %8159 = vmatprep.subr.mxu0 0.0
        %8160 = vmatpush2.msra.mxu0 0.0
        %8161 = vmatprep.subr.mxu0 0.0
        %8162 = vmatpush2.msra.mxu0 0.0
        %8163 = vmatprep.subr.mxu0 0.0
        %8164 = vmatpush2.msra.mxu0 0.0
        %8165 = vmatprep.subr.mxu0 0.0
        %8166 = vmatpush2.msra.mxu0 0.0
        %8167 = vmatprep.subr.mxu0 0.0
        %8168 = vmatpush2.msra.mxu0 0.0
        %8169 = vmatprep.subr.mxu0 0.0
        %8170 = vmatpush2.msra.mxu0 0.0
        %8171 = vmatprep.subr.mxu0 0.0
        %8172 = vmatpush2.msra.mxu0 0.0
        %8173 = vmatprep.subr.mxu0 0.0
        %8174 = vmatpush2.msra.mxu0 0.0
        %8175 = vmatprep.subr.mxu0 0.0
        %8176 = vmatpush2.msra.mxu0 0.0
        %8177 = vmatprep.subr.mxu0 0.0
        %8178 = vmatpush2.msra.mxu0 0.0
        %8179 = vmatprep.subr.mxu0 0.0
        %8180 = vmatpush2.msra.mxu0 0.0
        %8181 = vmatprep.subr.mxu0 0.0
        %8182 = vmatpush2.msra.mxu0 0.0
        %8183 = vmatprep.subr.mxu0 0.0
        %8184 = vmatpush2.msra.mxu0 0.0
        %8185 = vmatprep.subr.mxu0 0.0
        %8186 = vmatpush2.msra.mxu0 0.0
        %8187 = vmatprep.mubr.f32.mxu0 0.0
        %8188 = vmatmul.mubr.f32.gmra.mxu0 %v8121
        %v8189 = vpop.f32.mrf.mxu0
        %v8190 = vadd.f32 %v8118, %v8189
        %v8191 = vpop.f32.mrf.mxu0
        %8192 = vdwg.mxu0
        %8193 = vst [vmem:[%s352] sm:$0xff] %v8190
        %s8194 = sand.u32 %s247, 1
        %s8195 = scalar_lea.sflag [#allocation8], %s8194
        %s8196 = sand.u32 %s247, 1
        %s8197 = smul.addr %s8196, 8
        %s8198 = scalar_lea.vmem [#allocation7], %s8197
        // Predicated region
        $region61: #{my_cnn_forward.1} parent=59 // pred_check
          %p8199 = pneg %p257
        $region62: #{my_cnn_forward.1} parent=59 // pred_check_branch
          %8201 = sbr.rel (%p8199) target = $region64
        $region63: #{my_cnn_forward.1} parent=59 // pred_region
          %s8203 = ssub.s32 128, 128
          %8204 = vsyncadd %s8195, %s8203
          %s8205 = smul.addr %s24, 128
          %s8206 = scalar_lea.hbm %s10, %s8205
          %s8208 = sshll.u32 %s8198, 4
          %s8209 = int_to_ptr.vmem [resolvable:$true] %s8208
          %8211 = dma.vmem_to_hbm [thread:$0]  %s8209, 128, %s8206, %s8195
        $region64: #{my_cnn_forward.1} parent=59 // pred_fallthru
          _
      $region60: #{my_cnn_forward.1} parent=5 // pred_fallthru
        _
      %p8212 = scmp.le.s32.totalorder 2, %s19
      // Predicated region
      $region65: #{my_cnn_forward.1} parent=5 // pred_check
        %p8213 = pneg %p8212
      $region66: #{my_cnn_forward.1} parent=5 // pred_check_branch
        %8215 = sbr.rel (%p8213) target = $region68
      $region67: #{my_cnn_forward.1} parent=5 // pred_region
        %s8216 = ssub.s32 %s19, 2
        // Predicated region
        $region69: #{my_cnn_forward.1} parent=67 // pred_check
          %p8217 = pneg %p263
        $region70: #{my_cnn_forward.1} parent=67 // pred_check_branch
          %8219 = sbr.rel (%p8217) target = $region72
        $region71: #{my_cnn_forward.1} parent=67 // pred_region
          %s8220 = sand.u32 %s248, 1
          %s8221 = scalar_lea.sflag [#allocation8], %s8220
          %s8222 = sand.u32 %s248, 1
          %s8223 = smul.addr %s8222, 8
          %s8224 = scalar_lea.vmem [#allocation7], %s8223
          %8225 = dma.done %s8221, 128
        $region72: #{my_cnn_forward.1} parent=67 // pred_fallthru
          _
      $region68: #{my_cnn_forward.1} parent=5 // pred_fallthru
        _
    $region6: #{my_cnn_forward.1} parent=1 // loop_footer
      %s23 = sadd.s32 1, %s19
    $region7: #{my_cnn_forward.1} parent=1 // loop_footer_branch
      %18 = sbr.rel target = $region3
    $region8: #{my_cnn_forward.1} parent=1 // loop_exit
      _
    %8226 = vsyncpa [#allocation8], 1
    %s8227 = scalar_lea.sflag [#allocation8], 1
    %8228 = vsyncpa %s8227, 1

</llo_original>
